<compile_context>
chip_gen: v5e
topology: v5e:2x2
jax: 0.10.0
libtpu: 0.0.40
codegen_flags: <defaults>
</compile_context>

<pallas_src>
import functools

import jax
import jax.numpy as jnp
from jax.experimental import pallas as pl
from jax.experimental.pallas import tpu as pltpu


_IH = 32                   # input spatial size (32x32, implied by fc1 = 16*5*5)
_S = _IH * _IH             # flat lane extent of one image (index = 32*y + x)

# Per-image flat-lane extents of each stage's (strided, uncompacted) map.
_L1 = 27 * 32 + 27 + 1     # conv1 outputs, (y, x) in [0, 28)           -> 892
_LP1 = _L1 - 33            # pool1 outputs at anchors, stride (64, 2)   -> 859
_L2 = 9 * 64 + 9 * 2 + 1   # conv2 outputs, (y2, x2) in [0, 10)         -> 595
_LP2 = _L2 - 66            # pool2 outputs at anchors, stride (128, 4)  -> 529


# ------------------------- fused forward kernel ---------------------------

def _fused_kernel(x_ref, w1_ref, b1_ref, w2_ref, b2_ref,
                  f1_ref, fb1_ref, f2_ref, fb2_ref, f3_ref, fb3_ref,
                  o_ref, a1_s, p1_s, a2_s, p2_s):
    """One image per grid step: conv1+relu+pool1+conv2+relu+pool2+fc1+fc2+fc3."""
    # ---- conv1: 25 accumulated per-tap matmuls (no im2col, no scratch stores)
    a1 = None
    for t in range(25):                          # t = i*5 + j, tap offset 32i+j
        i, j = divmod(t, 5)
        d = 32 * i + j
        c = jnp.dot(w1_ref[:, 8 * t:8 * t + 8],          # (8, 8)  bf16 (out, in)
                    x_ref[0, :, d:d + _L1],              # (8, L1) bf16
                    preferred_element_type=jnp.float32)
        a1 = c if a1 is None else a1 + c
    a1_s[...] = jnp.maximum(a1 + b1_ref[...], 0.0)       # (8, L1) f32, pad rows 0

    # ---- maxpool1 (2x2/2): window offsets {0,1,32,33}; stored bf16 for conv2
    p1_s[...] = jnp.maximum(
        jnp.maximum(a1_s[:, 0:_LP1], a1_s[:, 1:1 + _LP1]),
        jnp.maximum(a1_s[:, 32:32 + _LP1], a1_s[:, 33:33 + _LP1]),
    ).astype(jnp.bfloat16)                               # (8, LP1)

    # ---- conv2 over the strided (uncompacted) pooled map: taps 64i + 2j ------
    a2 = None
    for t in range(25):
        i, j = divmod(t, 5)
        d = 64 * i + 2 * j
        c = jnp.dot(w2_ref[:, 8 * t:8 * t + 8],          # (16, 8) bf16
                    p1_s[:, d:d + _L2],                  # (8, L2) bf16
                    preferred_element_type=jnp.float32)
        a2 = c if a2 is None else a2 + c
    a2_s[...] = jnp.maximum(a2 + b2_ref[...], 0.0)       # (16, L2) f32

    # ---- maxpool2: window offsets {0, 2, 64, 66} -----------------------------
    p2_s[...] = jnp.maximum(
        jnp.maximum(a2_s[:, 0:_LP2], a2_s[:, 2:2 + _LP2]),
        jnp.maximum(a2_s[:, 64:64 + _LP2], a2_s[:, 66:66 + _LP2]),
    ).astype(jnp.bfloat16)                               # (16, LP2)

    # ---- flatten + fc1: 25 accumulated (120,16)@(16,1) per-tap matmuls -------
    # (torch's c*25 + v*5 + u flatten order is absorbed into fc1's pre-permuted
    #  column blocks, so the gather here is tap-major and store-free)
    h1 = None
    for t in range(25):                                  # t = v*5 + u
        v, u = divmod(t, 5)
        a = 128 * v + 4 * u
        c = jnp.dot(f1_ref[:, 16 * t:16 * t + 16],       # (120, 16) bf16
                    p2_s[:, a:a + 1],                    # (16, 1)   bf16
                    preferred_element_type=jnp.float32)
        h1 = c if h1 is None else h1 + c
    h1 = jnp.maximum(h1 + fb1_ref[...], 0.0)             # (120, 1) f32

    # ---- fc2 / fc3, kept (features, 1) ---------------------------------------
    h2 = jnp.dot(f2_ref[...], h1.astype(jnp.bfloat16),
                 preferred_element_type=jnp.float32)
    h2 = jnp.maximum(h2 + fb2_ref[...], 0.0)             # (84, 1)
    h3 = jnp.dot(f3_ref[...], h2.astype(jnp.bfloat16),
                 preferred_element_type=jnp.float32) + fb3_ref[...]   # (10, 1)
    o_ref[0] = h3


@functools.lru_cache(maxsize=None)
def _build_fused(B):
    vmem = pl.BlockSpec(memory_space=pltpu.MemorySpace.VMEM)
    return pl.pallas_call(
        _fused_kernel,
        out_shape=jax.ShapeDtypeStruct((B, 10, 1), jnp.float32),
        grid=(B,),
        in_specs=[pl.BlockSpec((1, 8, _S), lambda b: (b, 0, 0))] + [vmem] * 10,
        out_specs=pl.BlockSpec((1, 10, 1), lambda b: (b, 0, 0)),
        scratch_shapes=[
            pltpu.VMEM((8, _L1), jnp.float32),      # conv1 + relu
            pltpu.VMEM((8, _LP1), jnp.bfloat16),    # pool1
            pltpu.VMEM((16, _L2), jnp.float32),     # conv2 + relu
            pltpu.VMEM((16, _LP2), jnp.bfloat16),   # pool2
        ],
        compiler_params=pltpu.CompilerParams(
            dimension_semantics=("parallel",)),     # v7x: split batch over cores
    )


# --------------------------- parameter handling ----------------------------

def init_params(key):
    """PyTorch-default-like uniform(-1/sqrt(fan_in), 1/sqrt(fan_in)) init."""
    def uniform(k, shape, fan_in):
        bound = 1.0 / (fan_in ** 0.5)
        return jax.random.uniform(k, shape, jnp.float32, -bound, bound)

    ks = jax.random.split(key, 10)
    return {
        "conv1_w": uniform(ks[0], (6, 3, 5, 5), 3 * 5 * 5),
        "conv1_b": uniform(ks[1], (6,), 3 * 5 * 5),
        "conv2_w": uniform(ks[2], (16, 6, 5, 5), 6 * 5 * 5),
        "conv2_b": uniform(ks[3], (16,), 6 * 5 * 5),
        "fc1_w": uniform(ks[4], (120, 16 * 5 * 5), 16 * 5 * 5),
        "fc1_b": uniform(ks[5], (120,), 16 * 5 * 5),
        "fc2_w": uniform(ks[6], (84, 120), 120),
        "fc2_b": uniform(ks[7], (84,), 120),
        "fc3_w": uniform(ks[8], (10, 84), 84),
        "fc3_b": uniform(ks[9], (10,), 84),
    }


def prepare_params(params):
    """One-time weight prep (hoisted out of the per-forward hot path).

    Conv kernels become (out_pad, 25*8) bf16 with one 8-wide, zero-padded
    input-channel block per tap (sublane-aligned K=8 per-tap matmuls); conv1's
    output channels are padded 6->8 so every activation map is a full sublane
    tile.  fc1's columns are permuted into 16-wide per-tap blocks matching the
    in-kernel tap-major gather.  Biases become (N, 1) f32 columns.
    """
    def conv_mat(w, out_pad):
        oc, ic, kh, kw = w.shape
        m = jnp.transpose(w, (0, 2, 3, 1))                       # (oc, kh, kw, ic)
        m = jnp.pad(m, ((0, out_pad - oc), (0, 0), (0, 0), (0, 8 - ic)))
        return m.reshape(out_pad, kh * kw * 8).astype(jnp.bfloat16)

    def col(b, pad_to=None):
        v = b if pad_to is None else jnp.pad(b, (0, pad_to - b.shape[0]))
        return v.reshape(-1, 1).astype(jnp.float32)

    # fc1: column c*25+t  ->  16*t + c  (tap-major blocks of 16 channels)
    f1 = params["fc1_w"].reshape(120, 16, 25).transpose(0, 2, 1).reshape(120, 400)
    return {
        "w1": conv_mat(params["conv1_w"], 8),  "b1": col(params["conv1_b"], 8),
        "w2": conv_mat(params["conv2_w"], 16), "b2": col(params["conv2_b"]),
        "f1": f1.astype(jnp.bfloat16),         "fb1": col(params["fc1_b"]),
        "f2": params["fc2_w"].astype(jnp.bfloat16), "fb2": col(params["fc2_b"]),
        "f3": params["fc3_w"].astype(jnp.bfloat16), "fb3": col(params["fc3_b"]),
    }


# -------------------------------- forward ----------------------------------

@jax.jit
def alexnet_forward(x, prepped):
    B = x.shape[0]
    # Channels padded 3->8 (zeros), flattened (y, x) lane axis, cast to bf16 once.
    xin = jnp.pad(x, ((0, 0), (0, 5), (0, 0), (0, 0)))
    xin = xin.reshape(B, 8, _S).astype(jnp.bfloat16)
    out = _build_fused(B)(
        xin,
        prepped["w1"], prepped["b1"], prepped["w2"], prepped["b2"],
        prepped["f1"], prepped["fb1"], prepped["f2"], prepped["fb2"],
        prepped["f3"], prepped["fb3"])
    return out.reshape(B, 10)          # free metadata reshape (no transpose)


# ------------------------------- reference ---------------------------------

def _reference_forward(x, params):
    """Plain-XLA reference, used only for the self-check in __main__."""
    def conv(x, w, b):
        y = jax.lax.conv_general_dilated(
            x, w, window_strides=(1, 1), padding="VALID",
            dimension_numbers=("NCHW", "OIHW", "NCHW"))
        return jax.nn.relu(y + b[None, :, None, None])

    def pool(x):
        return jax.lax.reduce_window(
            x, -jnp.inf, jax.lax.max, (1, 1, 2, 2), (1, 1, 2, 2), "VALID")

    x = pool(conv(x, params["conv1_w"], params["conv1_b"]))
    x = pool(conv(x, params["conv2_w"], params["conv2_b"]))
    x = x.reshape(x.shape[0], -1)
    x = jax.nn.relu(x @ params["fc1_w"].T + params["fc1_b"])
    x = jax.nn.relu(x @ params["fc2_w"].T + params["fc2_b"])
    return x @ params["fc3_w"].T + params["fc3_b"]


if __name__ == "__main__":
    key = jax.random.PRNGKey(0)
    pkey, xkey = jax.random.split(key)
    params = init_params(pkey)
    prepped = prepare_params(params)
    # Input shape implied by fc1 (16*5*5): CIFAR-style (B, 3, 32, 32).
    x = jax.random.normal(xkey, (2, 3, 32, 32), dtype=jnp.float32)
    out = jax.block_until_ready(alexnet_forward(x, prepped))
    assert out.shape == (2, 10), out.shape
    # Self-check vs. the f32 XLA reference (kernel uses bf16 MXU operands).
    ref = _reference_forward(x, params)
    err = float(jnp.max(jnp.abs(out - ref)))
    assert err < 8e-2, f"max abs error vs reference: {err}"
    print("KERNEL_OK")
</pallas_src>

<mosaic_0001>
module attributes {stable_mosaic.version = 11 : i64} {
  func.func @_fused_kernel(%arg0: i32, %arg1: memref<1x8x1024xbf16, #tpu.memory_space<vmem>>, %arg2: memref<8x200xbf16, #tpu.memory_space<vmem>>, %arg3: memref<8x1xf32, #tpu.memory_space<vmem>>, %arg4: memref<16x200xbf16, #tpu.memory_space<vmem>>, %arg5: memref<16x1xf32, #tpu.memory_space<vmem>>, %arg6: memref<120x400xbf16, #tpu.memory_space<vmem>>, %arg7: memref<120x1xf32, #tpu.memory_space<vmem>>, %arg8: memref<84x120xbf16, #tpu.memory_space<vmem>>, %arg9: memref<84x1xf32, #tpu.memory_space<vmem>>, %arg10: memref<10x84xbf16, #tpu.memory_space<vmem>>, %arg11: memref<10x1xf32, #tpu.memory_space<vmem>>, %arg12: memref<1x10x1xf32, #tpu.memory_space<vmem>>, %arg13: memref<8x892xf32, #tpu.memory_space<vmem>>, %arg14: memref<8x859xbf16, #tpu.memory_space<vmem>>, %arg15: memref<16x595xf32, #tpu.memory_space<vmem>>, %arg16: memref<16x529xbf16, #tpu.memory_space<vmem>>) attributes {dimension_semantics = [#tpu.dimension_semantics<parallel>], iteration_bounds = array<i64: 2>, scalar_prefetch = 0 : i64, scratch_operands = 4 : i64, tpu.core_type = #tpu.core_type<tc>, window_params = [{transform_indices = @transform_0, window_bounds = array<i64: 1, 8, 1024>}, {pipeline_mode = #tpu.pipeline_mode<synchronous>, transform_indices = @transform_1, window_bounds = array<i64: 8, 200>}, {pipeline_mode = #tpu.pipeline_mode<synchronous>, transform_indices = @transform_2, window_bounds = array<i64: 8, 1>}, {pipeline_mode = #tpu.pipeline_mode<synchronous>, transform_indices = @transform_3, window_bounds = array<i64: 16, 200>}, {pipeline_mode = #tpu.pipeline_mode<synchronous>, transform_indices = @transform_4, window_bounds = array<i64: 16, 1>}, {pipeline_mode = #tpu.pipeline_mode<synchronous>, transform_indices = @transform_5, window_bounds = array<i64: 120, 400>}, {pipeline_mode = #tpu.pipeline_mode<synchronous>, transform_indices = @transform_6, window_bounds = array<i64: 120, 1>}, {pipeline_mode = #tpu.pipeline_mode<synchronous>, transform_indices = @transform_7, window_bounds = array<i64: 84, 120>}, {pipeline_mode = #tpu.pipeline_mode<synchronous>, transform_indices = @transform_8, window_bounds = array<i64: 84, 1>}, {pipeline_mode = #tpu.pipeline_mode<synchronous>, transform_indices = @transform_9, window_bounds = array<i64: 10, 84>}, {pipeline_mode = #tpu.pipeline_mode<synchronous>, transform_indices = @transform_10, window_bounds = array<i64: 10, 1>}, {transform_indices = @transform_11, window_bounds = array<i64: 1, 10, 1>}]} {
    %c0 = arith.constant 0 : index
    %c0_0 = arith.constant 0 : index
    %0 = vector.load %arg2[%c0, %c0_0] : memref<8x200xbf16, #tpu.memory_space<vmem>>, vector<8x8xbf16>
    %c0_1 = arith.constant 0 : index
    %c0_2 = arith.constant 0 : index
    %c0_3 = arith.constant 0 : index
    %1 = vector.load %arg1[%c0_1, %c0_2, %c0_3] : memref<1x8x1024xbf16, #tpu.memory_space<vmem>>, vector<1x8x892xbf16>
    %2 = vector.shape_cast %1 : vector<1x8x892xbf16> to vector<8x892xbf16>
    %cst = arith.constant dense<0.000000e+00> : vector<8x892xf32>
    %3 = tpu.matmul %0, %2, %cst {dimension_numbers = #tpu.dot_dimension_numbers<[1], [0], [0], [1], [0, 0, 1, 1], [], []>} : vector<8x8xbf16>, vector<8x892xbf16>, vector<8x892xf32> -> vector<8x892xf32>
    %c0_4 = arith.constant 0 : index
    %c8 = arith.constant 8 : index
    %4 = vector.load %arg2[%c0_4, %c8] : memref<8x200xbf16, #tpu.memory_space<vmem>>, vector<8x8xbf16>
    %c0_5 = arith.constant 0 : index
    %c0_6 = arith.constant 0 : index
    %c1 = arith.constant 1 : index
    %5 = vector.load %arg1[%c0_5, %c0_6, %c1] : memref<1x8x1024xbf16, #tpu.memory_space<vmem>>, vector<1x8x892xbf16>
    %6 = vector.shape_cast %5 : vector<1x8x892xbf16> to vector<8x892xbf16>
    %cst_7 = arith.constant dense<0.000000e+00> : vector<8x892xf32>
    %7 = tpu.matmul %4, %6, %cst_7 {dimension_numbers = #tpu.dot_dimension_numbers<[1], [0], [0], [1], [0, 0, 1, 1], [], []>} : vector<8x8xbf16>, vector<8x892xbf16>, vector<8x892xf32> -> vector<8x892xf32>
    %8 = arith.addf %3, %7 : vector<8x892xf32>
    %c0_8 = arith.constant 0 : index
    %c16 = arith.constant 16 : index
    %9 = vector.load %arg2[%c0_8, %c16] : memref<8x200xbf16, #tpu.memory_space<vmem>>, vector<8x8xbf16>
    %c0_9 = arith.constant 0 : index
    %c0_10 = arith.constant 0 : index
    %c2 = arith.constant 2 : index
    %10 = vector.load %arg1[%c0_9, %c0_10, %c2] : memref<1x8x1024xbf16, #tpu.memory_space<vmem>>, vector<1x8x892xbf16>
    %11 = vector.shape_cast %10 : vector<1x8x892xbf16> to vector<8x892xbf16>
    %cst_11 = arith.constant dense<0.000000e+00> : vector<8x892xf32>
    %12 = tpu.matmul %9, %11, %cst_11 {dimension_numbers = #tpu.dot_dimension_numbers<[1], [0], [0], [1], [0, 0, 1, 1], [], []>} : vector<8x8xbf16>, vector<8x892xbf16>, vector<8x892xf32> -> vector<8x892xf32>
    %13 = arith.addf %8, %12 : vector<8x892xf32>
    %c0_12 = arith.constant 0 : index
    %c24 = arith.constant 24 : index
    %14 = vector.load %arg2[%c0_12, %c24] : memref<8x200xbf16, #tpu.memory_space<vmem>>, vector<8x8xbf16>
    %c0_13 = arith.constant 0 : index
    %c0_14 = arith.constant 0 : index
    %c3 = arith.constant 3 : index
    %15 = vector.load %arg1[%c0_13, %c0_14, %c3] : memref<1x8x1024xbf16, #tpu.memory_space<vmem>>, vector<1x8x892xbf16>
    %16 = vector.shape_cast %15 : vector<1x8x892xbf16> to vector<8x892xbf16>
    %cst_15 = arith.constant dense<0.000000e+00> : vector<8x892xf32>
    %17 = tpu.matmul %14, %16, %cst_15 {dimension_numbers = #tpu.dot_dimension_numbers<[1], [0], [0], [1], [0, 0, 1, 1], [], []>} : vector<8x8xbf16>, vector<8x892xbf16>, vector<8x892xf32> -> vector<8x892xf32>
    %18 = arith.addf %13, %17 : vector<8x892xf32>
    %c0_16 = arith.constant 0 : index
    %c32 = arith.constant 32 : index
    %19 = vector.load %arg2[%c0_16, %c32] : memref<8x200xbf16, #tpu.memory_space<vmem>>, vector<8x8xbf16>
    %c0_17 = arith.constant 0 : index
    %c0_18 = arith.constant 0 : index
    %c4 = arith.constant 4 : index
    %20 = vector.load %arg1[%c0_17, %c0_18, %c4] : memref<1x8x1024xbf16, #tpu.memory_space<vmem>>, vector<1x8x892xbf16>
    %21 = vector.shape_cast %20 : vector<1x8x892xbf16> to vector<8x892xbf16>
    %cst_19 = arith.constant dense<0.000000e+00> : vector<8x892xf32>
    %22 = tpu.matmul %19, %21, %cst_19 {dimension_numbers = #tpu.dot_dimension_numbers<[1], [0], [0], [1], [0, 0, 1, 1], [], []>} : vector<8x8xbf16>, vector<8x892xbf16>, vector<8x892xf32> -> vector<8x892xf32>
    %23 = arith.addf %18, %22 : vector<8x892xf32>
    %c0_20 = arith.constant 0 : index
    %c40 = arith.constant 40 : index
    %24 = vector.load %arg2[%c0_20, %c40] : memref<8x200xbf16, #tpu.memory_space<vmem>>, vector<8x8xbf16>
    %c0_21 = arith.constant 0 : index
    %c0_22 = arith.constant 0 : index
    %c32_23 = arith.constant 32 : index
    %25 = vector.load %arg1[%c0_21, %c0_22, %c32_23] : memref<1x8x1024xbf16, #tpu.memory_space<vmem>>, vector<1x8x892xbf16>
    %26 = vector.shape_cast %25 : vector<1x8x892xbf16> to vector<8x892xbf16>
    %cst_24 = arith.constant dense<0.000000e+00> : vector<8x892xf32>
    %27 = tpu.matmul %24, %26, %cst_24 {dimension_numbers = #tpu.dot_dimension_numbers<[1], [0], [0], [1], [0, 0, 1, 1], [], []>} : vector<8x8xbf16>, vector<8x892xbf16>, vector<8x892xf32> -> vector<8x892xf32>
    %28 = arith.addf %23, %27 : vector<8x892xf32>
    %c0_25 = arith.constant 0 : index
    %c48 = arith.constant 48 : index
    %29 = vector.load %arg2[%c0_25, %c48] : memref<8x200xbf16, #tpu.memory_space<vmem>>, vector<8x8xbf16>
    %c0_26 = arith.constant 0 : index
    %c0_27 = arith.constant 0 : index
    %c33 = arith.constant 33 : index
    %30 = vector.load %arg1[%c0_26, %c0_27, %c33] : memref<1x8x1024xbf16, #tpu.memory_space<vmem>>, vector<1x8x892xbf16>
    %31 = vector.shape_cast %30 : vector<1x8x892xbf16> to vector<8x892xbf16>
    %cst_28 = arith.constant dense<0.000000e+00> : vector<8x892xf32>
    %32 = tpu.matmul %29, %31, %cst_28 {dimension_numbers = #tpu.dot_dimension_numbers<[1], [0], [0], [1], [0, 0, 1, 1], [], []>} : vector<8x8xbf16>, vector<8x892xbf16>, vector<8x892xf32> -> vector<8x892xf32>
    %33 = arith.addf %28, %32 : vector<8x892xf32>
    %c0_29 = arith.constant 0 : index
    %c56 = arith.constant 56 : index
    %34 = vector.load %arg2[%c0_29, %c56] : memref<8x200xbf16, #tpu.memory_space<vmem>>, vector<8x8xbf16>
    %c0_30 = arith.constant 0 : index
    %c0_31 = arith.constant 0 : index
    %c34 = arith.constant 34 : index
    %35 = vector.load %arg1[%c0_30, %c0_31, %c34] : memref<1x8x1024xbf16, #tpu.memory_space<vmem>>, vector<1x8x892xbf16>
    %36 = vector.shape_cast %35 : vector<1x8x892xbf16> to vector<8x892xbf16>
    %cst_32 = arith.constant dense<0.000000e+00> : vector<8x892xf32>
    %37 = tpu.matmul %34, %36, %cst_32 {dimension_numbers = #tpu.dot_dimension_numbers<[1], [0], [0], [1], [0, 0, 1, 1], [], []>} : vector<8x8xbf16>, vector<8x892xbf16>, vector<8x892xf32> -> vector<8x892xf32>
    %38 = arith.addf %33, %37 : vector<8x892xf32>
    %c0_33 = arith.constant 0 : index
    %c64 = arith.constant 64 : index
    %39 = vector.load %arg2[%c0_33, %c64] : memref<8x200xbf16, #tpu.memory_space<vmem>>, vector<8x8xbf16>
    %c0_34 = arith.constant 0 : index
    %c0_35 = arith.constant 0 : index
    %c35 = arith.constant 35 : index
    %40 = vector.load %arg1[%c0_34, %c0_35, %c35] : memref<1x8x1024xbf16, #tpu.memory_space<vmem>>, vector<1x8x892xbf16>
    %41 = vector.shape_cast %40 : vector<1x8x892xbf16> to vector<8x892xbf16>
    %cst_36 = arith.constant dense<0.000000e+00> : vector<8x892xf32>
    %42 = tpu.matmul %39, %41, %cst_36 {dimension_numbers = #tpu.dot_dimension_numbers<[1], [0], [0], [1], [0, 0, 1, 1], [], []>} : vector<8x8xbf16>, vector<8x892xbf16>, vector<8x892xf32> -> vector<8x892xf32>
    %43 = arith.addf %38, %42 : vector<8x892xf32>
    %c0_37 = arith.constant 0 : index
    %c72 = arith.constant 72 : index
    %44 = vector.load %arg2[%c0_37, %c72] : memref<8x200xbf16, #tpu.memory_space<vmem>>, vector<8x8xbf16>
    %c0_38 = arith.constant 0 : index
    %c0_39 = arith.constant 0 : index
    %c36 = arith.constant 36 : index
    %45 = vector.load %arg1[%c0_38, %c0_39, %c36] : memref<1x8x1024xbf16, #tpu.memory_space<vmem>>, vector<1x8x892xbf16>
    %46 = vector.shape_cast %45 : vector<1x8x892xbf16> to vector<8x892xbf16>
    %cst_40 = arith.constant dense<0.000000e+00> : vector<8x892xf32>
    %47 = tpu.matmul %44, %46, %cst_40 {dimension_numbers = #tpu.dot_dimension_numbers<[1], [0], [0], [1], [0, 0, 1, 1], [], []>} : vector<8x8xbf16>, vector<8x892xbf16>, vector<8x892xf32> -> vector<8x892xf32>
    %48 = arith.addf %43, %47 : vector<8x892xf32>
    %c0_41 = arith.constant 0 : index
    %c80 = arith.constant 80 : index
    %49 = vector.load %arg2[%c0_41, %c80] : memref<8x200xbf16, #tpu.memory_space<vmem>>, vector<8x8xbf16>
    %c0_42 = arith.constant 0 : index
    %c0_43 = arith.constant 0 : index
    %c64_44 = arith.constant 64 : index
    %50 = vector.load %arg1[%c0_42, %c0_43, %c64_44] : memref<1x8x1024xbf16, #tpu.memory_space<vmem>>, vector<1x8x892xbf16>
    %51 = vector.shape_cast %50 : vector<1x8x892xbf16> to vector<8x892xbf16>
    %cst_45 = arith.constant dense<0.000000e+00> : vector<8x892xf32>
    %52 = tpu.matmul %49, %51, %cst_45 {dimension_numbers = #tpu.dot_dimension_numbers<[1], [0], [0], [1], [0, 0, 1, 1], [], []>} : vector<8x8xbf16>, vector<8x892xbf16>, vector<8x892xf32> -> vector<8x892xf32>
    %53 = arith.addf %48, %52 : vector<8x892xf32>
    %c0_46 = arith.constant 0 : index
    %c88 = arith.constant 88 : index
    %54 = vector.load %arg2[%c0_46, %c88] : memref<8x200xbf16, #tpu.memory_space<vmem>>, vector<8x8xbf16>
    %c0_47 = arith.constant 0 : index
    %c0_48 = arith.constant 0 : index
    %c65 = arith.constant 65 : index
    %55 = vector.load %arg1[%c0_47, %c0_48, %c65] : memref<1x8x1024xbf16, #tpu.memory_space<vmem>>, vector<1x8x892xbf16>
    %56 = vector.shape_cast %55 : vector<1x8x892xbf16> to vector<8x892xbf16>
    %cst_49 = arith.constant dense<0.000000e+00> : vector<8x892xf32>
    %57 = tpu.matmul %54, %56, %cst_49 {dimension_numbers = #tpu.dot_dimension_numbers<[1], [0], [0], [1], [0, 0, 1, 1], [], []>} : vector<8x8xbf16>, vector<8x892xbf16>, vector<8x892xf32> -> vector<8x892xf32>
    %58 = arith.addf %53, %57 : vector<8x892xf32>
    %c0_50 = arith.constant 0 : index
    %c96 = arith.constant 96 : index
    %59 = vector.load %arg2[%c0_50, %c96] : memref<8x200xbf16, #tpu.memory_space<vmem>>, vector<8x8xbf16>
    %c0_51 = arith.constant 0 : index
    %c0_52 = arith.constant 0 : index
    %c66 = arith.constant 66 : index
    %60 = vector.load %arg1[%c0_51, %c0_52, %c66] : memref<1x8x1024xbf16, #tpu.memory_space<vmem>>, vector<1x8x892xbf16>
    %61 = vector.shape_cast %60 : vector<1x8x892xbf16> to vector<8x892xbf16>
    %cst_53 = arith.constant dense<0.000000e+00> : vector<8x892xf32>
    %62 = tpu.matmul %59, %61, %cst_53 {dimension_numbers = #tpu.dot_dimension_numbers<[1], [0], [0], [1], [0, 0, 1, 1], [], []>} : vector<8x8xbf16>, vector<8x892xbf16>, vector<8x892xf32> -> vector<8x892xf32>
    %63 = arith.addf %58, %62 : vector<8x892xf32>
    %c0_54 = arith.constant 0 : index
    %c104 = arith.constant 104 : index
    %64 = vector.load %arg2[%c0_54, %c104] : memref<8x200xbf16, #tpu.memory_space<vmem>>, vector<8x8xbf16>
    %c0_55 = arith.constant 0 : index
    %c0_56 = arith.constant 0 : index
    %c67 = arith.constant 67 : index
    %65 = vector.load %arg1[%c0_55, %c0_56, %c67] : memref<1x8x1024xbf16, #tpu.memory_space<vmem>>, vector<1x8x892xbf16>
    %66 = vector.shape_cast %65 : vector<1x8x892xbf16> to vector<8x892xbf16>
    %cst_57 = arith.constant dense<0.000000e+00> : vector<8x892xf32>
    %67 = tpu.matmul %64, %66, %cst_57 {dimension_numbers = #tpu.dot_dimension_numbers<[1], [0], [0], [1], [0, 0, 1, 1], [], []>} : vector<8x8xbf16>, vector<8x892xbf16>, vector<8x892xf32> -> vector<8x892xf32>
    %68 = arith.addf %63, %67 : vector<8x892xf32>
    %c0_58 = arith.constant 0 : index
    %c112 = arith.constant 112 : index
    %69 = vector.load %arg2[%c0_58, %c112] : memref<8x200xbf16, #tpu.memory_space<vmem>>, vector<8x8xbf16>
    %c0_59 = arith.constant 0 : index
    %c0_60 = arith.constant 0 : index
    %c68 = arith.constant 68 : index
    %70 = vector.load %arg1[%c0_59, %c0_60, %c68] : memref<1x8x1024xbf16, #tpu.memory_space<vmem>>, vector<1x8x892xbf16>
    %71 = vector.shape_cast %70 : vector<1x8x892xbf16> to vector<8x892xbf16>
    %cst_61 = arith.constant dense<0.000000e+00> : vector<8x892xf32>
    %72 = tpu.matmul %69, %71, %cst_61 {dimension_numbers = #tpu.dot_dimension_numbers<[1], [0], [0], [1], [0, 0, 1, 1], [], []>} : vector<8x8xbf16>, vector<8x892xbf16>, vector<8x892xf32> -> vector<8x892xf32>
    %73 = arith.addf %68, %72 : vector<8x892xf32>
    %c0_62 = arith.constant 0 : index
    %c120 = arith.constant 120 : index
    %74 = vector.load %arg2[%c0_62, %c120] : memref<8x200xbf16, #tpu.memory_space<vmem>>, vector<8x8xbf16>
    %c0_63 = arith.constant 0 : index
    %c0_64 = arith.constant 0 : index
    %c96_65 = arith.constant 96 : index
    %75 = vector.load %arg1[%c0_63, %c0_64, %c96_65] : memref<1x8x1024xbf16, #tpu.memory_space<vmem>>, vector<1x8x892xbf16>
    %76 = vector.shape_cast %75 : vector<1x8x892xbf16> to vector<8x892xbf16>
    %cst_66 = arith.constant dense<0.000000e+00> : vector<8x892xf32>
    %77 = tpu.matmul %74, %76, %cst_66 {dimension_numbers = #tpu.dot_dimension_numbers<[1], [0], [0], [1], [0, 0, 1, 1], [], []>} : vector<8x8xbf16>, vector<8x892xbf16>, vector<8x892xf32> -> vector<8x892xf32>
    %78 = arith.addf %73, %77 : vector<8x892xf32>
    %c0_67 = arith.constant 0 : index
    %c128 = arith.constant 128 : index
    %79 = vector.load %arg2[%c0_67, %c128] : memref<8x200xbf16, #tpu.memory_space<vmem>>, vector<8x8xbf16>
    %c0_68 = arith.constant 0 : index
    %c0_69 = arith.constant 0 : index
    %c97 = arith.constant 97 : index
    %80 = vector.load %arg1[%c0_68, %c0_69, %c97] : memref<1x8x1024xbf16, #tpu.memory_space<vmem>>, vector<1x8x892xbf16>
    %81 = vector.shape_cast %80 : vector<1x8x892xbf16> to vector<8x892xbf16>
    %cst_70 = arith.constant dense<0.000000e+00> : vector<8x892xf32>
    %82 = tpu.matmul %79, %81, %cst_70 {dimension_numbers = #tpu.dot_dimension_numbers<[1], [0], [0], [1], [0, 0, 1, 1], [], []>} : vector<8x8xbf16>, vector<8x892xbf16>, vector<8x892xf32> -> vector<8x892xf32>
    %83 = arith.addf %78, %82 : vector<8x892xf32>
    %c0_71 = arith.constant 0 : index
    %c136 = arith.constant 136 : index
    %84 = vector.load %arg2[%c0_71, %c136] : memref<8x200xbf16, #tpu.memory_space<vmem>>, vector<8x8xbf16>
    %c0_72 = arith.constant 0 : index
    %c0_73 = arith.constant 0 : index
    %c98 = arith.constant 98 : index
    %85 = vector.load %arg1[%c0_72, %c0_73, %c98] : memref<1x8x1024xbf16, #tpu.memory_space<vmem>>, vector<1x8x892xbf16>
    %86 = vector.shape_cast %85 : vector<1x8x892xbf16> to vector<8x892xbf16>
    %cst_74 = arith.constant dense<0.000000e+00> : vector<8x892xf32>
    %87 = tpu.matmul %84, %86, %cst_74 {dimension_numbers = #tpu.dot_dimension_numbers<[1], [0], [0], [1], [0, 0, 1, 1], [], []>} : vector<8x8xbf16>, vector<8x892xbf16>, vector<8x892xf32> -> vector<8x892xf32>
    %88 = arith.addf %83, %87 : vector<8x892xf32>
    %c0_75 = arith.constant 0 : index
    %c144 = arith.constant 144 : index
    %89 = vector.load %arg2[%c0_75, %c144] : memref<8x200xbf16, #tpu.memory_space<vmem>>, vector<8x8xbf16>
    %c0_76 = arith.constant 0 : index
    %c0_77 = arith.constant 0 : index
    %c99 = arith.constant 99 : index
    %90 = vector.load %arg1[%c0_76, %c0_77, %c99] : memref<1x8x1024xbf16, #tpu.memory_space<vmem>>, vector<1x8x892xbf16>
    %91 = vector.shape_cast %90 : vector<1x8x892xbf16> to vector<8x892xbf16>
    %cst_78 = arith.constant dense<0.000000e+00> : vector<8x892xf32>
    %92 = tpu.matmul %89, %91, %cst_78 {dimension_numbers = #tpu.dot_dimension_numbers<[1], [0], [0], [1], [0, 0, 1, 1], [], []>} : vector<8x8xbf16>, vector<8x892xbf16>, vector<8x892xf32> -> vector<8x892xf32>
    %93 = arith.addf %88, %92 : vector<8x892xf32>
    %c0_79 = arith.constant 0 : index
    %c152 = arith.constant 152 : index
    %94 = vector.load %arg2[%c0_79, %c152] : memref<8x200xbf16, #tpu.memory_space<vmem>>, vector<8x8xbf16>
    %c0_80 = arith.constant 0 : index
    %c0_81 = arith.constant 0 : index
    %c100 = arith.constant 100 : index
    %95 = vector.load %arg1[%c0_80, %c0_81, %c100] : memref<1x8x1024xbf16, #tpu.memory_space<vmem>>, vector<1x8x892xbf16>
    %96 = vector.shape_cast %95 : vector<1x8x892xbf16> to vector<8x892xbf16>
    %cst_82 = arith.constant dense<0.000000e+00> : vector<8x892xf32>
    %97 = tpu.matmul %94, %96, %cst_82 {dimension_numbers = #tpu.dot_dimension_numbers<[1], [0], [0], [1], [0, 0, 1, 1], [], []>} : vector<8x8xbf16>, vector<8x892xbf16>, vector<8x892xf32> -> vector<8x892xf32>
    %98 = arith.addf %93, %97 : vector<8x892xf32>
    %c0_83 = arith.constant 0 : index
    %c160 = arith.constant 160 : index
    %99 = vector.load %arg2[%c0_83, %c160] : memref<8x200xbf16, #tpu.memory_space<vmem>>, vector<8x8xbf16>
    %c0_84 = arith.constant 0 : index
    %c0_85 = arith.constant 0 : index
    %c128_86 = arith.constant 128 : index
    %100 = vector.load %arg1[%c0_84, %c0_85, %c128_86] : memref<1x8x1024xbf16, #tpu.memory_space<vmem>>, vector<1x8x892xbf16>
    %101 = vector.shape_cast %100 : vector<1x8x892xbf16> to vector<8x892xbf16>
    %cst_87 = arith.constant dense<0.000000e+00> : vector<8x892xf32>
    %102 = tpu.matmul %99, %101, %cst_87 {dimension_numbers = #tpu.dot_dimension_numbers<[1], [0], [0], [1], [0, 0, 1, 1], [], []>} : vector<8x8xbf16>, vector<8x892xbf16>, vector<8x892xf32> -> vector<8x892xf32>
    %103 = arith.addf %98, %102 : vector<8x892xf32>
    %c0_88 = arith.constant 0 : index
    %c168 = arith.constant 168 : index
    %104 = vector.load %arg2[%c0_88, %c168] : memref<8x200xbf16, #tpu.memory_space<vmem>>, vector<8x8xbf16>
    %c0_89 = arith.constant 0 : index
    %c0_90 = arith.constant 0 : index
    %c129 = arith.constant 129 : index
    %105 = vector.load %arg1[%c0_89, %c0_90, %c129] : memref<1x8x1024xbf16, #tpu.memory_space<vmem>>, vector<1x8x892xbf16>
    %106 = vector.shape_cast %105 : vector<1x8x892xbf16> to vector<8x892xbf16>
    %cst_91 = arith.constant dense<0.000000e+00> : vector<8x892xf32>
    %107 = tpu.matmul %104, %106, %cst_91 {dimension_numbers = #tpu.dot_dimension_numbers<[1], [0], [0], [1], [0, 0, 1, 1], [], []>} : vector<8x8xbf16>, vector<8x892xbf16>, vector<8x892xf32> -> vector<8x892xf32>
    %108 = arith.addf %103, %107 : vector<8x892xf32>
    %c0_92 = arith.constant 0 : index
    %c176 = arith.constant 176 : index
    %109 = vector.load %arg2[%c0_92, %c176] : memref<8x200xbf16, #tpu.memory_space<vmem>>, vector<8x8xbf16>
    %c0_93 = arith.constant 0 : index
    %c0_94 = arith.constant 0 : index
    %c130 = arith.constant 130 : index
    %110 = vector.load %arg1[%c0_93, %c0_94, %c130] : memref<1x8x1024xbf16, #tpu.memory_space<vmem>>, vector<1x8x892xbf16>
    %111 = vector.shape_cast %110 : vector<1x8x892xbf16> to vector<8x892xbf16>
    %cst_95 = arith.constant dense<0.000000e+00> : vector<8x892xf32>
    %112 = tpu.matmul %109, %111, %cst_95 {dimension_numbers = #tpu.dot_dimension_numbers<[1], [0], [0], [1], [0, 0, 1, 1], [], []>} : vector<8x8xbf16>, vector<8x892xbf16>, vector<8x892xf32> -> vector<8x892xf32>
    %113 = arith.addf %108, %112 : vector<8x892xf32>
    %c0_96 = arith.constant 0 : index
    %c184 = arith.constant 184 : index
    %114 = vector.load %arg2[%c0_96, %c184] : memref<8x200xbf16, #tpu.memory_space<vmem>>, vector<8x8xbf16>
    %c0_97 = arith.constant 0 : index
    %c0_98 = arith.constant 0 : index
    %c131 = arith.constant 131 : index
    %115 = vector.load %arg1[%c0_97, %c0_98, %c131] : memref<1x8x1024xbf16, #tpu.memory_space<vmem>>, vector<1x8x892xbf16>
    %116 = vector.shape_cast %115 : vector<1x8x892xbf16> to vector<8x892xbf16>
    %cst_99 = arith.constant dense<0.000000e+00> : vector<8x892xf32>
    %117 = tpu.matmul %114, %116, %cst_99 {dimension_numbers = #tpu.dot_dimension_numbers<[1], [0], [0], [1], [0, 0, 1, 1], [], []>} : vector<8x8xbf16>, vector<8x892xbf16>, vector<8x892xf32> -> vector<8x892xf32>
    %118 = arith.addf %113, %117 : vector<8x892xf32>
    %c0_100 = arith.constant 0 : index
    %c192 = arith.constant 192 : index
    %119 = vector.load %arg2[%c0_100, %c192] : memref<8x200xbf16, #tpu.memory_space<vmem>>, vector<8x8xbf16>
    %c0_101 = arith.constant 0 : index
    %c0_102 = arith.constant 0 : index
    %c132 = arith.constant 132 : index
    %120 = vector.load %arg1[%c0_101, %c0_102, %c132] : memref<1x8x1024xbf16, #tpu.memory_space<vmem>>, vector<1x8x892xbf16>
    %121 = vector.shape_cast %120 : vector<1x8x892xbf16> to vector<8x892xbf16>
    %cst_103 = arith.constant dense<0.000000e+00> : vector<8x892xf32>
    %122 = tpu.matmul %119, %121, %cst_103 {dimension_numbers = #tpu.dot_dimension_numbers<[1], [0], [0], [1], [0, 0, 1, 1], [], []>} : vector<8x8xbf16>, vector<8x892xbf16>, vector<8x892xf32> -> vector<8x892xf32>
    %123 = arith.addf %118, %122 : vector<8x892xf32>
    %c0_104 = arith.constant 0 : index
    %c0_105 = arith.constant 0 : index
    %124 = vector.load %arg3[%c0_104, %c0_105] : memref<8x1xf32, #tpu.memory_space<vmem>>, vector<8x1xf32>
    %125 = vector.broadcast %124 : vector<8x1xf32> to vector<8x892xf32>
    %126 = arith.addf %123, %125 : vector<8x892xf32>
    %cst_106 = arith.constant 0.000000e+00 : f32
    %127 = vector.broadcast %cst_106 : f32 to vector<8x892xf32>
    %128 = arith.maximumf %126, %127 : vector<8x892xf32>
    %c0_107 = arith.constant 0 : index
    %c0_108 = arith.constant 0 : index
    %129 = vector.load %arg13[%c0_107, %c0_108] : memref<8x892xf32, #tpu.memory_space<vmem>>, vector<8x892xf32>
    tpu.vector_store %arg13[%c0_107, %c0_108], %128 {strides = array<i32>} : memref<8x892xf32, #tpu.memory_space<vmem>>, vector<8x892xf32>,
    %c0_109 = arith.constant 0 : index
    %c0_110 = arith.constant 0 : index
    %130 = vector.load %arg13[%c0_109, %c0_110] : memref<8x892xf32, #tpu.memory_space<vmem>>, vector<8x859xf32>
    %c0_111 = arith.constant 0 : index
    %c1_112 = arith.constant 1 : index
    %131 = vector.load %arg13[%c0_111, %c1_112] : memref<8x892xf32, #tpu.memory_space<vmem>>, vector<8x859xf32>
    %132 = arith.maximumf %130, %131 : vector<8x859xf32>
    %c0_113 = arith.constant 0 : index
    %c32_114 = arith.constant 32 : index
    %133 = vector.load %arg13[%c0_113, %c32_114] : memref<8x892xf32, #tpu.memory_space<vmem>>, vector<8x859xf32>
    %c0_115 = arith.constant 0 : index
    %c33_116 = arith.constant 33 : index
    %134 = vector.load %arg13[%c0_115, %c33_116] : memref<8x892xf32, #tpu.memory_space<vmem>>, vector<8x859xf32>
    %135 = arith.maximumf %133, %134 : vector<8x859xf32>
    %136 = arith.maximumf %132, %135 : vector<8x859xf32>
    %137 = arith.truncf %136 : vector<8x859xf32> to vector<8x859xbf16>
    %c0_117 = arith.constant 0 : index
    %c0_118 = arith.constant 0 : index
    %138 = vector.load %arg14[%c0_117, %c0_118] : memref<8x859xbf16, #tpu.memory_space<vmem>>, vector<8x859xbf16>
    tpu.vector_store %arg14[%c0_117, %c0_118], %137 {strides = array<i32>} : memref<8x859xbf16, #tpu.memory_space<vmem>>, vector<8x859xbf16>,
    %c0_119 = arith.constant 0 : index
    %c0_120 = arith.constant 0 : index
    %139 = vector.load %arg4[%c0_119, %c0_120] : memref<16x200xbf16, #tpu.memory_space<vmem>>, vector<16x8xbf16>
    %c0_121 = arith.constant 0 : index
    %c0_122 = arith.constant 0 : index
    %140 = vector.load %arg14[%c0_121, %c0_122] : memref<8x859xbf16, #tpu.memory_space<vmem>>, vector<8x595xbf16>
    %cst_123 = arith.constant dense<0.000000e+00> : vector<16x595xf32>
    %141 = tpu.matmul %139, %140, %cst_123 {dimension_numbers = #tpu.dot_dimension_numbers<[1], [0], [0], [1], [0, 0, 1, 1], [], []>} : vector<16x8xbf16>, vector<8x595xbf16>, vector<16x595xf32> -> vector<16x595xf32>
    %c0_124 = arith.constant 0 : index
    %c8_125 = arith.constant 8 : index
    %142 = vector.load %arg4[%c0_124, %c8_125] : memref<16x200xbf16, #tpu.memory_space<vmem>>, vector<16x8xbf16>
    %c0_126 = arith.constant 0 : index
    %c2_127 = arith.constant 2 : index
    %143 = vector.load %arg14[%c0_126, %c2_127] : memref<8x859xbf16, #tpu.memory_space<vmem>>, vector<8x595xbf16>
    %cst_128 = arith.constant dense<0.000000e+00> : vector<16x595xf32>
    %144 = tpu.matmul %142, %143, %cst_128 {dimension_numbers = #tpu.dot_dimension_numbers<[1], [0], [0], [1], [0, 0, 1, 1], [], []>} : vector<16x8xbf16>, vector<8x595xbf16>, vector<16x595xf32> -> vector<16x595xf32>
    %145 = arith.addf %141, %144 : vector<16x595xf32>
    %c0_129 = arith.constant 0 : index
    %c16_130 = arith.constant 16 : index
    %146 = vector.load %arg4[%c0_129, %c16_130] : memref<16x200xbf16, #tpu.memory_space<vmem>>, vector<16x8xbf16>
    %c0_131 = arith.constant 0 : index
    %c4_132 = arith.constant 4 : index
    %147 = vector.load %arg14[%c0_131, %c4_132] : memref<8x859xbf16, #tpu.memory_space<vmem>>, vector<8x595xbf16>
    %cst_133 = arith.constant dense<0.000000e+00> : vector<16x595xf32>
    %148 = tpu.matmul %146, %147, %cst_133 {dimension_numbers = #tpu.dot_dimension_numbers<[1], [0], [0], [1], [0, 0, 1, 1], [], []>} : vector<16x8xbf16>, vector<8x595xbf16>, vector<16x595xf32> -> vector<16x595xf32>
    %149 = arith.addf %145, %148 : vector<16x595xf32>
    %c0_134 = arith.constant 0 : index
    %c24_135 = arith.constant 24 : index
    %150 = vector.load %arg4[%c0_134, %c24_135] : memref<16x200xbf16, #tpu.memory_space<vmem>>, vector<16x8xbf16>
    %c0_136 = arith.constant 0 : index
    %c6 = arith.constant 6 : index
    %151 = vector.load %arg14[%c0_136, %c6] : memref<8x859xbf16, #tpu.memory_space<vmem>>, vector<8x595xbf16>
    %cst_137 = arith.constant dense<0.000000e+00> : vector<16x595xf32>
    %152 = tpu.matmul %150, %151, %cst_137 {dimension_numbers = #tpu.dot_dimension_numbers<[1], [0], [0], [1], [0, 0, 1, 1], [], []>} : vector<16x8xbf16>, vector<8x595xbf16>, vector<16x595xf32> -> vector<16x595xf32>
    %153 = arith.addf %149, %152 : vector<16x595xf32>
    %c0_138 = arith.constant 0 : index
    %c32_139 = arith.constant 32 : index
    %154 = vector.load %arg4[%c0_138, %c32_139] : memref<16x200xbf16, #tpu.memory_space<vmem>>, vector<16x8xbf16>
    %c0_140 = arith.constant 0 : index
    %c8_141 = arith.constant 8 : index
    %155 = vector.load %arg14[%c0_140, %c8_141] : memref<8x859xbf16, #tpu.memory_space<vmem>>, vector<8x595xbf16>
    %cst_142 = arith.constant dense<0.000000e+00> : vector<16x595xf32>
    %156 = tpu.matmul %154, %155, %cst_142 {dimension_numbers = #tpu.dot_dimension_numbers<[1], [0], [0], [1], [0, 0, 1, 1], [], []>} : vector<16x8xbf16>, vector<8x595xbf16>, vector<16x595xf32> -> vector<16x595xf32>
    %157 = arith.addf %153, %156 : vector<16x595xf32>
    %c0_143 = arith.constant 0 : index
    %c40_144 = arith.constant 40 : index
    %158 = vector.load %arg4[%c0_143, %c40_144] : memref<16x200xbf16, #tpu.memory_space<vmem>>, vector<16x8xbf16>
    %c0_145 = arith.constant 0 : index
    %c64_146 = arith.constant 64 : index
    %159 = vector.load %arg14[%c0_145, %c64_146] : memref<8x859xbf16, #tpu.memory_space<vmem>>, vector<8x595xbf16>
    %cst_147 = arith.constant dense<0.000000e+00> : vector<16x595xf32>
    %160 = tpu.matmul %158, %159, %cst_147 {dimension_numbers = #tpu.dot_dimension_numbers<[1], [0], [0], [1], [0, 0, 1, 1], [], []>} : vector<16x8xbf16>, vector<8x595xbf16>, vector<16x595xf32> -> vector<16x595xf32>
    %161 = arith.addf %157, %160 : vector<16x595xf32>
    %c0_148 = arith.constant 0 : index
    %c48_149 = arith.constant 48 : index
    %162 = vector.load %arg4[%c0_148, %c48_149] : memref<16x200xbf16, #tpu.memory_space<vmem>>, vector<16x8xbf16>
    %c0_150 = arith.constant 0 : index
    %c66_151 = arith.constant 66 : index
    %163 = vector.load %arg14[%c0_150, %c66_151] : memref<8x859xbf16, #tpu.memory_space<vmem>>, vector<8x595xbf16>
    %cst_152 = arith.constant dense<0.000000e+00> : vector<16x595xf32>
    %164 = tpu.matmul %162, %163, %cst_152 {dimension_numbers = #tpu.dot_dimension_numbers<[1], [0], [0], [1], [0, 0, 1, 1], [], []>} : vector<16x8xbf16>, vector<8x595xbf16>, vector<16x595xf32> -> vector<16x595xf32>
    %165 = arith.addf %161, %164 : vector<16x595xf32>
    %c0_153 = arith.constant 0 : index
    %c56_154 = arith.constant 56 : index
    %166 = vector.load %arg4[%c0_153, %c56_154] : memref<16x200xbf16, #tpu.memory_space<vmem>>, vector<16x8xbf16>
    %c0_155 = arith.constant 0 : index
    %c68_156 = arith.constant 68 : index
    %167 = vector.load %arg14[%c0_155, %c68_156] : memref<8x859xbf16, #tpu.memory_space<vmem>>, vector<8x595xbf16>
    %cst_157 = arith.constant dense<0.000000e+00> : vector<16x595xf32>
    %168 = tpu.matmul %166, %167, %cst_157 {dimension_numbers = #tpu.dot_dimension_numbers<[1], [0], [0], [1], [0, 0, 1, 1], [], []>} : vector<16x8xbf16>, vector<8x595xbf16>, vector<16x595xf32> -> vector<16x595xf32>
    %169 = arith.addf %165, %168 : vector<16x595xf32>
    %c0_158 = arith.constant 0 : index
    %c64_159 = arith.constant 64 : index
    %170 = vector.load %arg4[%c0_158, %c64_159] : memref<16x200xbf16, #tpu.memory_space<vmem>>, vector<16x8xbf16>
    %c0_160 = arith.constant 0 : index
    %c70 = arith.constant 70 : index
    %171 = vector.load %arg14[%c0_160, %c70] : memref<8x859xbf16, #tpu.memory_space<vmem>>, vector<8x595xbf16>
    %cst_161 = arith.constant dense<0.000000e+00> : vector<16x595xf32>
    %172 = tpu.matmul %170, %171, %cst_161 {dimension_numbers = #tpu.dot_dimension_numbers<[1], [0], [0], [1], [0, 0, 1, 1], [], []>} : vector<16x8xbf16>, vector<8x595xbf16>, vector<16x595xf32> -> vector<16x595xf32>
    %173 = arith.addf %169, %172 : vector<16x595xf32>
    %c0_162 = arith.constant 0 : index
    %c72_163 = arith.constant 72 : index
    %174 = vector.load %arg4[%c0_162, %c72_163] : memref<16x200xbf16, #tpu.memory_space<vmem>>, vector<16x8xbf16>
    %c0_164 = arith.constant 0 : index
    %c72_165 = arith.constant 72 : index
    %175 = vector.load %arg14[%c0_164, %c72_165] : memref<8x859xbf16, #tpu.memory_space<vmem>>, vector<8x595xbf16>
    %cst_166 = arith.constant dense<0.000000e+00> : vector<16x595xf32>
    %176 = tpu.matmul %174, %175, %cst_166 {dimension_numbers = #tpu.dot_dimension_numbers<[1], [0], [0], [1], [0, 0, 1, 1], [], []>} : vector<16x8xbf16>, vector<8x595xbf16>, vector<16x595xf32> -> vector<16x595xf32>
    %177 = arith.addf %173, %176 : vector<16x595xf32>
    %c0_167 = arith.constant 0 : index
    %c80_168 = arith.constant 80 : index
    %178 = vector.load %arg4[%c0_167, %c80_168] : memref<16x200xbf16, #tpu.memory_space<vmem>>, vector<16x8xbf16>
    %c0_169 = arith.constant 0 : index
    %c128_170 = arith.constant 128 : index
    %179 = vector.load %arg14[%c0_169, %c128_170] : memref<8x859xbf16, #tpu.memory_space<vmem>>, vector<8x595xbf16>
    %cst_171 = arith.constant dense<0.000000e+00> : vector<16x595xf32>
    %180 = tpu.matmul %178, %179, %cst_171 {dimension_numbers = #tpu.dot_dimension_numbers<[1], [0], [0], [1], [0, 0, 1, 1], [], []>} : vector<16x8xbf16>, vector<8x595xbf16>, vector<16x595xf32> -> vector<16x595xf32>
    %181 = arith.addf %177, %180 : vector<16x595xf32>
    %c0_172 = arith.constant 0 : index
    %c88_173 = arith.constant 88 : index
    %182 = vector.load %arg4[%c0_172, %c88_173] : memref<16x200xbf16, #tpu.memory_space<vmem>>, vector<16x8xbf16>
    %c0_174 = arith.constant 0 : index
    %c130_175 = arith.constant 130 : index
    %183 = vector.load %arg14[%c0_174, %c130_175] : memref<8x859xbf16, #tpu.memory_space<vmem>>, vector<8x595xbf16>
    %cst_176 = arith.constant dense<0.000000e+00> : vector<16x595xf32>
    %184 = tpu.matmul %182, %183, %cst_176 {dimension_numbers = #tpu.dot_dimension_numbers<[1], [0], [0], [1], [0, 0, 1, 1], [], []>} : vector<16x8xbf16>, vector<8x595xbf16>, vector<16x595xf32> -> vector<16x595xf32>
    %185 = arith.addf %181, %184 : vector<16x595xf32>
    %c0_177 = arith.constant 0 : index
    %c96_178 = arith.constant 96 : index
    %186 = vector.load %arg4[%c0_177, %c96_178] : memref<16x200xbf16, #tpu.memory_space<vmem>>, vector<16x8xbf16>
    %c0_179 = arith.constant 0 : index
    %c132_180 = arith.constant 132 : index
    %187 = vector.load %arg14[%c0_179, %c132_180] : memref<8x859xbf16, #tpu.memory_space<vmem>>, vector<8x595xbf16>
    %cst_181 = arith.constant dense<0.000000e+00> : vector<16x595xf32>
    %188 = tpu.matmul %186, %187, %cst_181 {dimension_numbers = #tpu.dot_dimension_numbers<[1], [0], [0], [1], [0, 0, 1, 1], [], []>} : vector<16x8xbf16>, vector<8x595xbf16>, vector<16x595xf32> -> vector<16x595xf32>
    %189 = arith.addf %185, %188 : vector<16x595xf32>
    %c0_182 = arith.constant 0 : index
    %c104_183 = arith.constant 104 : index
    %190 = vector.load %arg4[%c0_182, %c104_183] : memref<16x200xbf16, #tpu.memory_space<vmem>>, vector<16x8xbf16>
    %c0_184 = arith.constant 0 : index
    %c134 = arith.constant 134 : index
    %191 = vector.load %arg14[%c0_184, %c134] : memref<8x859xbf16, #tpu.memory_space<vmem>>, vector<8x595xbf16>
    %cst_185 = arith.constant dense<0.000000e+00> : vector<16x595xf32>
    %192 = tpu.matmul %190, %191, %cst_185 {dimension_numbers = #tpu.dot_dimension_numbers<[1], [0], [0], [1], [0, 0, 1, 1], [], []>} : vector<16x8xbf16>, vector<8x595xbf16>, vector<16x595xf32> -> vector<16x595xf32>
    %193 = arith.addf %189, %192 : vector<16x595xf32>
    %c0_186 = arith.constant 0 : index
    %c112_187 = arith.constant 112 : index
    %194 = vector.load %arg4[%c0_186, %c112_187] : memref<16x200xbf16, #tpu.memory_space<vmem>>, vector<16x8xbf16>
    %c0_188 = arith.constant 0 : index
    %c136_189 = arith.constant 136 : index
    %195 = vector.load %arg14[%c0_188, %c136_189] : memref<8x859xbf16, #tpu.memory_space<vmem>>, vector<8x595xbf16>
    %cst_190 = arith.constant dense<0.000000e+00> : vector<16x595xf32>
    %196 = tpu.matmul %194, %195, %cst_190 {dimension_numbers = #tpu.dot_dimension_numbers<[1], [0], [0], [1], [0, 0, 1, 1], [], []>} : vector<16x8xbf16>, vector<8x595xbf16>, vector<16x595xf32> -> vector<16x595xf32>
    %197 = arith.addf %193, %196 : vector<16x595xf32>
    %c0_191 = arith.constant 0 : index
    %c120_192 = arith.constant 120 : index
    %198 = vector.load %arg4[%c0_191, %c120_192] : memref<16x200xbf16, #tpu.memory_space<vmem>>, vector<16x8xbf16>
    %c0_193 = arith.constant 0 : index
    %c192_194 = arith.constant 192 : index
    %199 = vector.load %arg14[%c0_193, %c192_194] : memref<8x859xbf16, #tpu.memory_space<vmem>>, vector<8x595xbf16>
    %cst_195 = arith.constant dense<0.000000e+00> : vector<16x595xf32>
    %200 = tpu.matmul %198, %199, %cst_195 {dimension_numbers = #tpu.dot_dimension_numbers<[1], [0], [0], [1], [0, 0, 1, 1], [], []>} : vector<16x8xbf16>, vector<8x595xbf16>, vector<16x595xf32> -> vector<16x595xf32>
    %201 = arith.addf %197, %200 : vector<16x595xf32>
    %c0_196 = arith.constant 0 : index
    %c128_197 = arith.constant 128 : index
    %202 = vector.load %arg4[%c0_196, %c128_197] : memref<16x200xbf16, #tpu.memory_space<vmem>>, vector<16x8xbf16>
    %c0_198 = arith.constant 0 : index
    %c194 = arith.constant 194 : index
    %203 = vector.load %arg14[%c0_198, %c194] : memref<8x859xbf16, #tpu.memory_space<vmem>>, vector<8x595xbf16>
    %cst_199 = arith.constant dense<0.000000e+00> : vector<16x595xf32>
    %204 = tpu.matmul %202, %203, %cst_199 {dimension_numbers = #tpu.dot_dimension_numbers<[1], [0], [0], [1], [0, 0, 1, 1], [], []>} : vector<16x8xbf16>, vector<8x595xbf16>, vector<16x595xf32> -> vector<16x595xf32>
    %205 = arith.addf %201, %204 : vector<16x595xf32>
    %c0_200 = arith.constant 0 : index
    %c136_201 = arith.constant 136 : index
    %206 = vector.load %arg4[%c0_200, %c136_201] : memref<16x200xbf16, #tpu.memory_space<vmem>>, vector<16x8xbf16>
    %c0_202 = arith.constant 0 : index
    %c196 = arith.constant 196 : index
    %207 = vector.load %arg14[%c0_202, %c196] : memref<8x859xbf16, #tpu.memory_space<vmem>>, vector<8x595xbf16>
    %cst_203 = arith.constant dense<0.000000e+00> : vector<16x595xf32>
    %208 = tpu.matmul %206, %207, %cst_203 {dimension_numbers = #tpu.dot_dimension_numbers<[1], [0], [0], [1], [0, 0, 1, 1], [], []>} : vector<16x8xbf16>, vector<8x595xbf16>, vector<16x595xf32> -> vector<16x595xf32>
    %209 = arith.addf %205, %208 : vector<16x595xf32>
    %c0_204 = arith.constant 0 : index
    %c144_205 = arith.constant 144 : index
    %210 = vector.load %arg4[%c0_204, %c144_205] : memref<16x200xbf16, #tpu.memory_space<vmem>>, vector<16x8xbf16>
    %c0_206 = arith.constant 0 : index
    %c198 = arith.constant 198 : index
    %211 = vector.load %arg14[%c0_206, %c198] : memref<8x859xbf16, #tpu.memory_space<vmem>>, vector<8x595xbf16>
    %cst_207 = arith.constant dense<0.000000e+00> : vector<16x595xf32>
    %212 = tpu.matmul %210, %211, %cst_207 {dimension_numbers = #tpu.dot_dimension_numbers<[1], [0], [0], [1], [0, 0, 1, 1], [], []>} : vector<16x8xbf16>, vector<8x595xbf16>, vector<16x595xf32> -> vector<16x595xf32>
    %213 = arith.addf %209, %212 : vector<16x595xf32>
    %c0_208 = arith.constant 0 : index
    %c152_209 = arith.constant 152 : index
    %214 = vector.load %arg4[%c0_208, %c152_209] : memref<16x200xbf16, #tpu.memory_space<vmem>>, vector<16x8xbf16>
    %c0_210 = arith.constant 0 : index
    %c200 = arith.constant 200 : index
    %215 = vector.load %arg14[%c0_210, %c200] : memref<8x859xbf16, #tpu.memory_space<vmem>>, vector<8x595xbf16>
    %cst_211 = arith.constant dense<0.000000e+00> : vector<16x595xf32>
    %216 = tpu.matmul %214, %215, %cst_211 {dimension_numbers = #tpu.dot_dimension_numbers<[1], [0], [0], [1], [0, 0, 1, 1], [], []>} : vector<16x8xbf16>, vector<8x595xbf16>, vector<16x595xf32> -> vector<16x595xf32>
    %217 = arith.addf %213, %216 : vector<16x595xf32>
    %c0_212 = arith.constant 0 : index
    %c160_213 = arith.constant 160 : index
    %218 = vector.load %arg4[%c0_212, %c160_213] : memref<16x200xbf16, #tpu.memory_space<vmem>>, vector<16x8xbf16>
    %c0_214 = arith.constant 0 : index
    %c256 = arith.constant 256 : index
    %219 = vector.load %arg14[%c0_214, %c256] : memref<8x859xbf16, #tpu.memory_space<vmem>>, vector<8x595xbf16>
    %cst_215 = arith.constant dense<0.000000e+00> : vector<16x595xf32>
    %220 = tpu.matmul %218, %219, %cst_215 {dimension_numbers = #tpu.dot_dimension_numbers<[1], [0], [0], [1], [0, 0, 1, 1], [], []>} : vector<16x8xbf16>, vector<8x595xbf16>, vector<16x595xf32> -> vector<16x595xf32>
    %221 = arith.addf %217, %220 : vector<16x595xf32>
    %c0_216 = arith.constant 0 : index
    %c168_217 = arith.constant 168 : index
    %222 = vector.load %arg4[%c0_216, %c168_217] : memref<16x200xbf16, #tpu.memory_space<vmem>>, vector<16x8xbf16>
    %c0_218 = arith.constant 0 : index
    %c258 = arith.constant 258 : index
    %223 = vector.load %arg14[%c0_218, %c258] : memref<8x859xbf16, #tpu.memory_space<vmem>>, vector<8x595xbf16>
    %cst_219 = arith.constant dense<0.000000e+00> : vector<16x595xf32>
    %224 = tpu.matmul %222, %223, %cst_219 {dimension_numbers = #tpu.dot_dimension_numbers<[1], [0], [0], [1], [0, 0, 1, 1], [], []>} : vector<16x8xbf16>, vector<8x595xbf16>, vector<16x595xf32> -> vector<16x595xf32>
    %225 = arith.addf %221, %224 : vector<16x595xf32>
    %c0_220 = arith.constant 0 : index
    %c176_221 = arith.constant 176 : index
    %226 = vector.load %arg4[%c0_220, %c176_221] : memref<16x200xbf16, #tpu.memory_space<vmem>>, vector<16x8xbf16>
    %c0_222 = arith.constant 0 : index
    %c260 = arith.constant 260 : index
    %227 = vector.load %arg14[%c0_222, %c260] : memref<8x859xbf16, #tpu.memory_space<vmem>>, vector<8x595xbf16>
    %cst_223 = arith.constant dense<0.000000e+00> : vector<16x595xf32>
    %228 = tpu.matmul %226, %227, %cst_223 {dimension_numbers = #tpu.dot_dimension_numbers<[1], [0], [0], [1], [0, 0, 1, 1], [], []>} : vector<16x8xbf16>, vector<8x595xbf16>, vector<16x595xf32> -> vector<16x595xf32>
    %229 = arith.addf %225, %228 : vector<16x595xf32>
    %c0_224 = arith.constant 0 : index
    %c184_225 = arith.constant 184 : index
    %230 = vector.load %arg4[%c0_224, %c184_225] : memref<16x200xbf16, #tpu.memory_space<vmem>>, vector<16x8xbf16>
    %c0_226 = arith.constant 0 : index
    %c262 = arith.constant 262 : index
    %231 = vector.load %arg14[%c0_226, %c262] : memref<8x859xbf16, #tpu.memory_space<vmem>>, vector<8x595xbf16>
    %cst_227 = arith.constant dense<0.000000e+00> : vector<16x595xf32>
    %232 = tpu.matmul %230, %231, %cst_227 {dimension_numbers = #tpu.dot_dimension_numbers<[1], [0], [0], [1], [0, 0, 1, 1], [], []>} : vector<16x8xbf16>, vector<8x595xbf16>, vector<16x595xf32> -> vector<16x595xf32>
    %233 = arith.addf %229, %232 : vector<16x595xf32>
    %c0_228 = arith.constant 0 : index
    %c192_229 = arith.constant 192 : index
    %234 = vector.load %arg4[%c0_228, %c192_229] : memref<16x200xbf16, #tpu.memory_space<vmem>>, vector<16x8xbf16>
    %c0_230 = arith.constant 0 : index
    %c264 = arith.constant 264 : index
    %235 = vector.load %arg14[%c0_230, %c264] : memref<8x859xbf16, #tpu.memory_space<vmem>>, vector<8x595xbf16>
    %cst_231 = arith.constant dense<0.000000e+00> : vector<16x595xf32>
    %236 = tpu.matmul %234, %235, %cst_231 {dimension_numbers = #tpu.dot_dimension_numbers<[1], [0], [0], [1], [0, 0, 1, 1], [], []>} : vector<16x8xbf16>, vector<8x595xbf16>, vector<16x595xf32> -> vector<16x595xf32>
    %237 = arith.addf %233, %236 : vector<16x595xf32>
    %c0_232 = arith.constant 0 : index
    %c0_233 = arith.constant 0 : index
    %238 = vector.load %arg5[%c0_232, %c0_233] : memref<16x1xf32, #tpu.memory_space<vmem>>, vector<16x1xf32>
    %239 = vector.broadcast %238 : vector<16x1xf32> to vector<16x595xf32>
    %240 = arith.addf %237, %239 : vector<16x595xf32>
    %cst_234 = arith.constant 0.000000e+00 : f32
    %241 = vector.broadcast %cst_234 : f32 to vector<16x595xf32>
    %242 = arith.maximumf %240, %241 : vector<16x595xf32>
    %c0_235 = arith.constant 0 : index
    %c0_236 = arith.constant 0 : index
    %243 = vector.load %arg15[%c0_235, %c0_236] : memref<16x595xf32, #tpu.memory_space<vmem>>, vector<16x595xf32>
    tpu.vector_store %arg15[%c0_235, %c0_236], %242 {strides = array<i32>} : memref<16x595xf32, #tpu.memory_space<vmem>>, vector<16x595xf32>,
    %c0_237 = arith.constant 0 : index
    %c0_238 = arith.constant 0 : index
    %244 = vector.load %arg15[%c0_237, %c0_238] : memref<16x595xf32, #tpu.memory_space<vmem>>, vector<16x529xf32>
    %c0_239 = arith.constant 0 : index
    %c2_240 = arith.constant 2 : index
    %245 = vector.load %arg15[%c0_239, %c2_240] : memref<16x595xf32, #tpu.memory_space<vmem>>, vector<16x529xf32>
    %246 = arith.maximumf %244, %245 : vector<16x529xf32>
    %c0_241 = arith.constant 0 : index
    %c64_242 = arith.constant 64 : index
    %247 = vector.load %arg15[%c0_241, %c64_242] : memref<16x595xf32, #tpu.memory_space<vmem>>, vector<16x529xf32>
    %c0_243 = arith.constant 0 : index
    %c66_244 = arith.constant 66 : index
    %248 = vector.load %arg15[%c0_243, %c66_244] : memref<16x595xf32, #tpu.memory_space<vmem>>, vector<16x529xf32>
    %249 = arith.maximumf %247, %248 : vector<16x529xf32>
    %250 = arith.maximumf %246, %249 : vector<16x529xf32>
    %251 = arith.truncf %250 : vector<16x529xf32> to vector<16x529xbf16>
    %c0_245 = arith.constant 0 : index
    %c0_246 = arith.constant 0 : index
    %252 = vector.load %arg16[%c0_245, %c0_246] : memref<16x529xbf16, #tpu.memory_space<vmem>>, vector<16x529xbf16>
    tpu.vector_store %arg16[%c0_245, %c0_246], %251 {strides = array<i32>} : memref<16x529xbf16, #tpu.memory_space<vmem>>, vector<16x529xbf16>,
    %c0_247 = arith.constant 0 : index
    %c0_248 = arith.constant 0 : index
    %253 = vector.load %arg6[%c0_247, %c0_248] : memref<120x400xbf16, #tpu.memory_space<vmem>>, vector<120x16xbf16>
    %c0_249 = arith.constant 0 : index
    %c0_250 = arith.constant 0 : index
    %254 = vector.load %arg16[%c0_249, %c0_250] : memref<16x529xbf16, #tpu.memory_space<vmem>>, vector<16x1xbf16>
    %cst_251 = arith.constant dense<0.000000e+00> : vector<120x1xf32>
    %255 = tpu.matmul %253, %254, %cst_251 {dimension_numbers = #tpu.dot_dimension_numbers<[1], [0], [0], [1], [0, 0, 1, 1], [], []>} : vector<120x16xbf16>, vector<16x1xbf16>, vector<120x1xf32> -> vector<120x1xf32>
    %c0_252 = arith.constant 0 : index
    %c16_253 = arith.constant 16 : index
    %256 = vector.load %arg6[%c0_252, %c16_253] : memref<120x400xbf16, #tpu.memory_space<vmem>>, vector<120x16xbf16>
    %c0_254 = arith.constant 0 : index
    %c4_255 = arith.constant 4 : index
    %257 = vector.load %arg16[%c0_254, %c4_255] : memref<16x529xbf16, #tpu.memory_space<vmem>>, vector<16x1xbf16>
    %cst_256 = arith.constant dense<0.000000e+00> : vector<120x1xf32>
    %258 = tpu.matmul %256, %257, %cst_256 {dimension_numbers = #tpu.dot_dimension_numbers<[1], [0], [0], [1], [0, 0, 1, 1], [], []>} : vector<120x16xbf16>, vector<16x1xbf16>, vector<120x1xf32> -> vector<120x1xf32>
    %259 = arith.addf %255, %258 : vector<120x1xf32>
    %c0_257 = arith.constant 0 : index
    %c32_258 = arith.constant 32 : index
    %260 = vector.load %arg6[%c0_257, %c32_258] : memref<120x400xbf16, #tpu.memory_space<vmem>>, vector<120x16xbf16>
    %c0_259 = arith.constant 0 : index
    %c8_260 = arith.constant 8 : index
    %261 = vector.load %arg16[%c0_259, %c8_260] : memref<16x529xbf16, #tpu.memory_space<vmem>>, vector<16x1xbf16>
    %cst_261 = arith.constant dense<0.000000e+00> : vector<120x1xf32>
    %262 = tpu.matmul %260, %261, %cst_261 {dimension_numbers = #tpu.dot_dimension_numbers<[1], [0], [0], [1], [0, 0, 1, 1], [], []>} : vector<120x16xbf16>, vector<16x1xbf16>, vector<120x1xf32> -> vector<120x1xf32>
    %263 = arith.addf %259, %262 : vector<120x1xf32>
    %c0_262 = arith.constant 0 : index
    %c48_263 = arith.constant 48 : index
    %264 = vector.load %arg6[%c0_262, %c48_263] : memref<120x400xbf16, #tpu.memory_space<vmem>>, vector<120x16xbf16>
    %c0_264 = arith.constant 0 : index
    %c12 = arith.constant 12 : index
    %265 = vector.load %arg16[%c0_264, %c12] : memref<16x529xbf16, #tpu.memory_space<vmem>>, vector<16x1xbf16>
    %cst_265 = arith.constant dense<0.000000e+00> : vector<120x1xf32>
    %266 = tpu.matmul %264, %265, %cst_265 {dimension_numbers = #tpu.dot_dimension_numbers<[1], [0], [0], [1], [0, 0, 1, 1], [], []>} : vector<120x16xbf16>, vector<16x1xbf16>, vector<120x1xf32> -> vector<120x1xf32>
    %267 = arith.addf %263, %266 : vector<120x1xf32>
    %c0_266 = arith.constant 0 : index
    %c64_267 = arith.constant 64 : index
    %268 = vector.load %arg6[%c0_266, %c64_267] : memref<120x400xbf16, #tpu.memory_space<vmem>>, vector<120x16xbf16>
    %c0_268 = arith.constant 0 : index
    %c16_269 = arith.constant 16 : index
    %269 = vector.load %arg16[%c0_268, %c16_269] : memref<16x529xbf16, #tpu.memory_space<vmem>>, vector<16x1xbf16>
    %cst_270 = arith.constant dense<0.000000e+00> : vector<120x1xf32>
    %270 = tpu.matmul %268, %269, %cst_270 {dimension_numbers = #tpu.dot_dimension_numbers<[1], [0], [0], [1], [0, 0, 1, 1], [], []>} : vector<120x16xbf16>, vector<16x1xbf16>, vector<120x1xf32> -> vector<120x1xf32>
    %271 = arith.addf %267, %270 : vector<120x1xf32>
    %c0_271 = arith.constant 0 : index
    %c80_272 = arith.constant 80 : index
    %272 = vector.load %arg6[%c0_271, %c80_272] : memref<120x400xbf16, #tpu.memory_space<vmem>>, vector<120x16xbf16>
    %c0_273 = arith.constant 0 : index
    %c128_274 = arith.constant 128 : index
    %273 = vector.load %arg16[%c0_273, %c128_274] : memref<16x529xbf16, #tpu.memory_space<vmem>>, vector<16x1xbf16>
    %cst_275 = arith.constant dense<0.000000e+00> : vector<120x1xf32>
    %274 = tpu.matmul %272, %273, %cst_275 {dimension_numbers = #tpu.dot_dimension_numbers<[1], [0], [0], [1], [0, 0, 1, 1], [], []>} : vector<120x16xbf16>, vector<16x1xbf16>, vector<120x1xf32> -> vector<120x1xf32>
    %275 = arith.addf %271, %274 : vector<120x1xf32>
    %c0_276 = arith.constant 0 : index
    %c96_277 = arith.constant 96 : index
    %276 = vector.load %arg6[%c0_276, %c96_277] : memref<120x400xbf16, #tpu.memory_space<vmem>>, vector<120x16xbf16>
    %c0_278 = arith.constant 0 : index
    %c132_279 = arith.constant 132 : index
    %277 = vector.load %arg16[%c0_278, %c132_279] : memref<16x529xbf16, #tpu.memory_space<vmem>>, vector<16x1xbf16>
    %cst_280 = arith.constant dense<0.000000e+00> : vector<120x1xf32>
    %278 = tpu.matmul %276, %277, %cst_280 {dimension_numbers = #tpu.dot_dimension_numbers<[1], [0], [0], [1], [0, 0, 1, 1], [], []>} : vector<120x16xbf16>, vector<16x1xbf16>, vector<120x1xf32> -> vector<120x1xf32>
    %279 = arith.addf %275, %278 : vector<120x1xf32>
    %c0_281 = arith.constant 0 : index
    %c112_282 = arith.constant 112 : index
    %280 = vector.load %arg6[%c0_281, %c112_282] : memref<120x400xbf16, #tpu.memory_space<vmem>>, vector<120x16xbf16>
    %c0_283 = arith.constant 0 : index
    %c136_284 = arith.constant 136 : index
    %281 = vector.load %arg16[%c0_283, %c136_284] : memref<16x529xbf16, #tpu.memory_space<vmem>>, vector<16x1xbf16>
    %cst_285 = arith.constant dense<0.000000e+00> : vector<120x1xf32>
    %282 = tpu.matmul %280, %281, %cst_285 {dimension_numbers = #tpu.dot_dimension_numbers<[1], [0], [0], [1], [0, 0, 1, 1], [], []>} : vector<120x16xbf16>, vector<16x1xbf16>, vector<120x1xf32> -> vector<120x1xf32>
    %283 = arith.addf %279, %282 : vector<120x1xf32>
    %c0_286 = arith.constant 0 : index
    %c128_287 = arith.constant 128 : index
    %284 = vector.load %arg6[%c0_286, %c128_287] : memref<120x400xbf16, #tpu.memory_space<vmem>>, vector<120x16xbf16>
    %c0_288 = arith.constant 0 : index
    %c140 = arith.constant 140 : index
    %285 = vector.load %arg16[%c0_288, %c140] : memref<16x529xbf16, #tpu.memory_space<vmem>>, vector<16x1xbf16>
    %cst_289 = arith.constant dense<0.000000e+00> : vector<120x1xf32>
    %286 = tpu.matmul %284, %285, %cst_289 {dimension_numbers = #tpu.dot_dimension_numbers<[1], [0], [0], [1], [0, 0, 1, 1], [], []>} : vector<120x16xbf16>, vector<16x1xbf16>, vector<120x1xf32> -> vector<120x1xf32>
    %287 = arith.addf %283, %286 : vector<120x1xf32>
    %c0_290 = arith.constant 0 : index
    %c144_291 = arith.constant 144 : index
    %288 = vector.load %arg6[%c0_290, %c144_291] : memref<120x400xbf16, #tpu.memory_space<vmem>>, vector<120x16xbf16>
    %c0_292 = arith.constant 0 : index
    %c144_293 = arith.constant 144 : index
    %289 = vector.load %arg16[%c0_292, %c144_293] : memref<16x529xbf16, #tpu.memory_space<vmem>>, vector<16x1xbf16>
    %cst_294 = arith.constant dense<0.000000e+00> : vector<120x1xf32>
    %290 = tpu.matmul %288, %289, %cst_294 {dimension_numbers = #tpu.dot_dimension_numbers<[1], [0], [0], [1], [0, 0, 1, 1], [], []>} : vector<120x16xbf16>, vector<16x1xbf16>, vector<120x1xf32> -> vector<120x1xf32>
    %291 = arith.addf %287, %290 : vector<120x1xf32>
    %c0_295 = arith.constant 0 : index
    %c160_296 = arith.constant 160 : index
    %292 = vector.load %arg6[%c0_295, %c160_296] : memref<120x400xbf16, #tpu.memory_space<vmem>>, vector<120x16xbf16>
    %c0_297 = arith.constant 0 : index
    %c256_298 = arith.constant 256 : index
    %293 = vector.load %arg16[%c0_297, %c256_298] : memref<16x529xbf16, #tpu.memory_space<vmem>>, vector<16x1xbf16>
    %cst_299 = arith.constant dense<0.000000e+00> : vector<120x1xf32>
    %294 = tpu.matmul %292, %293, %cst_299 {dimension_numbers = #tpu.dot_dimension_numbers<[1], [0], [0], [1], [0, 0, 1, 1], [], []>} : vector<120x16xbf16>, vector<16x1xbf16>, vector<120x1xf32> -> vector<120x1xf32>
    %295 = arith.addf %291, %294 : vector<120x1xf32>
    %c0_300 = arith.constant 0 : index
    %c176_301 = arith.constant 176 : index
    %296 = vector.load %arg6[%c0_300, %c176_301] : memref<120x400xbf16, #tpu.memory_space<vmem>>, vector<120x16xbf16>
    %c0_302 = arith.constant 0 : index
    %c260_303 = arith.constant 260 : index
    %297 = vector.load %arg16[%c0_302, %c260_303] : memref<16x529xbf16, #tpu.memory_space<vmem>>, vector<16x1xbf16>
    %cst_304 = arith.constant dense<0.000000e+00> : vector<120x1xf32>
    %298 = tpu.matmul %296, %297, %cst_304 {dimension_numbers = #tpu.dot_dimension_numbers<[1], [0], [0], [1], [0, 0, 1, 1], [], []>} : vector<120x16xbf16>, vector<16x1xbf16>, vector<120x1xf32> -> vector<120x1xf32>
    %299 = arith.addf %295, %298 : vector<120x1xf32>
    %c0_305 = arith.constant 0 : index
    %c192_306 = arith.constant 192 : index
    %300 = vector.load %arg6[%c0_305, %c192_306] : memref<120x400xbf16, #tpu.memory_space<vmem>>, vector<120x16xbf16>
    %c0_307 = arith.constant 0 : index
    %c264_308 = arith.constant 264 : index
    %301 = vector.load %arg16[%c0_307, %c264_308] : memref<16x529xbf16, #tpu.memory_space<vmem>>, vector<16x1xbf16>
    %cst_309 = arith.constant dense<0.000000e+00> : vector<120x1xf32>
    %302 = tpu.matmul %300, %301, %cst_309 {dimension_numbers = #tpu.dot_dimension_numbers<[1], [0], [0], [1], [0, 0, 1, 1], [], []>} : vector<120x16xbf16>, vector<16x1xbf16>, vector<120x1xf32> -> vector<120x1xf32>
    %303 = arith.addf %299, %302 : vector<120x1xf32>
    %c0_310 = arith.constant 0 : index
    %c208 = arith.constant 208 : index
    %304 = vector.load %arg6[%c0_310, %c208] : memref<120x400xbf16, #tpu.memory_space<vmem>>, vector<120x16xbf16>
    %c0_311 = arith.constant 0 : index
    %c268 = arith.constant 268 : index
    %305 = vector.load %arg16[%c0_311, %c268] : memref<16x529xbf16, #tpu.memory_space<vmem>>, vector<16x1xbf16>
    %cst_312 = arith.constant dense<0.000000e+00> : vector<120x1xf32>
    %306 = tpu.matmul %304, %305, %cst_312 {dimension_numbers = #tpu.dot_dimension_numbers<[1], [0], [0], [1], [0, 0, 1, 1], [], []>} : vector<120x16xbf16>, vector<16x1xbf16>, vector<120x1xf32> -> vector<120x1xf32>
    %307 = arith.addf %303, %306 : vector<120x1xf32>
    %c0_313 = arith.constant 0 : index
    %c224 = arith.constant 224 : index
    %308 = vector.load %arg6[%c0_313, %c224] : memref<120x400xbf16, #tpu.memory_space<vmem>>, vector<120x16xbf16>
    %c0_314 = arith.constant 0 : index
    %c272 = arith.constant 272 : index
    %309 = vector.load %arg16[%c0_314, %c272] : memref<16x529xbf16, #tpu.memory_space<vmem>>, vector<16x1xbf16>
    %cst_315 = arith.constant dense<0.000000e+00> : vector<120x1xf32>
    %310 = tpu.matmul %308, %309, %cst_315 {dimension_numbers = #tpu.dot_dimension_numbers<[1], [0], [0], [1], [0, 0, 1, 1], [], []>} : vector<120x16xbf16>, vector<16x1xbf16>, vector<120x1xf32> -> vector<120x1xf32>
    %311 = arith.addf %307, %310 : vector<120x1xf32>
    %c0_316 = arith.constant 0 : index
    %c240 = arith.constant 240 : index
    %312 = vector.load %arg6[%c0_316, %c240] : memref<120x400xbf16, #tpu.memory_space<vmem>>, vector<120x16xbf16>
    %c0_317 = arith.constant 0 : index
    %c384 = arith.constant 384 : index
    %313 = vector.load %arg16[%c0_317, %c384] : memref<16x529xbf16, #tpu.memory_space<vmem>>, vector<16x1xbf16>
    %cst_318 = arith.constant dense<0.000000e+00> : vector<120x1xf32>
    %314 = tpu.matmul %312, %313, %cst_318 {dimension_numbers = #tpu.dot_dimension_numbers<[1], [0], [0], [1], [0, 0, 1, 1], [], []>} : vector<120x16xbf16>, vector<16x1xbf16>, vector<120x1xf32> -> vector<120x1xf32>
    %315 = arith.addf %311, %314 : vector<120x1xf32>
    %c0_319 = arith.constant 0 : index
    %c256_320 = arith.constant 256 : index
    %316 = vector.load %arg6[%c0_319, %c256_320] : memref<120x400xbf16, #tpu.memory_space<vmem>>, vector<120x16xbf16>
    %c0_321 = arith.constant 0 : index
    %c388 = arith.constant 388 : index
    %317 = vector.load %arg16[%c0_321, %c388] : memref<16x529xbf16, #tpu.memory_space<vmem>>, vector<16x1xbf16>
    %cst_322 = arith.constant dense<0.000000e+00> : vector<120x1xf32>
    %318 = tpu.matmul %316, %317, %cst_322 {dimension_numbers = #tpu.dot_dimension_numbers<[1], [0], [0], [1], [0, 0, 1, 1], [], []>} : vector<120x16xbf16>, vector<16x1xbf16>, vector<120x1xf32> -> vector<120x1xf32>
    %319 = arith.addf %315, %318 : vector<120x1xf32>
    %c0_323 = arith.constant 0 : index
    %c272_324 = arith.constant 272 : index
    %320 = vector.load %arg6[%c0_323, %c272_324] : memref<120x400xbf16, #tpu.memory_space<vmem>>, vector<120x16xbf16>
    %c0_325 = arith.constant 0 : index
    %c392 = arith.constant 392 : index
    %321 = vector.load %arg16[%c0_325, %c392] : memref<16x529xbf16, #tpu.memory_space<vmem>>, vector<16x1xbf16>
    %cst_326 = arith.constant dense<0.000000e+00> : vector<120x1xf32>
    %322 = tpu.matmul %320, %321, %cst_326 {dimension_numbers = #tpu.dot_dimension_numbers<[1], [0], [0], [1], [0, 0, 1, 1], [], []>} : vector<120x16xbf16>, vector<16x1xbf16>, vector<120x1xf32> -> vector<120x1xf32>
    %323 = arith.addf %319, %322 : vector<120x1xf32>
    %c0_327 = arith.constant 0 : index
    %c288 = arith.constant 288 : index
    %324 = vector.load %arg6[%c0_327, %c288] : memref<120x400xbf16, #tpu.memory_space<vmem>>, vector<120x16xbf16>
    %c0_328 = arith.constant 0 : index
    %c396 = arith.constant 396 : index
    %325 = vector.load %arg16[%c0_328, %c396] : memref<16x529xbf16, #tpu.memory_space<vmem>>, vector<16x1xbf16>
    %cst_329 = arith.constant dense<0.000000e+00> : vector<120x1xf32>
    %326 = tpu.matmul %324, %325, %cst_329 {dimension_numbers = #tpu.dot_dimension_numbers<[1], [0], [0], [1], [0, 0, 1, 1], [], []>} : vector<120x16xbf16>, vector<16x1xbf16>, vector<120x1xf32> -> vector<120x1xf32>
    %327 = arith.addf %323, %326 : vector<120x1xf32>
    %c0_330 = arith.constant 0 : index
    %c304 = arith.constant 304 : index
    %328 = vector.load %arg6[%c0_330, %c304] : memref<120x400xbf16, #tpu.memory_space<vmem>>, vector<120x16xbf16>
    %c0_331 = arith.constant 0 : index
    %c400 = arith.constant 400 : index
    %329 = vector.load %arg16[%c0_331, %c400] : memref<16x529xbf16, #tpu.memory_space<vmem>>, vector<16x1xbf16>
    %cst_332 = arith.constant dense<0.000000e+00> : vector<120x1xf32>
    %330 = tpu.matmul %328, %329, %cst_332 {dimension_numbers = #tpu.dot_dimension_numbers<[1], [0], [0], [1], [0, 0, 1, 1], [], []>} : vector<120x16xbf16>, vector<16x1xbf16>, vector<120x1xf32> -> vector<120x1xf32>
    %331 = arith.addf %327, %330 : vector<120x1xf32>
    %c0_333 = arith.constant 0 : index
    %c320 = arith.constant 320 : index
    %332 = vector.load %arg6[%c0_333, %c320] : memref<120x400xbf16, #tpu.memory_space<vmem>>, vector<120x16xbf16>
    %c0_334 = arith.constant 0 : index
    %c512 = arith.constant 512 : index
    %333 = vector.load %arg16[%c0_334, %c512] : memref<16x529xbf16, #tpu.memory_space<vmem>>, vector<16x1xbf16>
    %cst_335 = arith.constant dense<0.000000e+00> : vector<120x1xf32>
    %334 = tpu.matmul %332, %333, %cst_335 {dimension_numbers = #tpu.dot_dimension_numbers<[1], [0], [0], [1], [0, 0, 1, 1], [], []>} : vector<120x16xbf16>, vector<16x1xbf16>, vector<120x1xf32> -> vector<120x1xf32>
    %335 = arith.addf %331, %334 : vector<120x1xf32>
    %c0_336 = arith.constant 0 : index
    %c336 = arith.constant 336 : index
    %336 = vector.load %arg6[%c0_336, %c336] : memref<120x400xbf16, #tpu.memory_space<vmem>>, vector<120x16xbf16>
    %c0_337 = arith.constant 0 : index
    %c516 = arith.constant 516 : index
    %337 = vector.load %arg16[%c0_337, %c516] : memref<16x529xbf16, #tpu.memory_space<vmem>>, vector<16x1xbf16>
    %cst_338 = arith.constant dense<0.000000e+00> : vector<120x1xf32>
    %338 = tpu.matmul %336, %337, %cst_338 {dimension_numbers = #tpu.dot_dimension_numbers<[1], [0], [0], [1], [0, 0, 1, 1], [], []>} : vector<120x16xbf16>, vector<16x1xbf16>, vector<120x1xf32> -> vector<120x1xf32>
    %339 = arith.addf %335, %338 : vector<120x1xf32>
    %c0_339 = arith.constant 0 : index
    %c352 = arith.constant 352 : index
    %340 = vector.load %arg6[%c0_339, %c352] : memref<120x400xbf16, #tpu.memory_space<vmem>>, vector<120x16xbf16>
    %c0_340 = arith.constant 0 : index
    %c520 = arith.constant 520 : index
    %341 = vector.load %arg16[%c0_340, %c520] : memref<16x529xbf16, #tpu.memory_space<vmem>>, vector<16x1xbf16>
    %cst_341 = arith.constant dense<0.000000e+00> : vector<120x1xf32>
    %342 = tpu.matmul %340, %341, %cst_341 {dimension_numbers = #tpu.dot_dimension_numbers<[1], [0], [0], [1], [0, 0, 1, 1], [], []>} : vector<120x16xbf16>, vector<16x1xbf16>, vector<120x1xf32> -> vector<120x1xf32>
    %343 = arith.addf %339, %342 : vector<120x1xf32>
    %c0_342 = arith.constant 0 : index
    %c368 = arith.constant 368 : index
    %344 = vector.load %arg6[%c0_342, %c368] : memref<120x400xbf16, #tpu.memory_space<vmem>>, vector<120x16xbf16>
    %c0_343 = arith.constant 0 : index
    %c524 = arith.constant 524 : index
    %345 = vector.load %arg16[%c0_343, %c524] : memref<16x529xbf16, #tpu.memory_space<vmem>>, vector<16x1xbf16>
    %cst_344 = arith.constant dense<0.000000e+00> : vector<120x1xf32>
    %346 = tpu.matmul %344, %345, %cst_344 {dimension_numbers = #tpu.dot_dimension_numbers<[1], [0], [0], [1], [0, 0, 1, 1], [], []>} : vector<120x16xbf16>, vector<16x1xbf16>, vector<120x1xf32> -> vector<120x1xf32>
    %347 = arith.addf %343, %346 : vector<120x1xf32>
    %c0_345 = arith.constant 0 : index
    %c384_346 = arith.constant 384 : index
    %348 = vector.load %arg6[%c0_345, %c384_346] : memref<120x400xbf16, #tpu.memory_space<vmem>>, vector<120x16xbf16>
    %c0_347 = arith.constant 0 : index
    %c528 = arith.constant 528 : index
    %349 = vector.load %arg16[%c0_347, %c528] : memref<16x529xbf16, #tpu.memory_space<vmem>>, vector<16x1xbf16>
    %cst_348 = arith.constant dense<0.000000e+00> : vector<120x1xf32>
    %350 = tpu.matmul %348, %349, %cst_348 {dimension_numbers = #tpu.dot_dimension_numbers<[1], [0], [0], [1], [0, 0, 1, 1], [], []>} : vector<120x16xbf16>, vector<16x1xbf16>, vector<120x1xf32> -> vector<120x1xf32>
    %351 = arith.addf %347, %350 : vector<120x1xf32>
    %c0_349 = arith.constant 0 : index
    %c0_350 = arith.constant 0 : index
    %352 = vector.load %arg7[%c0_349, %c0_350] : memref<120x1xf32, #tpu.memory_space<vmem>>, vector<120x1xf32>
    %353 = arith.addf %351, %352 : vector<120x1xf32>
    %cst_351 = arith.constant 0.000000e+00 : f32
    %354 = vector.broadcast %cst_351 : f32 to vector<120x1xf32>
    %355 = arith.maximumf %353, %354 : vector<120x1xf32>
    %c0_352 = arith.constant 0 : index
    %c0_353 = arith.constant 0 : index
    %356 = vector.load %arg8[%c0_352, %c0_353] : memref<84x120xbf16, #tpu.memory_space<vmem>>, vector<84x120xbf16>
    %357 = arith.truncf %355 : vector<120x1xf32> to vector<120x1xbf16>
    %cst_354 = arith.constant dense<0.000000e+00> : vector<84x1xf32>
    %358 = tpu.matmul %356, %357, %cst_354 {dimension_numbers = #tpu.dot_dimension_numbers<[1], [0], [0], [1], [0, 0, 1, 1], [], []>} : vector<84x120xbf16>, vector<120x1xbf16>, vector<84x1xf32> -> vector<84x1xf32>
    %c0_355 = arith.constant 0 : index
    %c0_356 = arith.constant 0 : index
    %359 = vector.load %arg9[%c0_355, %c0_356] : memref<84x1xf32, #tpu.memory_space<vmem>>, vector<84x1xf32>
    %360 = arith.addf %358, %359 : vector<84x1xf32>
    %cst_357 = arith.constant 0.000000e+00 : f32
    %361 = vector.broadcast %cst_357 : f32 to vector<84x1xf32>
    %362 = arith.maximumf %360, %361 : vector<84x1xf32>
    %c0_358 = arith.constant 0 : index
    %c0_359 = arith.constant 0 : index
    %363 = vector.load %arg10[%c0_358, %c0_359] : memref<10x84xbf16, #tpu.memory_space<vmem>>, vector<10x84xbf16>
    %364 = arith.truncf %362 : vector<84x1xf32> to vector<84x1xbf16>
    %cst_360 = arith.constant dense<0.000000e+00> : vector<10x1xf32>
    %365 = tpu.matmul %363, %364, %cst_360 {dimension_numbers = #tpu.dot_dimension_numbers<[1], [0], [0], [1], [0, 0, 1, 1], [], []>} : vector<10x84xbf16>, vector<84x1xbf16>, vector<10x1xf32> -> vector<10x1xf32>
    %c0_361 = arith.constant 0 : index
    %c0_362 = arith.constant 0 : index
    %366 = vector.load %arg11[%c0_361, %c0_362] : memref<10x1xf32, #tpu.memory_space<vmem>>, vector<10x1xf32>
    %367 = arith.addf %365, %366 : vector<10x1xf32>
    %c0_363 = arith.constant 0 : index
    %c0_364 = arith.constant 0 : index
    %c0_365 = arith.constant 0 : index
    %368 = vector.load %arg12[%c0_363, %c0_364, %c0_365] : memref<1x10x1xf32, #tpu.memory_space<vmem>>, vector<1x10x1xf32>
    %369 = vector.shape_cast %368 : vector<1x10x1xf32> to vector<10x1xf32>
    %370 = vector.shape_cast %367 : vector<10x1xf32> to vector<1x10x1xf32>
    tpu.vector_store %arg12[%c0_363, %c0_364, %c0_365], %370 {strides = array<i32>} : memref<1x10x1xf32, #tpu.memory_space<vmem>>, vector<1x10x1xf32>,
    return
  }
  func.func @transform_0(%arg0: i32) -> (i32, i32, i32) {
    %c0_i32 = arith.constant 0 : i32
    %c0_i32_0 = arith.constant 0 : i32
    %c0_i32_1 = arith.constant 0 : i32
    return %arg0, %c0_i32, %c0_i32_0 : i32, i32, i32
  }
  func.func @transform_1(%arg0: i32) -> (i32, i32) {
    %c0_i32 = arith.constant 0 : i32
    %c0_i32_0 = arith.constant 0 : i32
    %c0_i32_1 = arith.constant 0 : i32
    return %c0_i32, %c0_i32_0 : i32, i32
  }
  func.func @transform_2(%arg0: i32) -> (i32, i32) {
    %c0_i32 = arith.constant 0 : i32
    %c0_i32_0 = arith.constant 0 : i32
    %c0_i32_1 = arith.constant 0 : i32
    return %c0_i32, %c0_i32_0 : i32, i32
  }
  func.func @transform_3(%arg0: i32) -> (i32, i32) {
    %c0_i32 = arith.constant 0 : i32
    %c0_i32_0 = arith.constant 0 : i32
    %c0_i32_1 = arith.constant 0 : i32
    return %c0_i32, %c0_i32_0 : i32, i32
  }
  func.func @transform_4(%arg0: i32) -> (i32, i32) {
    %c0_i32 = arith.constant 0 : i32
    %c0_i32_0 = arith.constant 0 : i32
    %c0_i32_1 = arith.constant 0 : i32
    return %c0_i32, %c0_i32_0 : i32, i32
  }
  func.func @transform_5(%arg0: i32) -> (i32, i32) {
    %c0_i32 = arith.constant 0 : i32
    %c0_i32_0 = arith.constant 0 : i32
    %c0_i32_1 = arith.constant 0 : i32
    return %c0_i32, %c0_i32_0 : i32, i32
  }
  func.func @transform_6(%arg0: i32) -> (i32, i32) {
    %c0_i32 = arith.constant 0 : i32
    %c0_i32_0 = arith.constant 0 : i32
    %c0_i32_1 = arith.constant 0 : i32
    return %c0_i32, %c0_i32_0 : i32, i32
  }
  func.func @transform_7(%arg0: i32) -> (i32, i32) {
    %c0_i32 = arith.constant 0 : i32
    %c0_i32_0 = arith.constant 0 : i32
    %c0_i32_1 = arith.constant 0 : i32
    return %c0_i32, %c0_i32_0 : i32, i32
  }
  func.func @transform_8(%arg0: i32) -> (i32, i32) {
    %c0_i32 = arith.constant 0 : i32
    %c0_i32_0 = arith.constant 0 : i32
    %c0_i32_1 = arith.constant 0 : i32
    return %c0_i32, %c0_i32_0 : i32, i32
  }
  func.func @transform_9(%arg0: i32) -> (i32, i32) {
    %c0_i32 = arith.constant 0 : i32
    %c0_i32_0 = arith.constant 0 : i32
    %c0_i32_1 = arith.constant 0 : i32
    return %c0_i32, %c0_i32_0 : i32, i32
  }
  func.func @transform_10(%arg0: i32) -> (i32, i32) {
    %c0_i32 = arith.constant 0 : i32
    %c0_i32_0 = arith.constant 0 : i32
    %c0_i32_1 = arith.constant 0 : i32
    return %c0_i32, %c0_i32_0 : i32, i32
  }
  func.func @transform_11(%arg0: i32) -> (i32, i32, i32) {
    %c0_i32 = arith.constant 0 : i32
    %c0_i32_0 = arith.constant 0 : i32
    %c0_i32_1 = arith.constant 0 : i32
    return %arg0, %c0_i32, %c0_i32_0 : i32, i32, i32
  }
}

</mosaic_0001>

<llo_original>
// kernel: alexnet_forward.1
$region0: #{alexnet_forward.1}
  #allocation0 [shape = 'u32[]', space=smem, size = 0x4, offset = 0x4, fixed_abs, tag = 'smem constant byte address 0x4 - core index']
  #allocation1 [shape = 'u32[72,128]{1,0:T(1,128)}', space=vmem, size = 0x9000, scoped, tag = 'internal scratch']
  #allocation2 [shape = 'f32[8,892]{1,0:T(8,128)}', space=vmem, size = 0x7000, scoped, tag = 'scratch operand']
  #allocation3 [shape = 'bf16[8,859]{1,0:T(8,128)(2,1)}', space=vmem, size = 0x3800, scoped, tag = 'scratch operand']
  #allocation4 [shape = 'f32[16,595]{1,0:T(8,128)}', space=vmem, size = 0xa000, scoped, tag = 'scratch operand']
  #allocation5 [shape = 'bf16[16,529]{1,0:T(8,128)(2,1)}', space=vmem, size = 0x5000, scoped, tag = 'scratch operand']
  %s0 = inlined_call_operand.vmem [shape: bf16[2,8,1024], index: 0, kind: input, shape index: {}]
  %s1 = inlined_call_operand.vmem [shape: bf16[8,200], index: 1, kind: input, shape index: {}]
  %s2 = inlined_call_operand.vmem [shape: f32[8,1], index: 2, kind: input, shape index: {}]
  %s3 = inlined_call_operand.vmem [shape: bf16[16,200], index: 3, kind: input, shape index: {}]
  %s4 = inlined_call_operand.vmem [shape: f32[16,1], index: 4, kind: input, shape index: {}]
  %s5 = inlined_call_operand.vmem [shape: bf16[120,400], index: 5, kind: input, shape index: {}]
  %s6 = inlined_call_operand.vmem [shape: f32[120,1], index: 6, kind: input, shape index: {}]
  %s7 = inlined_call_operand.vmem [shape: bf16[84,120], index: 7, kind: input, shape index: {}]
  %s8 = inlined_call_operand.vmem [shape: f32[84,1], index: 8, kind: input, shape index: {}]
  %s9 = inlined_call_operand.vmem [shape: bf16[10,84], index: 9, kind: input, shape index: {}]
  %s10 = inlined_call_operand.vmem [shape: f32[10,1], index: 10, kind: input, shape index: {}]
  %s11 = inlined_call_operand.vmem [shape: f32[2,10,1], index: 11, kind: output, shape index: {}]
  %s12 = sld [smem:[#allocation0]]
  $region77: #{alexnet_forward.1} parent=0
    _
  %s14 = ssub.s32 1, %s12
  %s15 = scalar_select 0, %s14, %s12
  loop: start=0, step=1, limit=4
  $region2: #{alexnet_forward.1} parent=0 // loop_pre_header
    _
  $region3: #{alexnet_forward.1} parent=0 // loop_header
    %s17 = sphi 0, %s21
    %p18 = scmp.ge.s32.totalorder %s17, 4
    %s27 = sphi 0, %s29
    %s30 = sphi 0, %s27
    %s31 = sphi 0, %s30
    %s47 = sphi 0, %s31
    %s51 = sphi 0, %s51
    %s53 = sphi 0, %s51
    %s54 = sphi 0, %s53
    %s68 = sphi 0, %s54
    %s72 = sphi 0, %s72
    %s74 = sphi 0, %s72
    %s75 = sphi 0, %s74
    %s89 = sphi 0, %s75
    %s93 = sphi 0, %s93
    %s95 = sphi 0, %s93
    %s96 = sphi 0, %s95
    %s110 = sphi 0, %s96
    %s114 = sphi 0, %s114
    %s116 = sphi 0, %s114
    %s117 = sphi 0, %s116
    %s131 = sphi 0, %s117
    %s135 = sphi 0, %s135
    %s137 = sphi 0, %s135
    %s138 = sphi 0, %s137
    %s152 = sphi 0, %s138
    %s156 = sphi 0, %s156
    %s158 = sphi 0, %s156
    %s159 = sphi 0, %s158
    %s173 = sphi 0, %s159
    %s177 = sphi 0, %s177
    %s179 = sphi 0, %s177
    %s180 = sphi 0, %s179
    %s194 = sphi 0, %s180
    %s198 = sphi 0, %s198
    %s200 = sphi 0, %s198
    %s201 = sphi 0, %s200
    %s215 = sphi 0, %s201
    %s219 = sphi 0, %s219
    %s221 = sphi 0, %s219
    %s222 = sphi 0, %s221
    %s236 = sphi 0, %s222
    %s240 = sphi 0, %s240
    %s242 = sphi 0, %s240
    %s243 = sphi 0, %s242
    %s257 = sphi 0, %s243
    %s263 = sphi 0, %s265
    %s266 = sphi 0, %s263
    %s267 = sphi 0, %s266
    %s283 = sphi 0, %s267
  $region4: #{alexnet_forward.1} parent=0 // loop_header_branch
    %20 = sbr.rel (%p18) target = $region8
  $region5: #{alexnet_forward.1} parent=0 // loop_body
    %s22 = ssub.s32 %s17, 1
    %s23 = ssub.s32 %s17, 2
    %s24 = sadd.s32 %s17, 1
    %s25 = ssub.s32 %s17, %s24
    %p26 = scmp.eq.s32.totalorder %s25, 0
    %s28 = sadd.s32 %s27, 1
    %s29 = scalar_select %p26, %s27, %s28
    %p32 = pneg %p26
    %p33 = scmp.eq.s32.totalorder %s17, 1
    %p34 = por %p32, %p33
    %p35 = scmp.ne.s32.totalorder %s27, %s30
    %p36 = scmp.eq.s32.totalorder %s17, 0
    %p37 = por %p35, %p36
    %p38 = scmp.ne.s32.totalorder %s27, %s30
    %p39 = scmp.eq.s32.totalorder %s22, 1
    %p40 = por %p38, %p39
    %p41 = scmp.ne.s32.totalorder %s30, %s31
    %p42 = scmp.eq.s32.totalorder %s22, 0
    %p43 = por %p41, %p42
    %p44 = scmp.ne.s32.totalorder %s30, %s31
    %p45 = scmp.eq.s32.totalorder %s23, 1
    %p46 = por %p44, %p45
    %p48 = scmp.ne.s32.totalorder %s31, %s47
    %p49 = scmp.eq.s32.totalorder %s23, 0
    %p50 = por %p48, %p49
    %s52 = sadd.s32 %s51, 1
    %p55 = scmp.eq.s32.totalorder %s17, 1
    %p56 = scmp.ne.s32.totalorder %s51, %s53
    %p57 = scmp.eq.s32.totalorder %s17, 0
    %p58 = por %p56, %p57
    %p59 = scmp.ne.s32.totalorder %s51, %s53
    %p60 = scmp.eq.s32.totalorder %s22, 1
    %p61 = por %p59, %p60
    %p62 = scmp.ne.s32.totalorder %s53, %s54
    %p63 = scmp.eq.s32.totalorder %s22, 0
    %p64 = por %p62, %p63
    %p65 = scmp.ne.s32.totalorder %s53, %s54
    %p66 = scmp.eq.s32.totalorder %s23, 1
    %p67 = por %p65, %p66
    %p69 = scmp.ne.s32.totalorder %s54, %s68
    %p70 = scmp.eq.s32.totalorder %s23, 0
    %p71 = por %p69, %p70
    %s73 = sadd.s32 %s72, 1
    %p76 = scmp.eq.s32.totalorder %s17, 1
    %p77 = scmp.ne.s32.totalorder %s72, %s74
    %p78 = scmp.eq.s32.totalorder %s17, 0
    %p79 = por %p77, %p78
    %p80 = scmp.ne.s32.totalorder %s72, %s74
    %p81 = scmp.eq.s32.totalorder %s22, 1
    %p82 = por %p80, %p81
    %p83 = scmp.ne.s32.totalorder %s74, %s75
    %p84 = scmp.eq.s32.totalorder %s22, 0
    %p85 = por %p83, %p84
    %p86 = scmp.ne.s32.totalorder %s74, %s75
    %p87 = scmp.eq.s32.totalorder %s23, 1
    %p88 = por %p86, %p87
    %p90 = scmp.ne.s32.totalorder %s75, %s89
    %p91 = scmp.eq.s32.totalorder %s23, 0
    %p92 = por %p90, %p91
    %s94 = sadd.s32 %s93, 1
    %p97 = scmp.eq.s32.totalorder %s17, 1
    %p98 = scmp.ne.s32.totalorder %s93, %s95
    %p99 = scmp.eq.s32.totalorder %s17, 0
    %p100 = por %p98, %p99
    %p101 = scmp.ne.s32.totalorder %s93, %s95
    %p102 = scmp.eq.s32.totalorder %s22, 1
    %p103 = por %p101, %p102
    %p104 = scmp.ne.s32.totalorder %s95, %s96
    %p105 = scmp.eq.s32.totalorder %s22, 0
    %p106 = por %p104, %p105
    %p107 = scmp.ne.s32.totalorder %s95, %s96
    %p108 = scmp.eq.s32.totalorder %s23, 1
    %p109 = por %p107, %p108
    %p111 = scmp.ne.s32.totalorder %s96, %s110
    %p112 = scmp.eq.s32.totalorder %s23, 0
    %p113 = por %p111, %p112
    %s115 = sadd.s32 %s114, 1
    %p118 = scmp.eq.s32.totalorder %s17, 1
    %p119 = scmp.ne.s32.totalorder %s114, %s116
    %p120 = scmp.eq.s32.totalorder %s17, 0
    %p121 = por %p119, %p120
    %p122 = scmp.ne.s32.totalorder %s114, %s116
    %p123 = scmp.eq.s32.totalorder %s22, 1
    %p124 = por %p122, %p123
    %p125 = scmp.ne.s32.totalorder %s116, %s117
    %p126 = scmp.eq.s32.totalorder %s22, 0
    %p127 = por %p125, %p126
    %p128 = scmp.ne.s32.totalorder %s116, %s117
    %p129 = scmp.eq.s32.totalorder %s23, 1
    %p130 = por %p128, %p129
    %p132 = scmp.ne.s32.totalorder %s117, %s131
    %p133 = scmp.eq.s32.totalorder %s23, 0
    %p134 = por %p132, %p133
    %s136 = sadd.s32 %s135, 1
    %p139 = scmp.eq.s32.totalorder %s17, 1
    %p140 = scmp.ne.s32.totalorder %s135, %s137
    %p141 = scmp.eq.s32.totalorder %s17, 0
    %p142 = por %p140, %p141
    %p143 = scmp.ne.s32.totalorder %s135, %s137
    %p144 = scmp.eq.s32.totalorder %s22, 1
    %p145 = por %p143, %p144
    %p146 = scmp.ne.s32.totalorder %s137, %s138
    %p147 = scmp.eq.s32.totalorder %s22, 0
    %p148 = por %p146, %p147
    %p149 = scmp.ne.s32.totalorder %s137, %s138
    %p150 = scmp.eq.s32.totalorder %s23, 1
    %p151 = por %p149, %p150
    %p153 = scmp.ne.s32.totalorder %s138, %s152
    %p154 = scmp.eq.s32.totalorder %s23, 0
    %p155 = por %p153, %p154
    %s157 = sadd.s32 %s156, 1
    %p160 = scmp.eq.s32.totalorder %s17, 1
    %p161 = scmp.ne.s32.totalorder %s156, %s158
    %p162 = scmp.eq.s32.totalorder %s17, 0
    %p163 = por %p161, %p162
    %p164 = scmp.ne.s32.totalorder %s156, %s158
    %p165 = scmp.eq.s32.totalorder %s22, 1
    %p166 = por %p164, %p165
    %p167 = scmp.ne.s32.totalorder %s158, %s159
    %p168 = scmp.eq.s32.totalorder %s22, 0
    %p169 = por %p167, %p168
    %p170 = scmp.ne.s32.totalorder %s158, %s159
    %p171 = scmp.eq.s32.totalorder %s23, 1
    %p172 = por %p170, %p171
    %p174 = scmp.ne.s32.totalorder %s159, %s173
    %p175 = scmp.eq.s32.totalorder %s23, 0
    %p176 = por %p174, %p175
    %s178 = sadd.s32 %s177, 1
    %p181 = scmp.eq.s32.totalorder %s17, 1
    %p182 = scmp.ne.s32.totalorder %s177, %s179
    %p183 = scmp.eq.s32.totalorder %s17, 0
    %p184 = por %p182, %p183
    %p185 = scmp.ne.s32.totalorder %s177, %s179
    %p186 = scmp.eq.s32.totalorder %s22, 1
    %p187 = por %p185, %p186
    %p188 = scmp.ne.s32.totalorder %s179, %s180
    %p189 = scmp.eq.s32.totalorder %s22, 0
    %p190 = por %p188, %p189
    %p191 = scmp.ne.s32.totalorder %s179, %s180
    %p192 = scmp.eq.s32.totalorder %s23, 1
    %p193 = por %p191, %p192
    %p195 = scmp.ne.s32.totalorder %s180, %s194
    %p196 = scmp.eq.s32.totalorder %s23, 0
    %p197 = por %p195, %p196
    %s199 = sadd.s32 %s198, 1
    %p202 = scmp.eq.s32.totalorder %s17, 1
    %p203 = scmp.ne.s32.totalorder %s198, %s200
    %p204 = scmp.eq.s32.totalorder %s17, 0
    %p205 = por %p203, %p204
    %p206 = scmp.ne.s32.totalorder %s198, %s200
    %p207 = scmp.eq.s32.totalorder %s22, 1
    %p208 = por %p206, %p207
    %p209 = scmp.ne.s32.totalorder %s200, %s201
    %p210 = scmp.eq.s32.totalorder %s22, 0
    %p211 = por %p209, %p210
    %p212 = scmp.ne.s32.totalorder %s200, %s201
    %p213 = scmp.eq.s32.totalorder %s23, 1
    %p214 = por %p212, %p213
    %p216 = scmp.ne.s32.totalorder %s201, %s215
    %p217 = scmp.eq.s32.totalorder %s23, 0
    %p218 = por %p216, %p217
    %s220 = sadd.s32 %s219, 1
    %p223 = scmp.eq.s32.totalorder %s17, 1
    %p224 = scmp.ne.s32.totalorder %s219, %s221
    %p225 = scmp.eq.s32.totalorder %s17, 0
    %p226 = por %p224, %p225
    %p227 = scmp.ne.s32.totalorder %s219, %s221
    %p228 = scmp.eq.s32.totalorder %s22, 1
    %p229 = por %p227, %p228
    %p230 = scmp.ne.s32.totalorder %s221, %s222
    %p231 = scmp.eq.s32.totalorder %s22, 0
    %p232 = por %p230, %p231
    %p233 = scmp.ne.s32.totalorder %s221, %s222
    %p234 = scmp.eq.s32.totalorder %s23, 1
    %p235 = por %p233, %p234
    %p237 = scmp.ne.s32.totalorder %s222, %s236
    %p238 = scmp.eq.s32.totalorder %s23, 0
    %p239 = por %p237, %p238
    %s241 = sadd.s32 %s240, 1
    %p244 = scmp.eq.s32.totalorder %s17, 1
    %p245 = scmp.ne.s32.totalorder %s240, %s242
    %p246 = scmp.eq.s32.totalorder %s17, 0
    %p247 = por %p245, %p246
    %p248 = scmp.ne.s32.totalorder %s240, %s242
    %p249 = scmp.eq.s32.totalorder %s22, 1
    %p250 = por %p248, %p249
    %p251 = scmp.ne.s32.totalorder %s242, %s243
    %p252 = scmp.eq.s32.totalorder %s22, 0
    %p253 = por %p251, %p252
    %p254 = scmp.ne.s32.totalorder %s242, %s243
    %p255 = scmp.eq.s32.totalorder %s23, 1
    %p256 = por %p254, %p255
    %p258 = scmp.ne.s32.totalorder %s243, %s257
    %p259 = scmp.eq.s32.totalorder %s23, 0
    %p260 = por %p258, %p259
    %s261 = ssub.s32 %s17, %s24
    %p262 = scmp.eq.s32.totalorder %s261, 0
    %s264 = sadd.s32 %s263, 1
    %s265 = scalar_select %p262, %s263, %s264
    %p268 = pneg %p262
    %p269 = scmp.eq.s32.totalorder %s17, 1
    %p270 = por %p268, %p269
    %p271 = scmp.ne.s32.totalorder %s263, %s266
    %p272 = scmp.eq.s32.totalorder %s17, 0
    %p273 = por %p271, %p272
    %p274 = scmp.ne.s32.totalorder %s263, %s266
    %p275 = scmp.eq.s32.totalorder %s22, 1
    %p276 = por %p274, %p275
    %p277 = scmp.ne.s32.totalorder %s266, %s267
    %p278 = scmp.eq.s32.totalorder %s22, 0
    %p279 = por %p277, %p278
    %p280 = scmp.ne.s32.totalorder %s266, %s267
    %p281 = scmp.eq.s32.totalorder %s23, 1
    %p282 = por %p280, %p281
    %p284 = scmp.ne.s32.totalorder %s267, %s283
    %p285 = scmp.eq.s32.totalorder %s23, 0
    %p286 = por %p284, %p285
    %p287 = scmp.le.s32.totalorder 1, %s17
    %p288 = scmp.lt.s32.totalorder %s17, 3
    %p289 = pnand %p287, %p288
    %p290 = pneg %p289
    // Predicated region
    $region9: #{alexnet_forward.1} parent=5 // pred_check
      _
    $region10: #{alexnet_forward.1} parent=5 // pred_check_branch
      %292 = sbr.rel (%p289) target = $region12
    $region11: #{alexnet_forward.1} parent=5 // pred_region
      %s293 = ssub.s32 %s17, 1
      // Predicated region
      $region13: #{alexnet_forward.1} parent=11 // pred_check
        %p294 = pneg %p64
      $region14: #{alexnet_forward.1} parent=11 // pred_check_branch
        %296 = sbr.rel (%p294) target = $region16
      $region15: #{alexnet_forward.1} parent=11 // pred_region
        _
      $region16: #{alexnet_forward.1} parent=11 // pred_fallthru
        _
      // Predicated region
      $region17: #{alexnet_forward.1} parent=11 // pred_check
        %p297 = pneg %p85
      $region18: #{alexnet_forward.1} parent=11 // pred_check_branch
        %299 = sbr.rel (%p297) target = $region20
      $region19: #{alexnet_forward.1} parent=11 // pred_region
        _
      $region20: #{alexnet_forward.1} parent=11 // pred_fallthru
        _
      // Predicated region
      $region21: #{alexnet_forward.1} parent=11 // pred_check
        %p300 = pneg %p106
      $region22: #{alexnet_forward.1} parent=11 // pred_check_branch
        %302 = sbr.rel (%p300) target = $region24
      $region23: #{alexnet_forward.1} parent=11 // pred_region
        _
      $region24: #{alexnet_forward.1} parent=11 // pred_fallthru
        _
      // Predicated region
      $region25: #{alexnet_forward.1} parent=11 // pred_check
        %p303 = pneg %p127
      $region26: #{alexnet_forward.1} parent=11 // pred_check_branch
        %305 = sbr.rel (%p303) target = $region28
      $region27: #{alexnet_forward.1} parent=11 // pred_region
        _
      $region28: #{alexnet_forward.1} parent=11 // pred_fallthru
        _
      // Predicated region
      $region29: #{alexnet_forward.1} parent=11 // pred_check
        %p306 = pneg %p148
      $region30: #{alexnet_forward.1} parent=11 // pred_check_branch
        %308 = sbr.rel (%p306) target = $region32
      $region31: #{alexnet_forward.1} parent=11 // pred_region
        _
      $region32: #{alexnet_forward.1} parent=11 // pred_fallthru
        _
      // Predicated region
      $region33: #{alexnet_forward.1} parent=11 // pred_check
        %p309 = pneg %p169
      $region34: #{alexnet_forward.1} parent=11 // pred_check_branch
        %311 = sbr.rel (%p309) target = $region36
      $region35: #{alexnet_forward.1} parent=11 // pred_region
        _
      $region36: #{alexnet_forward.1} parent=11 // pred_fallthru
        _
      // Predicated region
      $region37: #{alexnet_forward.1} parent=11 // pred_check
        %p312 = pneg %p190
      $region38: #{alexnet_forward.1} parent=11 // pred_check_branch
        %314 = sbr.rel (%p312) target = $region40
      $region39: #{alexnet_forward.1} parent=11 // pred_region
        _
      $region40: #{alexnet_forward.1} parent=11 // pred_fallthru
        _
      // Predicated region
      $region41: #{alexnet_forward.1} parent=11 // pred_check
        %p315 = pneg %p211
      $region42: #{alexnet_forward.1} parent=11 // pred_check_branch
        %317 = sbr.rel (%p315) target = $region44
      $region43: #{alexnet_forward.1} parent=11 // pred_region
        _
      $region44: #{alexnet_forward.1} parent=11 // pred_fallthru
        _
      // Predicated region
      $region45: #{alexnet_forward.1} parent=11 // pred_check
        %p318 = pneg %p232
      $region46: #{alexnet_forward.1} parent=11 // pred_check_branch
        %320 = sbr.rel (%p318) target = $region48
      $region47: #{alexnet_forward.1} parent=11 // pred_region
        _
      $region48: #{alexnet_forward.1} parent=11 // pred_fallthru
        _
      // Predicated region
      $region49: #{alexnet_forward.1} parent=11 // pred_check
        %p321 = pneg %p253
      $region50: #{alexnet_forward.1} parent=11 // pred_check_branch
        %323 = sbr.rel (%p321) target = $region52
      $region51: #{alexnet_forward.1} parent=11 // pred_region
        _
      $region52: #{alexnet_forward.1} parent=11 // pred_fallthru
        _
    $region12: #{alexnet_forward.1} parent=5 // pred_fallthru
      _
    %p324 = scmp.lt.s32.totalorder %s17, 2
    // Predicated region
    $region53: #{alexnet_forward.1} parent=5 // pred_check
      %p325 = pneg %p324
    $region54: #{alexnet_forward.1} parent=5 // pred_check_branch
      %327 = sbr.rel (%p325) target = $region56
    $region55: #{alexnet_forward.1} parent=5 // pred_region
      // Predicated region
      $region57: #{alexnet_forward.1} parent=55 // pred_check
        %p328 = pneg %p37
      $region58: #{alexnet_forward.1} parent=55 // pred_check_branch
        %330 = sbr.rel (%p328) target = $region60
      $region59: #{alexnet_forward.1} parent=55 // pred_region
        %p331 = scmp.lt.s32.totalorder %s17, 1
        %s332 = scalar_select %p331, %s17, 1
        %s333 = smul.addr %s332, 8
        %s334 = smul.addr %s333, 4
        %s335 = scalar_lea.vmem %s0, %s334
      $region60: #{alexnet_forward.1} parent=55 // pred_fallthru
        _
    $region56: #{alexnet_forward.1} parent=5 // pred_fallthru
      _
    %p336 = scmp.le.s32.totalorder 1, %s17
    %p337 = scmp.lt.s32.totalorder %s17, 3
    %p338 = pnand %p336, %p337
    %p339 = pneg %p338
    // Predicated region
    $region61: #{alexnet_forward.1} parent=5 // pred_check
      _
    $region62: #{alexnet_forward.1} parent=5 // pred_check_branch
      %341 = sbr.rel (%p338) target = $region64
    $region63: #{alexnet_forward.1} parent=5 // pred_region
      %s342 = ssub.s32 %s17, 1
      %p343 = scmp.lt.s32.totalorder %s22, 1
      %s344 = scalar_select %p343, %s22, 1
      %s345 = smul.addr %s344, 8
      %s346 = smul.addr %s345, 4
      %s347 = scalar_lea.vmem %s0, %s346
      %p348 = pneg %p43
      %p349 = pneg %p40
      %p350 = pneg %p64
      %p351 = pneg %p61
      %p352 = pneg %p85
      %p353 = pneg %p82
      %p354 = pneg %p106
      %p355 = pneg %p103
      %p356 = pneg %p127
      %p357 = pneg %p124
      %p358 = pneg %p148
      %p359 = pneg %p145
      %p360 = pneg %p169
      %p361 = pneg %p166
      %p362 = pneg %p190
      %p363 = pneg %p187
      %p364 = pneg %p211
      %p365 = pneg %p208
      %p366 = pneg %p232
      %p367 = pneg %p229
      %p368 = pneg %p253
      %p369 = pneg %p250
      %p370 = pneg %p279
      %p371 = pneg %p276
      %p372 = scmp.lt.s32.totalorder %s22, 1
      %s373 = scalar_select %p372, %s22, 1
      %s374 = smul.addr %s373, 2
      %s375 = smul.addr %s374, 8
      %s376 = scalar_lea.vmem %s11, %s375
      %p377 = scmp.lt.s32.totalorder %s22, 1
      %s378 = scalar_select %p377, %s22, 1
      %s379 = smul.addr %s378, 8
      %s380 = smul.addr %s379, 4
      %s381 = scalar_lea.vmem %s0, %s380
      %p382 = scmp.lt.s32.totalorder %s22, 1
      %s383 = scalar_select %p382, %s22, 1
      %s384 = smul.addr %s383, 2
      %s385 = smul.addr %s384, 8
      %s386 = scalar_lea.vmem %s11, %s385
      %v388 = vld [vmem:[%s1] sm:$0xf]
      %v389 = vld [vmem:[%s381] sm:$0xff]
      %v390 = vld [vmem:[%s381 + $0x8] sm:$0xff]
      %v391 = vld [vmem:[%s381 + $0x10] sm:$0xff]
      %v392 = vld [vmem:[%s381 + $0x18] sm:$0xf]
      %v394 = vunpack.c.l.b16 %v388
      %v395 = vpack.c.b16 %v394, %v394
      %396 = vrot.lane.b32.xlu0 %v395, 120
      %v397 = vpop.permute.xlu0 %396
      %v402 = vunpack.c.l.b16 %v389
      %v403 = vunpack.c.h.b16 %v389
      %v404 = vunpack.c.l.b16 %v390
      %v405 = vunpack.c.h.b16 %v390
      %v406 = vunpack.c.l.b16 %v391
      %v407 = vunpack.c.h.b16 %v391
      %v408 = vunpack.c.l.b16 %v392
      %v409 = vpack.c.b16 %v402, %v402
      %v410 = vpack.c.b16 %v403, %v403
      %v411 = vpack.c.b16 %v404, %v404
      %v412 = vpack.c.b16 %v405, %v405
      %v413 = vpack.c.b16 %v406, %v406
      %v414 = vpack.c.b16 %v407, %v407
      %v415 = vpack.c.b16 %v408, %v408
      %416 = vrot.lane.b32.xlu0 %v409, 127
      %v417 = vpop.permute.xlu0 %416
      %418 = vrot.lane.b32.xlu0 %v410, 127
      %v419 = vpop.permute.xlu0 %418
      %420 = vrot.lane.b32.xlu0 %v411, 127
      %v421 = vpop.permute.xlu0 %420
      %422 = vrot.lane.b32.xlu0 %v412, 127
      %v423 = vpop.permute.xlu0 %422
      %424 = vrot.lane.b32.xlu0 %v413, 127
      %v425 = vpop.permute.xlu0 %424
      %426 = vrot.lane.b32.xlu0 %v414, 127
      %v427 = vpop.permute.xlu0 %426
      %428 = vrot.lane.b32.xlu0 %v415, 127
      %v429 = vpop.permute.xlu0 %428
      %vm430 = vcmask 1039360
      %v431 = vsel %vm430, %v417, %v419
      %v432 = vsel %vm430, %v419, %v421
      %v433 = vsel %vm430, %v421, %v423
      %v434 = vsel %vm430, %v423, %v425
      %v435 = vsel %vm430, %v425, %v427
      %v436 = vsel %vm430, %v427, %v429
      %vm437 = vcmask 64512
      %v439 = vsel %vm437, %v397, 0
      %vm441 = vcmask 1043456
      %v443 = vsel %vm441, %v431, 0
      %v446 = vsel %vm441, %v432, 0
      %v449 = vsel %vm441, %v433, 0
      %v452 = vsel %vm441, %v434, 0
      %v455 = vsel %vm441, %v435, 0
      %v458 = vsel %vm441, %v436, 0
      %v461 = vsel %vm441, %v429, 0
      %463 = vmatpush.bf16.msra.mxu0 0
      %464 = vmatpush.bf16.msra.mxu0 0
      %465 = vmatpush.bf16.msra.mxu0 0
      %466 = vmatpush.bf16.msra.mxu0 0
      %467 = vmatpush.bf16.msra.mxu0 0
      %468 = vmatpush.bf16.msra.mxu0 0
      %469 = vmatpush.bf16.msra.mxu0 0
      %470 = vmatpush.bf16.msra.mxu0 %v443
      %471 = vmatmul.bf16.gmra.mxu0 %v439
      %v472 = vpop.f32.mrf.mxu0
      %v473 = vadd.f32 0.0, %v472
      %v474 = vpop.f32.mrf.mxu0
      %475 = vdwg.mxu0
      %476 = vmatpush.bf16.msra.mxu0 0
      %477 = vmatpush.bf16.msra.mxu0 0
      %478 = vmatpush.bf16.msra.mxu0 0
      %479 = vmatpush.bf16.msra.mxu0 0
      %480 = vmatpush.bf16.msra.mxu0 0
      %481 = vmatpush.bf16.msra.mxu0 0
      %482 = vmatpush.bf16.msra.mxu0 0
      %483 = vmatpush.bf16.msra.mxu0 %v446
      %484 = vmatmul.bf16.gmra.mxu0 %v439
      %v485 = vpop.f32.mrf.mxu0
      %v486 = vadd.f32 0.0, %v485
      %v487 = vpop.f32.mrf.mxu0
      %488 = vdwg.mxu0
      %489 = vmatpush.bf16.msra.mxu0 0
      %490 = vmatpush.bf16.msra.mxu0 0
      %491 = vmatpush.bf16.msra.mxu0 0
      %492 = vmatpush.bf16.msra.mxu0 0
      %493 = vmatpush.bf16.msra.mxu0 0
      %494 = vmatpush.bf16.msra.mxu0 0
      %495 = vmatpush.bf16.msra.mxu0 0
      %496 = vmatpush.bf16.msra.mxu0 %v449
      %497 = vmatmul.bf16.gmra.mxu0 %v439
      %v498 = vpop.f32.mrf.mxu0
      %v499 = vadd.f32 0.0, %v498
      %v500 = vpop.f32.mrf.mxu0
      %501 = vdwg.mxu0
      %502 = vmatpush.bf16.msra.mxu0 0
      %503 = vmatpush.bf16.msra.mxu0 0
      %504 = vmatpush.bf16.msra.mxu0 0
      %505 = vmatpush.bf16.msra.mxu0 0
      %506 = vmatpush.bf16.msra.mxu0 0
      %507 = vmatpush.bf16.msra.mxu0 0
      %508 = vmatpush.bf16.msra.mxu0 0
      %509 = vmatpush.bf16.msra.mxu0 %v452
      %510 = vmatmul.bf16.gmra.mxu0 %v439
      %v511 = vpop.f32.mrf.mxu0
      %v512 = vadd.f32 0.0, %v511
      %v513 = vpop.f32.mrf.mxu0
      %514 = vdwg.mxu0
      %515 = vmatpush.bf16.msra.mxu0 0
      %516 = vmatpush.bf16.msra.mxu0 0
      %517 = vmatpush.bf16.msra.mxu0 0
      %518 = vmatpush.bf16.msra.mxu0 0
      %519 = vmatpush.bf16.msra.mxu0 0
      %520 = vmatpush.bf16.msra.mxu0 0
      %521 = vmatpush.bf16.msra.mxu0 0
      %522 = vmatpush.bf16.msra.mxu0 %v455
      %523 = vmatmul.bf16.gmra.mxu0 %v439
      %v524 = vpop.f32.mrf.mxu0
      %v525 = vadd.f32 0.0, %v524
      %v526 = vpop.f32.mrf.mxu0
      %527 = vdwg.mxu0
      %528 = vmatpush.bf16.msra.mxu0 0
      %529 = vmatpush.bf16.msra.mxu0 0
      %530 = vmatpush.bf16.msra.mxu0 0
      %531 = vmatpush.bf16.msra.mxu0 0
      %532 = vmatpush.bf16.msra.mxu0 0
      %533 = vmatpush.bf16.msra.mxu0 0
      %534 = vmatpush.bf16.msra.mxu0 0
      %535 = vmatpush.bf16.msra.mxu0 %v458
      %536 = vmatmul.bf16.gmra.mxu0 %v439
      %v537 = vpop.f32.mrf.mxu0
      %v538 = vadd.f32 0.0, %v537
      %v539 = vpop.f32.mrf.mxu0
      %540 = vdwg.mxu0
      %541 = vmatpush.bf16.msra.mxu0 0
      %542 = vmatpush.bf16.msra.mxu0 0
      %543 = vmatpush.bf16.msra.mxu0 0
      %544 = vmatpush.bf16.msra.mxu0 0
      %545 = vmatpush.bf16.msra.mxu0 0
      %546 = vmatpush.bf16.msra.mxu0 0
      %547 = vmatpush.bf16.msra.mxu0 0
      %548 = vmatpush.bf16.msra.mxu0 %v461
      %549 = vmatmul.bf16.gmra.mxu0 %v439
      %v550 = vpop.f32.mrf.mxu0
      %v551 = vadd.f32 0.0, %v550
      %v552 = vpop.f32.mrf.mxu0
      %553 = vdwg.mxu0
      %v555 = vsel %vm437, %v388, 0
      %v558 = vsel %vm441, %v409, 0
      %v561 = vsel %vm441, %v410, 0
      %v564 = vsel %vm441, %v411, 0
      %v567 = vsel %vm441, %v412, 0
      %v570 = vsel %vm441, %v413, 0
      %v573 = vsel %vm441, %v414, 0
      %v576 = vsel %vm441, %v415, 0
      %578 = vmatpush.bf16.msra.mxu0 0
      %579 = vmatpush.bf16.msra.mxu0 0
      %580 = vmatpush.bf16.msra.mxu0 0
      %581 = vmatpush.bf16.msra.mxu0 0
      %582 = vmatpush.bf16.msra.mxu0 0
      %583 = vmatpush.bf16.msra.mxu0 0
      %584 = vmatpush.bf16.msra.mxu0 0
      %585 = vmatpush.bf16.msra.mxu0 %v558
      %586 = vmatmul.bf16.gmra.mxu0 %v555
      %v587 = vpop.f32.mrf.mxu0
      %v588 = vadd.f32 %v473, %v587
      %v589 = vpop.f32.mrf.mxu0
      %590 = vdwg.mxu0
      %591 = vmatpush.bf16.msra.mxu0 0
      %592 = vmatpush.bf16.msra.mxu0 0
      %593 = vmatpush.bf16.msra.mxu0 0
      %594 = vmatpush.bf16.msra.mxu0 0
      %595 = vmatpush.bf16.msra.mxu0 0
      %596 = vmatpush.bf16.msra.mxu0 0
      %597 = vmatpush.bf16.msra.mxu0 0
      %598 = vmatpush.bf16.msra.mxu0 %v561
      %599 = vmatmul.bf16.gmra.mxu0 %v555
      %v600 = vpop.f32.mrf.mxu0
      %v601 = vadd.f32 %v486, %v600
      %v602 = vpop.f32.mrf.mxu0
      %603 = vdwg.mxu0
      %604 = vmatpush.bf16.msra.mxu0 0
      %605 = vmatpush.bf16.msra.mxu0 0
      %606 = vmatpush.bf16.msra.mxu0 0
      %607 = vmatpush.bf16.msra.mxu0 0
      %608 = vmatpush.bf16.msra.mxu0 0
      %609 = vmatpush.bf16.msra.mxu0 0
      %610 = vmatpush.bf16.msra.mxu0 0
      %611 = vmatpush.bf16.msra.mxu0 %v564
      %612 = vmatmul.bf16.gmra.mxu0 %v555
      %v613 = vpop.f32.mrf.mxu0
      %v614 = vadd.f32 %v499, %v613
      %v615 = vpop.f32.mrf.mxu0
      %616 = vdwg.mxu0
      %617 = vmatpush.bf16.msra.mxu0 0
      %618 = vmatpush.bf16.msra.mxu0 0
      %619 = vmatpush.bf16.msra.mxu0 0
      %620 = vmatpush.bf16.msra.mxu0 0
      %621 = vmatpush.bf16.msra.mxu0 0
      %622 = vmatpush.bf16.msra.mxu0 0
      %623 = vmatpush.bf16.msra.mxu0 0
      %624 = vmatpush.bf16.msra.mxu0 %v567
      %625 = vmatmul.bf16.gmra.mxu0 %v555
      %v626 = vpop.f32.mrf.mxu0
      %v627 = vadd.f32 %v512, %v626
      %v628 = vpop.f32.mrf.mxu0
      %629 = vdwg.mxu0
      %630 = vmatpush.bf16.msra.mxu0 0
      %631 = vmatpush.bf16.msra.mxu0 0
      %632 = vmatpush.bf16.msra.mxu0 0
      %633 = vmatpush.bf16.msra.mxu0 0
      %634 = vmatpush.bf16.msra.mxu0 0
      %635 = vmatpush.bf16.msra.mxu0 0
      %636 = vmatpush.bf16.msra.mxu0 0
      %637 = vmatpush.bf16.msra.mxu0 %v570
      %638 = vmatmul.bf16.gmra.mxu0 %v555
      %v639 = vpop.f32.mrf.mxu0
      %v640 = vadd.f32 %v525, %v639
      %v641 = vpop.f32.mrf.mxu0
      %642 = vdwg.mxu0
      %643 = vmatpush.bf16.msra.mxu0 0
      %644 = vmatpush.bf16.msra.mxu0 0
      %645 = vmatpush.bf16.msra.mxu0 0
      %646 = vmatpush.bf16.msra.mxu0 0
      %647 = vmatpush.bf16.msra.mxu0 0
      %648 = vmatpush.bf16.msra.mxu0 0
      %649 = vmatpush.bf16.msra.mxu0 0
      %650 = vmatpush.bf16.msra.mxu0 %v573
      %651 = vmatmul.bf16.gmra.mxu0 %v555
      %v652 = vpop.f32.mrf.mxu0
      %v653 = vadd.f32 %v538, %v652
      %v654 = vpop.f32.mrf.mxu0
      %655 = vdwg.mxu0
      %656 = vmatpush.bf16.msra.mxu0 0
      %657 = vmatpush.bf16.msra.mxu0 0
      %658 = vmatpush.bf16.msra.mxu0 0
      %659 = vmatpush.bf16.msra.mxu0 0
      %660 = vmatpush.bf16.msra.mxu0 0
      %661 = vmatpush.bf16.msra.mxu0 0
      %662 = vmatpush.bf16.msra.mxu0 0
      %663 = vmatpush.bf16.msra.mxu0 %v576
      %664 = vmatmul.bf16.gmra.mxu0 %v555
      %v665 = vpop.f32.mrf.mxu0
      %v666 = vadd.f32 %v551, %v665
      %v667 = vpop.f32.mrf.mxu0
      %668 = vdwg.mxu0
      %669 = vrot.lane.b32.xlu0 %v395, 112
      %v670 = vpop.permute.xlu0 %669
      %671 = vrot.lane.b32.xlu0 %v409, 126
      %v672 = vpop.permute.xlu0 %671
      %673 = vrot.lane.b32.xlu0 %v410, 126
      %v674 = vpop.permute.xlu0 %673
      %675 = vrot.lane.b32.xlu0 %v411, 126
      %v676 = vpop.permute.xlu0 %675
      %677 = vrot.lane.b32.xlu0 %v412, 126
      %v678 = vpop.permute.xlu0 %677
      %679 = vrot.lane.b32.xlu0 %v413, 126
      %v680 = vpop.permute.xlu0 %679
      %681 = vrot.lane.b32.xlu0 %v414, 126
      %v682 = vpop.permute.xlu0 %681
      %683 = vrot.lane.b32.xlu0 %v415, 126
      %v684 = vpop.permute.xlu0 %683
      %vm685 = vcmask 1031168
      %v686 = vsel %vm685, %v672, %v674
      %v687 = vsel %vm685, %v674, %v676
      %v688 = vsel %vm685, %v676, %v678
      %v689 = vsel %vm685, %v678, %v680
      %v690 = vsel %vm685, %v680, %v682
      %v691 = vsel %vm685, %v682, %v684
      %v693 = vsel %vm437, %v670, 0
      %v696 = vsel %vm441, %v686, 0
      %v699 = vsel %vm441, %v687, 0
      %v702 = vsel %vm441, %v688, 0
      %v705 = vsel %vm441, %v689, 0
      %v708 = vsel %vm441, %v690, 0
      %v711 = vsel %vm441, %v691, 0
      %v714 = vsel %vm441, %v684, 0
      %716 = vmatpush.bf16.msra.mxu0 0
      %717 = vmatpush.bf16.msra.mxu0 0
      %718 = vmatpush.bf16.msra.mxu0 0
      %719 = vmatpush.bf16.msra.mxu0 0
      %720 = vmatpush.bf16.msra.mxu0 0
      %721 = vmatpush.bf16.msra.mxu0 0
      %722 = vmatpush.bf16.msra.mxu0 0
      %723 = vmatpush.bf16.msra.mxu0 %v696
      %724 = vmatmul.bf16.gmra.mxu0 %v693
      %v725 = vpop.f32.mrf.mxu0
      %v726 = vadd.f32 0.0, %v725
      %v727 = vpop.f32.mrf.mxu0
      %728 = vdwg.mxu0
      %729 = vmatpush.bf16.msra.mxu0 0
      %730 = vmatpush.bf16.msra.mxu0 0
      %731 = vmatpush.bf16.msra.mxu0 0
      %732 = vmatpush.bf16.msra.mxu0 0
      %733 = vmatpush.bf16.msra.mxu0 0
      %734 = vmatpush.bf16.msra.mxu0 0
      %735 = vmatpush.bf16.msra.mxu0 0
      %736 = vmatpush.bf16.msra.mxu0 %v699
      %737 = vmatmul.bf16.gmra.mxu0 %v693
      %v738 = vpop.f32.mrf.mxu0
      %v739 = vadd.f32 0.0, %v738
      %v740 = vpop.f32.mrf.mxu0
      %741 = vdwg.mxu0
      %742 = vmatpush.bf16.msra.mxu0 0
      %743 = vmatpush.bf16.msra.mxu0 0
      %744 = vmatpush.bf16.msra.mxu0 0
      %745 = vmatpush.bf16.msra.mxu0 0
      %746 = vmatpush.bf16.msra.mxu0 0
      %747 = vmatpush.bf16.msra.mxu0 0
      %748 = vmatpush.bf16.msra.mxu0 0
      %749 = vmatpush.bf16.msra.mxu0 %v702
      %750 = vmatmul.bf16.gmra.mxu0 %v693
      %v751 = vpop.f32.mrf.mxu0
      %v752 = vadd.f32 0.0, %v751
      %v753 = vpop.f32.mrf.mxu0
      %754 = vdwg.mxu0
      %755 = vmatpush.bf16.msra.mxu0 0
      %756 = vmatpush.bf16.msra.mxu0 0
      %757 = vmatpush.bf16.msra.mxu0 0
      %758 = vmatpush.bf16.msra.mxu0 0
      %759 = vmatpush.bf16.msra.mxu0 0
      %760 = vmatpush.bf16.msra.mxu0 0
      %761 = vmatpush.bf16.msra.mxu0 0
      %762 = vmatpush.bf16.msra.mxu0 %v705
      %763 = vmatmul.bf16.gmra.mxu0 %v693
      %v764 = vpop.f32.mrf.mxu0
      %v765 = vadd.f32 0.0, %v764
      %v766 = vpop.f32.mrf.mxu0
      %767 = vdwg.mxu0
      %768 = vmatpush.bf16.msra.mxu0 0
      %769 = vmatpush.bf16.msra.mxu0 0
      %770 = vmatpush.bf16.msra.mxu0 0
      %771 = vmatpush.bf16.msra.mxu0 0
      %772 = vmatpush.bf16.msra.mxu0 0
      %773 = vmatpush.bf16.msra.mxu0 0
      %774 = vmatpush.bf16.msra.mxu0 0
      %775 = vmatpush.bf16.msra.mxu0 %v708
      %776 = vmatmul.bf16.gmra.mxu0 %v693
      %v777 = vpop.f32.mrf.mxu0
      %v778 = vadd.f32 0.0, %v777
      %v779 = vpop.f32.mrf.mxu0
      %780 = vdwg.mxu0
      %781 = vmatpush.bf16.msra.mxu0 0
      %782 = vmatpush.bf16.msra.mxu0 0
      %783 = vmatpush.bf16.msra.mxu0 0
      %784 = vmatpush.bf16.msra.mxu0 0
      %785 = vmatpush.bf16.msra.mxu0 0
      %786 = vmatpush.bf16.msra.mxu0 0
      %787 = vmatpush.bf16.msra.mxu0 0
      %788 = vmatpush.bf16.msra.mxu0 %v711
      %789 = vmatmul.bf16.gmra.mxu0 %v693
      %v790 = vpop.f32.mrf.mxu0
      %v791 = vadd.f32 0.0, %v790
      %v792 = vpop.f32.mrf.mxu0
      %793 = vdwg.mxu0
      %794 = vmatpush.bf16.msra.mxu0 0
      %795 = vmatpush.bf16.msra.mxu0 0
      %796 = vmatpush.bf16.msra.mxu0 0
      %797 = vmatpush.bf16.msra.mxu0 0
      %798 = vmatpush.bf16.msra.mxu0 0
      %799 = vmatpush.bf16.msra.mxu0 0
      %800 = vmatpush.bf16.msra.mxu0 0
      %801 = vmatpush.bf16.msra.mxu0 %v714
      %802 = vmatmul.bf16.gmra.mxu0 %v693
      %v803 = vpop.f32.mrf.mxu0
      %v804 = vadd.f32 0.0, %v803
      %v805 = vpop.f32.mrf.mxu0
      %806 = vdwg.mxu0
      %v807 = vadd.f32 %v588, %v726
      %v808 = vadd.f32 %v601, %v739
      %v809 = vadd.f32 %v614, %v752
      %v810 = vadd.f32 %v627, %v765
      %v811 = vadd.f32 %v640, %v778
      %v812 = vadd.f32 %v653, %v791
      %v813 = vadd.f32 %v666, %v804
      %814 = vrot.lane.b32.xlu0 %v395, 104
      %v815 = vpop.permute.xlu0 %814
      %816 = vrot.lane.b32.xlu0 %v409, 125
      %v817 = vpop.permute.xlu0 %816
      %818 = vrot.lane.b32.xlu0 %v410, 125
      %v819 = vpop.permute.xlu0 %818
      %820 = vrot.lane.b32.xlu0 %v411, 125
      %v821 = vpop.permute.xlu0 %820
      %822 = vrot.lane.b32.xlu0 %v412, 125
      %v823 = vpop.permute.xlu0 %822
      %824 = vrot.lane.b32.xlu0 %v413, 125
      %v825 = vpop.permute.xlu0 %824
      %826 = vrot.lane.b32.xlu0 %v414, 125
      %v827 = vpop.permute.xlu0 %826
      %828 = vrot.lane.b32.xlu0 %v415, 125
      %v829 = vpop.permute.xlu0 %828
      %vm830 = vcmask 1022976
      %v831 = vsel %vm830, %v817, %v819
      %v832 = vsel %vm830, %v819, %v821
      %v833 = vsel %vm830, %v821, %v823
      %v834 = vsel %vm830, %v823, %v825
      %v835 = vsel %vm830, %v825, %v827
      %v836 = vsel %vm830, %v827, %v829
      %v838 = vsel %vm437, %v815, 0
      %v841 = vsel %vm441, %v831, 0
      %v844 = vsel %vm441, %v832, 0
      %v847 = vsel %vm441, %v833, 0
      %v850 = vsel %vm441, %v834, 0
      %v853 = vsel %vm441, %v835, 0
      %v856 = vsel %vm441, %v836, 0
      %v859 = vsel %vm441, %v829, 0
      %861 = vmatpush.bf16.msra.mxu0 0
      %862 = vmatpush.bf16.msra.mxu0 0
      %863 = vmatpush.bf16.msra.mxu0 0
      %864 = vmatpush.bf16.msra.mxu0 0
      %865 = vmatpush.bf16.msra.mxu0 0
      %866 = vmatpush.bf16.msra.mxu0 0
      %867 = vmatpush.bf16.msra.mxu0 0
      %868 = vmatpush.bf16.msra.mxu0 %v841
      %869 = vmatmul.bf16.gmra.mxu0 %v838
      %v870 = vpop.f32.mrf.mxu0
      %v871 = vadd.f32 0.0, %v870
      %v872 = vpop.f32.mrf.mxu0
      %873 = vdwg.mxu0
      %874 = vmatpush.bf16.msra.mxu0 0
      %875 = vmatpush.bf16.msra.mxu0 0
      %876 = vmatpush.bf16.msra.mxu0 0
      %877 = vmatpush.bf16.msra.mxu0 0
      %878 = vmatpush.bf16.msra.mxu0 0
      %879 = vmatpush.bf16.msra.mxu0 0
      %880 = vmatpush.bf16.msra.mxu0 0
      %881 = vmatpush.bf16.msra.mxu0 %v844
      %882 = vmatmul.bf16.gmra.mxu0 %v838
      %v883 = vpop.f32.mrf.mxu0
      %v884 = vadd.f32 0.0, %v883
      %v885 = vpop.f32.mrf.mxu0
      %886 = vdwg.mxu0
      %887 = vmatpush.bf16.msra.mxu0 0
      %888 = vmatpush.bf16.msra.mxu0 0
      %889 = vmatpush.bf16.msra.mxu0 0
      %890 = vmatpush.bf16.msra.mxu0 0
      %891 = vmatpush.bf16.msra.mxu0 0
      %892 = vmatpush.bf16.msra.mxu0 0
      %893 = vmatpush.bf16.msra.mxu0 0
      %894 = vmatpush.bf16.msra.mxu0 %v847
      %895 = vmatmul.bf16.gmra.mxu0 %v838
      %v896 = vpop.f32.mrf.mxu0
      %v897 = vadd.f32 0.0, %v896
      %v898 = vpop.f32.mrf.mxu0
      %899 = vdwg.mxu0
      %900 = vmatpush.bf16.msra.mxu0 0
      %901 = vmatpush.bf16.msra.mxu0 0
      %902 = vmatpush.bf16.msra.mxu0 0
      %903 = vmatpush.bf16.msra.mxu0 0
      %904 = vmatpush.bf16.msra.mxu0 0
      %905 = vmatpush.bf16.msra.mxu0 0
      %906 = vmatpush.bf16.msra.mxu0 0
      %907 = vmatpush.bf16.msra.mxu0 %v850
      %908 = vmatmul.bf16.gmra.mxu0 %v838
      %v909 = vpop.f32.mrf.mxu0
      %v910 = vadd.f32 0.0, %v909
      %v911 = vpop.f32.mrf.mxu0
      %912 = vdwg.mxu0
      %913 = vmatpush.bf16.msra.mxu0 0
      %914 = vmatpush.bf16.msra.mxu0 0
      %915 = vmatpush.bf16.msra.mxu0 0
      %916 = vmatpush.bf16.msra.mxu0 0
      %917 = vmatpush.bf16.msra.mxu0 0
      %918 = vmatpush.bf16.msra.mxu0 0
      %919 = vmatpush.bf16.msra.mxu0 0
      %920 = vmatpush.bf16.msra.mxu0 %v853
      %921 = vmatmul.bf16.gmra.mxu0 %v838
      %v922 = vpop.f32.mrf.mxu0
      %v923 = vadd.f32 0.0, %v922
      %v924 = vpop.f32.mrf.mxu0
      %925 = vdwg.mxu0
      %926 = vmatpush.bf16.msra.mxu0 0
      %927 = vmatpush.bf16.msra.mxu0 0
      %928 = vmatpush.bf16.msra.mxu0 0
      %929 = vmatpush.bf16.msra.mxu0 0
      %930 = vmatpush.bf16.msra.mxu0 0
      %931 = vmatpush.bf16.msra.mxu0 0
      %932 = vmatpush.bf16.msra.mxu0 0
      %933 = vmatpush.bf16.msra.mxu0 %v856
      %934 = vmatmul.bf16.gmra.mxu0 %v838
      %v935 = vpop.f32.mrf.mxu0
      %v936 = vadd.f32 0.0, %v935
      %v937 = vpop.f32.mrf.mxu0
      %938 = vdwg.mxu0
      %939 = vmatpush.bf16.msra.mxu0 0
      %940 = vmatpush.bf16.msra.mxu0 0
      %941 = vmatpush.bf16.msra.mxu0 0
      %942 = vmatpush.bf16.msra.mxu0 0
      %943 = vmatpush.bf16.msra.mxu0 0
      %944 = vmatpush.bf16.msra.mxu0 0
      %945 = vmatpush.bf16.msra.mxu0 0
      %946 = vmatpush.bf16.msra.mxu0 %v859
      %947 = vmatmul.bf16.gmra.mxu0 %v838
      %v948 = vpop.f32.mrf.mxu0
      %v949 = vadd.f32 0.0, %v948
      %v950 = vpop.f32.mrf.mxu0
      %951 = vdwg.mxu0
      %v952 = vadd.f32 %v807, %v871
      %v953 = vadd.f32 %v808, %v884
      %v954 = vadd.f32 %v809, %v897
      %v955 = vadd.f32 %v810, %v910
      %v956 = vadd.f32 %v811, %v923
      %v957 = vadd.f32 %v812, %v936
      %v958 = vadd.f32 %v813, %v949
      %959 = vrot.lane.b32.xlu0 %v395, 96
      %v960 = vpop.permute.xlu0 %959
      %961 = vrot.lane.b32.xlu0 %v409, 124
      %v962 = vpop.permute.xlu0 %961
      %963 = vrot.lane.b32.xlu0 %v410, 124
      %v964 = vpop.permute.xlu0 %963
      %965 = vrot.lane.b32.xlu0 %v411, 124
      %v966 = vpop.permute.xlu0 %965
      %967 = vrot.lane.b32.xlu0 %v412, 124
      %v968 = vpop.permute.xlu0 %967
      %969 = vrot.lane.b32.xlu0 %v413, 124
      %v970 = vpop.permute.xlu0 %969
      %971 = vrot.lane.b32.xlu0 %v414, 124
      %v972 = vpop.permute.xlu0 %971
      %973 = vrot.lane.b32.xlu0 %v415, 124
      %v974 = vpop.permute.xlu0 %973
      %vm975 = vcmask 1014784
      %v976 = vsel %vm975, %v962, %v964
      %v977 = vsel %vm975, %v964, %v966
      %v978 = vsel %vm975, %v966, %v968
      %v979 = vsel %vm975, %v968, %v970
      %v980 = vsel %vm975, %v970, %v972
      %v981 = vsel %vm975, %v972, %v974
      %v983 = vsel %vm437, %v960, 0
      %v986 = vsel %vm441, %v976, 0
      %v989 = vsel %vm441, %v977, 0
      %v992 = vsel %vm441, %v978, 0
      %v995 = vsel %vm441, %v979, 0
      %v998 = vsel %vm441, %v980, 0
      %v1001 = vsel %vm441, %v981, 0
      %v1004 = vsel %vm441, %v974, 0
      %1006 = vmatpush.bf16.msra.mxu0 0
      %1007 = vmatpush.bf16.msra.mxu0 0
      %1008 = vmatpush.bf16.msra.mxu0 0
      %1009 = vmatpush.bf16.msra.mxu0 0
      %1010 = vmatpush.bf16.msra.mxu0 0
      %1011 = vmatpush.bf16.msra.mxu0 0
      %1012 = vmatpush.bf16.msra.mxu0 0
      %1013 = vmatpush.bf16.msra.mxu0 %v986
      %1014 = vmatmul.bf16.gmra.mxu0 %v983
      %v1015 = vpop.f32.mrf.mxu0
      %v1016 = vadd.f32 0.0, %v1015
      %v1017 = vpop.f32.mrf.mxu0
      %1018 = vdwg.mxu0
      %1019 = vmatpush.bf16.msra.mxu0 0
      %1020 = vmatpush.bf16.msra.mxu0 0
      %1021 = vmatpush.bf16.msra.mxu0 0
      %1022 = vmatpush.bf16.msra.mxu0 0
      %1023 = vmatpush.bf16.msra.mxu0 0
      %1024 = vmatpush.bf16.msra.mxu0 0
      %1025 = vmatpush.bf16.msra.mxu0 0
      %1026 = vmatpush.bf16.msra.mxu0 %v989
      %1027 = vmatmul.bf16.gmra.mxu0 %v983
      %v1028 = vpop.f32.mrf.mxu0
      %v1029 = vadd.f32 0.0, %v1028
      %v1030 = vpop.f32.mrf.mxu0
      %1031 = vdwg.mxu0
      %1032 = vmatpush.bf16.msra.mxu0 0
      %1033 = vmatpush.bf16.msra.mxu0 0
      %1034 = vmatpush.bf16.msra.mxu0 0
      %1035 = vmatpush.bf16.msra.mxu0 0
      %1036 = vmatpush.bf16.msra.mxu0 0
      %1037 = vmatpush.bf16.msra.mxu0 0
      %1038 = vmatpush.bf16.msra.mxu0 0
      %1039 = vmatpush.bf16.msra.mxu0 %v992
      %1040 = vmatmul.bf16.gmra.mxu0 %v983
      %v1041 = vpop.f32.mrf.mxu0
      %v1042 = vadd.f32 0.0, %v1041
      %v1043 = vpop.f32.mrf.mxu0
      %1044 = vdwg.mxu0
      %1045 = vmatpush.bf16.msra.mxu0 0
      %1046 = vmatpush.bf16.msra.mxu0 0
      %1047 = vmatpush.bf16.msra.mxu0 0
      %1048 = vmatpush.bf16.msra.mxu0 0
      %1049 = vmatpush.bf16.msra.mxu0 0
      %1050 = vmatpush.bf16.msra.mxu0 0
      %1051 = vmatpush.bf16.msra.mxu0 0
      %1052 = vmatpush.bf16.msra.mxu0 %v995
      %1053 = vmatmul.bf16.gmra.mxu0 %v983
      %v1054 = vpop.f32.mrf.mxu0
      %v1055 = vadd.f32 0.0, %v1054
      %v1056 = vpop.f32.mrf.mxu0
      %1057 = vdwg.mxu0
      %1058 = vmatpush.bf16.msra.mxu0 0
      %1059 = vmatpush.bf16.msra.mxu0 0
      %1060 = vmatpush.bf16.msra.mxu0 0
      %1061 = vmatpush.bf16.msra.mxu0 0
      %1062 = vmatpush.bf16.msra.mxu0 0
      %1063 = vmatpush.bf16.msra.mxu0 0
      %1064 = vmatpush.bf16.msra.mxu0 0
      %1065 = vmatpush.bf16.msra.mxu0 %v998
      %1066 = vmatmul.bf16.gmra.mxu0 %v983
      %v1067 = vpop.f32.mrf.mxu0
      %v1068 = vadd.f32 0.0, %v1067
      %v1069 = vpop.f32.mrf.mxu0
      %1070 = vdwg.mxu0
      %1071 = vmatpush.bf16.msra.mxu0 0
      %1072 = vmatpush.bf16.msra.mxu0 0
      %1073 = vmatpush.bf16.msra.mxu0 0
      %1074 = vmatpush.bf16.msra.mxu0 0
      %1075 = vmatpush.bf16.msra.mxu0 0
      %1076 = vmatpush.bf16.msra.mxu0 0
      %1077 = vmatpush.bf16.msra.mxu0 0
      %1078 = vmatpush.bf16.msra.mxu0 %v1001
      %1079 = vmatmul.bf16.gmra.mxu0 %v983
      %v1080 = vpop.f32.mrf.mxu0
      %v1081 = vadd.f32 0.0, %v1080
      %v1082 = vpop.f32.mrf.mxu0
      %1083 = vdwg.mxu0
      %1084 = vmatpush.bf16.msra.mxu0 0
      %1085 = vmatpush.bf16.msra.mxu0 0
      %1086 = vmatpush.bf16.msra.mxu0 0
      %1087 = vmatpush.bf16.msra.mxu0 0
      %1088 = vmatpush.bf16.msra.mxu0 0
      %1089 = vmatpush.bf16.msra.mxu0 0
      %1090 = vmatpush.bf16.msra.mxu0 0
      %1091 = vmatpush.bf16.msra.mxu0 %v1004
      %1092 = vmatmul.bf16.gmra.mxu0 %v983
      %v1093 = vpop.f32.mrf.mxu0
      %v1094 = vadd.f32 0.0, %v1093
      %v1095 = vpop.f32.mrf.mxu0
      %1096 = vdwg.mxu0
      %v1097 = vadd.f32 %v952, %v1016
      %v1098 = vadd.f32 %v953, %v1029
      %v1099 = vadd.f32 %v954, %v1042
      %v1100 = vadd.f32 %v955, %v1055
      %v1101 = vadd.f32 %v956, %v1068
      %v1102 = vadd.f32 %v957, %v1081
      %v1103 = vadd.f32 %v958, %v1094
      %v1104 = vld [vmem:[%s381] sm:$0xff]
      %v1105 = vld [vmem:[%s381 + $0x8] sm:$0xff]
      %v1106 = vld [vmem:[%s381 + $0x10] sm:$0xff]
      %v1107 = vld [vmem:[%s381 + $0x18] sm:$0xff]
      %1108 = vrot.lane.b32.xlu0 %v395, 88
      %v1109 = vpop.permute.xlu0 %1108
      %v1114 = vunpack.c.l.b16 %v1104
      %v1115 = vunpack.c.h.b16 %v1104
      %v1116 = vunpack.c.l.b16 %v1105
      %v1117 = vunpack.c.h.b16 %v1105
      %v1118 = vunpack.c.l.b16 %v1106
      %v1119 = vunpack.c.h.b16 %v1106
      %v1120 = vunpack.c.l.b16 %v1107
      %v1121 = vunpack.c.h.b16 %v1107
      %v1122 = vpack.c.b16 %v1114, %v1114
      %v1123 = vpack.c.b16 %v1115, %v1115
      %v1124 = vpack.c.b16 %v1116, %v1116
      %v1125 = vpack.c.b16 %v1117, %v1117
      %v1126 = vpack.c.b16 %v1118, %v1118
      %v1127 = vpack.c.b16 %v1119, %v1119
      %v1128 = vpack.c.b16 %v1120, %v1120
      %v1129 = vpack.c.b16 %v1121, %v1121
      %1130 = vrot.lane.b32.xlu0 %v1122, 96
      %v1131 = vpop.permute.xlu0 %1130
      %1132 = vrot.lane.b32.xlu0 %v1123, 96
      %v1133 = vpop.permute.xlu0 %1132
      %1134 = vrot.lane.b32.xlu0 %v1124, 96
      %v1135 = vpop.permute.xlu0 %1134
      %1136 = vrot.lane.b32.xlu0 %v1125, 96
      %v1137 = vpop.permute.xlu0 %1136
      %1138 = vrot.lane.b32.xlu0 %v1126, 96
      %v1139 = vpop.permute.xlu0 %1138
      %1140 = vrot.lane.b32.xlu0 %v1127, 96
      %v1141 = vpop.permute.xlu0 %1140
      %1142 = vrot.lane.b32.xlu0 %v1128, 96
      %v1143 = vpop.permute.xlu0 %1142
      %1144 = vrot.lane.b32.xlu0 %v1129, 96
      %v1145 = vpop.permute.xlu0 %1144
      %vm1146 = vcmask 785408
      %v1147 = vsel %vm1146, %v1131, %v1133
      %v1148 = vsel %vm1146, %v1133, %v1135
      %v1149 = vsel %vm1146, %v1135, %v1137
      %v1150 = vsel %vm1146, %v1137, %v1139
      %v1151 = vsel %vm1146, %v1139, %v1141
      %v1152 = vsel %vm1146, %v1141, %v1143
      %v1153 = vsel %vm1146, %v1143, %v1145
      %v1155 = vsel %vm437, %v1109, 0
      %v1158 = vsel %vm441, %v1147, 0
      %v1161 = vsel %vm441, %v1148, 0
      %v1164 = vsel %vm441, %v1149, 0
      %v1167 = vsel %vm441, %v1150, 0
      %v1170 = vsel %vm441, %v1151, 0
      %v1173 = vsel %vm441, %v1152, 0
      %v1176 = vsel %vm441, %v1153, 0
      %1178 = vmatpush.bf16.msra.mxu0 0
      %1179 = vmatpush.bf16.msra.mxu0 0
      %1180 = vmatpush.bf16.msra.mxu0 0
      %1181 = vmatpush.bf16.msra.mxu0 0
      %1182 = vmatpush.bf16.msra.mxu0 0
      %1183 = vmatpush.bf16.msra.mxu0 0
      %1184 = vmatpush.bf16.msra.mxu0 0
      %1185 = vmatpush.bf16.msra.mxu0 %v1158
      %1186 = vmatmul.bf16.gmra.mxu0 %v1155
      %v1187 = vpop.f32.mrf.mxu0
      %v1188 = vadd.f32 0.0, %v1187
      %v1189 = vpop.f32.mrf.mxu0
      %1190 = vdwg.mxu0
      %1191 = vmatpush.bf16.msra.mxu0 0
      %1192 = vmatpush.bf16.msra.mxu0 0
      %1193 = vmatpush.bf16.msra.mxu0 0
      %1194 = vmatpush.bf16.msra.mxu0 0
      %1195 = vmatpush.bf16.msra.mxu0 0
      %1196 = vmatpush.bf16.msra.mxu0 0
      %1197 = vmatpush.bf16.msra.mxu0 0
      %1198 = vmatpush.bf16.msra.mxu0 %v1161
      %1199 = vmatmul.bf16.gmra.mxu0 %v1155
      %v1200 = vpop.f32.mrf.mxu0
      %v1201 = vadd.f32 0.0, %v1200
      %v1202 = vpop.f32.mrf.mxu0
      %1203 = vdwg.mxu0
      %1204 = vmatpush.bf16.msra.mxu0 0
      %1205 = vmatpush.bf16.msra.mxu0 0
      %1206 = vmatpush.bf16.msra.mxu0 0
      %1207 = vmatpush.bf16.msra.mxu0 0
      %1208 = vmatpush.bf16.msra.mxu0 0
      %1209 = vmatpush.bf16.msra.mxu0 0
      %1210 = vmatpush.bf16.msra.mxu0 0
      %1211 = vmatpush.bf16.msra.mxu0 %v1164
      %1212 = vmatmul.bf16.gmra.mxu0 %v1155
      %v1213 = vpop.f32.mrf.mxu0
      %v1214 = vadd.f32 0.0, %v1213
      %v1215 = vpop.f32.mrf.mxu0
      %1216 = vdwg.mxu0
      %1217 = vmatpush.bf16.msra.mxu0 0
      %1218 = vmatpush.bf16.msra.mxu0 0
      %1219 = vmatpush.bf16.msra.mxu0 0
      %1220 = vmatpush.bf16.msra.mxu0 0
      %1221 = vmatpush.bf16.msra.mxu0 0
      %1222 = vmatpush.bf16.msra.mxu0 0
      %1223 = vmatpush.bf16.msra.mxu0 0
      %1224 = vmatpush.bf16.msra.mxu0 %v1167
      %1225 = vmatmul.bf16.gmra.mxu0 %v1155
      %v1226 = vpop.f32.mrf.mxu0
      %v1227 = vadd.f32 0.0, %v1226
      %v1228 = vpop.f32.mrf.mxu0
      %1229 = vdwg.mxu0
      %1230 = vmatpush.bf16.msra.mxu0 0
      %1231 = vmatpush.bf16.msra.mxu0 0
      %1232 = vmatpush.bf16.msra.mxu0 0
      %1233 = vmatpush.bf16.msra.mxu0 0
      %1234 = vmatpush.bf16.msra.mxu0 0
      %1235 = vmatpush.bf16.msra.mxu0 0
      %1236 = vmatpush.bf16.msra.mxu0 0
      %1237 = vmatpush.bf16.msra.mxu0 %v1170
      %1238 = vmatmul.bf16.gmra.mxu0 %v1155
      %v1239 = vpop.f32.mrf.mxu0
      %v1240 = vadd.f32 0.0, %v1239
      %v1241 = vpop.f32.mrf.mxu0
      %1242 = vdwg.mxu0
      %1243 = vmatpush.bf16.msra.mxu0 0
      %1244 = vmatpush.bf16.msra.mxu0 0
      %1245 = vmatpush.bf16.msra.mxu0 0
      %1246 = vmatpush.bf16.msra.mxu0 0
      %1247 = vmatpush.bf16.msra.mxu0 0
      %1248 = vmatpush.bf16.msra.mxu0 0
      %1249 = vmatpush.bf16.msra.mxu0 0
      %1250 = vmatpush.bf16.msra.mxu0 %v1173
      %1251 = vmatmul.bf16.gmra.mxu0 %v1155
      %v1252 = vpop.f32.mrf.mxu0
      %v1253 = vadd.f32 0.0, %v1252
      %v1254 = vpop.f32.mrf.mxu0
      %1255 = vdwg.mxu0
      %1256 = vmatpush.bf16.msra.mxu0 0
      %1257 = vmatpush.bf16.msra.mxu0 0
      %1258 = vmatpush.bf16.msra.mxu0 0
      %1259 = vmatpush.bf16.msra.mxu0 0
      %1260 = vmatpush.bf16.msra.mxu0 0
      %1261 = vmatpush.bf16.msra.mxu0 0
      %1262 = vmatpush.bf16.msra.mxu0 0
      %1263 = vmatpush.bf16.msra.mxu0 %v1176
      %1264 = vmatmul.bf16.gmra.mxu0 %v1155
      %v1265 = vpop.f32.mrf.mxu0
      %v1266 = vadd.f32 0.0, %v1265
      %v1267 = vpop.f32.mrf.mxu0
      %1268 = vdwg.mxu0
      %v1269 = vadd.f32 %v1097, %v1188
      %v1270 = vadd.f32 %v1098, %v1201
      %v1271 = vadd.f32 %v1099, %v1214
      %v1272 = vadd.f32 %v1100, %v1227
      %v1273 = vadd.f32 %v1101, %v1240
      %v1274 = vadd.f32 %v1102, %v1253
      %v1275 = vadd.f32 %v1103, %v1266
      %1276 = vrot.lane.b32.xlu0 %v395, 80
      %v1277 = vpop.permute.xlu0 %1276
      %1278 = vrot.lane.b32.xlu0 %v1122, 95
      %v1279 = vpop.permute.xlu0 %1278
      %1280 = vrot.lane.b32.xlu0 %v1123, 95
      %v1281 = vpop.permute.xlu0 %1280
      %1282 = vrot.lane.b32.xlu0 %v1124, 95
      %v1283 = vpop.permute.xlu0 %1282
      %1284 = vrot.lane.b32.xlu0 %v1125, 95
      %v1285 = vpop.permute.xlu0 %1284
      %1286 = vrot.lane.b32.xlu0 %v1126, 95
      %v1287 = vpop.permute.xlu0 %1286
      %1288 = vrot.lane.b32.xlu0 %v1127, 95
      %v1289 = vpop.permute.xlu0 %1288
      %1290 = vrot.lane.b32.xlu0 %v1128, 95
      %v1291 = vpop.permute.xlu0 %1290
      %1292 = vrot.lane.b32.xlu0 %v1129, 95
      %v1293 = vpop.permute.xlu0 %1292
      %vm1294 = vcmask 777216
      %v1295 = vsel %vm1294, %v1279, %v1281
      %v1296 = vsel %vm1294, %v1281, %v1283
      %v1297 = vsel %vm1294, %v1283, %v1285
      %v1298 = vsel %vm1294, %v1285, %v1287
      %v1299 = vsel %vm1294, %v1287, %v1289
      %v1300 = vsel %vm1294, %v1289, %v1291
      %v1301 = vsel %vm1294, %v1291, %v1293
      %v1303 = vsel %vm437, %v1277, 0
      %v1306 = vsel %vm441, %v1295, 0
      %v1309 = vsel %vm441, %v1296, 0
      %v1312 = vsel %vm441, %v1297, 0
      %v1315 = vsel %vm441, %v1298, 0
      %v1318 = vsel %vm441, %v1299, 0
      %v1321 = vsel %vm441, %v1300, 0
      %v1324 = vsel %vm441, %v1301, 0
      %1326 = vmatpush.bf16.msra.mxu0 0
      %1327 = vmatpush.bf16.msra.mxu0 0
      %1328 = vmatpush.bf16.msra.mxu0 0
      %1329 = vmatpush.bf16.msra.mxu0 0
      %1330 = vmatpush.bf16.msra.mxu0 0
      %1331 = vmatpush.bf16.msra.mxu0 0
      %1332 = vmatpush.bf16.msra.mxu0 0
      %1333 = vmatpush.bf16.msra.mxu0 %v1306
      %1334 = vmatmul.bf16.gmra.mxu0 %v1303
      %v1335 = vpop.f32.mrf.mxu0
      %v1336 = vadd.f32 0.0, %v1335
      %v1337 = vpop.f32.mrf.mxu0
      %1338 = vdwg.mxu0
      %1339 = vmatpush.bf16.msra.mxu0 0
      %1340 = vmatpush.bf16.msra.mxu0 0
      %1341 = vmatpush.bf16.msra.mxu0 0
      %1342 = vmatpush.bf16.msra.mxu0 0
      %1343 = vmatpush.bf16.msra.mxu0 0
      %1344 = vmatpush.bf16.msra.mxu0 0
      %1345 = vmatpush.bf16.msra.mxu0 0
      %1346 = vmatpush.bf16.msra.mxu0 %v1309
      %1347 = vmatmul.bf16.gmra.mxu0 %v1303
      %v1348 = vpop.f32.mrf.mxu0
      %v1349 = vadd.f32 0.0, %v1348
      %v1350 = vpop.f32.mrf.mxu0
      %1351 = vdwg.mxu0
      %1352 = vmatpush.bf16.msra.mxu0 0
      %1353 = vmatpush.bf16.msra.mxu0 0
      %1354 = vmatpush.bf16.msra.mxu0 0
      %1355 = vmatpush.bf16.msra.mxu0 0
      %1356 = vmatpush.bf16.msra.mxu0 0
      %1357 = vmatpush.bf16.msra.mxu0 0
      %1358 = vmatpush.bf16.msra.mxu0 0
      %1359 = vmatpush.bf16.msra.mxu0 %v1312
      %1360 = vmatmul.bf16.gmra.mxu0 %v1303
      %v1361 = vpop.f32.mrf.mxu0
      %v1362 = vadd.f32 0.0, %v1361
      %v1363 = vpop.f32.mrf.mxu0
      %1364 = vdwg.mxu0
      %1365 = vmatpush.bf16.msra.mxu0 0
      %1366 = vmatpush.bf16.msra.mxu0 0
      %1367 = vmatpush.bf16.msra.mxu0 0
      %1368 = vmatpush.bf16.msra.mxu0 0
      %1369 = vmatpush.bf16.msra.mxu0 0
      %1370 = vmatpush.bf16.msra.mxu0 0
      %1371 = vmatpush.bf16.msra.mxu0 0
      %1372 = vmatpush.bf16.msra.mxu0 %v1315
      %1373 = vmatmul.bf16.gmra.mxu0 %v1303
      %v1374 = vpop.f32.mrf.mxu0
      %v1375 = vadd.f32 0.0, %v1374
      %v1376 = vpop.f32.mrf.mxu0
      %1377 = vdwg.mxu0
      %1378 = vmatpush.bf16.msra.mxu0 0
      %1379 = vmatpush.bf16.msra.mxu0 0
      %1380 = vmatpush.bf16.msra.mxu0 0
      %1381 = vmatpush.bf16.msra.mxu0 0
      %1382 = vmatpush.bf16.msra.mxu0 0
      %1383 = vmatpush.bf16.msra.mxu0 0
      %1384 = vmatpush.bf16.msra.mxu0 0
      %1385 = vmatpush.bf16.msra.mxu0 %v1318
      %1386 = vmatmul.bf16.gmra.mxu0 %v1303
      %v1387 = vpop.f32.mrf.mxu0
      %v1388 = vadd.f32 0.0, %v1387
      %v1389 = vpop.f32.mrf.mxu0
      %1390 = vdwg.mxu0
      %1391 = vmatpush.bf16.msra.mxu0 0
      %1392 = vmatpush.bf16.msra.mxu0 0
      %1393 = vmatpush.bf16.msra.mxu0 0
      %1394 = vmatpush.bf16.msra.mxu0 0
      %1395 = vmatpush.bf16.msra.mxu0 0
      %1396 = vmatpush.bf16.msra.mxu0 0
      %1397 = vmatpush.bf16.msra.mxu0 0
      %1398 = vmatpush.bf16.msra.mxu0 %v1321
      %1399 = vmatmul.bf16.gmra.mxu0 %v1303
      %v1400 = vpop.f32.mrf.mxu0
      %v1401 = vadd.f32 0.0, %v1400
      %v1402 = vpop.f32.mrf.mxu0
      %1403 = vdwg.mxu0
      %1404 = vmatpush.bf16.msra.mxu0 0
      %1405 = vmatpush.bf16.msra.mxu0 0
      %1406 = vmatpush.bf16.msra.mxu0 0
      %1407 = vmatpush.bf16.msra.mxu0 0
      %1408 = vmatpush.bf16.msra.mxu0 0
      %1409 = vmatpush.bf16.msra.mxu0 0
      %1410 = vmatpush.bf16.msra.mxu0 0
      %1411 = vmatpush.bf16.msra.mxu0 %v1324
      %1412 = vmatmul.bf16.gmra.mxu0 %v1303
      %v1413 = vpop.f32.mrf.mxu0
      %v1414 = vadd.f32 0.0, %v1413
      %v1415 = vpop.f32.mrf.mxu0
      %1416 = vdwg.mxu0
      %v1417 = vadd.f32 %v1269, %v1336
      %v1418 = vadd.f32 %v1270, %v1349
      %v1419 = vadd.f32 %v1271, %v1362
      %v1420 = vadd.f32 %v1272, %v1375
      %v1421 = vadd.f32 %v1273, %v1388
      %v1422 = vadd.f32 %v1274, %v1401
      %v1423 = vadd.f32 %v1275, %v1414
      %1424 = vrot.lane.b32.xlu0 %v395, 72
      %v1425 = vpop.permute.xlu0 %1424
      %1426 = vrot.lane.b32.xlu0 %v1122, 94
      %v1427 = vpop.permute.xlu0 %1426
      %1428 = vrot.lane.b32.xlu0 %v1123, 94
      %v1429 = vpop.permute.xlu0 %1428
      %1430 = vrot.lane.b32.xlu0 %v1124, 94
      %v1431 = vpop.permute.xlu0 %1430
      %1432 = vrot.lane.b32.xlu0 %v1125, 94
      %v1433 = vpop.permute.xlu0 %1432
      %1434 = vrot.lane.b32.xlu0 %v1126, 94
      %v1435 = vpop.permute.xlu0 %1434
      %1436 = vrot.lane.b32.xlu0 %v1127, 94
      %v1437 = vpop.permute.xlu0 %1436
      %1438 = vrot.lane.b32.xlu0 %v1128, 94
      %v1439 = vpop.permute.xlu0 %1438
      %1440 = vrot.lane.b32.xlu0 %v1129, 94
      %v1441 = vpop.permute.xlu0 %1440
      %vm1442 = vcmask 769024
      %v1443 = vsel %vm1442, %v1427, %v1429
      %v1444 = vsel %vm1442, %v1429, %v1431
      %v1445 = vsel %vm1442, %v1431, %v1433
      %v1446 = vsel %vm1442, %v1433, %v1435
      %v1447 = vsel %vm1442, %v1435, %v1437
      %v1448 = vsel %vm1442, %v1437, %v1439
      %v1449 = vsel %vm1442, %v1439, %v1441
      %v1451 = vsel %vm437, %v1425, 0
      %v1454 = vsel %vm441, %v1443, 0
      %v1457 = vsel %vm441, %v1444, 0
      %v1460 = vsel %vm441, %v1445, 0
      %v1463 = vsel %vm441, %v1446, 0
      %v1466 = vsel %vm441, %v1447, 0
      %v1469 = vsel %vm441, %v1448, 0
      %v1472 = vsel %vm441, %v1449, 0
      %1474 = vmatpush.bf16.msra.mxu0 0
      %1475 = vmatpush.bf16.msra.mxu0 0
      %1476 = vmatpush.bf16.msra.mxu0 0
      %1477 = vmatpush.bf16.msra.mxu0 0
      %1478 = vmatpush.bf16.msra.mxu0 0
      %1479 = vmatpush.bf16.msra.mxu0 0
      %1480 = vmatpush.bf16.msra.mxu0 0
      %1481 = vmatpush.bf16.msra.mxu0 %v1454
      %1482 = vmatmul.bf16.gmra.mxu0 %v1451
      %v1483 = vpop.f32.mrf.mxu0
      %v1484 = vadd.f32 0.0, %v1483
      %v1485 = vpop.f32.mrf.mxu0
      %1486 = vdwg.mxu0
      %1487 = vmatpush.bf16.msra.mxu0 0
      %1488 = vmatpush.bf16.msra.mxu0 0
      %1489 = vmatpush.bf16.msra.mxu0 0
      %1490 = vmatpush.bf16.msra.mxu0 0
      %1491 = vmatpush.bf16.msra.mxu0 0
      %1492 = vmatpush.bf16.msra.mxu0 0
      %1493 = vmatpush.bf16.msra.mxu0 0
      %1494 = vmatpush.bf16.msra.mxu0 %v1457
      %1495 = vmatmul.bf16.gmra.mxu0 %v1451
      %v1496 = vpop.f32.mrf.mxu0
      %v1497 = vadd.f32 0.0, %v1496
      %v1498 = vpop.f32.mrf.mxu0
      %1499 = vdwg.mxu0
      %1500 = vmatpush.bf16.msra.mxu0 0
      %1501 = vmatpush.bf16.msra.mxu0 0
      %1502 = vmatpush.bf16.msra.mxu0 0
      %1503 = vmatpush.bf16.msra.mxu0 0
      %1504 = vmatpush.bf16.msra.mxu0 0
      %1505 = vmatpush.bf16.msra.mxu0 0
      %1506 = vmatpush.bf16.msra.mxu0 0
      %1507 = vmatpush.bf16.msra.mxu0 %v1460
      %1508 = vmatmul.bf16.gmra.mxu0 %v1451
      %v1509 = vpop.f32.mrf.mxu0
      %v1510 = vadd.f32 0.0, %v1509
      %v1511 = vpop.f32.mrf.mxu0
      %1512 = vdwg.mxu0
      %1513 = vmatpush.bf16.msra.mxu0 0
      %1514 = vmatpush.bf16.msra.mxu0 0
      %1515 = vmatpush.bf16.msra.mxu0 0
      %1516 = vmatpush.bf16.msra.mxu0 0
      %1517 = vmatpush.bf16.msra.mxu0 0
      %1518 = vmatpush.bf16.msra.mxu0 0
      %1519 = vmatpush.bf16.msra.mxu0 0
      %1520 = vmatpush.bf16.msra.mxu0 %v1463
      %1521 = vmatmul.bf16.gmra.mxu0 %v1451
      %v1522 = vpop.f32.mrf.mxu0
      %v1523 = vadd.f32 0.0, %v1522
      %v1524 = vpop.f32.mrf.mxu0
      %1525 = vdwg.mxu0
      %1526 = vmatpush.bf16.msra.mxu0 0
      %1527 = vmatpush.bf16.msra.mxu0 0
      %1528 = vmatpush.bf16.msra.mxu0 0
      %1529 = vmatpush.bf16.msra.mxu0 0
      %1530 = vmatpush.bf16.msra.mxu0 0
      %1531 = vmatpush.bf16.msra.mxu0 0
      %1532 = vmatpush.bf16.msra.mxu0 0
      %1533 = vmatpush.bf16.msra.mxu0 %v1466
      %1534 = vmatmul.bf16.gmra.mxu0 %v1451
      %v1535 = vpop.f32.mrf.mxu0
      %v1536 = vadd.f32 0.0, %v1535
      %v1537 = vpop.f32.mrf.mxu0
      %1538 = vdwg.mxu0
      %1539 = vmatpush.bf16.msra.mxu0 0
      %1540 = vmatpush.bf16.msra.mxu0 0
      %1541 = vmatpush.bf16.msra.mxu0 0
      %1542 = vmatpush.bf16.msra.mxu0 0
      %1543 = vmatpush.bf16.msra.mxu0 0
      %1544 = vmatpush.bf16.msra.mxu0 0
      %1545 = vmatpush.bf16.msra.mxu0 0
      %1546 = vmatpush.bf16.msra.mxu0 %v1469
      %1547 = vmatmul.bf16.gmra.mxu0 %v1451
      %v1548 = vpop.f32.mrf.mxu0
      %v1549 = vadd.f32 0.0, %v1548
      %v1550 = vpop.f32.mrf.mxu0
      %1551 = vdwg.mxu0
      %1552 = vmatpush.bf16.msra.mxu0 0
      %1553 = vmatpush.bf16.msra.mxu0 0
      %1554 = vmatpush.bf16.msra.mxu0 0
      %1555 = vmatpush.bf16.msra.mxu0 0
      %1556 = vmatpush.bf16.msra.mxu0 0
      %1557 = vmatpush.bf16.msra.mxu0 0
      %1558 = vmatpush.bf16.msra.mxu0 0
      %1559 = vmatpush.bf16.msra.mxu0 %v1472
      %1560 = vmatmul.bf16.gmra.mxu0 %v1451
      %v1561 = vpop.f32.mrf.mxu0
      %v1562 = vadd.f32 0.0, %v1561
      %v1563 = vpop.f32.mrf.mxu0
      %1564 = vdwg.mxu0
      %v1565 = vadd.f32 %v1417, %v1484
      %v1566 = vadd.f32 %v1418, %v1497
      %v1567 = vadd.f32 %v1419, %v1510
      %v1568 = vadd.f32 %v1420, %v1523
      %v1569 = vadd.f32 %v1421, %v1536
      %v1570 = vadd.f32 %v1422, %v1549
      %v1571 = vadd.f32 %v1423, %v1562
      %1572 = vrot.lane.b32.xlu0 %v395, 64
      %v1573 = vpop.permute.xlu0 %1572
      %1574 = vrot.lane.b32.xlu0 %v1122, 93
      %v1575 = vpop.permute.xlu0 %1574
      %1576 = vrot.lane.b32.xlu0 %v1123, 93
      %v1577 = vpop.permute.xlu0 %1576
      %1578 = vrot.lane.b32.xlu0 %v1124, 93
      %v1579 = vpop.permute.xlu0 %1578
      %1580 = vrot.lane.b32.xlu0 %v1125, 93
      %v1581 = vpop.permute.xlu0 %1580
      %1582 = vrot.lane.b32.xlu0 %v1126, 93
      %v1583 = vpop.permute.xlu0 %1582
      %1584 = vrot.lane.b32.xlu0 %v1127, 93
      %v1585 = vpop.permute.xlu0 %1584
      %1586 = vrot.lane.b32.xlu0 %v1128, 93
      %v1587 = vpop.permute.xlu0 %1586
      %1588 = vrot.lane.b32.xlu0 %v1129, 93
      %v1589 = vpop.permute.xlu0 %1588
      %vm1590 = vcmask 760832
      %v1591 = vsel %vm1590, %v1575, %v1577
      %v1592 = vsel %vm1590, %v1577, %v1579
      %v1593 = vsel %vm1590, %v1579, %v1581
      %v1594 = vsel %vm1590, %v1581, %v1583
      %v1595 = vsel %vm1590, %v1583, %v1585
      %v1596 = vsel %vm1590, %v1585, %v1587
      %v1597 = vsel %vm1590, %v1587, %v1589
      %v1599 = vsel %vm437, %v1573, 0
      %v1602 = vsel %vm441, %v1591, 0
      %v1605 = vsel %vm441, %v1592, 0
      %v1608 = vsel %vm441, %v1593, 0
      %v1611 = vsel %vm441, %v1594, 0
      %v1614 = vsel %vm441, %v1595, 0
      %v1617 = vsel %vm441, %v1596, 0
      %v1620 = vsel %vm441, %v1597, 0
      %1622 = vmatpush.bf16.msra.mxu0 0
      %1623 = vmatpush.bf16.msra.mxu0 0
      %1624 = vmatpush.bf16.msra.mxu0 0
      %1625 = vmatpush.bf16.msra.mxu0 0
      %1626 = vmatpush.bf16.msra.mxu0 0
      %1627 = vmatpush.bf16.msra.mxu0 0
      %1628 = vmatpush.bf16.msra.mxu0 0
      %1629 = vmatpush.bf16.msra.mxu0 %v1602
      %1630 = vmatmul.bf16.gmra.mxu0 %v1599
      %v1631 = vpop.f32.mrf.mxu0
      %v1632 = vadd.f32 0.0, %v1631
      %v1633 = vpop.f32.mrf.mxu0
      %1634 = vdwg.mxu0
      %1635 = vmatpush.bf16.msra.mxu0 0
      %1636 = vmatpush.bf16.msra.mxu0 0
      %1637 = vmatpush.bf16.msra.mxu0 0
      %1638 = vmatpush.bf16.msra.mxu0 0
      %1639 = vmatpush.bf16.msra.mxu0 0
      %1640 = vmatpush.bf16.msra.mxu0 0
      %1641 = vmatpush.bf16.msra.mxu0 0
      %1642 = vmatpush.bf16.msra.mxu0 %v1605
      %1643 = vmatmul.bf16.gmra.mxu0 %v1599
      %v1644 = vpop.f32.mrf.mxu0
      %v1645 = vadd.f32 0.0, %v1644
      %v1646 = vpop.f32.mrf.mxu0
      %1647 = vdwg.mxu0
      %1648 = vmatpush.bf16.msra.mxu0 0
      %1649 = vmatpush.bf16.msra.mxu0 0
      %1650 = vmatpush.bf16.msra.mxu0 0
      %1651 = vmatpush.bf16.msra.mxu0 0
      %1652 = vmatpush.bf16.msra.mxu0 0
      %1653 = vmatpush.bf16.msra.mxu0 0
      %1654 = vmatpush.bf16.msra.mxu0 0
      %1655 = vmatpush.bf16.msra.mxu0 %v1608
      %1656 = vmatmul.bf16.gmra.mxu0 %v1599
      %v1657 = vpop.f32.mrf.mxu0
      %v1658 = vadd.f32 0.0, %v1657
      %v1659 = vpop.f32.mrf.mxu0
      %1660 = vdwg.mxu0
      %1661 = vmatpush.bf16.msra.mxu0 0
      %1662 = vmatpush.bf16.msra.mxu0 0
      %1663 = vmatpush.bf16.msra.mxu0 0
      %1664 = vmatpush.bf16.msra.mxu0 0
      %1665 = vmatpush.bf16.msra.mxu0 0
      %1666 = vmatpush.bf16.msra.mxu0 0
      %1667 = vmatpush.bf16.msra.mxu0 0
      %1668 = vmatpush.bf16.msra.mxu0 %v1611
      %1669 = vmatmul.bf16.gmra.mxu0 %v1599
      %v1670 = vpop.f32.mrf.mxu0
      %v1671 = vadd.f32 0.0, %v1670
      %v1672 = vpop.f32.mrf.mxu0
      %1673 = vdwg.mxu0
      %1674 = vmatpush.bf16.msra.mxu0 0
      %1675 = vmatpush.bf16.msra.mxu0 0
      %1676 = vmatpush.bf16.msra.mxu0 0
      %1677 = vmatpush.bf16.msra.mxu0 0
      %1678 = vmatpush.bf16.msra.mxu0 0
      %1679 = vmatpush.bf16.msra.mxu0 0
      %1680 = vmatpush.bf16.msra.mxu0 0
      %1681 = vmatpush.bf16.msra.mxu0 %v1614
      %1682 = vmatmul.bf16.gmra.mxu0 %v1599
      %v1683 = vpop.f32.mrf.mxu0
      %v1684 = vadd.f32 0.0, %v1683
      %v1685 = vpop.f32.mrf.mxu0
      %1686 = vdwg.mxu0
      %1687 = vmatpush.bf16.msra.mxu0 0
      %1688 = vmatpush.bf16.msra.mxu0 0
      %1689 = vmatpush.bf16.msra.mxu0 0
      %1690 = vmatpush.bf16.msra.mxu0 0
      %1691 = vmatpush.bf16.msra.mxu0 0
      %1692 = vmatpush.bf16.msra.mxu0 0
      %1693 = vmatpush.bf16.msra.mxu0 0
      %1694 = vmatpush.bf16.msra.mxu0 %v1617
      %1695 = vmatmul.bf16.gmra.mxu0 %v1599
      %v1696 = vpop.f32.mrf.mxu0
      %v1697 = vadd.f32 0.0, %v1696
      %v1698 = vpop.f32.mrf.mxu0
      %1699 = vdwg.mxu0
      %1700 = vmatpush.bf16.msra.mxu0 0
      %1701 = vmatpush.bf16.msra.mxu0 0
      %1702 = vmatpush.bf16.msra.mxu0 0
      %1703 = vmatpush.bf16.msra.mxu0 0
      %1704 = vmatpush.bf16.msra.mxu0 0
      %1705 = vmatpush.bf16.msra.mxu0 0
      %1706 = vmatpush.bf16.msra.mxu0 0
      %1707 = vmatpush.bf16.msra.mxu0 %v1620
      %1708 = vmatmul.bf16.gmra.mxu0 %v1599
      %v1709 = vpop.f32.mrf.mxu0
      %v1710 = vadd.f32 0.0, %v1709
      %v1711 = vpop.f32.mrf.mxu0
      %1712 = vdwg.mxu0
      %v1713 = vadd.f32 %v1565, %v1632
      %v1714 = vadd.f32 %v1566, %v1645
      %v1715 = vadd.f32 %v1567, %v1658
      %v1716 = vadd.f32 %v1568, %v1671
      %v1717 = vadd.f32 %v1569, %v1684
      %v1718 = vadd.f32 %v1570, %v1697
      %v1719 = vadd.f32 %v1571, %v1710
      %1720 = vrot.lane.b32.xlu0 %v395, 56
      %v1721 = vpop.permute.xlu0 %1720
      %1722 = vrot.lane.b32.xlu0 %v1122, 92
      %v1723 = vpop.permute.xlu0 %1722
      %1724 = vrot.lane.b32.xlu0 %v1123, 92
      %v1725 = vpop.permute.xlu0 %1724
      %1726 = vrot.lane.b32.xlu0 %v1124, 92
      %v1727 = vpop.permute.xlu0 %1726
      %1728 = vrot.lane.b32.xlu0 %v1125, 92
      %v1729 = vpop.permute.xlu0 %1728
      %1730 = vrot.lane.b32.xlu0 %v1126, 92
      %v1731 = vpop.permute.xlu0 %1730
      %1732 = vrot.lane.b32.xlu0 %v1127, 92
      %v1733 = vpop.permute.xlu0 %1732
      %1734 = vrot.lane.b32.xlu0 %v1128, 92
      %v1735 = vpop.permute.xlu0 %1734
      %1736 = vrot.lane.b32.xlu0 %v1129, 92
      %v1737 = vpop.permute.xlu0 %1736
      %vm1738 = vcmask 752640
      %v1739 = vsel %vm1738, %v1723, %v1725
      %v1740 = vsel %vm1738, %v1725, %v1727
      %v1741 = vsel %vm1738, %v1727, %v1729
      %v1742 = vsel %vm1738, %v1729, %v1731
      %v1743 = vsel %vm1738, %v1731, %v1733
      %v1744 = vsel %vm1738, %v1733, %v1735
      %v1745 = vsel %vm1738, %v1735, %v1737
      %v1747 = vsel %vm437, %v1721, 0
      %v1750 = vsel %vm441, %v1739, 0
      %v1753 = vsel %vm441, %v1740, 0
      %v1756 = vsel %vm441, %v1741, 0
      %v1759 = vsel %vm441, %v1742, 0
      %v1762 = vsel %vm441, %v1743, 0
      %v1765 = vsel %vm441, %v1744, 0
      %v1768 = vsel %vm441, %v1745, 0
      %1770 = vmatpush.bf16.msra.mxu0 0
      %1771 = vmatpush.bf16.msra.mxu0 0
      %1772 = vmatpush.bf16.msra.mxu0 0
      %1773 = vmatpush.bf16.msra.mxu0 0
      %1774 = vmatpush.bf16.msra.mxu0 0
      %1775 = vmatpush.bf16.msra.mxu0 0
      %1776 = vmatpush.bf16.msra.mxu0 0
      %1777 = vmatpush.bf16.msra.mxu0 %v1750
      %1778 = vmatmul.bf16.gmra.mxu0 %v1747
      %v1779 = vpop.f32.mrf.mxu0
      %v1780 = vadd.f32 0.0, %v1779
      %v1781 = vpop.f32.mrf.mxu0
      %1782 = vdwg.mxu0
      %1783 = vmatpush.bf16.msra.mxu0 0
      %1784 = vmatpush.bf16.msra.mxu0 0
      %1785 = vmatpush.bf16.msra.mxu0 0
      %1786 = vmatpush.bf16.msra.mxu0 0
      %1787 = vmatpush.bf16.msra.mxu0 0
      %1788 = vmatpush.bf16.msra.mxu0 0
      %1789 = vmatpush.bf16.msra.mxu0 0
      %1790 = vmatpush.bf16.msra.mxu0 %v1753
      %1791 = vmatmul.bf16.gmra.mxu0 %v1747
      %v1792 = vpop.f32.mrf.mxu0
      %v1793 = vadd.f32 0.0, %v1792
      %v1794 = vpop.f32.mrf.mxu0
      %1795 = vdwg.mxu0
      %1796 = vmatpush.bf16.msra.mxu0 0
      %1797 = vmatpush.bf16.msra.mxu0 0
      %1798 = vmatpush.bf16.msra.mxu0 0
      %1799 = vmatpush.bf16.msra.mxu0 0
      %1800 = vmatpush.bf16.msra.mxu0 0
      %1801 = vmatpush.bf16.msra.mxu0 0
      %1802 = vmatpush.bf16.msra.mxu0 0
      %1803 = vmatpush.bf16.msra.mxu0 %v1756
      %1804 = vmatmul.bf16.gmra.mxu0 %v1747
      %v1805 = vpop.f32.mrf.mxu0
      %v1806 = vadd.f32 0.0, %v1805
      %v1807 = vpop.f32.mrf.mxu0
      %1808 = vdwg.mxu0
      %1809 = vmatpush.bf16.msra.mxu0 0
      %1810 = vmatpush.bf16.msra.mxu0 0
      %1811 = vmatpush.bf16.msra.mxu0 0
      %1812 = vmatpush.bf16.msra.mxu0 0
      %1813 = vmatpush.bf16.msra.mxu0 0
      %1814 = vmatpush.bf16.msra.mxu0 0
      %1815 = vmatpush.bf16.msra.mxu0 0
      %1816 = vmatpush.bf16.msra.mxu0 %v1759
      %1817 = vmatmul.bf16.gmra.mxu0 %v1747
      %v1818 = vpop.f32.mrf.mxu0
      %v1819 = vadd.f32 0.0, %v1818
      %v1820 = vpop.f32.mrf.mxu0
      %1821 = vdwg.mxu0
      %1822 = vmatpush.bf16.msra.mxu0 0
      %1823 = vmatpush.bf16.msra.mxu0 0
      %1824 = vmatpush.bf16.msra.mxu0 0
      %1825 = vmatpush.bf16.msra.mxu0 0
      %1826 = vmatpush.bf16.msra.mxu0 0
      %1827 = vmatpush.bf16.msra.mxu0 0
      %1828 = vmatpush.bf16.msra.mxu0 0
      %1829 = vmatpush.bf16.msra.mxu0 %v1762
      %1830 = vmatmul.bf16.gmra.mxu0 %v1747
      %v1831 = vpop.f32.mrf.mxu0
      %v1832 = vadd.f32 0.0, %v1831
      %v1833 = vpop.f32.mrf.mxu0
      %1834 = vdwg.mxu0
      %1835 = vmatpush.bf16.msra.mxu0 0
      %1836 = vmatpush.bf16.msra.mxu0 0
      %1837 = vmatpush.bf16.msra.mxu0 0
      %1838 = vmatpush.bf16.msra.mxu0 0
      %1839 = vmatpush.bf16.msra.mxu0 0
      %1840 = vmatpush.bf16.msra.mxu0 0
      %1841 = vmatpush.bf16.msra.mxu0 0
      %1842 = vmatpush.bf16.msra.mxu0 %v1765
      %1843 = vmatmul.bf16.gmra.mxu0 %v1747
      %v1844 = vpop.f32.mrf.mxu0
      %v1845 = vadd.f32 0.0, %v1844
      %v1846 = vpop.f32.mrf.mxu0
      %1847 = vdwg.mxu0
      %1848 = vmatpush.bf16.msra.mxu0 0
      %1849 = vmatpush.bf16.msra.mxu0 0
      %1850 = vmatpush.bf16.msra.mxu0 0
      %1851 = vmatpush.bf16.msra.mxu0 0
      %1852 = vmatpush.bf16.msra.mxu0 0
      %1853 = vmatpush.bf16.msra.mxu0 0
      %1854 = vmatpush.bf16.msra.mxu0 0
      %1855 = vmatpush.bf16.msra.mxu0 %v1768
      %1856 = vmatmul.bf16.gmra.mxu0 %v1747
      %v1857 = vpop.f32.mrf.mxu0
      %v1858 = vadd.f32 0.0, %v1857
      %v1859 = vpop.f32.mrf.mxu0
      %1860 = vdwg.mxu0
      %v1861 = vadd.f32 %v1713, %v1780
      %v1862 = vadd.f32 %v1714, %v1793
      %v1863 = vadd.f32 %v1715, %v1806
      %v1864 = vadd.f32 %v1716, %v1819
      %v1865 = vadd.f32 %v1717, %v1832
      %v1866 = vadd.f32 %v1718, %v1845
      %v1867 = vadd.f32 %v1719, %v1858
      %1868 = vrot.lane.b32.xlu0 %v395, 48
      %v1869 = vpop.permute.xlu0 %1868
      %1870 = vrot.lane.b32.xlu0 %v1122, 64
      %v1871 = vpop.permute.xlu0 %1870
      %1872 = vrot.lane.b32.xlu0 %v1123, 64
      %v1873 = vpop.permute.xlu0 %1872
      %1874 = vrot.lane.b32.xlu0 %v1124, 64
      %v1875 = vpop.permute.xlu0 %1874
      %1876 = vrot.lane.b32.xlu0 %v1125, 64
      %v1877 = vpop.permute.xlu0 %1876
      %1878 = vrot.lane.b32.xlu0 %v1126, 64
      %v1879 = vpop.permute.xlu0 %1878
      %1880 = vrot.lane.b32.xlu0 %v1127, 64
      %v1881 = vpop.permute.xlu0 %1880
      %1882 = vrot.lane.b32.xlu0 %v1128, 64
      %v1883 = vpop.permute.xlu0 %1882
      %1884 = vrot.lane.b32.xlu0 %v1129, 64
      %v1885 = vpop.permute.xlu0 %1884
      %vm1886 = vcmask 523264
      %v1887 = vsel %vm1886, %v1871, %v1873
      %v1888 = vsel %vm1886, %v1873, %v1875
      %v1889 = vsel %vm1886, %v1875, %v1877
      %v1890 = vsel %vm1886, %v1877, %v1879
      %v1891 = vsel %vm1886, %v1879, %v1881
      %v1892 = vsel %vm1886, %v1881, %v1883
      %v1893 = vsel %vm1886, %v1883, %v1885
      %v1895 = vsel %vm437, %v1869, 0
      %v1898 = vsel %vm441, %v1887, 0
      %v1901 = vsel %vm441, %v1888, 0
      %v1904 = vsel %vm441, %v1889, 0
      %v1907 = vsel %vm441, %v1890, 0
      %v1910 = vsel %vm441, %v1891, 0
      %v1913 = vsel %vm441, %v1892, 0
      %v1916 = vsel %vm441, %v1893, 0
      %1918 = vmatpush.bf16.msra.mxu0 0
      %1919 = vmatpush.bf16.msra.mxu0 0
      %1920 = vmatpush.bf16.msra.mxu0 0
      %1921 = vmatpush.bf16.msra.mxu0 0
      %1922 = vmatpush.bf16.msra.mxu0 0
      %1923 = vmatpush.bf16.msra.mxu0 0
      %1924 = vmatpush.bf16.msra.mxu0 0
      %1925 = vmatpush.bf16.msra.mxu0 %v1898
      %1926 = vmatmul.bf16.gmra.mxu0 %v1895
      %v1927 = vpop.f32.mrf.mxu0
      %v1928 = vadd.f32 0.0, %v1927
      %v1929 = vpop.f32.mrf.mxu0
      %1930 = vdwg.mxu0
      %1931 = vmatpush.bf16.msra.mxu0 0
      %1932 = vmatpush.bf16.msra.mxu0 0
      %1933 = vmatpush.bf16.msra.mxu0 0
      %1934 = vmatpush.bf16.msra.mxu0 0
      %1935 = vmatpush.bf16.msra.mxu0 0
      %1936 = vmatpush.bf16.msra.mxu0 0
      %1937 = vmatpush.bf16.msra.mxu0 0
      %1938 = vmatpush.bf16.msra.mxu0 %v1901
      %1939 = vmatmul.bf16.gmra.mxu0 %v1895
      %v1940 = vpop.f32.mrf.mxu0
      %v1941 = vadd.f32 0.0, %v1940
      %v1942 = vpop.f32.mrf.mxu0
      %1943 = vdwg.mxu0
      %1944 = vmatpush.bf16.msra.mxu0 0
      %1945 = vmatpush.bf16.msra.mxu0 0
      %1946 = vmatpush.bf16.msra.mxu0 0
      %1947 = vmatpush.bf16.msra.mxu0 0
      %1948 = vmatpush.bf16.msra.mxu0 0
      %1949 = vmatpush.bf16.msra.mxu0 0
      %1950 = vmatpush.bf16.msra.mxu0 0
      %1951 = vmatpush.bf16.msra.mxu0 %v1904
      %1952 = vmatmul.bf16.gmra.mxu0 %v1895
      %v1953 = vpop.f32.mrf.mxu0
      %v1954 = vadd.f32 0.0, %v1953
      %v1955 = vpop.f32.mrf.mxu0
      %1956 = vdwg.mxu0
      %1957 = vmatpush.bf16.msra.mxu0 0
      %1958 = vmatpush.bf16.msra.mxu0 0
      %1959 = vmatpush.bf16.msra.mxu0 0
      %1960 = vmatpush.bf16.msra.mxu0 0
      %1961 = vmatpush.bf16.msra.mxu0 0
      %1962 = vmatpush.bf16.msra.mxu0 0
      %1963 = vmatpush.bf16.msra.mxu0 0
      %1964 = vmatpush.bf16.msra.mxu0 %v1907
      %1965 = vmatmul.bf16.gmra.mxu0 %v1895
      %v1966 = vpop.f32.mrf.mxu0
      %v1967 = vadd.f32 0.0, %v1966
      %v1968 = vpop.f32.mrf.mxu0
      %1969 = vdwg.mxu0
      %1970 = vmatpush.bf16.msra.mxu0 0
      %1971 = vmatpush.bf16.msra.mxu0 0
      %1972 = vmatpush.bf16.msra.mxu0 0
      %1973 = vmatpush.bf16.msra.mxu0 0
      %1974 = vmatpush.bf16.msra.mxu0 0
      %1975 = vmatpush.bf16.msra.mxu0 0
      %1976 = vmatpush.bf16.msra.mxu0 0
      %1977 = vmatpush.bf16.msra.mxu0 %v1910
      %1978 = vmatmul.bf16.gmra.mxu0 %v1895
      %v1979 = vpop.f32.mrf.mxu0
      %v1980 = vadd.f32 0.0, %v1979
      %v1981 = vpop.f32.mrf.mxu0
      %1982 = vdwg.mxu0
      %1983 = vmatpush.bf16.msra.mxu0 0
      %1984 = vmatpush.bf16.msra.mxu0 0
      %1985 = vmatpush.bf16.msra.mxu0 0
      %1986 = vmatpush.bf16.msra.mxu0 0
      %1987 = vmatpush.bf16.msra.mxu0 0
      %1988 = vmatpush.bf16.msra.mxu0 0
      %1989 = vmatpush.bf16.msra.mxu0 0
      %1990 = vmatpush.bf16.msra.mxu0 %v1913
      %1991 = vmatmul.bf16.gmra.mxu0 %v1895
      %v1992 = vpop.f32.mrf.mxu0
      %v1993 = vadd.f32 0.0, %v1992
      %v1994 = vpop.f32.mrf.mxu0
      %1995 = vdwg.mxu0
      %1996 = vmatpush.bf16.msra.mxu0 0
      %1997 = vmatpush.bf16.msra.mxu0 0
      %1998 = vmatpush.bf16.msra.mxu0 0
      %1999 = vmatpush.bf16.msra.mxu0 0
      %2000 = vmatpush.bf16.msra.mxu0 0
      %2001 = vmatpush.bf16.msra.mxu0 0
      %2002 = vmatpush.bf16.msra.mxu0 0
      %2003 = vmatpush.bf16.msra.mxu0 %v1916
      %2004 = vmatmul.bf16.gmra.mxu0 %v1895
      %v2005 = vpop.f32.mrf.mxu0
      %v2006 = vadd.f32 0.0, %v2005
      %v2007 = vpop.f32.mrf.mxu0
      %2008 = vdwg.mxu0
      %v2009 = vadd.f32 %v1861, %v1928
      %v2010 = vadd.f32 %v1862, %v1941
      %v2011 = vadd.f32 %v1863, %v1954
      %v2012 = vadd.f32 %v1864, %v1967
      %v2013 = vadd.f32 %v1865, %v1980
      %v2014 = vadd.f32 %v1866, %v1993
      %v2015 = vadd.f32 %v1867, %v2006
      %2016 = vrot.lane.b32.xlu0 %v395, 40
      %v2017 = vpop.permute.xlu0 %2016
      %2018 = vrot.lane.b32.xlu0 %v1122, 63
      %v2019 = vpop.permute.xlu0 %2018
      %2020 = vrot.lane.b32.xlu0 %v1123, 63
      %v2021 = vpop.permute.xlu0 %2020
      %2022 = vrot.lane.b32.xlu0 %v1124, 63
      %v2023 = vpop.permute.xlu0 %2022
      %2024 = vrot.lane.b32.xlu0 %v1125, 63
      %v2025 = vpop.permute.xlu0 %2024
      %2026 = vrot.lane.b32.xlu0 %v1126, 63
      %v2027 = vpop.permute.xlu0 %2026
      %2028 = vrot.lane.b32.xlu0 %v1127, 63
      %v2029 = vpop.permute.xlu0 %2028
      %2030 = vrot.lane.b32.xlu0 %v1128, 63
      %v2031 = vpop.permute.xlu0 %2030
      %2032 = vrot.lane.b32.xlu0 %v1129, 63
      %v2033 = vpop.permute.xlu0 %2032
      %vm2034 = vcmask 515072
      %v2035 = vsel %vm2034, %v2019, %v2021
      %v2036 = vsel %vm2034, %v2021, %v2023
      %v2037 = vsel %vm2034, %v2023, %v2025
      %v2038 = vsel %vm2034, %v2025, %v2027
      %v2039 = vsel %vm2034, %v2027, %v2029
      %v2040 = vsel %vm2034, %v2029, %v2031
      %v2041 = vsel %vm2034, %v2031, %v2033
      %v2043 = vsel %vm437, %v2017, 0
      %v2046 = vsel %vm441, %v2035, 0
      %v2049 = vsel %vm441, %v2036, 0
      %v2052 = vsel %vm441, %v2037, 0
      %v2055 = vsel %vm441, %v2038, 0
      %v2058 = vsel %vm441, %v2039, 0
      %v2061 = vsel %vm441, %v2040, 0
      %v2064 = vsel %vm441, %v2041, 0
      %2066 = vmatpush.bf16.msra.mxu0 0
      %2067 = vmatpush.bf16.msra.mxu0 0
      %2068 = vmatpush.bf16.msra.mxu0 0
      %2069 = vmatpush.bf16.msra.mxu0 0
      %2070 = vmatpush.bf16.msra.mxu0 0
      %2071 = vmatpush.bf16.msra.mxu0 0
      %2072 = vmatpush.bf16.msra.mxu0 0
      %2073 = vmatpush.bf16.msra.mxu0 %v2046
      %2074 = vmatmul.bf16.gmra.mxu0 %v2043
      %v2075 = vpop.f32.mrf.mxu0
      %v2076 = vadd.f32 0.0, %v2075
      %v2077 = vpop.f32.mrf.mxu0
      %2078 = vdwg.mxu0
      %2079 = vmatpush.bf16.msra.mxu0 0
      %2080 = vmatpush.bf16.msra.mxu0 0
      %2081 = vmatpush.bf16.msra.mxu0 0
      %2082 = vmatpush.bf16.msra.mxu0 0
      %2083 = vmatpush.bf16.msra.mxu0 0
      %2084 = vmatpush.bf16.msra.mxu0 0
      %2085 = vmatpush.bf16.msra.mxu0 0
      %2086 = vmatpush.bf16.msra.mxu0 %v2049
      %2087 = vmatmul.bf16.gmra.mxu0 %v2043
      %v2088 = vpop.f32.mrf.mxu0
      %v2089 = vadd.f32 0.0, %v2088
      %v2090 = vpop.f32.mrf.mxu0
      %2091 = vdwg.mxu0
      %2092 = vmatpush.bf16.msra.mxu0 0
      %2093 = vmatpush.bf16.msra.mxu0 0
      %2094 = vmatpush.bf16.msra.mxu0 0
      %2095 = vmatpush.bf16.msra.mxu0 0
      %2096 = vmatpush.bf16.msra.mxu0 0
      %2097 = vmatpush.bf16.msra.mxu0 0
      %2098 = vmatpush.bf16.msra.mxu0 0
      %2099 = vmatpush.bf16.msra.mxu0 %v2052
      %2100 = vmatmul.bf16.gmra.mxu0 %v2043
      %v2101 = vpop.f32.mrf.mxu0
      %v2102 = vadd.f32 0.0, %v2101
      %v2103 = vpop.f32.mrf.mxu0
      %2104 = vdwg.mxu0
      %2105 = vmatpush.bf16.msra.mxu0 0
      %2106 = vmatpush.bf16.msra.mxu0 0
      %2107 = vmatpush.bf16.msra.mxu0 0
      %2108 = vmatpush.bf16.msra.mxu0 0
      %2109 = vmatpush.bf16.msra.mxu0 0
      %2110 = vmatpush.bf16.msra.mxu0 0
      %2111 = vmatpush.bf16.msra.mxu0 0
      %2112 = vmatpush.bf16.msra.mxu0 %v2055
      %2113 = vmatmul.bf16.gmra.mxu0 %v2043
      %v2114 = vpop.f32.mrf.mxu0
      %v2115 = vadd.f32 0.0, %v2114
      %v2116 = vpop.f32.mrf.mxu0
      %2117 = vdwg.mxu0
      %2118 = vmatpush.bf16.msra.mxu0 0
      %2119 = vmatpush.bf16.msra.mxu0 0
      %2120 = vmatpush.bf16.msra.mxu0 0
      %2121 = vmatpush.bf16.msra.mxu0 0
      %2122 = vmatpush.bf16.msra.mxu0 0
      %2123 = vmatpush.bf16.msra.mxu0 0
      %2124 = vmatpush.bf16.msra.mxu0 0
      %2125 = vmatpush.bf16.msra.mxu0 %v2058
      %2126 = vmatmul.bf16.gmra.mxu0 %v2043
      %v2127 = vpop.f32.mrf.mxu0
      %v2128 = vadd.f32 0.0, %v2127
      %v2129 = vpop.f32.mrf.mxu0
      %2130 = vdwg.mxu0
      %2131 = vmatpush.bf16.msra.mxu0 0
      %2132 = vmatpush.bf16.msra.mxu0 0
      %2133 = vmatpush.bf16.msra.mxu0 0
      %2134 = vmatpush.bf16.msra.mxu0 0
      %2135 = vmatpush.bf16.msra.mxu0 0
      %2136 = vmatpush.bf16.msra.mxu0 0
      %2137 = vmatpush.bf16.msra.mxu0 0
      %2138 = vmatpush.bf16.msra.mxu0 %v2061
      %2139 = vmatmul.bf16.gmra.mxu0 %v2043
      %v2140 = vpop.f32.mrf.mxu0
      %v2141 = vadd.f32 0.0, %v2140
      %v2142 = vpop.f32.mrf.mxu0
      %2143 = vdwg.mxu0
      %2144 = vmatpush.bf16.msra.mxu0 0
      %2145 = vmatpush.bf16.msra.mxu0 0
      %2146 = vmatpush.bf16.msra.mxu0 0
      %2147 = vmatpush.bf16.msra.mxu0 0
      %2148 = vmatpush.bf16.msra.mxu0 0
      %2149 = vmatpush.bf16.msra.mxu0 0
      %2150 = vmatpush.bf16.msra.mxu0 0
      %2151 = vmatpush.bf16.msra.mxu0 %v2064
      %2152 = vmatmul.bf16.gmra.mxu0 %v2043
      %v2153 = vpop.f32.mrf.mxu0
      %v2154 = vadd.f32 0.0, %v2153
      %v2155 = vpop.f32.mrf.mxu0
      %2156 = vdwg.mxu0
      %v2157 = vadd.f32 %v2009, %v2076
      %v2158 = vadd.f32 %v2010, %v2089
      %v2159 = vadd.f32 %v2011, %v2102
      %v2160 = vadd.f32 %v2012, %v2115
      %v2161 = vadd.f32 %v2013, %v2128
      %v2162 = vadd.f32 %v2014, %v2141
      %v2163 = vadd.f32 %v2015, %v2154
      %2164 = vrot.lane.b32.xlu0 %v395, 32
      %v2165 = vpop.permute.xlu0 %2164
      %2166 = vrot.lane.b32.xlu0 %v1122, 62
      %v2167 = vpop.permute.xlu0 %2166
      %2168 = vrot.lane.b32.xlu0 %v1123, 62
      %v2169 = vpop.permute.xlu0 %2168
      %2170 = vrot.lane.b32.xlu0 %v1124, 62
      %v2171 = vpop.permute.xlu0 %2170
      %2172 = vrot.lane.b32.xlu0 %v1125, 62
      %v2173 = vpop.permute.xlu0 %2172
      %2174 = vrot.lane.b32.xlu0 %v1126, 62
      %v2175 = vpop.permute.xlu0 %2174
      %2176 = vrot.lane.b32.xlu0 %v1127, 62
      %v2177 = vpop.permute.xlu0 %2176
      %2178 = vrot.lane.b32.xlu0 %v1128, 62
      %v2179 = vpop.permute.xlu0 %2178
      %2180 = vrot.lane.b32.xlu0 %v1129, 62
      %v2181 = vpop.permute.xlu0 %2180
      %vm2182 = vcmask 506880
      %v2183 = vsel %vm2182, %v2167, %v2169
      %v2184 = vsel %vm2182, %v2169, %v2171
      %v2185 = vsel %vm2182, %v2171, %v2173
      %v2186 = vsel %vm2182, %v2173, %v2175
      %v2187 = vsel %vm2182, %v2175, %v2177
      %v2188 = vsel %vm2182, %v2177, %v2179
      %v2189 = vsel %vm2182, %v2179, %v2181
      %v2191 = vsel %vm437, %v2165, 0
      %v2194 = vsel %vm441, %v2183, 0
      %v2197 = vsel %vm441, %v2184, 0
      %v2200 = vsel %vm441, %v2185, 0
      %v2203 = vsel %vm441, %v2186, 0
      %v2206 = vsel %vm441, %v2187, 0
      %v2209 = vsel %vm441, %v2188, 0
      %v2212 = vsel %vm441, %v2189, 0
      %2214 = vmatpush.bf16.msra.mxu0 0
      %2215 = vmatpush.bf16.msra.mxu0 0
      %2216 = vmatpush.bf16.msra.mxu0 0
      %2217 = vmatpush.bf16.msra.mxu0 0
      %2218 = vmatpush.bf16.msra.mxu0 0
      %2219 = vmatpush.bf16.msra.mxu0 0
      %2220 = vmatpush.bf16.msra.mxu0 0
      %2221 = vmatpush.bf16.msra.mxu0 %v2194
      %2222 = vmatmul.bf16.gmra.mxu0 %v2191
      %v2223 = vpop.f32.mrf.mxu0
      %v2224 = vadd.f32 0.0, %v2223
      %v2225 = vpop.f32.mrf.mxu0
      %2226 = vdwg.mxu0
      %2227 = vmatpush.bf16.msra.mxu0 0
      %2228 = vmatpush.bf16.msra.mxu0 0
      %2229 = vmatpush.bf16.msra.mxu0 0
      %2230 = vmatpush.bf16.msra.mxu0 0
      %2231 = vmatpush.bf16.msra.mxu0 0
      %2232 = vmatpush.bf16.msra.mxu0 0
      %2233 = vmatpush.bf16.msra.mxu0 0
      %2234 = vmatpush.bf16.msra.mxu0 %v2197
      %2235 = vmatmul.bf16.gmra.mxu0 %v2191
      %v2236 = vpop.f32.mrf.mxu0
      %v2237 = vadd.f32 0.0, %v2236
      %v2238 = vpop.f32.mrf.mxu0
      %2239 = vdwg.mxu0
      %2240 = vmatpush.bf16.msra.mxu0 0
      %2241 = vmatpush.bf16.msra.mxu0 0
      %2242 = vmatpush.bf16.msra.mxu0 0
      %2243 = vmatpush.bf16.msra.mxu0 0
      %2244 = vmatpush.bf16.msra.mxu0 0
      %2245 = vmatpush.bf16.msra.mxu0 0
      %2246 = vmatpush.bf16.msra.mxu0 0
      %2247 = vmatpush.bf16.msra.mxu0 %v2200
      %2248 = vmatmul.bf16.gmra.mxu0 %v2191
      %v2249 = vpop.f32.mrf.mxu0
      %v2250 = vadd.f32 0.0, %v2249
      %v2251 = vpop.f32.mrf.mxu0
      %2252 = vdwg.mxu0
      %2253 = vmatpush.bf16.msra.mxu0 0
      %2254 = vmatpush.bf16.msra.mxu0 0
      %2255 = vmatpush.bf16.msra.mxu0 0
      %2256 = vmatpush.bf16.msra.mxu0 0
      %2257 = vmatpush.bf16.msra.mxu0 0
      %2258 = vmatpush.bf16.msra.mxu0 0
      %2259 = vmatpush.bf16.msra.mxu0 0
      %2260 = vmatpush.bf16.msra.mxu0 %v2203
      %2261 = vmatmul.bf16.gmra.mxu0 %v2191
      %v2262 = vpop.f32.mrf.mxu0
      %v2263 = vadd.f32 0.0, %v2262
      %v2264 = vpop.f32.mrf.mxu0
      %2265 = vdwg.mxu0
      %2266 = vmatpush.bf16.msra.mxu0 0
      %2267 = vmatpush.bf16.msra.mxu0 0
      %2268 = vmatpush.bf16.msra.mxu0 0
      %2269 = vmatpush.bf16.msra.mxu0 0
      %2270 = vmatpush.bf16.msra.mxu0 0
      %2271 = vmatpush.bf16.msra.mxu0 0
      %2272 = vmatpush.bf16.msra.mxu0 0
      %2273 = vmatpush.bf16.msra.mxu0 %v2206
      %2274 = vmatmul.bf16.gmra.mxu0 %v2191
      %v2275 = vpop.f32.mrf.mxu0
      %v2276 = vadd.f32 0.0, %v2275
      %v2277 = vpop.f32.mrf.mxu0
      %2278 = vdwg.mxu0
      %2279 = vmatpush.bf16.msra.mxu0 0
      %2280 = vmatpush.bf16.msra.mxu0 0
      %2281 = vmatpush.bf16.msra.mxu0 0
      %2282 = vmatpush.bf16.msra.mxu0 0
      %2283 = vmatpush.bf16.msra.mxu0 0
      %2284 = vmatpush.bf16.msra.mxu0 0
      %2285 = vmatpush.bf16.msra.mxu0 0
      %2286 = vmatpush.bf16.msra.mxu0 %v2209
      %2287 = vmatmul.bf16.gmra.mxu0 %v2191
      %v2288 = vpop.f32.mrf.mxu0
      %v2289 = vadd.f32 0.0, %v2288
      %v2290 = vpop.f32.mrf.mxu0
      %2291 = vdwg.mxu0
      %2292 = vmatpush.bf16.msra.mxu0 0
      %2293 = vmatpush.bf16.msra.mxu0 0
      %2294 = vmatpush.bf16.msra.mxu0 0
      %2295 = vmatpush.bf16.msra.mxu0 0
      %2296 = vmatpush.bf16.msra.mxu0 0
      %2297 = vmatpush.bf16.msra.mxu0 0
      %2298 = vmatpush.bf16.msra.mxu0 0
      %2299 = vmatpush.bf16.msra.mxu0 %v2212
      %2300 = vmatmul.bf16.gmra.mxu0 %v2191
      %v2301 = vpop.f32.mrf.mxu0
      %v2302 = vadd.f32 0.0, %v2301
      %v2303 = vpop.f32.mrf.mxu0
      %2304 = vdwg.mxu0
      %v2305 = vadd.f32 %v2157, %v2224
      %v2306 = vadd.f32 %v2158, %v2237
      %v2307 = vadd.f32 %v2159, %v2250
      %v2308 = vadd.f32 %v2160, %v2263
      %v2309 = vadd.f32 %v2161, %v2276
      %v2310 = vadd.f32 %v2162, %v2289
      %v2311 = vadd.f32 %v2163, %v2302
      %2312 = vrot.lane.b32.xlu0 %v395, 24
      %v2313 = vpop.permute.xlu0 %2312
      %2314 = vrot.lane.b32.xlu0 %v1122, 61
      %v2315 = vpop.permute.xlu0 %2314
      %2316 = vrot.lane.b32.xlu0 %v1123, 61
      %v2317 = vpop.permute.xlu0 %2316
      %2318 = vrot.lane.b32.xlu0 %v1124, 61
      %v2319 = vpop.permute.xlu0 %2318
      %2320 = vrot.lane.b32.xlu0 %v1125, 61
      %v2321 = vpop.permute.xlu0 %2320
      %2322 = vrot.lane.b32.xlu0 %v1126, 61
      %v2323 = vpop.permute.xlu0 %2322
      %2324 = vrot.lane.b32.xlu0 %v1127, 61
      %v2325 = vpop.permute.xlu0 %2324
      %2326 = vrot.lane.b32.xlu0 %v1128, 61
      %v2327 = vpop.permute.xlu0 %2326
      %2328 = vrot.lane.b32.xlu0 %v1129, 61
      %v2329 = vpop.permute.xlu0 %2328
      %vm2330 = vcmask 498688
      %v2331 = vsel %vm2330, %v2315, %v2317
      %v2332 = vsel %vm2330, %v2317, %v2319
      %v2333 = vsel %vm2330, %v2319, %v2321
      %v2334 = vsel %vm2330, %v2321, %v2323
      %v2335 = vsel %vm2330, %v2323, %v2325
      %v2336 = vsel %vm2330, %v2325, %v2327
      %v2337 = vsel %vm2330, %v2327, %v2329
      %v2339 = vsel %vm437, %v2313, 0
      %v2342 = vsel %vm441, %v2331, 0
      %v2345 = vsel %vm441, %v2332, 0
      %v2348 = vsel %vm441, %v2333, 0
      %v2351 = vsel %vm441, %v2334, 0
      %v2354 = vsel %vm441, %v2335, 0
      %v2357 = vsel %vm441, %v2336, 0
      %v2360 = vsel %vm441, %v2337, 0
      %2362 = vmatpush.bf16.msra.mxu0 0
      %2363 = vmatpush.bf16.msra.mxu0 0
      %2364 = vmatpush.bf16.msra.mxu0 0
      %2365 = vmatpush.bf16.msra.mxu0 0
      %2366 = vmatpush.bf16.msra.mxu0 0
      %2367 = vmatpush.bf16.msra.mxu0 0
      %2368 = vmatpush.bf16.msra.mxu0 0
      %2369 = vmatpush.bf16.msra.mxu0 %v2342
      %2370 = vmatmul.bf16.gmra.mxu0 %v2339
      %v2371 = vpop.f32.mrf.mxu0
      %v2372 = vadd.f32 0.0, %v2371
      %v2373 = vpop.f32.mrf.mxu0
      %2374 = vdwg.mxu0
      %2375 = vmatpush.bf16.msra.mxu0 0
      %2376 = vmatpush.bf16.msra.mxu0 0
      %2377 = vmatpush.bf16.msra.mxu0 0
      %2378 = vmatpush.bf16.msra.mxu0 0
      %2379 = vmatpush.bf16.msra.mxu0 0
      %2380 = vmatpush.bf16.msra.mxu0 0
      %2381 = vmatpush.bf16.msra.mxu0 0
      %2382 = vmatpush.bf16.msra.mxu0 %v2345
      %2383 = vmatmul.bf16.gmra.mxu0 %v2339
      %v2384 = vpop.f32.mrf.mxu0
      %v2385 = vadd.f32 0.0, %v2384
      %v2386 = vpop.f32.mrf.mxu0
      %2387 = vdwg.mxu0
      %2388 = vmatpush.bf16.msra.mxu0 0
      %2389 = vmatpush.bf16.msra.mxu0 0
      %2390 = vmatpush.bf16.msra.mxu0 0
      %2391 = vmatpush.bf16.msra.mxu0 0
      %2392 = vmatpush.bf16.msra.mxu0 0
      %2393 = vmatpush.bf16.msra.mxu0 0
      %2394 = vmatpush.bf16.msra.mxu0 0
      %2395 = vmatpush.bf16.msra.mxu0 %v2348
      %2396 = vmatmul.bf16.gmra.mxu0 %v2339
      %v2397 = vpop.f32.mrf.mxu0
      %v2398 = vadd.f32 0.0, %v2397
      %v2399 = vpop.f32.mrf.mxu0
      %2400 = vdwg.mxu0
      %2401 = vmatpush.bf16.msra.mxu0 0
      %2402 = vmatpush.bf16.msra.mxu0 0
      %2403 = vmatpush.bf16.msra.mxu0 0
      %2404 = vmatpush.bf16.msra.mxu0 0
      %2405 = vmatpush.bf16.msra.mxu0 0
      %2406 = vmatpush.bf16.msra.mxu0 0
      %2407 = vmatpush.bf16.msra.mxu0 0
      %2408 = vmatpush.bf16.msra.mxu0 %v2351
      %2409 = vmatmul.bf16.gmra.mxu0 %v2339
      %v2410 = vpop.f32.mrf.mxu0
      %v2411 = vadd.f32 0.0, %v2410
      %v2412 = vpop.f32.mrf.mxu0
      %2413 = vdwg.mxu0
      %2414 = vmatpush.bf16.msra.mxu0 0
      %2415 = vmatpush.bf16.msra.mxu0 0
      %2416 = vmatpush.bf16.msra.mxu0 0
      %2417 = vmatpush.bf16.msra.mxu0 0
      %2418 = vmatpush.bf16.msra.mxu0 0
      %2419 = vmatpush.bf16.msra.mxu0 0
      %2420 = vmatpush.bf16.msra.mxu0 0
      %2421 = vmatpush.bf16.msra.mxu0 %v2354
      %2422 = vmatmul.bf16.gmra.mxu0 %v2339
      %v2423 = vpop.f32.mrf.mxu0
      %v2424 = vadd.f32 0.0, %v2423
      %v2425 = vpop.f32.mrf.mxu0
      %2426 = vdwg.mxu0
      %2427 = vmatpush.bf16.msra.mxu0 0
      %2428 = vmatpush.bf16.msra.mxu0 0
      %2429 = vmatpush.bf16.msra.mxu0 0
      %2430 = vmatpush.bf16.msra.mxu0 0
      %2431 = vmatpush.bf16.msra.mxu0 0
      %2432 = vmatpush.bf16.msra.mxu0 0
      %2433 = vmatpush.bf16.msra.mxu0 0
      %2434 = vmatpush.bf16.msra.mxu0 %v2357
      %2435 = vmatmul.bf16.gmra.mxu0 %v2339
      %v2436 = vpop.f32.mrf.mxu0
      %v2437 = vadd.f32 0.0, %v2436
      %v2438 = vpop.f32.mrf.mxu0
      %2439 = vdwg.mxu0
      %2440 = vmatpush.bf16.msra.mxu0 0
      %2441 = vmatpush.bf16.msra.mxu0 0
      %2442 = vmatpush.bf16.msra.mxu0 0
      %2443 = vmatpush.bf16.msra.mxu0 0
      %2444 = vmatpush.bf16.msra.mxu0 0
      %2445 = vmatpush.bf16.msra.mxu0 0
      %2446 = vmatpush.bf16.msra.mxu0 0
      %2447 = vmatpush.bf16.msra.mxu0 %v2360
      %2448 = vmatmul.bf16.gmra.mxu0 %v2339
      %v2449 = vpop.f32.mrf.mxu0
      %v2450 = vadd.f32 0.0, %v2449
      %v2451 = vpop.f32.mrf.mxu0
      %2452 = vdwg.mxu0
      %v2453 = vadd.f32 %v2305, %v2372
      %v2454 = vadd.f32 %v2306, %v2385
      %v2455 = vadd.f32 %v2307, %v2398
      %v2456 = vadd.f32 %v2308, %v2411
      %v2457 = vadd.f32 %v2309, %v2424
      %v2458 = vadd.f32 %v2310, %v2437
      %v2459 = vadd.f32 %v2311, %v2450
      %2460 = vrot.lane.b32.xlu0 %v395, 16
      %v2461 = vpop.permute.xlu0 %2460
      %2462 = vrot.lane.b32.xlu0 %v1122, 60
      %v2463 = vpop.permute.xlu0 %2462
      %2464 = vrot.lane.b32.xlu0 %v1123, 60
      %v2465 = vpop.permute.xlu0 %2464
      %2466 = vrot.lane.b32.xlu0 %v1124, 60
      %v2467 = vpop.permute.xlu0 %2466
      %2468 = vrot.lane.b32.xlu0 %v1125, 60
      %v2469 = vpop.permute.xlu0 %2468
      %2470 = vrot.lane.b32.xlu0 %v1126, 60
      %v2471 = vpop.permute.xlu0 %2470
      %2472 = vrot.lane.b32.xlu0 %v1127, 60
      %v2473 = vpop.permute.xlu0 %2472
      %2474 = vrot.lane.b32.xlu0 %v1128, 60
      %v2475 = vpop.permute.xlu0 %2474
      %2476 = vrot.lane.b32.xlu0 %v1129, 60
      %v2477 = vpop.permute.xlu0 %2476
      %vm2478 = vcmask 490496
      %v2479 = vsel %vm2478, %v2463, %v2465
      %v2480 = vsel %vm2478, %v2465, %v2467
      %v2481 = vsel %vm2478, %v2467, %v2469
      %v2482 = vsel %vm2478, %v2469, %v2471
      %v2483 = vsel %vm2478, %v2471, %v2473
      %v2484 = vsel %vm2478, %v2473, %v2475
      %v2485 = vsel %vm2478, %v2475, %v2477
      %v2487 = vsel %vm437, %v2461, 0
      %v2490 = vsel %vm441, %v2479, 0
      %v2493 = vsel %vm441, %v2480, 0
      %v2496 = vsel %vm441, %v2481, 0
      %v2499 = vsel %vm441, %v2482, 0
      %v2502 = vsel %vm441, %v2483, 0
      %v2505 = vsel %vm441, %v2484, 0
      %v2508 = vsel %vm441, %v2485, 0
      %2510 = vmatpush.bf16.msra.mxu0 0
      %2511 = vmatpush.bf16.msra.mxu0 0
      %2512 = vmatpush.bf16.msra.mxu0 0
      %2513 = vmatpush.bf16.msra.mxu0 0
      %2514 = vmatpush.bf16.msra.mxu0 0
      %2515 = vmatpush.bf16.msra.mxu0 0
      %2516 = vmatpush.bf16.msra.mxu0 0
      %2517 = vmatpush.bf16.msra.mxu0 %v2490
      %2518 = vmatmul.bf16.gmra.mxu0 %v2487
      %v2519 = vpop.f32.mrf.mxu0
      %v2520 = vadd.f32 0.0, %v2519
      %v2521 = vpop.f32.mrf.mxu0
      %2522 = vdwg.mxu0
      %2523 = vmatpush.bf16.msra.mxu0 0
      %2524 = vmatpush.bf16.msra.mxu0 0
      %2525 = vmatpush.bf16.msra.mxu0 0
      %2526 = vmatpush.bf16.msra.mxu0 0
      %2527 = vmatpush.bf16.msra.mxu0 0
      %2528 = vmatpush.bf16.msra.mxu0 0
      %2529 = vmatpush.bf16.msra.mxu0 0
      %2530 = vmatpush.bf16.msra.mxu0 %v2493
      %2531 = vmatmul.bf16.gmra.mxu0 %v2487
      %v2532 = vpop.f32.mrf.mxu0
      %v2533 = vadd.f32 0.0, %v2532
      %v2534 = vpop.f32.mrf.mxu0
      %2535 = vdwg.mxu0
      %2536 = vmatpush.bf16.msra.mxu0 0
      %2537 = vmatpush.bf16.msra.mxu0 0
      %2538 = vmatpush.bf16.msra.mxu0 0
      %2539 = vmatpush.bf16.msra.mxu0 0
      %2540 = vmatpush.bf16.msra.mxu0 0
      %2541 = vmatpush.bf16.msra.mxu0 0
      %2542 = vmatpush.bf16.msra.mxu0 0
      %2543 = vmatpush.bf16.msra.mxu0 %v2496
      %2544 = vmatmul.bf16.gmra.mxu0 %v2487
      %v2545 = vpop.f32.mrf.mxu0
      %v2546 = vadd.f32 0.0, %v2545
      %v2547 = vpop.f32.mrf.mxu0
      %2548 = vdwg.mxu0
      %2549 = vmatpush.bf16.msra.mxu0 0
      %2550 = vmatpush.bf16.msra.mxu0 0
      %2551 = vmatpush.bf16.msra.mxu0 0
      %2552 = vmatpush.bf16.msra.mxu0 0
      %2553 = vmatpush.bf16.msra.mxu0 0
      %2554 = vmatpush.bf16.msra.mxu0 0
      %2555 = vmatpush.bf16.msra.mxu0 0
      %2556 = vmatpush.bf16.msra.mxu0 %v2499
      %2557 = vmatmul.bf16.gmra.mxu0 %v2487
      %v2558 = vpop.f32.mrf.mxu0
      %v2559 = vadd.f32 0.0, %v2558
      %v2560 = vpop.f32.mrf.mxu0
      %2561 = vdwg.mxu0
      %2562 = vmatpush.bf16.msra.mxu0 0
      %2563 = vmatpush.bf16.msra.mxu0 0
      %2564 = vmatpush.bf16.msra.mxu0 0
      %2565 = vmatpush.bf16.msra.mxu0 0
      %2566 = vmatpush.bf16.msra.mxu0 0
      %2567 = vmatpush.bf16.msra.mxu0 0
      %2568 = vmatpush.bf16.msra.mxu0 0
      %2569 = vmatpush.bf16.msra.mxu0 %v2502
      %2570 = vmatmul.bf16.gmra.mxu0 %v2487
      %v2571 = vpop.f32.mrf.mxu0
      %v2572 = vadd.f32 0.0, %v2571
      %v2573 = vpop.f32.mrf.mxu0
      %2574 = vdwg.mxu0
      %2575 = vmatpush.bf16.msra.mxu0 0
      %2576 = vmatpush.bf16.msra.mxu0 0
      %2577 = vmatpush.bf16.msra.mxu0 0
      %2578 = vmatpush.bf16.msra.mxu0 0
      %2579 = vmatpush.bf16.msra.mxu0 0
      %2580 = vmatpush.bf16.msra.mxu0 0
      %2581 = vmatpush.bf16.msra.mxu0 0
      %2582 = vmatpush.bf16.msra.mxu0 %v2505
      %2583 = vmatmul.bf16.gmra.mxu0 %v2487
      %v2584 = vpop.f32.mrf.mxu0
      %v2585 = vadd.f32 0.0, %v2584
      %v2586 = vpop.f32.mrf.mxu0
      %2587 = vdwg.mxu0
      %2588 = vmatpush.bf16.msra.mxu0 0
      %2589 = vmatpush.bf16.msra.mxu0 0
      %2590 = vmatpush.bf16.msra.mxu0 0
      %2591 = vmatpush.bf16.msra.mxu0 0
      %2592 = vmatpush.bf16.msra.mxu0 0
      %2593 = vmatpush.bf16.msra.mxu0 0
      %2594 = vmatpush.bf16.msra.mxu0 0
      %2595 = vmatpush.bf16.msra.mxu0 %v2508
      %2596 = vmatmul.bf16.gmra.mxu0 %v2487
      %v2597 = vpop.f32.mrf.mxu0
      %v2598 = vadd.f32 0.0, %v2597
      %v2599 = vpop.f32.mrf.mxu0
      %2600 = vdwg.mxu0
      %v2601 = vadd.f32 %v2453, %v2520
      %v2602 = vadd.f32 %v2454, %v2533
      %v2603 = vadd.f32 %v2455, %v2546
      %v2604 = vadd.f32 %v2456, %v2559
      %v2605 = vadd.f32 %v2457, %v2572
      %v2606 = vadd.f32 %v2458, %v2585
      %v2607 = vadd.f32 %v2459, %v2598
      %2608 = vrot.lane.b32.xlu0 %v395, 8
      %v2609 = vpop.permute.xlu0 %2608
      %2610 = vrot.lane.b32.xlu0 %v1122, 32
      %v2611 = vpop.permute.xlu0 %2610
      %2612 = vrot.lane.b32.xlu0 %v1123, 32
      %v2613 = vpop.permute.xlu0 %2612
      %2614 = vrot.lane.b32.xlu0 %v1124, 32
      %v2615 = vpop.permute.xlu0 %2614
      %2616 = vrot.lane.b32.xlu0 %v1125, 32
      %v2617 = vpop.permute.xlu0 %2616
      %2618 = vrot.lane.b32.xlu0 %v1126, 32
      %v2619 = vpop.permute.xlu0 %2618
      %2620 = vrot.lane.b32.xlu0 %v1127, 32
      %v2621 = vpop.permute.xlu0 %2620
      %2622 = vrot.lane.b32.xlu0 %v1128, 32
      %v2623 = vpop.permute.xlu0 %2622
      %2624 = vrot.lane.b32.xlu0 %v1129, 32
      %v2625 = vpop.permute.xlu0 %2624
      %vm2626 = vcmask 261120
      %v2627 = vsel %vm2626, %v2611, %v2613
      %v2628 = vsel %vm2626, %v2613, %v2615
      %v2629 = vsel %vm2626, %v2615, %v2617
      %v2630 = vsel %vm2626, %v2617, %v2619
      %v2631 = vsel %vm2626, %v2619, %v2621
      %v2632 = vsel %vm2626, %v2621, %v2623
      %v2633 = vsel %vm2626, %v2623, %v2625
      %v2635 = vsel %vm437, %v2609, 0
      %v2638 = vsel %vm441, %v2627, 0
      %v2641 = vsel %vm441, %v2628, 0
      %v2644 = vsel %vm441, %v2629, 0
      %v2647 = vsel %vm441, %v2630, 0
      %v2650 = vsel %vm441, %v2631, 0
      %v2653 = vsel %vm441, %v2632, 0
      %v2656 = vsel %vm441, %v2633, 0
      %2658 = vmatpush.bf16.msra.mxu0 0
      %2659 = vmatpush.bf16.msra.mxu0 0
      %2660 = vmatpush.bf16.msra.mxu0 0
      %2661 = vmatpush.bf16.msra.mxu0 0
      %2662 = vmatpush.bf16.msra.mxu0 0
      %2663 = vmatpush.bf16.msra.mxu0 0
      %2664 = vmatpush.bf16.msra.mxu0 0
      %2665 = vmatpush.bf16.msra.mxu0 %v2638
      %2666 = vmatmul.bf16.gmra.mxu0 %v2635
      %v2667 = vpop.f32.mrf.mxu0
      %v2668 = vadd.f32 0.0, %v2667
      %v2669 = vpop.f32.mrf.mxu0
      %2670 = vdwg.mxu0
      %2671 = vmatpush.bf16.msra.mxu0 0
      %2672 = vmatpush.bf16.msra.mxu0 0
      %2673 = vmatpush.bf16.msra.mxu0 0
      %2674 = vmatpush.bf16.msra.mxu0 0
      %2675 = vmatpush.bf16.msra.mxu0 0
      %2676 = vmatpush.bf16.msra.mxu0 0
      %2677 = vmatpush.bf16.msra.mxu0 0
      %2678 = vmatpush.bf16.msra.mxu0 %v2641
      %2679 = vmatmul.bf16.gmra.mxu0 %v2635
      %v2680 = vpop.f32.mrf.mxu0
      %v2681 = vadd.f32 0.0, %v2680
      %v2682 = vpop.f32.mrf.mxu0
      %2683 = vdwg.mxu0
      %2684 = vmatpush.bf16.msra.mxu0 0
      %2685 = vmatpush.bf16.msra.mxu0 0
      %2686 = vmatpush.bf16.msra.mxu0 0
      %2687 = vmatpush.bf16.msra.mxu0 0
      %2688 = vmatpush.bf16.msra.mxu0 0
      %2689 = vmatpush.bf16.msra.mxu0 0
      %2690 = vmatpush.bf16.msra.mxu0 0
      %2691 = vmatpush.bf16.msra.mxu0 %v2644
      %2692 = vmatmul.bf16.gmra.mxu0 %v2635
      %v2693 = vpop.f32.mrf.mxu0
      %v2694 = vadd.f32 0.0, %v2693
      %v2695 = vpop.f32.mrf.mxu0
      %2696 = vdwg.mxu0
      %2697 = vmatpush.bf16.msra.mxu0 0
      %2698 = vmatpush.bf16.msra.mxu0 0
      %2699 = vmatpush.bf16.msra.mxu0 0
      %2700 = vmatpush.bf16.msra.mxu0 0
      %2701 = vmatpush.bf16.msra.mxu0 0
      %2702 = vmatpush.bf16.msra.mxu0 0
      %2703 = vmatpush.bf16.msra.mxu0 0
      %2704 = vmatpush.bf16.msra.mxu0 %v2647
      %2705 = vmatmul.bf16.gmra.mxu0 %v2635
      %v2706 = vpop.f32.mrf.mxu0
      %v2707 = vadd.f32 0.0, %v2706
      %v2708 = vpop.f32.mrf.mxu0
      %2709 = vdwg.mxu0
      %2710 = vmatpush.bf16.msra.mxu0 0
      %2711 = vmatpush.bf16.msra.mxu0 0
      %2712 = vmatpush.bf16.msra.mxu0 0
      %2713 = vmatpush.bf16.msra.mxu0 0
      %2714 = vmatpush.bf16.msra.mxu0 0
      %2715 = vmatpush.bf16.msra.mxu0 0
      %2716 = vmatpush.bf16.msra.mxu0 0
      %2717 = vmatpush.bf16.msra.mxu0 %v2650
      %2718 = vmatmul.bf16.gmra.mxu0 %v2635
      %v2719 = vpop.f32.mrf.mxu0
      %v2720 = vadd.f32 0.0, %v2719
      %v2721 = vpop.f32.mrf.mxu0
      %2722 = vdwg.mxu0
      %2723 = vmatpush.bf16.msra.mxu0 0
      %2724 = vmatpush.bf16.msra.mxu0 0
      %2725 = vmatpush.bf16.msra.mxu0 0
      %2726 = vmatpush.bf16.msra.mxu0 0
      %2727 = vmatpush.bf16.msra.mxu0 0
      %2728 = vmatpush.bf16.msra.mxu0 0
      %2729 = vmatpush.bf16.msra.mxu0 0
      %2730 = vmatpush.bf16.msra.mxu0 %v2653
      %2731 = vmatmul.bf16.gmra.mxu0 %v2635
      %v2732 = vpop.f32.mrf.mxu0
      %v2733 = vadd.f32 0.0, %v2732
      %v2734 = vpop.f32.mrf.mxu0
      %2735 = vdwg.mxu0
      %2736 = vmatpush.bf16.msra.mxu0 0
      %2737 = vmatpush.bf16.msra.mxu0 0
      %2738 = vmatpush.bf16.msra.mxu0 0
      %2739 = vmatpush.bf16.msra.mxu0 0
      %2740 = vmatpush.bf16.msra.mxu0 0
      %2741 = vmatpush.bf16.msra.mxu0 0
      %2742 = vmatpush.bf16.msra.mxu0 0
      %2743 = vmatpush.bf16.msra.mxu0 %v2656
      %2744 = vmatmul.bf16.gmra.mxu0 %v2635
      %v2745 = vpop.f32.mrf.mxu0
      %v2746 = vadd.f32 0.0, %v2745
      %v2747 = vpop.f32.mrf.mxu0
      %2748 = vdwg.mxu0
      %v2749 = vadd.f32 %v2601, %v2668
      %v2750 = vadd.f32 %v2602, %v2681
      %v2751 = vadd.f32 %v2603, %v2694
      %v2752 = vadd.f32 %v2604, %v2707
      %v2753 = vadd.f32 %v2605, %v2720
      %v2754 = vadd.f32 %v2606, %v2733
      %v2755 = vadd.f32 %v2607, %v2746
      %v2756 = vld [vmem:[%s1 + $0x4] sm:$0xf]
      %2757 = vrot.lane.b32.xlu0 %v1122, 31
      %v2758 = vpop.permute.xlu0 %2757
      %2759 = vrot.lane.b32.xlu0 %v1123, 31
      %v2760 = vpop.permute.xlu0 %2759
      %2761 = vrot.lane.b32.xlu0 %v1124, 31
      %v2762 = vpop.permute.xlu0 %2761
      %2763 = vrot.lane.b32.xlu0 %v1125, 31
      %v2764 = vpop.permute.xlu0 %2763
      %2765 = vrot.lane.b32.xlu0 %v1126, 31
      %v2766 = vpop.permute.xlu0 %2765
      %2767 = vrot.lane.b32.xlu0 %v1127, 31
      %v2768 = vpop.permute.xlu0 %2767
      %2769 = vrot.lane.b32.xlu0 %v1128, 31
      %v2770 = vpop.permute.xlu0 %2769
      %2771 = vrot.lane.b32.xlu0 %v1129, 31
      %v2772 = vpop.permute.xlu0 %2771
      %vm2773 = vcmask 252928
      %v2774 = vsel %vm2773, %v2758, %v2760
      %v2775 = vsel %vm2773, %v2760, %v2762
      %v2776 = vsel %vm2773, %v2762, %v2764
      %v2777 = vsel %vm2773, %v2764, %v2766
      %v2778 = vsel %vm2773, %v2766, %v2768
      %v2779 = vsel %vm2773, %v2768, %v2770
      %v2780 = vsel %vm2773, %v2770, %v2772
      %v2782 = vsel %vm437, %v2756, 0
      %v2785 = vsel %vm441, %v2774, 0
      %v2788 = vsel %vm441, %v2775, 0
      %v2791 = vsel %vm441, %v2776, 0
      %v2794 = vsel %vm441, %v2777, 0
      %v2797 = vsel %vm441, %v2778, 0
      %v2800 = vsel %vm441, %v2779, 0
      %v2803 = vsel %vm441, %v2780, 0
      %2805 = vmatpush.bf16.msra.mxu0 0
      %2806 = vmatpush.bf16.msra.mxu0 0
      %2807 = vmatpush.bf16.msra.mxu0 0
      %2808 = vmatpush.bf16.msra.mxu0 0
      %2809 = vmatpush.bf16.msra.mxu0 0
      %2810 = vmatpush.bf16.msra.mxu0 0
      %2811 = vmatpush.bf16.msra.mxu0 0
      %2812 = vmatpush.bf16.msra.mxu0 %v2785
      %2813 = vmatmul.bf16.gmra.mxu0 %v2782
      %v2814 = vpop.f32.mrf.mxu0
      %v2815 = vadd.f32 0.0, %v2814
      %v2816 = vpop.f32.mrf.mxu0
      %2817 = vdwg.mxu0
      %2818 = vmatpush.bf16.msra.mxu0 0
      %2819 = vmatpush.bf16.msra.mxu0 0
      %2820 = vmatpush.bf16.msra.mxu0 0
      %2821 = vmatpush.bf16.msra.mxu0 0
      %2822 = vmatpush.bf16.msra.mxu0 0
      %2823 = vmatpush.bf16.msra.mxu0 0
      %2824 = vmatpush.bf16.msra.mxu0 0
      %2825 = vmatpush.bf16.msra.mxu0 %v2788
      %2826 = vmatmul.bf16.gmra.mxu0 %v2782
      %v2827 = vpop.f32.mrf.mxu0
      %v2828 = vadd.f32 0.0, %v2827
      %v2829 = vpop.f32.mrf.mxu0
      %2830 = vdwg.mxu0
      %2831 = vmatpush.bf16.msra.mxu0 0
      %2832 = vmatpush.bf16.msra.mxu0 0
      %2833 = vmatpush.bf16.msra.mxu0 0
      %2834 = vmatpush.bf16.msra.mxu0 0
      %2835 = vmatpush.bf16.msra.mxu0 0
      %2836 = vmatpush.bf16.msra.mxu0 0
      %2837 = vmatpush.bf16.msra.mxu0 0
      %2838 = vmatpush.bf16.msra.mxu0 %v2791
      %2839 = vmatmul.bf16.gmra.mxu0 %v2782
      %v2840 = vpop.f32.mrf.mxu0
      %v2841 = vadd.f32 0.0, %v2840
      %v2842 = vpop.f32.mrf.mxu0
      %2843 = vdwg.mxu0
      %2844 = vmatpush.bf16.msra.mxu0 0
      %2845 = vmatpush.bf16.msra.mxu0 0
      %2846 = vmatpush.bf16.msra.mxu0 0
      %2847 = vmatpush.bf16.msra.mxu0 0
      %2848 = vmatpush.bf16.msra.mxu0 0
      %2849 = vmatpush.bf16.msra.mxu0 0
      %2850 = vmatpush.bf16.msra.mxu0 0
      %2851 = vmatpush.bf16.msra.mxu0 %v2794
      %2852 = vmatmul.bf16.gmra.mxu0 %v2782
      %v2853 = vpop.f32.mrf.mxu0
      %v2854 = vadd.f32 0.0, %v2853
      %v2855 = vpop.f32.mrf.mxu0
      %2856 = vdwg.mxu0
      %2857 = vmatpush.bf16.msra.mxu0 0
      %2858 = vmatpush.bf16.msra.mxu0 0
      %2859 = vmatpush.bf16.msra.mxu0 0
      %2860 = vmatpush.bf16.msra.mxu0 0
      %2861 = vmatpush.bf16.msra.mxu0 0
      %2862 = vmatpush.bf16.msra.mxu0 0
      %2863 = vmatpush.bf16.msra.mxu0 0
      %2864 = vmatpush.bf16.msra.mxu0 %v2797
      %2865 = vmatmul.bf16.gmra.mxu0 %v2782
      %v2866 = vpop.f32.mrf.mxu0
      %v2867 = vadd.f32 0.0, %v2866
      %v2868 = vpop.f32.mrf.mxu0
      %2869 = vdwg.mxu0
      %2870 = vmatpush.bf16.msra.mxu0 0
      %2871 = vmatpush.bf16.msra.mxu0 0
      %2872 = vmatpush.bf16.msra.mxu0 0
      %2873 = vmatpush.bf16.msra.mxu0 0
      %2874 = vmatpush.bf16.msra.mxu0 0
      %2875 = vmatpush.bf16.msra.mxu0 0
      %2876 = vmatpush.bf16.msra.mxu0 0
      %2877 = vmatpush.bf16.msra.mxu0 %v2800
      %2878 = vmatmul.bf16.gmra.mxu0 %v2782
      %v2879 = vpop.f32.mrf.mxu0
      %v2880 = vadd.f32 0.0, %v2879
      %v2881 = vpop.f32.mrf.mxu0
      %2882 = vdwg.mxu0
      %2883 = vmatpush.bf16.msra.mxu0 0
      %2884 = vmatpush.bf16.msra.mxu0 0
      %2885 = vmatpush.bf16.msra.mxu0 0
      %2886 = vmatpush.bf16.msra.mxu0 0
      %2887 = vmatpush.bf16.msra.mxu0 0
      %2888 = vmatpush.bf16.msra.mxu0 0
      %2889 = vmatpush.bf16.msra.mxu0 0
      %2890 = vmatpush.bf16.msra.mxu0 %v2803
      %2891 = vmatmul.bf16.gmra.mxu0 %v2782
      %v2892 = vpop.f32.mrf.mxu0
      %v2893 = vadd.f32 0.0, %v2892
      %v2894 = vpop.f32.mrf.mxu0
      %2895 = vdwg.mxu0
      %v2896 = vadd.f32 %v2749, %v2815
      %v2897 = vadd.f32 %v2750, %v2828
      %v2898 = vadd.f32 %v2751, %v2841
      %v2899 = vadd.f32 %v2752, %v2854
      %v2900 = vadd.f32 %v2753, %v2867
      %v2901 = vadd.f32 %v2754, %v2880
      %v2902 = vadd.f32 %v2755, %v2893
      %v2904 = vunpack.c.l.b16 %v2756
      %v2905 = vpack.c.b16 %v2904, %v2904
      %2906 = vrot.lane.b32.xlu0 %v2905, 120
      %v2907 = vpop.permute.xlu0 %2906
      %2908 = vrot.lane.b32.xlu0 %v1122, 30
      %v2909 = vpop.permute.xlu0 %2908
      %2910 = vrot.lane.b32.xlu0 %v1123, 30
      %v2911 = vpop.permute.xlu0 %2910
      %2912 = vrot.lane.b32.xlu0 %v1124, 30
      %v2913 = vpop.permute.xlu0 %2912
      %2914 = vrot.lane.b32.xlu0 %v1125, 30
      %v2915 = vpop.permute.xlu0 %2914
      %2916 = vrot.lane.b32.xlu0 %v1126, 30
      %v2917 = vpop.permute.xlu0 %2916
      %2918 = vrot.lane.b32.xlu0 %v1127, 30
      %v2919 = vpop.permute.xlu0 %2918
      %2920 = vrot.lane.b32.xlu0 %v1128, 30
      %v2921 = vpop.permute.xlu0 %2920
      %2922 = vrot.lane.b32.xlu0 %v1129, 30
      %v2923 = vpop.permute.xlu0 %2922
      %vm2924 = vcmask 244736
      %v2925 = vsel %vm2924, %v2909, %v2911
      %v2926 = vsel %vm2924, %v2911, %v2913
      %v2927 = vsel %vm2924, %v2913, %v2915
      %v2928 = vsel %vm2924, %v2915, %v2917
      %v2929 = vsel %vm2924, %v2917, %v2919
      %v2930 = vsel %vm2924, %v2919, %v2921
      %v2931 = vsel %vm2924, %v2921, %v2923
      %v2933 = vsel %vm437, %v2907, 0
      %v2936 = vsel %vm441, %v2925, 0
      %v2939 = vsel %vm441, %v2926, 0
      %v2942 = vsel %vm441, %v2927, 0
      %v2945 = vsel %vm441, %v2928, 0
      %v2948 = vsel %vm441, %v2929, 0
      %v2951 = vsel %vm441, %v2930, 0
      %v2954 = vsel %vm441, %v2931, 0
      %2956 = vmatpush.bf16.msra.mxu0 0
      %2957 = vmatpush.bf16.msra.mxu0 0
      %2958 = vmatpush.bf16.msra.mxu0 0
      %2959 = vmatpush.bf16.msra.mxu0 0
      %2960 = vmatpush.bf16.msra.mxu0 0
      %2961 = vmatpush.bf16.msra.mxu0 0
      %2962 = vmatpush.bf16.msra.mxu0 0
      %2963 = vmatpush.bf16.msra.mxu0 %v2936
      %2964 = vmatmul.bf16.gmra.mxu0 %v2933
      %v2965 = vpop.f32.mrf.mxu0
      %v2966 = vadd.f32 0.0, %v2965
      %v2967 = vpop.f32.mrf.mxu0
      %2968 = vdwg.mxu0
      %2969 = vmatpush.bf16.msra.mxu0 0
      %2970 = vmatpush.bf16.msra.mxu0 0
      %2971 = vmatpush.bf16.msra.mxu0 0
      %2972 = vmatpush.bf16.msra.mxu0 0
      %2973 = vmatpush.bf16.msra.mxu0 0
      %2974 = vmatpush.bf16.msra.mxu0 0
      %2975 = vmatpush.bf16.msra.mxu0 0
      %2976 = vmatpush.bf16.msra.mxu0 %v2939
      %2977 = vmatmul.bf16.gmra.mxu0 %v2933
      %v2978 = vpop.f32.mrf.mxu0
      %v2979 = vadd.f32 0.0, %v2978
      %v2980 = vpop.f32.mrf.mxu0
      %2981 = vdwg.mxu0
      %2982 = vmatpush.bf16.msra.mxu0 0
      %2983 = vmatpush.bf16.msra.mxu0 0
      %2984 = vmatpush.bf16.msra.mxu0 0
      %2985 = vmatpush.bf16.msra.mxu0 0
      %2986 = vmatpush.bf16.msra.mxu0 0
      %2987 = vmatpush.bf16.msra.mxu0 0
      %2988 = vmatpush.bf16.msra.mxu0 0
      %2989 = vmatpush.bf16.msra.mxu0 %v2942
      %2990 = vmatmul.bf16.gmra.mxu0 %v2933
      %v2991 = vpop.f32.mrf.mxu0
      %v2992 = vadd.f32 0.0, %v2991
      %v2993 = vpop.f32.mrf.mxu0
      %2994 = vdwg.mxu0
      %2995 = vmatpush.bf16.msra.mxu0 0
      %2996 = vmatpush.bf16.msra.mxu0 0
      %2997 = vmatpush.bf16.msra.mxu0 0
      %2998 = vmatpush.bf16.msra.mxu0 0
      %2999 = vmatpush.bf16.msra.mxu0 0
      %3000 = vmatpush.bf16.msra.mxu0 0
      %3001 = vmatpush.bf16.msra.mxu0 0
      %3002 = vmatpush.bf16.msra.mxu0 %v2945
      %3003 = vmatmul.bf16.gmra.mxu0 %v2933
      %v3004 = vpop.f32.mrf.mxu0
      %v3005 = vadd.f32 0.0, %v3004
      %v3006 = vpop.f32.mrf.mxu0
      %3007 = vdwg.mxu0
      %3008 = vmatpush.bf16.msra.mxu0 0
      %3009 = vmatpush.bf16.msra.mxu0 0
      %3010 = vmatpush.bf16.msra.mxu0 0
      %3011 = vmatpush.bf16.msra.mxu0 0
      %3012 = vmatpush.bf16.msra.mxu0 0
      %3013 = vmatpush.bf16.msra.mxu0 0
      %3014 = vmatpush.bf16.msra.mxu0 0
      %3015 = vmatpush.bf16.msra.mxu0 %v2948
      %3016 = vmatmul.bf16.gmra.mxu0 %v2933
      %v3017 = vpop.f32.mrf.mxu0
      %v3018 = vadd.f32 0.0, %v3017
      %v3019 = vpop.f32.mrf.mxu0
      %3020 = vdwg.mxu0
      %3021 = vmatpush.bf16.msra.mxu0 0
      %3022 = vmatpush.bf16.msra.mxu0 0
      %3023 = vmatpush.bf16.msra.mxu0 0
      %3024 = vmatpush.bf16.msra.mxu0 0
      %3025 = vmatpush.bf16.msra.mxu0 0
      %3026 = vmatpush.bf16.msra.mxu0 0
      %3027 = vmatpush.bf16.msra.mxu0 0
      %3028 = vmatpush.bf16.msra.mxu0 %v2951
      %3029 = vmatmul.bf16.gmra.mxu0 %v2933
      %v3030 = vpop.f32.mrf.mxu0
      %v3031 = vadd.f32 0.0, %v3030
      %v3032 = vpop.f32.mrf.mxu0
      %3033 = vdwg.mxu0
      %3034 = vmatpush.bf16.msra.mxu0 0
      %3035 = vmatpush.bf16.msra.mxu0 0
      %3036 = vmatpush.bf16.msra.mxu0 0
      %3037 = vmatpush.bf16.msra.mxu0 0
      %3038 = vmatpush.bf16.msra.mxu0 0
      %3039 = vmatpush.bf16.msra.mxu0 0
      %3040 = vmatpush.bf16.msra.mxu0 0
      %3041 = vmatpush.bf16.msra.mxu0 %v2954
      %3042 = vmatmul.bf16.gmra.mxu0 %v2933
      %v3043 = vpop.f32.mrf.mxu0
      %v3044 = vadd.f32 0.0, %v3043
      %v3045 = vpop.f32.mrf.mxu0
      %3046 = vdwg.mxu0
      %v3047 = vadd.f32 %v2896, %v2966
      %v3048 = vadd.f32 %v2897, %v2979
      %v3049 = vadd.f32 %v2898, %v2992
      %v3050 = vadd.f32 %v2899, %v3005
      %v3051 = vadd.f32 %v2900, %v3018
      %v3052 = vadd.f32 %v2901, %v3031
      %v3053 = vadd.f32 %v2902, %v3044
      %3054 = vrot.lane.b32.xlu0 %v2905, 112
      %v3055 = vpop.permute.xlu0 %3054
      %3056 = vrot.lane.b32.xlu0 %v1122, 29
      %v3057 = vpop.permute.xlu0 %3056
      %3058 = vrot.lane.b32.xlu0 %v1123, 29
      %v3059 = vpop.permute.xlu0 %3058
      %3060 = vrot.lane.b32.xlu0 %v1124, 29
      %v3061 = vpop.permute.xlu0 %3060
      %3062 = vrot.lane.b32.xlu0 %v1125, 29
      %v3063 = vpop.permute.xlu0 %3062
      %3064 = vrot.lane.b32.xlu0 %v1126, 29
      %v3065 = vpop.permute.xlu0 %3064
      %3066 = vrot.lane.b32.xlu0 %v1127, 29
      %v3067 = vpop.permute.xlu0 %3066
      %3068 = vrot.lane.b32.xlu0 %v1128, 29
      %v3069 = vpop.permute.xlu0 %3068
      %3070 = vrot.lane.b32.xlu0 %v1129, 29
      %v3071 = vpop.permute.xlu0 %3070
      %vm3072 = vcmask 236544
      %v3073 = vsel %vm3072, %v3057, %v3059
      %v3074 = vsel %vm3072, %v3059, %v3061
      %v3075 = vsel %vm3072, %v3061, %v3063
      %v3076 = vsel %vm3072, %v3063, %v3065
      %v3077 = vsel %vm3072, %v3065, %v3067
      %v3078 = vsel %vm3072, %v3067, %v3069
      %v3079 = vsel %vm3072, %v3069, %v3071
      %v3081 = vsel %vm437, %v3055, 0
      %v3084 = vsel %vm441, %v3073, 0
      %v3087 = vsel %vm441, %v3074, 0
      %v3090 = vsel %vm441, %v3075, 0
      %v3093 = vsel %vm441, %v3076, 0
      %v3096 = vsel %vm441, %v3077, 0
      %v3099 = vsel %vm441, %v3078, 0
      %v3102 = vsel %vm441, %v3079, 0
      %3104 = vmatpush.bf16.msra.mxu0 0
      %3105 = vmatpush.bf16.msra.mxu0 0
      %3106 = vmatpush.bf16.msra.mxu0 0
      %3107 = vmatpush.bf16.msra.mxu0 0
      %3108 = vmatpush.bf16.msra.mxu0 0
      %3109 = vmatpush.bf16.msra.mxu0 0
      %3110 = vmatpush.bf16.msra.mxu0 0
      %3111 = vmatpush.bf16.msra.mxu0 %v3084
      %3112 = vmatmul.bf16.gmra.mxu0 %v3081
      %v3113 = vpop.f32.mrf.mxu0
      %v3114 = vadd.f32 0.0, %v3113
      %v3115 = vpop.f32.mrf.mxu0
      %3116 = vdwg.mxu0
      %3117 = vmatpush.bf16.msra.mxu0 0
      %3118 = vmatpush.bf16.msra.mxu0 0
      %3119 = vmatpush.bf16.msra.mxu0 0
      %3120 = vmatpush.bf16.msra.mxu0 0
      %3121 = vmatpush.bf16.msra.mxu0 0
      %3122 = vmatpush.bf16.msra.mxu0 0
      %3123 = vmatpush.bf16.msra.mxu0 0
      %3124 = vmatpush.bf16.msra.mxu0 %v3087
      %3125 = vmatmul.bf16.gmra.mxu0 %v3081
      %v3126 = vpop.f32.mrf.mxu0
      %v3127 = vadd.f32 0.0, %v3126
      %v3128 = vpop.f32.mrf.mxu0
      %3129 = vdwg.mxu0
      %3130 = vmatpush.bf16.msra.mxu0 0
      %3131 = vmatpush.bf16.msra.mxu0 0
      %3132 = vmatpush.bf16.msra.mxu0 0
      %3133 = vmatpush.bf16.msra.mxu0 0
      %3134 = vmatpush.bf16.msra.mxu0 0
      %3135 = vmatpush.bf16.msra.mxu0 0
      %3136 = vmatpush.bf16.msra.mxu0 0
      %3137 = vmatpush.bf16.msra.mxu0 %v3090
      %3138 = vmatmul.bf16.gmra.mxu0 %v3081
      %v3139 = vpop.f32.mrf.mxu0
      %v3140 = vadd.f32 0.0, %v3139
      %v3141 = vpop.f32.mrf.mxu0
      %3142 = vdwg.mxu0
      %3143 = vmatpush.bf16.msra.mxu0 0
      %3144 = vmatpush.bf16.msra.mxu0 0
      %3145 = vmatpush.bf16.msra.mxu0 0
      %3146 = vmatpush.bf16.msra.mxu0 0
      %3147 = vmatpush.bf16.msra.mxu0 0
      %3148 = vmatpush.bf16.msra.mxu0 0
      %3149 = vmatpush.bf16.msra.mxu0 0
      %3150 = vmatpush.bf16.msra.mxu0 %v3093
      %3151 = vmatmul.bf16.gmra.mxu0 %v3081
      %v3152 = vpop.f32.mrf.mxu0
      %v3153 = vadd.f32 0.0, %v3152
      %v3154 = vpop.f32.mrf.mxu0
      %3155 = vdwg.mxu0
      %3156 = vmatpush.bf16.msra.mxu0 0
      %3157 = vmatpush.bf16.msra.mxu0 0
      %3158 = vmatpush.bf16.msra.mxu0 0
      %3159 = vmatpush.bf16.msra.mxu0 0
      %3160 = vmatpush.bf16.msra.mxu0 0
      %3161 = vmatpush.bf16.msra.mxu0 0
      %3162 = vmatpush.bf16.msra.mxu0 0
      %3163 = vmatpush.bf16.msra.mxu0 %v3096
      %3164 = vmatmul.bf16.gmra.mxu0 %v3081
      %v3165 = vpop.f32.mrf.mxu0
      %v3166 = vadd.f32 0.0, %v3165
      %v3167 = vpop.f32.mrf.mxu0
      %3168 = vdwg.mxu0
      %3169 = vmatpush.bf16.msra.mxu0 0
      %3170 = vmatpush.bf16.msra.mxu0 0
      %3171 = vmatpush.bf16.msra.mxu0 0
      %3172 = vmatpush.bf16.msra.mxu0 0
      %3173 = vmatpush.bf16.msra.mxu0 0
      %3174 = vmatpush.bf16.msra.mxu0 0
      %3175 = vmatpush.bf16.msra.mxu0 0
      %3176 = vmatpush.bf16.msra.mxu0 %v3099
      %3177 = vmatmul.bf16.gmra.mxu0 %v3081
      %v3178 = vpop.f32.mrf.mxu0
      %v3179 = vadd.f32 0.0, %v3178
      %v3180 = vpop.f32.mrf.mxu0
      %3181 = vdwg.mxu0
      %3182 = vmatpush.bf16.msra.mxu0 0
      %3183 = vmatpush.bf16.msra.mxu0 0
      %3184 = vmatpush.bf16.msra.mxu0 0
      %3185 = vmatpush.bf16.msra.mxu0 0
      %3186 = vmatpush.bf16.msra.mxu0 0
      %3187 = vmatpush.bf16.msra.mxu0 0
      %3188 = vmatpush.bf16.msra.mxu0 0
      %3189 = vmatpush.bf16.msra.mxu0 %v3102
      %3190 = vmatmul.bf16.gmra.mxu0 %v3081
      %v3191 = vpop.f32.mrf.mxu0
      %v3192 = vadd.f32 0.0, %v3191
      %v3193 = vpop.f32.mrf.mxu0
      %3194 = vdwg.mxu0
      %v3195 = vadd.f32 %v3047, %v3114
      %v3196 = vadd.f32 %v3048, %v3127
      %v3197 = vadd.f32 %v3049, %v3140
      %v3198 = vadd.f32 %v3050, %v3153
      %v3199 = vadd.f32 %v3051, %v3166
      %v3200 = vadd.f32 %v3052, %v3179
      %v3201 = vadd.f32 %v3053, %v3192
      %3202 = vrot.lane.b32.xlu0 %v2905, 104
      %v3203 = vpop.permute.xlu0 %3202
      %3204 = vrot.lane.b32.xlu0 %v1122, 28
      %v3205 = vpop.permute.xlu0 %3204
      %3206 = vrot.lane.b32.xlu0 %v1123, 28
      %v3207 = vpop.permute.xlu0 %3206
      %3208 = vrot.lane.b32.xlu0 %v1124, 28
      %v3209 = vpop.permute.xlu0 %3208
      %3210 = vrot.lane.b32.xlu0 %v1125, 28
      %v3211 = vpop.permute.xlu0 %3210
      %3212 = vrot.lane.b32.xlu0 %v1126, 28
      %v3213 = vpop.permute.xlu0 %3212
      %3214 = vrot.lane.b32.xlu0 %v1127, 28
      %v3215 = vpop.permute.xlu0 %3214
      %3216 = vrot.lane.b32.xlu0 %v1128, 28
      %v3217 = vpop.permute.xlu0 %3216
      %3218 = vrot.lane.b32.xlu0 %v1129, 28
      %v3219 = vpop.permute.xlu0 %3218
      %vm3220 = vcmask 228352
      %v3221 = vsel %vm3220, %v3205, %v3207
      %v3222 = vsel %vm3220, %v3207, %v3209
      %v3223 = vsel %vm3220, %v3209, %v3211
      %v3224 = vsel %vm3220, %v3211, %v3213
      %v3225 = vsel %vm3220, %v3213, %v3215
      %v3226 = vsel %vm3220, %v3215, %v3217
      %v3227 = vsel %vm3220, %v3217, %v3219
      %v3229 = vsel %vm437, %v3203, 0
      %v3232 = vsel %vm441, %v3221, 0
      %v3235 = vsel %vm441, %v3222, 0
      %v3238 = vsel %vm441, %v3223, 0
      %v3241 = vsel %vm441, %v3224, 0
      %v3244 = vsel %vm441, %v3225, 0
      %v3247 = vsel %vm441, %v3226, 0
      %v3250 = vsel %vm441, %v3227, 0
      %3252 = vmatpush.bf16.msra.mxu0 0
      %3253 = vmatpush.bf16.msra.mxu0 0
      %3254 = vmatpush.bf16.msra.mxu0 0
      %3255 = vmatpush.bf16.msra.mxu0 0
      %3256 = vmatpush.bf16.msra.mxu0 0
      %3257 = vmatpush.bf16.msra.mxu0 0
      %3258 = vmatpush.bf16.msra.mxu0 0
      %3259 = vmatpush.bf16.msra.mxu0 %v3232
      %3260 = vmatmul.bf16.gmra.mxu0 %v3229
      %v3261 = vpop.f32.mrf.mxu0
      %v3262 = vadd.f32 0.0, %v3261
      %v3263 = vpop.f32.mrf.mxu0
      %3264 = vdwg.mxu0
      %3265 = vmatpush.bf16.msra.mxu0 0
      %3266 = vmatpush.bf16.msra.mxu0 0
      %3267 = vmatpush.bf16.msra.mxu0 0
      %3268 = vmatpush.bf16.msra.mxu0 0
      %3269 = vmatpush.bf16.msra.mxu0 0
      %3270 = vmatpush.bf16.msra.mxu0 0
      %3271 = vmatpush.bf16.msra.mxu0 0
      %3272 = vmatpush.bf16.msra.mxu0 %v3235
      %3273 = vmatmul.bf16.gmra.mxu0 %v3229
      %v3274 = vpop.f32.mrf.mxu0
      %v3275 = vadd.f32 0.0, %v3274
      %v3276 = vpop.f32.mrf.mxu0
      %3277 = vdwg.mxu0
      %3278 = vmatpush.bf16.msra.mxu0 0
      %3279 = vmatpush.bf16.msra.mxu0 0
      %3280 = vmatpush.bf16.msra.mxu0 0
      %3281 = vmatpush.bf16.msra.mxu0 0
      %3282 = vmatpush.bf16.msra.mxu0 0
      %3283 = vmatpush.bf16.msra.mxu0 0
      %3284 = vmatpush.bf16.msra.mxu0 0
      %3285 = vmatpush.bf16.msra.mxu0 %v3238
      %3286 = vmatmul.bf16.gmra.mxu0 %v3229
      %v3287 = vpop.f32.mrf.mxu0
      %v3288 = vadd.f32 0.0, %v3287
      %v3289 = vpop.f32.mrf.mxu0
      %3290 = vdwg.mxu0
      %3291 = vmatpush.bf16.msra.mxu0 0
      %3292 = vmatpush.bf16.msra.mxu0 0
      %3293 = vmatpush.bf16.msra.mxu0 0
      %3294 = vmatpush.bf16.msra.mxu0 0
      %3295 = vmatpush.bf16.msra.mxu0 0
      %3296 = vmatpush.bf16.msra.mxu0 0
      %3297 = vmatpush.bf16.msra.mxu0 0
      %3298 = vmatpush.bf16.msra.mxu0 %v3241
      %3299 = vmatmul.bf16.gmra.mxu0 %v3229
      %v3300 = vpop.f32.mrf.mxu0
      %v3301 = vadd.f32 0.0, %v3300
      %v3302 = vpop.f32.mrf.mxu0
      %3303 = vdwg.mxu0
      %3304 = vmatpush.bf16.msra.mxu0 0
      %3305 = vmatpush.bf16.msra.mxu0 0
      %3306 = vmatpush.bf16.msra.mxu0 0
      %3307 = vmatpush.bf16.msra.mxu0 0
      %3308 = vmatpush.bf16.msra.mxu0 0
      %3309 = vmatpush.bf16.msra.mxu0 0
      %3310 = vmatpush.bf16.msra.mxu0 0
      %3311 = vmatpush.bf16.msra.mxu0 %v3244
      %3312 = vmatmul.bf16.gmra.mxu0 %v3229
      %v3313 = vpop.f32.mrf.mxu0
      %v3314 = vadd.f32 0.0, %v3313
      %v3315 = vpop.f32.mrf.mxu0
      %3316 = vdwg.mxu0
      %3317 = vmatpush.bf16.msra.mxu0 0
      %3318 = vmatpush.bf16.msra.mxu0 0
      %3319 = vmatpush.bf16.msra.mxu0 0
      %3320 = vmatpush.bf16.msra.mxu0 0
      %3321 = vmatpush.bf16.msra.mxu0 0
      %3322 = vmatpush.bf16.msra.mxu0 0
      %3323 = vmatpush.bf16.msra.mxu0 0
      %3324 = vmatpush.bf16.msra.mxu0 %v3247
      %3325 = vmatmul.bf16.gmra.mxu0 %v3229
      %v3326 = vpop.f32.mrf.mxu0
      %v3327 = vadd.f32 0.0, %v3326
      %v3328 = vpop.f32.mrf.mxu0
      %3329 = vdwg.mxu0
      %3330 = vmatpush.bf16.msra.mxu0 0
      %3331 = vmatpush.bf16.msra.mxu0 0
      %3332 = vmatpush.bf16.msra.mxu0 0
      %3333 = vmatpush.bf16.msra.mxu0 0
      %3334 = vmatpush.bf16.msra.mxu0 0
      %3335 = vmatpush.bf16.msra.mxu0 0
      %3336 = vmatpush.bf16.msra.mxu0 0
      %3337 = vmatpush.bf16.msra.mxu0 %v3250
      %3338 = vmatmul.bf16.gmra.mxu0 %v3229
      %v3339 = vpop.f32.mrf.mxu0
      %v3340 = vadd.f32 0.0, %v3339
      %v3341 = vpop.f32.mrf.mxu0
      %3342 = vdwg.mxu0
      %v3343 = vadd.f32 %v3195, %v3262
      %v3344 = vadd.f32 %v3196, %v3275
      %v3345 = vadd.f32 %v3197, %v3288
      %v3346 = vadd.f32 %v3198, %v3301
      %v3347 = vadd.f32 %v3199, %v3314
      %v3348 = vadd.f32 %v3200, %v3327
      %v3349 = vadd.f32 %v3201, %v3340
      %v3350 = vld [vmem:[%s381 + $0x4] sm:$0xff]
      %v3351 = vld [vmem:[%s381 + $0xc] sm:$0xff]
      %v3352 = vld [vmem:[%s381 + $0x14] sm:$0xff]
      %v3353 = vld [vmem:[%s381 + $0x1c] sm:$0xf]
      %3354 = vrot.lane.b32.xlu0 %v2905, 96
      %v3355 = vpop.permute.xlu0 %3354
      %v3360 = vunpack.c.l.b16 %v3350
      %v3361 = vunpack.c.h.b16 %v3350
      %v3362 = vunpack.c.l.b16 %v3351
      %v3363 = vunpack.c.h.b16 %v3351
      %v3364 = vunpack.c.l.b16 %v3352
      %v3365 = vunpack.c.h.b16 %v3352
      %v3366 = vunpack.c.l.b16 %v3353
      %v3367 = vpack.c.b16 %v3360, %v3360
      %v3368 = vpack.c.b16 %v3361, %v3361
      %v3369 = vpack.c.b16 %v3362, %v3362
      %v3370 = vpack.c.b16 %v3363, %v3363
      %v3371 = vpack.c.b16 %v3364, %v3364
      %v3372 = vpack.c.b16 %v3365, %v3365
      %v3373 = vpack.c.b16 %v3366, %v3366
      %v3375 = vsel %vm437, %v3355, 0
      %v3378 = vsel %vm441, %v3367, 0
      %v3381 = vsel %vm441, %v3368, 0
      %v3384 = vsel %vm441, %v3369, 0
      %v3387 = vsel %vm441, %v3370, 0
      %v3390 = vsel %vm441, %v3371, 0
      %v3393 = vsel %vm441, %v3372, 0
      %v3396 = vsel %vm441, %v3373, 0
      %3398 = vmatpush.bf16.msra.mxu0 0
      %3399 = vmatpush.bf16.msra.mxu0 0
      %3400 = vmatpush.bf16.msra.mxu0 0
      %3401 = vmatpush.bf16.msra.mxu0 0
      %3402 = vmatpush.bf16.msra.mxu0 0
      %3403 = vmatpush.bf16.msra.mxu0 0
      %3404 = vmatpush.bf16.msra.mxu0 0
      %3405 = vmatpush.bf16.msra.mxu0 %v3378
      %3406 = vmatmul.bf16.gmra.mxu0 %v3375
      %v3407 = vpop.f32.mrf.mxu0
      %v3408 = vadd.f32 0.0, %v3407
      %v3409 = vpop.f32.mrf.mxu0
      %3410 = vdwg.mxu0
      %3411 = vmatpush.bf16.msra.mxu0 0
      %3412 = vmatpush.bf16.msra.mxu0 0
      %3413 = vmatpush.bf16.msra.mxu0 0
      %3414 = vmatpush.bf16.msra.mxu0 0
      %3415 = vmatpush.bf16.msra.mxu0 0
      %3416 = vmatpush.bf16.msra.mxu0 0
      %3417 = vmatpush.bf16.msra.mxu0 0
      %3418 = vmatpush.bf16.msra.mxu0 %v3381
      %3419 = vmatmul.bf16.gmra.mxu0 %v3375
      %v3420 = vpop.f32.mrf.mxu0
      %v3421 = vadd.f32 0.0, %v3420
      %v3422 = vpop.f32.mrf.mxu0
      %3423 = vdwg.mxu0
      %3424 = vmatpush.bf16.msra.mxu0 0
      %3425 = vmatpush.bf16.msra.mxu0 0
      %3426 = vmatpush.bf16.msra.mxu0 0
      %3427 = vmatpush.bf16.msra.mxu0 0
      %3428 = vmatpush.bf16.msra.mxu0 0
      %3429 = vmatpush.bf16.msra.mxu0 0
      %3430 = vmatpush.bf16.msra.mxu0 0
      %3431 = vmatpush.bf16.msra.mxu0 %v3384
      %3432 = vmatmul.bf16.gmra.mxu0 %v3375
      %v3433 = vpop.f32.mrf.mxu0
      %v3434 = vadd.f32 0.0, %v3433
      %v3435 = vpop.f32.mrf.mxu0
      %3436 = vdwg.mxu0
      %3437 = vmatpush.bf16.msra.mxu0 0
      %3438 = vmatpush.bf16.msra.mxu0 0
      %3439 = vmatpush.bf16.msra.mxu0 0
      %3440 = vmatpush.bf16.msra.mxu0 0
      %3441 = vmatpush.bf16.msra.mxu0 0
      %3442 = vmatpush.bf16.msra.mxu0 0
      %3443 = vmatpush.bf16.msra.mxu0 0
      %3444 = vmatpush.bf16.msra.mxu0 %v3387
      %3445 = vmatmul.bf16.gmra.mxu0 %v3375
      %v3446 = vpop.f32.mrf.mxu0
      %v3447 = vadd.f32 0.0, %v3446
      %v3448 = vpop.f32.mrf.mxu0
      %3449 = vdwg.mxu0
      %3450 = vmatpush.bf16.msra.mxu0 0
      %3451 = vmatpush.bf16.msra.mxu0 0
      %3452 = vmatpush.bf16.msra.mxu0 0
      %3453 = vmatpush.bf16.msra.mxu0 0
      %3454 = vmatpush.bf16.msra.mxu0 0
      %3455 = vmatpush.bf16.msra.mxu0 0
      %3456 = vmatpush.bf16.msra.mxu0 0
      %3457 = vmatpush.bf16.msra.mxu0 %v3390
      %3458 = vmatmul.bf16.gmra.mxu0 %v3375
      %v3459 = vpop.f32.mrf.mxu0
      %v3460 = vadd.f32 0.0, %v3459
      %v3461 = vpop.f32.mrf.mxu0
      %3462 = vdwg.mxu0
      %3463 = vmatpush.bf16.msra.mxu0 0
      %3464 = vmatpush.bf16.msra.mxu0 0
      %3465 = vmatpush.bf16.msra.mxu0 0
      %3466 = vmatpush.bf16.msra.mxu0 0
      %3467 = vmatpush.bf16.msra.mxu0 0
      %3468 = vmatpush.bf16.msra.mxu0 0
      %3469 = vmatpush.bf16.msra.mxu0 0
      %3470 = vmatpush.bf16.msra.mxu0 %v3393
      %3471 = vmatmul.bf16.gmra.mxu0 %v3375
      %v3472 = vpop.f32.mrf.mxu0
      %v3473 = vadd.f32 0.0, %v3472
      %v3474 = vpop.f32.mrf.mxu0
      %3475 = vdwg.mxu0
      %3476 = vmatpush.bf16.msra.mxu0 0
      %3477 = vmatpush.bf16.msra.mxu0 0
      %3478 = vmatpush.bf16.msra.mxu0 0
      %3479 = vmatpush.bf16.msra.mxu0 0
      %3480 = vmatpush.bf16.msra.mxu0 0
      %3481 = vmatpush.bf16.msra.mxu0 0
      %3482 = vmatpush.bf16.msra.mxu0 0
      %3483 = vmatpush.bf16.msra.mxu0 %v3396
      %3484 = vmatmul.bf16.gmra.mxu0 %v3375
      %v3485 = vpop.f32.mrf.mxu0
      %v3486 = vadd.f32 0.0, %v3485
      %v3487 = vpop.f32.mrf.mxu0
      %3488 = vdwg.mxu0
      %v3489 = vadd.f32 %v3343, %v3408
      %v3490 = vadd.f32 %v3344, %v3421
      %v3491 = vadd.f32 %v3345, %v3434
      %v3492 = vadd.f32 %v3346, %v3447
      %v3493 = vadd.f32 %v3347, %v3460
      %v3494 = vadd.f32 %v3348, %v3473
      %v3495 = vadd.f32 %v3349, %v3486
      %3496 = vrot.lane.b32.xlu0 %v2905, 88
      %v3497 = vpop.permute.xlu0 %3496
      %3498 = vrot.lane.b32.xlu0 %v3367, 127
      %v3499 = vpop.permute.xlu0 %3498
      %3500 = vrot.lane.b32.xlu0 %v3368, 127
      %v3501 = vpop.permute.xlu0 %3500
      %3502 = vrot.lane.b32.xlu0 %v3369, 127
      %v3503 = vpop.permute.xlu0 %3502
      %3504 = vrot.lane.b32.xlu0 %v3370, 127
      %v3505 = vpop.permute.xlu0 %3504
      %3506 = vrot.lane.b32.xlu0 %v3371, 127
      %v3507 = vpop.permute.xlu0 %3506
      %3508 = vrot.lane.b32.xlu0 %v3372, 127
      %v3509 = vpop.permute.xlu0 %3508
      %3510 = vrot.lane.b32.xlu0 %v3373, 127
      %v3511 = vpop.permute.xlu0 %3510
      %v3512 = vsel %vm430, %v3499, %v3501
      %v3513 = vsel %vm430, %v3501, %v3503
      %v3514 = vsel %vm430, %v3503, %v3505
      %v3515 = vsel %vm430, %v3505, %v3507
      %v3516 = vsel %vm430, %v3507, %v3509
      %v3517 = vsel %vm430, %v3509, %v3511
      %v3519 = vsel %vm437, %v3497, 0
      %v3522 = vsel %vm441, %v3512, 0
      %v3525 = vsel %vm441, %v3513, 0
      %v3528 = vsel %vm441, %v3514, 0
      %v3531 = vsel %vm441, %v3515, 0
      %v3534 = vsel %vm441, %v3516, 0
      %v3537 = vsel %vm441, %v3517, 0
      %v3540 = vsel %vm441, %v3511, 0
      %3542 = vmatpush.bf16.msra.mxu0 0
      %3543 = vmatpush.bf16.msra.mxu0 0
      %3544 = vmatpush.bf16.msra.mxu0 0
      %3545 = vmatpush.bf16.msra.mxu0 0
      %3546 = vmatpush.bf16.msra.mxu0 0
      %3547 = vmatpush.bf16.msra.mxu0 0
      %3548 = vmatpush.bf16.msra.mxu0 0
      %3549 = vmatpush.bf16.msra.mxu0 %v3522
      %3550 = vmatmul.bf16.gmra.mxu0 %v3519
      %v3551 = vpop.f32.mrf.mxu0
      %v3552 = vadd.f32 0.0, %v3551
      %v3553 = vpop.f32.mrf.mxu0
      %3554 = vdwg.mxu0
      %3555 = vmatpush.bf16.msra.mxu0 0
      %3556 = vmatpush.bf16.msra.mxu0 0
      %3557 = vmatpush.bf16.msra.mxu0 0
      %3558 = vmatpush.bf16.msra.mxu0 0
      %3559 = vmatpush.bf16.msra.mxu0 0
      %3560 = vmatpush.bf16.msra.mxu0 0
      %3561 = vmatpush.bf16.msra.mxu0 0
      %3562 = vmatpush.bf16.msra.mxu0 %v3525
      %3563 = vmatmul.bf16.gmra.mxu0 %v3519
      %v3564 = vpop.f32.mrf.mxu0
      %v3565 = vadd.f32 0.0, %v3564
      %v3566 = vpop.f32.mrf.mxu0
      %3567 = vdwg.mxu0
      %3568 = vmatpush.bf16.msra.mxu0 0
      %3569 = vmatpush.bf16.msra.mxu0 0
      %3570 = vmatpush.bf16.msra.mxu0 0
      %3571 = vmatpush.bf16.msra.mxu0 0
      %3572 = vmatpush.bf16.msra.mxu0 0
      %3573 = vmatpush.bf16.msra.mxu0 0
      %3574 = vmatpush.bf16.msra.mxu0 0
      %3575 = vmatpush.bf16.msra.mxu0 %v3528
      %3576 = vmatmul.bf16.gmra.mxu0 %v3519
      %v3577 = vpop.f32.mrf.mxu0
      %v3578 = vadd.f32 0.0, %v3577
      %v3579 = vpop.f32.mrf.mxu0
      %3580 = vdwg.mxu0
      %3581 = vmatpush.bf16.msra.mxu0 0
      %3582 = vmatpush.bf16.msra.mxu0 0
      %3583 = vmatpush.bf16.msra.mxu0 0
      %3584 = vmatpush.bf16.msra.mxu0 0
      %3585 = vmatpush.bf16.msra.mxu0 0
      %3586 = vmatpush.bf16.msra.mxu0 0
      %3587 = vmatpush.bf16.msra.mxu0 0
      %3588 = vmatpush.bf16.msra.mxu0 %v3531
      %3589 = vmatmul.bf16.gmra.mxu0 %v3519
      %v3590 = vpop.f32.mrf.mxu0
      %v3591 = vadd.f32 0.0, %v3590
      %v3592 = vpop.f32.mrf.mxu0
      %3593 = vdwg.mxu0
      %3594 = vmatpush.bf16.msra.mxu0 0
      %3595 = vmatpush.bf16.msra.mxu0 0
      %3596 = vmatpush.bf16.msra.mxu0 0
      %3597 = vmatpush.bf16.msra.mxu0 0
      %3598 = vmatpush.bf16.msra.mxu0 0
      %3599 = vmatpush.bf16.msra.mxu0 0
      %3600 = vmatpush.bf16.msra.mxu0 0
      %3601 = vmatpush.bf16.msra.mxu0 %v3534
      %3602 = vmatmul.bf16.gmra.mxu0 %v3519
      %v3603 = vpop.f32.mrf.mxu0
      %v3604 = vadd.f32 0.0, %v3603
      %v3605 = vpop.f32.mrf.mxu0
      %3606 = vdwg.mxu0
      %3607 = vmatpush.bf16.msra.mxu0 0
      %3608 = vmatpush.bf16.msra.mxu0 0
      %3609 = vmatpush.bf16.msra.mxu0 0
      %3610 = vmatpush.bf16.msra.mxu0 0
      %3611 = vmatpush.bf16.msra.mxu0 0
      %3612 = vmatpush.bf16.msra.mxu0 0
      %3613 = vmatpush.bf16.msra.mxu0 0
      %3614 = vmatpush.bf16.msra.mxu0 %v3537
      %3615 = vmatmul.bf16.gmra.mxu0 %v3519
      %v3616 = vpop.f32.mrf.mxu0
      %v3617 = vadd.f32 0.0, %v3616
      %v3618 = vpop.f32.mrf.mxu0
      %3619 = vdwg.mxu0
      %3620 = vmatpush.bf16.msra.mxu0 0
      %3621 = vmatpush.bf16.msra.mxu0 0
      %3622 = vmatpush.bf16.msra.mxu0 0
      %3623 = vmatpush.bf16.msra.mxu0 0
      %3624 = vmatpush.bf16.msra.mxu0 0
      %3625 = vmatpush.bf16.msra.mxu0 0
      %3626 = vmatpush.bf16.msra.mxu0 0
      %3627 = vmatpush.bf16.msra.mxu0 %v3540
      %3628 = vmatmul.bf16.gmra.mxu0 %v3519
      %v3629 = vpop.f32.mrf.mxu0
      %v3630 = vadd.f32 0.0, %v3629
      %v3631 = vpop.f32.mrf.mxu0
      %3632 = vdwg.mxu0
      %v3633 = vadd.f32 %v3489, %v3552
      %v3634 = vadd.f32 %v3490, %v3565
      %v3635 = vadd.f32 %v3491, %v3578
      %v3636 = vadd.f32 %v3492, %v3591
      %v3637 = vadd.f32 %v3493, %v3604
      %v3638 = vadd.f32 %v3494, %v3617
      %v3639 = vadd.f32 %v3495, %v3630
      %3640 = vrot.lane.b32.xlu0 %v2905, 80
      %v3641 = vpop.permute.xlu0 %3640
      %3642 = vrot.lane.b32.xlu0 %v3367, 126
      %v3643 = vpop.permute.xlu0 %3642
      %3644 = vrot.lane.b32.xlu0 %v3368, 126
      %v3645 = vpop.permute.xlu0 %3644
      %3646 = vrot.lane.b32.xlu0 %v3369, 126
      %v3647 = vpop.permute.xlu0 %3646
      %3648 = vrot.lane.b32.xlu0 %v3370, 126
      %v3649 = vpop.permute.xlu0 %3648
      %3650 = vrot.lane.b32.xlu0 %v3371, 126
      %v3651 = vpop.permute.xlu0 %3650
      %3652 = vrot.lane.b32.xlu0 %v3372, 126
      %v3653 = vpop.permute.xlu0 %3652
      %3654 = vrot.lane.b32.xlu0 %v3373, 126
      %v3655 = vpop.permute.xlu0 %3654
      %v3656 = vsel %vm685, %v3643, %v3645
      %v3657 = vsel %vm685, %v3645, %v3647
      %v3658 = vsel %vm685, %v3647, %v3649
      %v3659 = vsel %vm685, %v3649, %v3651
      %v3660 = vsel %vm685, %v3651, %v3653
      %v3661 = vsel %vm685, %v3653, %v3655
      %v3663 = vsel %vm437, %v3641, 0
      %v3666 = vsel %vm441, %v3656, 0
      %v3669 = vsel %vm441, %v3657, 0
      %v3672 = vsel %vm441, %v3658, 0
      %v3675 = vsel %vm441, %v3659, 0
      %v3678 = vsel %vm441, %v3660, 0
      %v3681 = vsel %vm441, %v3661, 0
      %v3684 = vsel %vm441, %v3655, 0
      %3686 = vmatpush.bf16.msra.mxu0 0
      %3687 = vmatpush.bf16.msra.mxu0 0
      %3688 = vmatpush.bf16.msra.mxu0 0
      %3689 = vmatpush.bf16.msra.mxu0 0
      %3690 = vmatpush.bf16.msra.mxu0 0
      %3691 = vmatpush.bf16.msra.mxu0 0
      %3692 = vmatpush.bf16.msra.mxu0 0
      %3693 = vmatpush.bf16.msra.mxu0 %v3666
      %3694 = vmatmul.bf16.gmra.mxu0 %v3663
      %v3695 = vpop.f32.mrf.mxu0
      %v3696 = vadd.f32 0.0, %v3695
      %v3697 = vpop.f32.mrf.mxu0
      %3698 = vdwg.mxu0
      %3699 = vmatpush.bf16.msra.mxu0 0
      %3700 = vmatpush.bf16.msra.mxu0 0
      %3701 = vmatpush.bf16.msra.mxu0 0
      %3702 = vmatpush.bf16.msra.mxu0 0
      %3703 = vmatpush.bf16.msra.mxu0 0
      %3704 = vmatpush.bf16.msra.mxu0 0
      %3705 = vmatpush.bf16.msra.mxu0 0
      %3706 = vmatpush.bf16.msra.mxu0 %v3669
      %3707 = vmatmul.bf16.gmra.mxu0 %v3663
      %v3708 = vpop.f32.mrf.mxu0
      %v3709 = vadd.f32 0.0, %v3708
      %v3710 = vpop.f32.mrf.mxu0
      %3711 = vdwg.mxu0
      %3712 = vmatpush.bf16.msra.mxu0 0
      %3713 = vmatpush.bf16.msra.mxu0 0
      %3714 = vmatpush.bf16.msra.mxu0 0
      %3715 = vmatpush.bf16.msra.mxu0 0
      %3716 = vmatpush.bf16.msra.mxu0 0
      %3717 = vmatpush.bf16.msra.mxu0 0
      %3718 = vmatpush.bf16.msra.mxu0 0
      %3719 = vmatpush.bf16.msra.mxu0 %v3672
      %3720 = vmatmul.bf16.gmra.mxu0 %v3663
      %v3721 = vpop.f32.mrf.mxu0
      %v3722 = vadd.f32 0.0, %v3721
      %v3723 = vpop.f32.mrf.mxu0
      %3724 = vdwg.mxu0
      %3725 = vmatpush.bf16.msra.mxu0 0
      %3726 = vmatpush.bf16.msra.mxu0 0
      %3727 = vmatpush.bf16.msra.mxu0 0
      %3728 = vmatpush.bf16.msra.mxu0 0
      %3729 = vmatpush.bf16.msra.mxu0 0
      %3730 = vmatpush.bf16.msra.mxu0 0
      %3731 = vmatpush.bf16.msra.mxu0 0
      %3732 = vmatpush.bf16.msra.mxu0 %v3675
      %3733 = vmatmul.bf16.gmra.mxu0 %v3663
      %v3734 = vpop.f32.mrf.mxu0
      %v3735 = vadd.f32 0.0, %v3734
      %v3736 = vpop.f32.mrf.mxu0
      %3737 = vdwg.mxu0
      %3738 = vmatpush.bf16.msra.mxu0 0
      %3739 = vmatpush.bf16.msra.mxu0 0
      %3740 = vmatpush.bf16.msra.mxu0 0
      %3741 = vmatpush.bf16.msra.mxu0 0
      %3742 = vmatpush.bf16.msra.mxu0 0
      %3743 = vmatpush.bf16.msra.mxu0 0
      %3744 = vmatpush.bf16.msra.mxu0 0
      %3745 = vmatpush.bf16.msra.mxu0 %v3678
      %3746 = vmatmul.bf16.gmra.mxu0 %v3663
      %v3747 = vpop.f32.mrf.mxu0
      %v3748 = vadd.f32 0.0, %v3747
      %v3749 = vpop.f32.mrf.mxu0
      %3750 = vdwg.mxu0
      %3751 = vmatpush.bf16.msra.mxu0 0
      %3752 = vmatpush.bf16.msra.mxu0 0
      %3753 = vmatpush.bf16.msra.mxu0 0
      %3754 = vmatpush.bf16.msra.mxu0 0
      %3755 = vmatpush.bf16.msra.mxu0 0
      %3756 = vmatpush.bf16.msra.mxu0 0
      %3757 = vmatpush.bf16.msra.mxu0 0
      %3758 = vmatpush.bf16.msra.mxu0 %v3681
      %3759 = vmatmul.bf16.gmra.mxu0 %v3663
      %v3760 = vpop.f32.mrf.mxu0
      %v3761 = vadd.f32 0.0, %v3760
      %v3762 = vpop.f32.mrf.mxu0
      %3763 = vdwg.mxu0
      %3764 = vmatpush.bf16.msra.mxu0 0
      %3765 = vmatpush.bf16.msra.mxu0 0
      %3766 = vmatpush.bf16.msra.mxu0 0
      %3767 = vmatpush.bf16.msra.mxu0 0
      %3768 = vmatpush.bf16.msra.mxu0 0
      %3769 = vmatpush.bf16.msra.mxu0 0
      %3770 = vmatpush.bf16.msra.mxu0 0
      %3771 = vmatpush.bf16.msra.mxu0 %v3684
      %3772 = vmatmul.bf16.gmra.mxu0 %v3663
      %v3773 = vpop.f32.mrf.mxu0
      %v3774 = vadd.f32 0.0, %v3773
      %v3775 = vpop.f32.mrf.mxu0
      %3776 = vdwg.mxu0
      %v3777 = vadd.f32 %v3633, %v3696
      %v3778 = vadd.f32 %v3634, %v3709
      %v3779 = vadd.f32 %v3635, %v3722
      %v3780 = vadd.f32 %v3636, %v3735
      %v3781 = vadd.f32 %v3637, %v3748
      %v3782 = vadd.f32 %v3638, %v3761
      %v3783 = vadd.f32 %v3639, %v3774
      %3784 = vrot.lane.b32.xlu0 %v2905, 72
      %v3785 = vpop.permute.xlu0 %3784
      %3786 = vrot.lane.b32.xlu0 %v3367, 125
      %v3787 = vpop.permute.xlu0 %3786
      %3788 = vrot.lane.b32.xlu0 %v3368, 125
      %v3789 = vpop.permute.xlu0 %3788
      %3790 = vrot.lane.b32.xlu0 %v3369, 125
      %v3791 = vpop.permute.xlu0 %3790
      %3792 = vrot.lane.b32.xlu0 %v3370, 125
      %v3793 = vpop.permute.xlu0 %3792
      %3794 = vrot.lane.b32.xlu0 %v3371, 125
      %v3795 = vpop.permute.xlu0 %3794
      %3796 = vrot.lane.b32.xlu0 %v3372, 125
      %v3797 = vpop.permute.xlu0 %3796
      %3798 = vrot.lane.b32.xlu0 %v3373, 125
      %v3799 = vpop.permute.xlu0 %3798
      %v3800 = vsel %vm830, %v3787, %v3789
      %v3801 = vsel %vm830, %v3789, %v3791
      %v3802 = vsel %vm830, %v3791, %v3793
      %v3803 = vsel %vm830, %v3793, %v3795
      %v3804 = vsel %vm830, %v3795, %v3797
      %v3805 = vsel %vm830, %v3797, %v3799
      %v3807 = vsel %vm437, %v3785, 0
      %v3810 = vsel %vm441, %v3800, 0
      %v3813 = vsel %vm441, %v3801, 0
      %v3816 = vsel %vm441, %v3802, 0
      %v3819 = vsel %vm441, %v3803, 0
      %v3822 = vsel %vm441, %v3804, 0
      %v3825 = vsel %vm441, %v3805, 0
      %v3828 = vsel %vm441, %v3799, 0
      %3830 = vmatpush.bf16.msra.mxu0 0
      %3831 = vmatpush.bf16.msra.mxu0 0
      %3832 = vmatpush.bf16.msra.mxu0 0
      %3833 = vmatpush.bf16.msra.mxu0 0
      %3834 = vmatpush.bf16.msra.mxu0 0
      %3835 = vmatpush.bf16.msra.mxu0 0
      %3836 = vmatpush.bf16.msra.mxu0 0
      %3837 = vmatpush.bf16.msra.mxu0 %v3810
      %3838 = vmatmul.bf16.gmra.mxu0 %v3807
      %v3839 = vpop.f32.mrf.mxu0
      %v3840 = vadd.f32 0.0, %v3839
      %v3841 = vpop.f32.mrf.mxu0
      %3842 = vdwg.mxu0
      %3843 = vmatpush.bf16.msra.mxu0 0
      %3844 = vmatpush.bf16.msra.mxu0 0
      %3845 = vmatpush.bf16.msra.mxu0 0
      %3846 = vmatpush.bf16.msra.mxu0 0
      %3847 = vmatpush.bf16.msra.mxu0 0
      %3848 = vmatpush.bf16.msra.mxu0 0
      %3849 = vmatpush.bf16.msra.mxu0 0
      %3850 = vmatpush.bf16.msra.mxu0 %v3813
      %3851 = vmatmul.bf16.gmra.mxu0 %v3807
      %v3852 = vpop.f32.mrf.mxu0
      %v3853 = vadd.f32 0.0, %v3852
      %v3854 = vpop.f32.mrf.mxu0
      %3855 = vdwg.mxu0
      %3856 = vmatpush.bf16.msra.mxu0 0
      %3857 = vmatpush.bf16.msra.mxu0 0
      %3858 = vmatpush.bf16.msra.mxu0 0
      %3859 = vmatpush.bf16.msra.mxu0 0
      %3860 = vmatpush.bf16.msra.mxu0 0
      %3861 = vmatpush.bf16.msra.mxu0 0
      %3862 = vmatpush.bf16.msra.mxu0 0
      %3863 = vmatpush.bf16.msra.mxu0 %v3816
      %3864 = vmatmul.bf16.gmra.mxu0 %v3807
      %v3865 = vpop.f32.mrf.mxu0
      %v3866 = vadd.f32 0.0, %v3865
      %v3867 = vpop.f32.mrf.mxu0
      %3868 = vdwg.mxu0
      %3869 = vmatpush.bf16.msra.mxu0 0
      %3870 = vmatpush.bf16.msra.mxu0 0
      %3871 = vmatpush.bf16.msra.mxu0 0
      %3872 = vmatpush.bf16.msra.mxu0 0
      %3873 = vmatpush.bf16.msra.mxu0 0
      %3874 = vmatpush.bf16.msra.mxu0 0
      %3875 = vmatpush.bf16.msra.mxu0 0
      %3876 = vmatpush.bf16.msra.mxu0 %v3819
      %3877 = vmatmul.bf16.gmra.mxu0 %v3807
      %v3878 = vpop.f32.mrf.mxu0
      %v3879 = vadd.f32 0.0, %v3878
      %v3880 = vpop.f32.mrf.mxu0
      %3881 = vdwg.mxu0
      %3882 = vmatpush.bf16.msra.mxu0 0
      %3883 = vmatpush.bf16.msra.mxu0 0
      %3884 = vmatpush.bf16.msra.mxu0 0
      %3885 = vmatpush.bf16.msra.mxu0 0
      %3886 = vmatpush.bf16.msra.mxu0 0
      %3887 = vmatpush.bf16.msra.mxu0 0
      %3888 = vmatpush.bf16.msra.mxu0 0
      %3889 = vmatpush.bf16.msra.mxu0 %v3822
      %3890 = vmatmul.bf16.gmra.mxu0 %v3807
      %v3891 = vpop.f32.mrf.mxu0
      %v3892 = vadd.f32 0.0, %v3891
      %v3893 = vpop.f32.mrf.mxu0
      %3894 = vdwg.mxu0
      %3895 = vmatpush.bf16.msra.mxu0 0
      %3896 = vmatpush.bf16.msra.mxu0 0
      %3897 = vmatpush.bf16.msra.mxu0 0
      %3898 = vmatpush.bf16.msra.mxu0 0
      %3899 = vmatpush.bf16.msra.mxu0 0
      %3900 = vmatpush.bf16.msra.mxu0 0
      %3901 = vmatpush.bf16.msra.mxu0 0
      %3902 = vmatpush.bf16.msra.mxu0 %v3825
      %3903 = vmatmul.bf16.gmra.mxu0 %v3807
      %v3904 = vpop.f32.mrf.mxu0
      %v3905 = vadd.f32 0.0, %v3904
      %v3906 = vpop.f32.mrf.mxu0
      %3907 = vdwg.mxu0
      %3908 = vmatpush.bf16.msra.mxu0 0
      %3909 = vmatpush.bf16.msra.mxu0 0
      %3910 = vmatpush.bf16.msra.mxu0 0
      %3911 = vmatpush.bf16.msra.mxu0 0
      %3912 = vmatpush.bf16.msra.mxu0 0
      %3913 = vmatpush.bf16.msra.mxu0 0
      %3914 = vmatpush.bf16.msra.mxu0 0
      %3915 = vmatpush.bf16.msra.mxu0 %v3828
      %3916 = vmatmul.bf16.gmra.mxu0 %v3807
      %v3917 = vpop.f32.mrf.mxu0
      %v3918 = vadd.f32 0.0, %v3917
      %v3919 = vpop.f32.mrf.mxu0
      %3920 = vdwg.mxu0
      %v3921 = vadd.f32 %v3777, %v3840
      %v3922 = vadd.f32 %v3778, %v3853
      %v3923 = vadd.f32 %v3779, %v3866
      %v3924 = vadd.f32 %v3780, %v3879
      %v3925 = vadd.f32 %v3781, %v3892
      %v3926 = vadd.f32 %v3782, %v3905
      %v3927 = vadd.f32 %v3783, %v3918
      %3928 = vrot.lane.b32.xlu0 %v2905, 64
      %v3929 = vpop.permute.xlu0 %3928
      %3930 = vrot.lane.b32.xlu0 %v3367, 124
      %v3931 = vpop.permute.xlu0 %3930
      %3932 = vrot.lane.b32.xlu0 %v3368, 124
      %v3933 = vpop.permute.xlu0 %3932
      %3934 = vrot.lane.b32.xlu0 %v3369, 124
      %v3935 = vpop.permute.xlu0 %3934
      %3936 = vrot.lane.b32.xlu0 %v3370, 124
      %v3937 = vpop.permute.xlu0 %3936
      %3938 = vrot.lane.b32.xlu0 %v3371, 124
      %v3939 = vpop.permute.xlu0 %3938
      %3940 = vrot.lane.b32.xlu0 %v3372, 124
      %v3941 = vpop.permute.xlu0 %3940
      %3942 = vrot.lane.b32.xlu0 %v3373, 124
      %v3943 = vpop.permute.xlu0 %3942
      %v3944 = vsel %vm975, %v3931, %v3933
      %v3945 = vsel %vm975, %v3933, %v3935
      %v3946 = vsel %vm975, %v3935, %v3937
      %v3947 = vsel %vm975, %v3937, %v3939
      %v3948 = vsel %vm975, %v3939, %v3941
      %v3949 = vsel %vm975, %v3941, %v3943
      %v3951 = vsel %vm437, %v3929, 0
      %v3954 = vsel %vm441, %v3944, 0
      %v3957 = vsel %vm441, %v3945, 0
      %v3960 = vsel %vm441, %v3946, 0
      %v3963 = vsel %vm441, %v3947, 0
      %v3966 = vsel %vm441, %v3948, 0
      %v3969 = vsel %vm441, %v3949, 0
      %v3972 = vsel %vm441, %v3943, 0
      %3974 = vmatpush.bf16.msra.mxu0 0
      %3975 = vmatpush.bf16.msra.mxu0 0
      %3976 = vmatpush.bf16.msra.mxu0 0
      %3977 = vmatpush.bf16.msra.mxu0 0
      %3978 = vmatpush.bf16.msra.mxu0 0
      %3979 = vmatpush.bf16.msra.mxu0 0
      %3980 = vmatpush.bf16.msra.mxu0 0
      %3981 = vmatpush.bf16.msra.mxu0 %v3954
      %3982 = vmatmul.bf16.gmra.mxu0 %v3951
      %v3983 = vpop.f32.mrf.mxu0
      %v3984 = vadd.f32 0.0, %v3983
      %v3985 = vpop.f32.mrf.mxu0
      %3986 = vdwg.mxu0
      %3987 = vmatpush.bf16.msra.mxu0 0
      %3988 = vmatpush.bf16.msra.mxu0 0
      %3989 = vmatpush.bf16.msra.mxu0 0
      %3990 = vmatpush.bf16.msra.mxu0 0
      %3991 = vmatpush.bf16.msra.mxu0 0
      %3992 = vmatpush.bf16.msra.mxu0 0
      %3993 = vmatpush.bf16.msra.mxu0 0
      %3994 = vmatpush.bf16.msra.mxu0 %v3957
      %3995 = vmatmul.bf16.gmra.mxu0 %v3951
      %v3996 = vpop.f32.mrf.mxu0
      %v3997 = vadd.f32 0.0, %v3996
      %v3998 = vpop.f32.mrf.mxu0
      %3999 = vdwg.mxu0
      %4000 = vmatpush.bf16.msra.mxu0 0
      %4001 = vmatpush.bf16.msra.mxu0 0
      %4002 = vmatpush.bf16.msra.mxu0 0
      %4003 = vmatpush.bf16.msra.mxu0 0
      %4004 = vmatpush.bf16.msra.mxu0 0
      %4005 = vmatpush.bf16.msra.mxu0 0
      %4006 = vmatpush.bf16.msra.mxu0 0
      %4007 = vmatpush.bf16.msra.mxu0 %v3960
      %4008 = vmatmul.bf16.gmra.mxu0 %v3951
      %v4009 = vpop.f32.mrf.mxu0
      %v4010 = vadd.f32 0.0, %v4009
      %v4011 = vpop.f32.mrf.mxu0
      %4012 = vdwg.mxu0
      %4013 = vmatpush.bf16.msra.mxu0 0
      %4014 = vmatpush.bf16.msra.mxu0 0
      %4015 = vmatpush.bf16.msra.mxu0 0
      %4016 = vmatpush.bf16.msra.mxu0 0
      %4017 = vmatpush.bf16.msra.mxu0 0
      %4018 = vmatpush.bf16.msra.mxu0 0
      %4019 = vmatpush.bf16.msra.mxu0 0
      %4020 = vmatpush.bf16.msra.mxu0 %v3963
      %4021 = vmatmul.bf16.gmra.mxu0 %v3951
      %v4022 = vpop.f32.mrf.mxu0
      %v4023 = vadd.f32 0.0, %v4022
      %v4024 = vpop.f32.mrf.mxu0
      %4025 = vdwg.mxu0
      %4026 = vmatpush.bf16.msra.mxu0 0
      %4027 = vmatpush.bf16.msra.mxu0 0
      %4028 = vmatpush.bf16.msra.mxu0 0
      %4029 = vmatpush.bf16.msra.mxu0 0
      %4030 = vmatpush.bf16.msra.mxu0 0
      %4031 = vmatpush.bf16.msra.mxu0 0
      %4032 = vmatpush.bf16.msra.mxu0 0
      %4033 = vmatpush.bf16.msra.mxu0 %v3966
      %4034 = vmatmul.bf16.gmra.mxu0 %v3951
      %v4035 = vpop.f32.mrf.mxu0
      %v4036 = vadd.f32 0.0, %v4035
      %v4037 = vpop.f32.mrf.mxu0
      %4038 = vdwg.mxu0
      %4039 = vmatpush.bf16.msra.mxu0 0
      %4040 = vmatpush.bf16.msra.mxu0 0
      %4041 = vmatpush.bf16.msra.mxu0 0
      %4042 = vmatpush.bf16.msra.mxu0 0
      %4043 = vmatpush.bf16.msra.mxu0 0
      %4044 = vmatpush.bf16.msra.mxu0 0
      %4045 = vmatpush.bf16.msra.mxu0 0
      %4046 = vmatpush.bf16.msra.mxu0 %v3969
      %4047 = vmatmul.bf16.gmra.mxu0 %v3951
      %v4048 = vpop.f32.mrf.mxu0
      %v4049 = vadd.f32 0.0, %v4048
      %v4050 = vpop.f32.mrf.mxu0
      %4051 = vdwg.mxu0
      %4052 = vmatpush.bf16.msra.mxu0 0
      %4053 = vmatpush.bf16.msra.mxu0 0
      %4054 = vmatpush.bf16.msra.mxu0 0
      %4055 = vmatpush.bf16.msra.mxu0 0
      %4056 = vmatpush.bf16.msra.mxu0 0
      %4057 = vmatpush.bf16.msra.mxu0 0
      %4058 = vmatpush.bf16.msra.mxu0 0
      %4059 = vmatpush.bf16.msra.mxu0 %v3972
      %4060 = vmatmul.bf16.gmra.mxu0 %v3951
      %v4061 = vpop.f32.mrf.mxu0
      %v4062 = vadd.f32 0.0, %v4061
      %v4063 = vpop.f32.mrf.mxu0
      %4064 = vdwg.mxu0
      %v4065 = vadd.f32 %v3921, %v3984
      %v4066 = vadd.f32 %v3922, %v3997
      %v4067 = vadd.f32 %v3923, %v4010
      %v4068 = vadd.f32 %v3924, %v4023
      %v4069 = vadd.f32 %v3925, %v4036
      %v4070 = vadd.f32 %v3926, %v4049
      %v4071 = vadd.f32 %v3927, %v4062
      %v4072 = vld [vmem:[%s2] sm:$0xff]
      %4074 = vset.pattern.permute.xlu0 0
      %4075 = vperm.xlu0 %4074, %v4072
      %v4076 = vpop.permute.xlu0 %4075
      %v4078 = vadd.f32 %v4065, %v4076
      %v4079 = vadd.f32 %v4066, %v4076
      %v4080 = vadd.f32 %v4067, %v4076
      %v4081 = vadd.f32 %v4068, %v4076
      %v4082 = vadd.f32 %v4069, %v4076
      %v4083 = vadd.f32 %v4070, %v4076
      %v4084 = vadd.f32 %v4071, %v4076
      %v4085 = vmax.f32 %v4078, 0.0
      %v4086 = vmax.f32 %v4079, 0.0
      %v4087 = vmax.f32 %v4080, 0.0
      %v4088 = vmax.f32 %v4081, 0.0
      %v4089 = vmax.f32 %v4082, 0.0
      %v4090 = vmax.f32 %v4083, 0.0
      %v4091 = vmax.f32 %v4084, 0.0
      %4092 = vst [vmem:[#allocation2] sm:$0xff] %v4085
      %4093 = vst [vmem:[#allocation2 + $0x8] sm:$0xff] %v4086
      %4094 = vst [vmem:[#allocation2 + $0x10] sm:$0xff] %v4087
      %4095 = vst [vmem:[#allocation2 + $0x18] sm:$0xff] %v4088
      %4096 = vst [vmem:[#allocation2 + $0x20] sm:$0xff] %v4089
      %4097 = vst [vmem:[#allocation2 + $0x28] sm:$0xff] %v4090
      %vm4098 = vcmask 1014784
      %4099 = vst.msk [vmem:[#allocation2 + $0x30] sm:$0xff] %vm4098, %v4091
      %v4100 = vld [vmem:[#allocation2] sm:$0xff]
      %v4101 = vld [vmem:[#allocation2 + $0x8] sm:$0xff]
      %v4102 = vld [vmem:[#allocation2 + $0x10] sm:$0xff]
      %v4103 = vld [vmem:[#allocation2 + $0x18] sm:$0xff]
      %v4104 = vld [vmem:[#allocation2 + $0x20] sm:$0xff]
      %v4105 = vld [vmem:[#allocation2 + $0x28] sm:$0xff]
      %v4106 = vld [vmem:[#allocation2 + $0x30] sm:$0xff]
      %4114 = vrot.lane.b32.xlu0 %v4100, 127
      %v4115 = vpop.permute.xlu0 %4114
      %4116 = vrot.lane.b32.xlu0 %v4101, 127
      %v4117 = vpop.permute.xlu0 %4116
      %4118 = vrot.lane.b32.xlu0 %v4102, 127
      %v4119 = vpop.permute.xlu0 %4118
      %4120 = vrot.lane.b32.xlu0 %v4103, 127
      %v4121 = vpop.permute.xlu0 %4120
      %4122 = vrot.lane.b32.xlu0 %v4104, 127
      %v4123 = vpop.permute.xlu0 %4122
      %4124 = vrot.lane.b32.xlu0 %v4105, 127
      %v4125 = vpop.permute.xlu0 %4124
      %4126 = vrot.lane.b32.xlu0 %v4106, 127
      %v4127 = vpop.permute.xlu0 %4126
      %vm4128 = vcmask 1039360
      %v4129 = vsel %vm4128, %v4115, %v4117
      %v4130 = vsel %vm4128, %v4117, %v4119
      %v4131 = vsel %vm4128, %v4119, %v4121
      %v4132 = vsel %vm4128, %v4121, %v4123
      %v4133 = vsel %vm4128, %v4123, %v4125
      %v4134 = vsel %vm4128, %v4125, %v4127
      %v4142 = vmax.f32 %v4100, %v4129
      %v4143 = vmax.f32 %v4101, %v4130
      %v4144 = vmax.f32 %v4102, %v4131
      %v4145 = vmax.f32 %v4103, %v4132
      %v4146 = vmax.f32 %v4104, %v4133
      %v4147 = vmax.f32 %v4105, %v4134
      %v4148 = vmax.f32 %v4106, %v4127
      %4156 = vrot.lane.b32.xlu0 %v4142, 96
      %v4157 = vpop.permute.xlu0 %4156
      %4158 = vrot.lane.b32.xlu0 %v4143, 96
      %v4159 = vpop.permute.xlu0 %4158
      %4160 = vrot.lane.b32.xlu0 %v4144, 96
      %v4161 = vpop.permute.xlu0 %4160
      %4162 = vrot.lane.b32.xlu0 %v4145, 96
      %v4163 = vpop.permute.xlu0 %4162
      %4164 = vrot.lane.b32.xlu0 %v4146, 96
      %v4165 = vpop.permute.xlu0 %4164
      %4166 = vrot.lane.b32.xlu0 %v4147, 96
      %v4167 = vpop.permute.xlu0 %4166
      %4168 = vrot.lane.b32.xlu0 %v4148, 96
      %v4169 = vpop.permute.xlu0 %4168
      %vm4170 = vcmask 785408
      %v4171 = vsel %vm4170, %v4157, %v4159
      %v4172 = vsel %vm4170, %v4159, %v4161
      %v4173 = vsel %vm4170, %v4161, %v4163
      %v4174 = vsel %vm4170, %v4163, %v4165
      %v4175 = vsel %vm4170, %v4165, %v4167
      %v4176 = vsel %vm4170, %v4167, %v4169
      %v4184 = vmax.f32 %v4142, %v4171
      %v4185 = vmax.f32 %v4143, %v4172
      %v4186 = vmax.f32 %v4144, %v4173
      %v4187 = vmax.f32 %v4145, %v4174
      %v4188 = vmax.f32 %v4146, %v4175
      %v4189 = vmax.f32 %v4147, %v4176
      %v4190 = vmax.f32 %v4148, %v4169
      %v4191 = vpack.c.bf16 %v4185, %v4184
      %v4192 = vpack.c.bf16 %v4187, %v4186
      %v4193 = vpack.c.bf16 %v4189, %v4188
      %v4194 = vpack.c.bf16 %v4190, %v4190
      %4195 = vst [vmem:[#allocation3] sm:$0xff] %v4191
      %4196 = vst [vmem:[#allocation3 + $0x8] sm:$0xff] %v4192
      %4197 = vst [vmem:[#allocation3 + $0x10] sm:$0xff] %v4193
      %vm4198 = vcmask 740352
      %4199 = vst.msk [vmem:[#allocation3 + $0x18] sm:$0xf] %vm4198, %v4194
      %v4200 = vld [vmem:[%s3] sm:$0xf]
      %v4201 = vld [vmem:[%s3 + $0x8] sm:$0xf]
      %v4202 = vld [vmem:[#allocation3] sm:$0xff]
      %v4203 = vld [vmem:[#allocation3 + $0x8] sm:$0xff]
      %v4204 = vld [vmem:[#allocation3 + $0x10] sm:$0xf]
      %v4207 = vunpack.c.l.b16 %v4200
      %v4208 = vunpack.c.l.b16 %v4201
      %v4209 = vpack.c.b16 %v4208, %v4207
      %4210 = vrot.lane.b32.xlu0 %v4209, 120
      %v4211 = vpop.permute.xlu0 %4210
      %v4215 = vunpack.c.l.b16 %v4202
      %v4216 = vunpack.c.h.b16 %v4202
      %v4217 = vunpack.c.l.b16 %v4203
      %v4218 = vunpack.c.h.b16 %v4203
      %v4219 = vunpack.c.l.b16 %v4204
      %v4220 = vpack.c.b16 %v4215, %v4215
      %v4221 = vpack.c.b16 %v4216, %v4216
      %v4222 = vpack.c.b16 %v4217, %v4217
      %v4223 = vpack.c.b16 %v4218, %v4218
      %v4224 = vpack.c.b16 %v4219, %v4219
      %4225 = vrot.lane.b32.xlu0 %v4220, 126
      %v4226 = vpop.permute.xlu0 %4225
      %4227 = vrot.lane.b32.xlu0 %v4221, 126
      %v4228 = vpop.permute.xlu0 %4227
      %4229 = vrot.lane.b32.xlu0 %v4222, 126
      %v4230 = vpop.permute.xlu0 %4229
      %4231 = vrot.lane.b32.xlu0 %v4223, 126
      %v4232 = vpop.permute.xlu0 %4231
      %4233 = vrot.lane.b32.xlu0 %v4224, 126
      %v4234 = vpop.permute.xlu0 %4233
      %v4235 = vsel %vm685, %v4226, %v4228
      %v4236 = vsel %vm685, %v4228, %v4230
      %v4237 = vsel %vm685, %v4230, %v4232
      %v4238 = vsel %vm685, %v4232, %v4234
      %v4240 = vsel %vm437, %v4211, 0
      %v4243 = vsel %vm441, %v4235, 0
      %v4246 = vsel %vm441, %v4236, 0
      %v4249 = vsel %vm441, %v4237, 0
      %v4252 = vsel %vm441, %v4238, 0
      %v4255 = vsel %vm441, %v4234, 0
      %4257 = vmatpush.bf16.msra.mxu0 0
      %4258 = vmatpush.bf16.msra.mxu0 0
      %4259 = vmatpush.bf16.msra.mxu0 0
      %4260 = vmatpush.bf16.msra.mxu0 0
      %4261 = vmatpush.bf16.msra.mxu0 0
      %4262 = vmatpush.bf16.msra.mxu0 0
      %4263 = vmatpush.bf16.msra.mxu0 0
      %4264 = vmatpush.bf16.msra.mxu0 %v4243
      %4265 = vmatmul.bf16.gmra.mxu0 %v4240
      %v4266 = vpop.f32.mrf.mxu0
      %v4267 = vadd.f32 0.0, %v4266
      %v4268 = vpop.f32.mrf.mxu0
      %v4269 = vadd.f32 0.0, %v4268
      %4270 = vdwg.mxu0
      %4271 = vmatpush.bf16.msra.mxu0 0
      %4272 = vmatpush.bf16.msra.mxu0 0
      %4273 = vmatpush.bf16.msra.mxu0 0
      %4274 = vmatpush.bf16.msra.mxu0 0
      %4275 = vmatpush.bf16.msra.mxu0 0
      %4276 = vmatpush.bf16.msra.mxu0 0
      %4277 = vmatpush.bf16.msra.mxu0 0
      %4278 = vmatpush.bf16.msra.mxu0 %v4246
      %4279 = vmatmul.bf16.gmra.mxu0 %v4240
      %v4280 = vpop.f32.mrf.mxu0
      %v4281 = vadd.f32 0.0, %v4280
      %v4282 = vpop.f32.mrf.mxu0
      %v4283 = vadd.f32 0.0, %v4282
      %4284 = vdwg.mxu0
      %4285 = vmatpush.bf16.msra.mxu0 0
      %4286 = vmatpush.bf16.msra.mxu0 0
      %4287 = vmatpush.bf16.msra.mxu0 0
      %4288 = vmatpush.bf16.msra.mxu0 0
      %4289 = vmatpush.bf16.msra.mxu0 0
      %4290 = vmatpush.bf16.msra.mxu0 0
      %4291 = vmatpush.bf16.msra.mxu0 0
      %4292 = vmatpush.bf16.msra.mxu0 %v4249
      %4293 = vmatmul.bf16.gmra.mxu0 %v4240
      %v4294 = vpop.f32.mrf.mxu0
      %v4295 = vadd.f32 0.0, %v4294
      %v4296 = vpop.f32.mrf.mxu0
      %v4297 = vadd.f32 0.0, %v4296
      %4298 = vdwg.mxu0
      %4299 = vmatpush.bf16.msra.mxu0 0
      %4300 = vmatpush.bf16.msra.mxu0 0
      %4301 = vmatpush.bf16.msra.mxu0 0
      %4302 = vmatpush.bf16.msra.mxu0 0
      %4303 = vmatpush.bf16.msra.mxu0 0
      %4304 = vmatpush.bf16.msra.mxu0 0
      %4305 = vmatpush.bf16.msra.mxu0 0
      %4306 = vmatpush.bf16.msra.mxu0 %v4252
      %4307 = vmatmul.bf16.gmra.mxu0 %v4240
      %v4308 = vpop.f32.mrf.mxu0
      %v4309 = vadd.f32 0.0, %v4308
      %v4310 = vpop.f32.mrf.mxu0
      %v4311 = vadd.f32 0.0, %v4310
      %4312 = vdwg.mxu0
      %4313 = vmatpush.bf16.msra.mxu0 0
      %4314 = vmatpush.bf16.msra.mxu0 0
      %4315 = vmatpush.bf16.msra.mxu0 0
      %4316 = vmatpush.bf16.msra.mxu0 0
      %4317 = vmatpush.bf16.msra.mxu0 0
      %4318 = vmatpush.bf16.msra.mxu0 0
      %4319 = vmatpush.bf16.msra.mxu0 0
      %4320 = vmatpush.bf16.msra.mxu0 %v4255
      %4321 = vmatmul.bf16.gmra.mxu0 %v4240
      %v4322 = vpop.f32.mrf.mxu0
      %v4323 = vadd.f32 0.0, %v4322
      %v4324 = vpop.f32.mrf.mxu0
      %v4325 = vadd.f32 0.0, %v4324
      %4326 = vdwg.mxu0
      %v4328 = vsel %vm437, %v4209, 0
      %v4331 = vsel %vm441, %v4220, 0
      %v4334 = vsel %vm441, %v4221, 0
      %v4337 = vsel %vm441, %v4222, 0
      %v4340 = vsel %vm441, %v4223, 0
      %v4343 = vsel %vm441, %v4224, 0
      %4345 = vmatpush.bf16.msra.mxu0 0
      %4346 = vmatpush.bf16.msra.mxu0 0
      %4347 = vmatpush.bf16.msra.mxu0 0
      %4348 = vmatpush.bf16.msra.mxu0 0
      %4349 = vmatpush.bf16.msra.mxu0 0
      %4350 = vmatpush.bf16.msra.mxu0 0
      %4351 = vmatpush.bf16.msra.mxu0 0
      %4352 = vmatpush.bf16.msra.mxu0 %v4331
      %4353 = vmatmul.bf16.gmra.mxu0 %v4328
      %v4354 = vpop.f32.mrf.mxu0
      %v4355 = vadd.f32 %v4267, %v4354
      %v4356 = vpop.f32.mrf.mxu0
      %v4357 = vadd.f32 %v4269, %v4356
      %4358 = vdwg.mxu0
      %4359 = vmatpush.bf16.msra.mxu0 0
      %4360 = vmatpush.bf16.msra.mxu0 0
      %4361 = vmatpush.bf16.msra.mxu0 0
      %4362 = vmatpush.bf16.msra.mxu0 0
      %4363 = vmatpush.bf16.msra.mxu0 0
      %4364 = vmatpush.bf16.msra.mxu0 0
      %4365 = vmatpush.bf16.msra.mxu0 0
      %4366 = vmatpush.bf16.msra.mxu0 %v4334
      %4367 = vmatmul.bf16.gmra.mxu0 %v4328
      %v4368 = vpop.f32.mrf.mxu0
      %v4369 = vadd.f32 %v4281, %v4368
      %v4370 = vpop.f32.mrf.mxu0
      %v4371 = vadd.f32 %v4283, %v4370
      %4372 = vdwg.mxu0
      %4373 = vmatpush.bf16.msra.mxu0 0
      %4374 = vmatpush.bf16.msra.mxu0 0
      %4375 = vmatpush.bf16.msra.mxu0 0
      %4376 = vmatpush.bf16.msra.mxu0 0
      %4377 = vmatpush.bf16.msra.mxu0 0
      %4378 = vmatpush.bf16.msra.mxu0 0
      %4379 = vmatpush.bf16.msra.mxu0 0
      %4380 = vmatpush.bf16.msra.mxu0 %v4337
      %4381 = vmatmul.bf16.gmra.mxu0 %v4328
      %v4382 = vpop.f32.mrf.mxu0
      %v4383 = vadd.f32 %v4295, %v4382
      %v4384 = vpop.f32.mrf.mxu0
      %v4385 = vadd.f32 %v4297, %v4384
      %4386 = vdwg.mxu0
      %4387 = vmatpush.bf16.msra.mxu0 0
      %4388 = vmatpush.bf16.msra.mxu0 0
      %4389 = vmatpush.bf16.msra.mxu0 0
      %4390 = vmatpush.bf16.msra.mxu0 0
      %4391 = vmatpush.bf16.msra.mxu0 0
      %4392 = vmatpush.bf16.msra.mxu0 0
      %4393 = vmatpush.bf16.msra.mxu0 0
      %4394 = vmatpush.bf16.msra.mxu0 %v4340
      %4395 = vmatmul.bf16.gmra.mxu0 %v4328
      %v4396 = vpop.f32.mrf.mxu0
      %v4397 = vadd.f32 %v4309, %v4396
      %v4398 = vpop.f32.mrf.mxu0
      %v4399 = vadd.f32 %v4311, %v4398
      %4400 = vdwg.mxu0
      %4401 = vmatpush.bf16.msra.mxu0 0
      %4402 = vmatpush.bf16.msra.mxu0 0
      %4403 = vmatpush.bf16.msra.mxu0 0
      %4404 = vmatpush.bf16.msra.mxu0 0
      %4405 = vmatpush.bf16.msra.mxu0 0
      %4406 = vmatpush.bf16.msra.mxu0 0
      %4407 = vmatpush.bf16.msra.mxu0 0
      %4408 = vmatpush.bf16.msra.mxu0 %v4343
      %4409 = vmatmul.bf16.gmra.mxu0 %v4328
      %v4410 = vpop.f32.mrf.mxu0
      %v4411 = vadd.f32 %v4323, %v4410
      %v4412 = vpop.f32.mrf.mxu0
      %v4413 = vadd.f32 %v4325, %v4412
      %4414 = vdwg.mxu0
      %4415 = vrot.lane.b32.xlu0 %v4209, 112
      %v4416 = vpop.permute.xlu0 %4415
      %4417 = vrot.lane.b32.xlu0 %v4220, 124
      %v4418 = vpop.permute.xlu0 %4417
      %4419 = vrot.lane.b32.xlu0 %v4221, 124
      %v4420 = vpop.permute.xlu0 %4419
      %4421 = vrot.lane.b32.xlu0 %v4222, 124
      %v4422 = vpop.permute.xlu0 %4421
      %4423 = vrot.lane.b32.xlu0 %v4223, 124
      %v4424 = vpop.permute.xlu0 %4423
      %4425 = vrot.lane.b32.xlu0 %v4224, 124
      %v4426 = vpop.permute.xlu0 %4425
      %v4427 = vsel %vm975, %v4418, %v4420
      %v4428 = vsel %vm975, %v4420, %v4422
      %v4429 = vsel %vm975, %v4422, %v4424
      %v4430 = vsel %vm975, %v4424, %v4426
      %v4432 = vsel %vm437, %v4416, 0
      %v4435 = vsel %vm441, %v4427, 0
      %v4438 = vsel %vm441, %v4428, 0
      %v4441 = vsel %vm441, %v4429, 0
      %v4444 = vsel %vm441, %v4430, 0
      %v4447 = vsel %vm441, %v4426, 0
      %4449 = vmatpush.bf16.msra.mxu0 0
      %4450 = vmatpush.bf16.msra.mxu0 0
      %4451 = vmatpush.bf16.msra.mxu0 0
      %4452 = vmatpush.bf16.msra.mxu0 0
      %4453 = vmatpush.bf16.msra.mxu0 0
      %4454 = vmatpush.bf16.msra.mxu0 0
      %4455 = vmatpush.bf16.msra.mxu0 0
      %4456 = vmatpush.bf16.msra.mxu0 %v4435
      %4457 = vmatmul.bf16.gmra.mxu0 %v4432
      %v4458 = vpop.f32.mrf.mxu0
      %v4459 = vadd.f32 0.0, %v4458
      %v4460 = vpop.f32.mrf.mxu0
      %v4461 = vadd.f32 0.0, %v4460
      %4462 = vdwg.mxu0
      %4463 = vmatpush.bf16.msra.mxu0 0
      %4464 = vmatpush.bf16.msra.mxu0 0
      %4465 = vmatpush.bf16.msra.mxu0 0
      %4466 = vmatpush.bf16.msra.mxu0 0
      %4467 = vmatpush.bf16.msra.mxu0 0
      %4468 = vmatpush.bf16.msra.mxu0 0
      %4469 = vmatpush.bf16.msra.mxu0 0
      %4470 = vmatpush.bf16.msra.mxu0 %v4438
      %4471 = vmatmul.bf16.gmra.mxu0 %v4432
      %v4472 = vpop.f32.mrf.mxu0
      %v4473 = vadd.f32 0.0, %v4472
      %v4474 = vpop.f32.mrf.mxu0
      %v4475 = vadd.f32 0.0, %v4474
      %4476 = vdwg.mxu0
      %4477 = vmatpush.bf16.msra.mxu0 0
      %4478 = vmatpush.bf16.msra.mxu0 0
      %4479 = vmatpush.bf16.msra.mxu0 0
      %4480 = vmatpush.bf16.msra.mxu0 0
      %4481 = vmatpush.bf16.msra.mxu0 0
      %4482 = vmatpush.bf16.msra.mxu0 0
      %4483 = vmatpush.bf16.msra.mxu0 0
      %4484 = vmatpush.bf16.msra.mxu0 %v4441
      %4485 = vmatmul.bf16.gmra.mxu0 %v4432
      %v4486 = vpop.f32.mrf.mxu0
      %v4487 = vadd.f32 0.0, %v4486
      %v4488 = vpop.f32.mrf.mxu0
      %v4489 = vadd.f32 0.0, %v4488
      %4490 = vdwg.mxu0
      %4491 = vmatpush.bf16.msra.mxu0 0
      %4492 = vmatpush.bf16.msra.mxu0 0
      %4493 = vmatpush.bf16.msra.mxu0 0
      %4494 = vmatpush.bf16.msra.mxu0 0
      %4495 = vmatpush.bf16.msra.mxu0 0
      %4496 = vmatpush.bf16.msra.mxu0 0
      %4497 = vmatpush.bf16.msra.mxu0 0
      %4498 = vmatpush.bf16.msra.mxu0 %v4444
      %4499 = vmatmul.bf16.gmra.mxu0 %v4432
      %v4500 = vpop.f32.mrf.mxu0
      %v4501 = vadd.f32 0.0, %v4500
      %v4502 = vpop.f32.mrf.mxu0
      %v4503 = vadd.f32 0.0, %v4502
      %4504 = vdwg.mxu0
      %4505 = vmatpush.bf16.msra.mxu0 0
      %4506 = vmatpush.bf16.msra.mxu0 0
      %4507 = vmatpush.bf16.msra.mxu0 0
      %4508 = vmatpush.bf16.msra.mxu0 0
      %4509 = vmatpush.bf16.msra.mxu0 0
      %4510 = vmatpush.bf16.msra.mxu0 0
      %4511 = vmatpush.bf16.msra.mxu0 0
      %4512 = vmatpush.bf16.msra.mxu0 %v4447
      %4513 = vmatmul.bf16.gmra.mxu0 %v4432
      %v4514 = vpop.f32.mrf.mxu0
      %v4515 = vadd.f32 0.0, %v4514
      %v4516 = vpop.f32.mrf.mxu0
      %v4517 = vadd.f32 0.0, %v4516
      %4518 = vdwg.mxu0
      %v4519 = vadd.f32 %v4355, %v4459
      %v4520 = vadd.f32 %v4369, %v4473
      %v4521 = vadd.f32 %v4383, %v4487
      %v4522 = vadd.f32 %v4397, %v4501
      %v4523 = vadd.f32 %v4411, %v4515
      %v4524 = vadd.f32 %v4357, %v4461
      %v4525 = vadd.f32 %v4371, %v4475
      %v4526 = vadd.f32 %v4385, %v4489
      %v4527 = vadd.f32 %v4399, %v4503
      %v4528 = vadd.f32 %v4413, %v4517
      %4529 = vrot.lane.b32.xlu0 %v4209, 104
      %v4530 = vpop.permute.xlu0 %4529
      %4531 = vrot.lane.b32.xlu0 %v4220, 122
      %v4532 = vpop.permute.xlu0 %4531
      %4533 = vrot.lane.b32.xlu0 %v4221, 122
      %v4534 = vpop.permute.xlu0 %4533
      %4535 = vrot.lane.b32.xlu0 %v4222, 122
      %v4536 = vpop.permute.xlu0 %4535
      %4537 = vrot.lane.b32.xlu0 %v4223, 122
      %v4538 = vpop.permute.xlu0 %4537
      %4539 = vrot.lane.b32.xlu0 %v4224, 122
      %v4540 = vpop.permute.xlu0 %4539
      %vm4541 = vcmask 998400
      %v4542 = vsel %vm4541, %v4532, %v4534
      %v4543 = vsel %vm4541, %v4534, %v4536
      %v4544 = vsel %vm4541, %v4536, %v4538
      %v4545 = vsel %vm4541, %v4538, %v4540
      %v4547 = vsel %vm437, %v4530, 0
      %v4550 = vsel %vm441, %v4542, 0
      %v4553 = vsel %vm441, %v4543, 0
      %v4556 = vsel %vm441, %v4544, 0
      %v4559 = vsel %vm441, %v4545, 0
      %v4562 = vsel %vm441, %v4540, 0
      %4564 = vmatpush.bf16.msra.mxu0 0
      %4565 = vmatpush.bf16.msra.mxu0 0
      %4566 = vmatpush.bf16.msra.mxu0 0
      %4567 = vmatpush.bf16.msra.mxu0 0
      %4568 = vmatpush.bf16.msra.mxu0 0
      %4569 = vmatpush.bf16.msra.mxu0 0
      %4570 = vmatpush.bf16.msra.mxu0 0
      %4571 = vmatpush.bf16.msra.mxu0 %v4550
      %4572 = vmatmul.bf16.gmra.mxu0 %v4547
      %v4573 = vpop.f32.mrf.mxu0
      %v4574 = vadd.f32 0.0, %v4573
      %v4575 = vpop.f32.mrf.mxu0
      %v4576 = vadd.f32 0.0, %v4575
      %4577 = vdwg.mxu0
      %4578 = vmatpush.bf16.msra.mxu0 0
      %4579 = vmatpush.bf16.msra.mxu0 0
      %4580 = vmatpush.bf16.msra.mxu0 0
      %4581 = vmatpush.bf16.msra.mxu0 0
      %4582 = vmatpush.bf16.msra.mxu0 0
      %4583 = vmatpush.bf16.msra.mxu0 0
      %4584 = vmatpush.bf16.msra.mxu0 0
      %4585 = vmatpush.bf16.msra.mxu0 %v4553
      %4586 = vmatmul.bf16.gmra.mxu0 %v4547
      %v4587 = vpop.f32.mrf.mxu0
      %v4588 = vadd.f32 0.0, %v4587
      %v4589 = vpop.f32.mrf.mxu0
      %v4590 = vadd.f32 0.0, %v4589
      %4591 = vdwg.mxu0
      %4592 = vmatpush.bf16.msra.mxu0 0
      %4593 = vmatpush.bf16.msra.mxu0 0
      %4594 = vmatpush.bf16.msra.mxu0 0
      %4595 = vmatpush.bf16.msra.mxu0 0
      %4596 = vmatpush.bf16.msra.mxu0 0
      %4597 = vmatpush.bf16.msra.mxu0 0
      %4598 = vmatpush.bf16.msra.mxu0 0
      %4599 = vmatpush.bf16.msra.mxu0 %v4556
      %4600 = vmatmul.bf16.gmra.mxu0 %v4547
      %v4601 = vpop.f32.mrf.mxu0
      %v4602 = vadd.f32 0.0, %v4601
      %v4603 = vpop.f32.mrf.mxu0
      %v4604 = vadd.f32 0.0, %v4603
      %4605 = vdwg.mxu0
      %4606 = vmatpush.bf16.msra.mxu0 0
      %4607 = vmatpush.bf16.msra.mxu0 0
      %4608 = vmatpush.bf16.msra.mxu0 0
      %4609 = vmatpush.bf16.msra.mxu0 0
      %4610 = vmatpush.bf16.msra.mxu0 0
      %4611 = vmatpush.bf16.msra.mxu0 0
      %4612 = vmatpush.bf16.msra.mxu0 0
      %4613 = vmatpush.bf16.msra.mxu0 %v4559
      %4614 = vmatmul.bf16.gmra.mxu0 %v4547
      %v4615 = vpop.f32.mrf.mxu0
      %v4616 = vadd.f32 0.0, %v4615
      %v4617 = vpop.f32.mrf.mxu0
      %v4618 = vadd.f32 0.0, %v4617
      %4619 = vdwg.mxu0
      %4620 = vmatpush.bf16.msra.mxu0 0
      %4621 = vmatpush.bf16.msra.mxu0 0
      %4622 = vmatpush.bf16.msra.mxu0 0
      %4623 = vmatpush.bf16.msra.mxu0 0
      %4624 = vmatpush.bf16.msra.mxu0 0
      %4625 = vmatpush.bf16.msra.mxu0 0
      %4626 = vmatpush.bf16.msra.mxu0 0
      %4627 = vmatpush.bf16.msra.mxu0 %v4562
      %4628 = vmatmul.bf16.gmra.mxu0 %v4547
      %v4629 = vpop.f32.mrf.mxu0
      %v4630 = vadd.f32 0.0, %v4629
      %v4631 = vpop.f32.mrf.mxu0
      %v4632 = vadd.f32 0.0, %v4631
      %4633 = vdwg.mxu0
      %v4634 = vadd.f32 %v4519, %v4574
      %v4635 = vadd.f32 %v4520, %v4588
      %v4636 = vadd.f32 %v4521, %v4602
      %v4637 = vadd.f32 %v4522, %v4616
      %v4638 = vadd.f32 %v4523, %v4630
      %v4639 = vadd.f32 %v4524, %v4576
      %v4640 = vadd.f32 %v4525, %v4590
      %v4641 = vadd.f32 %v4526, %v4604
      %v4642 = vadd.f32 %v4527, %v4618
      %v4643 = vadd.f32 %v4528, %v4632
      %4644 = vrot.lane.b32.xlu0 %v4209, 96
      %v4645 = vpop.permute.xlu0 %4644
      %4646 = vrot.lane.b32.xlu0 %v4220, 120
      %v4647 = vpop.permute.xlu0 %4646
      %4648 = vrot.lane.b32.xlu0 %v4221, 120
      %v4649 = vpop.permute.xlu0 %4648
      %4650 = vrot.lane.b32.xlu0 %v4222, 120
      %v4651 = vpop.permute.xlu0 %4650
      %4652 = vrot.lane.b32.xlu0 %v4223, 120
      %v4653 = vpop.permute.xlu0 %4652
      %4654 = vrot.lane.b32.xlu0 %v4224, 120
      %v4655 = vpop.permute.xlu0 %4654
      %vm4656 = vcmask 982016
      %v4657 = vsel %vm4656, %v4647, %v4649
      %v4658 = vsel %vm4656, %v4649, %v4651
      %v4659 = vsel %vm4656, %v4651, %v4653
      %v4660 = vsel %vm4656, %v4653, %v4655
      %v4662 = vsel %vm437, %v4645, 0
      %v4665 = vsel %vm441, %v4657, 0
      %v4668 = vsel %vm441, %v4658, 0
      %v4671 = vsel %vm441, %v4659, 0
      %v4674 = vsel %vm441, %v4660, 0
      %v4677 = vsel %vm441, %v4655, 0
      %4679 = vmatpush.bf16.msra.mxu0 0
      %4680 = vmatpush.bf16.msra.mxu0 0
      %4681 = vmatpush.bf16.msra.mxu0 0
      %4682 = vmatpush.bf16.msra.mxu0 0
      %4683 = vmatpush.bf16.msra.mxu0 0
      %4684 = vmatpush.bf16.msra.mxu0 0
      %4685 = vmatpush.bf16.msra.mxu0 0
      %4686 = vmatpush.bf16.msra.mxu0 %v4665
      %4687 = vmatmul.bf16.gmra.mxu0 %v4662
      %v4688 = vpop.f32.mrf.mxu0
      %v4689 = vadd.f32 0.0, %v4688
      %v4690 = vpop.f32.mrf.mxu0
      %v4691 = vadd.f32 0.0, %v4690
      %4692 = vdwg.mxu0
      %4693 = vmatpush.bf16.msra.mxu0 0
      %4694 = vmatpush.bf16.msra.mxu0 0
      %4695 = vmatpush.bf16.msra.mxu0 0
      %4696 = vmatpush.bf16.msra.mxu0 0
      %4697 = vmatpush.bf16.msra.mxu0 0
      %4698 = vmatpush.bf16.msra.mxu0 0
      %4699 = vmatpush.bf16.msra.mxu0 0
      %4700 = vmatpush.bf16.msra.mxu0 %v4668
      %4701 = vmatmul.bf16.gmra.mxu0 %v4662
      %v4702 = vpop.f32.mrf.mxu0
      %v4703 = vadd.f32 0.0, %v4702
      %v4704 = vpop.f32.mrf.mxu0
      %v4705 = vadd.f32 0.0, %v4704
      %4706 = vdwg.mxu0
      %4707 = vmatpush.bf16.msra.mxu0 0
      %4708 = vmatpush.bf16.msra.mxu0 0
      %4709 = vmatpush.bf16.msra.mxu0 0
      %4710 = vmatpush.bf16.msra.mxu0 0
      %4711 = vmatpush.bf16.msra.mxu0 0
      %4712 = vmatpush.bf16.msra.mxu0 0
      %4713 = vmatpush.bf16.msra.mxu0 0
      %4714 = vmatpush.bf16.msra.mxu0 %v4671
      %4715 = vmatmul.bf16.gmra.mxu0 %v4662
      %v4716 = vpop.f32.mrf.mxu0
      %v4717 = vadd.f32 0.0, %v4716
      %v4718 = vpop.f32.mrf.mxu0
      %v4719 = vadd.f32 0.0, %v4718
      %4720 = vdwg.mxu0
      %4721 = vmatpush.bf16.msra.mxu0 0
      %4722 = vmatpush.bf16.msra.mxu0 0
      %4723 = vmatpush.bf16.msra.mxu0 0
      %4724 = vmatpush.bf16.msra.mxu0 0
      %4725 = vmatpush.bf16.msra.mxu0 0
      %4726 = vmatpush.bf16.msra.mxu0 0
      %4727 = vmatpush.bf16.msra.mxu0 0
      %4728 = vmatpush.bf16.msra.mxu0 %v4674
      %4729 = vmatmul.bf16.gmra.mxu0 %v4662
      %v4730 = vpop.f32.mrf.mxu0
      %v4731 = vadd.f32 0.0, %v4730
      %v4732 = vpop.f32.mrf.mxu0
      %v4733 = vadd.f32 0.0, %v4732
      %4734 = vdwg.mxu0
      %4735 = vmatpush.bf16.msra.mxu0 0
      %4736 = vmatpush.bf16.msra.mxu0 0
      %4737 = vmatpush.bf16.msra.mxu0 0
      %4738 = vmatpush.bf16.msra.mxu0 0
      %4739 = vmatpush.bf16.msra.mxu0 0
      %4740 = vmatpush.bf16.msra.mxu0 0
      %4741 = vmatpush.bf16.msra.mxu0 0
      %4742 = vmatpush.bf16.msra.mxu0 %v4677
      %4743 = vmatmul.bf16.gmra.mxu0 %v4662
      %v4744 = vpop.f32.mrf.mxu0
      %v4745 = vadd.f32 0.0, %v4744
      %v4746 = vpop.f32.mrf.mxu0
      %v4747 = vadd.f32 0.0, %v4746
      %4748 = vdwg.mxu0
      %v4749 = vadd.f32 %v4634, %v4689
      %v4750 = vadd.f32 %v4635, %v4703
      %v4751 = vadd.f32 %v4636, %v4717
      %v4752 = vadd.f32 %v4637, %v4731
      %v4753 = vadd.f32 %v4638, %v4745
      %v4754 = vadd.f32 %v4639, %v4691
      %v4755 = vadd.f32 %v4640, %v4705
      %v4756 = vadd.f32 %v4641, %v4719
      %v4757 = vadd.f32 %v4642, %v4733
      %v4758 = vadd.f32 %v4643, %v4747
      %v4759 = vld [vmem:[#allocation3] sm:$0xff]
      %v4760 = vld [vmem:[#allocation3 + $0x8] sm:$0xff]
      %v4761 = vld [vmem:[#allocation3 + $0x10] sm:$0xff]
      %4762 = vrot.lane.b32.xlu0 %v4209, 88
      %v4763 = vpop.permute.xlu0 %4762
      %v4767 = vunpack.c.l.b16 %v4759
      %v4768 = vunpack.c.h.b16 %v4759
      %v4769 = vunpack.c.l.b16 %v4760
      %v4770 = vunpack.c.h.b16 %v4760
      %v4771 = vunpack.c.l.b16 %v4761
      %v4772 = vunpack.c.h.b16 %v4761
      %v4773 = vpack.c.b16 %v4767, %v4767
      %v4774 = vpack.c.b16 %v4768, %v4768
      %v4775 = vpack.c.b16 %v4769, %v4769
      %v4776 = vpack.c.b16 %v4770, %v4770
      %v4777 = vpack.c.b16 %v4771, %v4771
      %v4778 = vpack.c.b16 %v4772, %v4772
      %4779 = vrot.lane.b32.xlu0 %v4773, 64
      %v4780 = vpop.permute.xlu0 %4779
      %4781 = vrot.lane.b32.xlu0 %v4774, 64
      %v4782 = vpop.permute.xlu0 %4781
      %4783 = vrot.lane.b32.xlu0 %v4775, 64
      %v4784 = vpop.permute.xlu0 %4783
      %4785 = vrot.lane.b32.xlu0 %v4776, 64
      %v4786 = vpop.permute.xlu0 %4785
      %4787 = vrot.lane.b32.xlu0 %v4777, 64
      %v4788 = vpop.permute.xlu0 %4787
      %4789 = vrot.lane.b32.xlu0 %v4778, 64
      %v4790 = vpop.permute.xlu0 %4789
      %v4791 = vsel %vm1886, %v4780, %v4782
      %v4792 = vsel %vm1886, %v4782, %v4784
      %v4793 = vsel %vm1886, %v4784, %v4786
      %v4794 = vsel %vm1886, %v4786, %v4788
      %v4795 = vsel %vm1886, %v4788, %v4790
      %v4797 = vsel %vm437, %v4763, 0
      %v4800 = vsel %vm441, %v4791, 0
      %v4803 = vsel %vm441, %v4792, 0
      %v4806 = vsel %vm441, %v4793, 0
      %v4809 = vsel %vm441, %v4794, 0
      %v4812 = vsel %vm441, %v4795, 0
      %4814 = vmatpush.bf16.msra.mxu0 0
      %4815 = vmatpush.bf16.msra.mxu0 0
      %4816 = vmatpush.bf16.msra.mxu0 0
      %4817 = vmatpush.bf16.msra.mxu0 0
      %4818 = vmatpush.bf16.msra.mxu0 0
      %4819 = vmatpush.bf16.msra.mxu0 0
      %4820 = vmatpush.bf16.msra.mxu0 0
      %4821 = vmatpush.bf16.msra.mxu0 %v4800
      %4822 = vmatmul.bf16.gmra.mxu0 %v4797
      %v4823 = vpop.f32.mrf.mxu0
      %v4824 = vadd.f32 0.0, %v4823
      %v4825 = vpop.f32.mrf.mxu0
      %v4826 = vadd.f32 0.0, %v4825
      %4827 = vdwg.mxu0
      %4828 = vmatpush.bf16.msra.mxu0 0
      %4829 = vmatpush.bf16.msra.mxu0 0
      %4830 = vmatpush.bf16.msra.mxu0 0
      %4831 = vmatpush.bf16.msra.mxu0 0
      %4832 = vmatpush.bf16.msra.mxu0 0
      %4833 = vmatpush.bf16.msra.mxu0 0
      %4834 = vmatpush.bf16.msra.mxu0 0
      %4835 = vmatpush.bf16.msra.mxu0 %v4803
      %4836 = vmatmul.bf16.gmra.mxu0 %v4797
      %v4837 = vpop.f32.mrf.mxu0
      %v4838 = vadd.f32 0.0, %v4837
      %v4839 = vpop.f32.mrf.mxu0
      %v4840 = vadd.f32 0.0, %v4839
      %4841 = vdwg.mxu0
      %4842 = vmatpush.bf16.msra.mxu0 0
      %4843 = vmatpush.bf16.msra.mxu0 0
      %4844 = vmatpush.bf16.msra.mxu0 0
      %4845 = vmatpush.bf16.msra.mxu0 0
      %4846 = vmatpush.bf16.msra.mxu0 0
      %4847 = vmatpush.bf16.msra.mxu0 0
      %4848 = vmatpush.bf16.msra.mxu0 0
      %4849 = vmatpush.bf16.msra.mxu0 %v4806
      %4850 = vmatmul.bf16.gmra.mxu0 %v4797
      %v4851 = vpop.f32.mrf.mxu0
      %v4852 = vadd.f32 0.0, %v4851
      %v4853 = vpop.f32.mrf.mxu0
      %v4854 = vadd.f32 0.0, %v4853
      %4855 = vdwg.mxu0
      %4856 = vmatpush.bf16.msra.mxu0 0
      %4857 = vmatpush.bf16.msra.mxu0 0
      %4858 = vmatpush.bf16.msra.mxu0 0
      %4859 = vmatpush.bf16.msra.mxu0 0
      %4860 = vmatpush.bf16.msra.mxu0 0
      %4861 = vmatpush.bf16.msra.mxu0 0
      %4862 = vmatpush.bf16.msra.mxu0 0
      %4863 = vmatpush.bf16.msra.mxu0 %v4809
      %4864 = vmatmul.bf16.gmra.mxu0 %v4797
      %v4865 = vpop.f32.mrf.mxu0
      %v4866 = vadd.f32 0.0, %v4865
      %v4867 = vpop.f32.mrf.mxu0
      %v4868 = vadd.f32 0.0, %v4867
      %4869 = vdwg.mxu0
      %4870 = vmatpush.bf16.msra.mxu0 0
      %4871 = vmatpush.bf16.msra.mxu0 0
      %4872 = vmatpush.bf16.msra.mxu0 0
      %4873 = vmatpush.bf16.msra.mxu0 0
      %4874 = vmatpush.bf16.msra.mxu0 0
      %4875 = vmatpush.bf16.msra.mxu0 0
      %4876 = vmatpush.bf16.msra.mxu0 0
      %4877 = vmatpush.bf16.msra.mxu0 %v4812
      %4878 = vmatmul.bf16.gmra.mxu0 %v4797
      %v4879 = vpop.f32.mrf.mxu0
      %v4880 = vadd.f32 0.0, %v4879
      %v4881 = vpop.f32.mrf.mxu0
      %v4882 = vadd.f32 0.0, %v4881
      %4883 = vdwg.mxu0
      %v4884 = vadd.f32 %v4749, %v4824
      %v4885 = vadd.f32 %v4750, %v4838
      %v4886 = vadd.f32 %v4751, %v4852
      %v4887 = vadd.f32 %v4752, %v4866
      %v4888 = vadd.f32 %v4753, %v4880
      %v4889 = vadd.f32 %v4754, %v4826
      %v4890 = vadd.f32 %v4755, %v4840
      %v4891 = vadd.f32 %v4756, %v4854
      %v4892 = vadd.f32 %v4757, %v4868
      %v4893 = vadd.f32 %v4758, %v4882
      %4894 = vrot.lane.b32.xlu0 %v4209, 80
      %v4895 = vpop.permute.xlu0 %4894
      %4896 = vrot.lane.b32.xlu0 %v4773, 62
      %v4897 = vpop.permute.xlu0 %4896
      %4898 = vrot.lane.b32.xlu0 %v4774, 62
      %v4899 = vpop.permute.xlu0 %4898
      %4900 = vrot.lane.b32.xlu0 %v4775, 62
      %v4901 = vpop.permute.xlu0 %4900
      %4902 = vrot.lane.b32.xlu0 %v4776, 62
      %v4903 = vpop.permute.xlu0 %4902
      %4904 = vrot.lane.b32.xlu0 %v4777, 62
      %v4905 = vpop.permute.xlu0 %4904
      %4906 = vrot.lane.b32.xlu0 %v4778, 62
      %v4907 = vpop.permute.xlu0 %4906
      %v4908 = vsel %vm2182, %v4897, %v4899
      %v4909 = vsel %vm2182, %v4899, %v4901
      %v4910 = vsel %vm2182, %v4901, %v4903
      %v4911 = vsel %vm2182, %v4903, %v4905
      %v4912 = vsel %vm2182, %v4905, %v4907
      %v4914 = vsel %vm437, %v4895, 0
      %v4917 = vsel %vm441, %v4908, 0
      %v4920 = vsel %vm441, %v4909, 0
      %v4923 = vsel %vm441, %v4910, 0
      %v4926 = vsel %vm441, %v4911, 0
      %v4929 = vsel %vm441, %v4912, 0
      %4931 = vmatpush.bf16.msra.mxu0 0
      %4932 = vmatpush.bf16.msra.mxu0 0
      %4933 = vmatpush.bf16.msra.mxu0 0
      %4934 = vmatpush.bf16.msra.mxu0 0
      %4935 = vmatpush.bf16.msra.mxu0 0
      %4936 = vmatpush.bf16.msra.mxu0 0
      %4937 = vmatpush.bf16.msra.mxu0 0
      %4938 = vmatpush.bf16.msra.mxu0 %v4917
      %4939 = vmatmul.bf16.gmra.mxu0 %v4914
      %v4940 = vpop.f32.mrf.mxu0
      %v4941 = vadd.f32 0.0, %v4940
      %v4942 = vpop.f32.mrf.mxu0
      %v4943 = vadd.f32 0.0, %v4942
      %4944 = vdwg.mxu0
      %4945 = vmatpush.bf16.msra.mxu0 0
      %4946 = vmatpush.bf16.msra.mxu0 0
      %4947 = vmatpush.bf16.msra.mxu0 0
      %4948 = vmatpush.bf16.msra.mxu0 0
      %4949 = vmatpush.bf16.msra.mxu0 0
      %4950 = vmatpush.bf16.msra.mxu0 0
      %4951 = vmatpush.bf16.msra.mxu0 0
      %4952 = vmatpush.bf16.msra.mxu0 %v4920
      %4953 = vmatmul.bf16.gmra.mxu0 %v4914
      %v4954 = vpop.f32.mrf.mxu0
      %v4955 = vadd.f32 0.0, %v4954
      %v4956 = vpop.f32.mrf.mxu0
      %v4957 = vadd.f32 0.0, %v4956
      %4958 = vdwg.mxu0
      %4959 = vmatpush.bf16.msra.mxu0 0
      %4960 = vmatpush.bf16.msra.mxu0 0
      %4961 = vmatpush.bf16.msra.mxu0 0
      %4962 = vmatpush.bf16.msra.mxu0 0
      %4963 = vmatpush.bf16.msra.mxu0 0
      %4964 = vmatpush.bf16.msra.mxu0 0
      %4965 = vmatpush.bf16.msra.mxu0 0
      %4966 = vmatpush.bf16.msra.mxu0 %v4923
      %4967 = vmatmul.bf16.gmra.mxu0 %v4914
      %v4968 = vpop.f32.mrf.mxu0
      %v4969 = vadd.f32 0.0, %v4968
      %v4970 = vpop.f32.mrf.mxu0
      %v4971 = vadd.f32 0.0, %v4970
      %4972 = vdwg.mxu0
      %4973 = vmatpush.bf16.msra.mxu0 0
      %4974 = vmatpush.bf16.msra.mxu0 0
      %4975 = vmatpush.bf16.msra.mxu0 0
      %4976 = vmatpush.bf16.msra.mxu0 0
      %4977 = vmatpush.bf16.msra.mxu0 0
      %4978 = vmatpush.bf16.msra.mxu0 0
      %4979 = vmatpush.bf16.msra.mxu0 0
      %4980 = vmatpush.bf16.msra.mxu0 %v4926
      %4981 = vmatmul.bf16.gmra.mxu0 %v4914
      %v4982 = vpop.f32.mrf.mxu0
      %v4983 = vadd.f32 0.0, %v4982
      %v4984 = vpop.f32.mrf.mxu0
      %v4985 = vadd.f32 0.0, %v4984
      %4986 = vdwg.mxu0
      %4987 = vmatpush.bf16.msra.mxu0 0
      %4988 = vmatpush.bf16.msra.mxu0 0
      %4989 = vmatpush.bf16.msra.mxu0 0
      %4990 = vmatpush.bf16.msra.mxu0 0
      %4991 = vmatpush.bf16.msra.mxu0 0
      %4992 = vmatpush.bf16.msra.mxu0 0
      %4993 = vmatpush.bf16.msra.mxu0 0
      %4994 = vmatpush.bf16.msra.mxu0 %v4929
      %4995 = vmatmul.bf16.gmra.mxu0 %v4914
      %v4996 = vpop.f32.mrf.mxu0
      %v4997 = vadd.f32 0.0, %v4996
      %v4998 = vpop.f32.mrf.mxu0
      %v4999 = vadd.f32 0.0, %v4998
      %5000 = vdwg.mxu0
      %v5001 = vadd.f32 %v4884, %v4941
      %v5002 = vadd.f32 %v4885, %v4955
      %v5003 = vadd.f32 %v4886, %v4969
      %v5004 = vadd.f32 %v4887, %v4983
      %v5005 = vadd.f32 %v4888, %v4997
      %v5006 = vadd.f32 %v4889, %v4943
      %v5007 = vadd.f32 %v4890, %v4957
      %v5008 = vadd.f32 %v4891, %v4971
      %v5009 = vadd.f32 %v4892, %v4985
      %v5010 = vadd.f32 %v4893, %v4999
      %5011 = vrot.lane.b32.xlu0 %v4209, 72
      %v5012 = vpop.permute.xlu0 %5011
      %5013 = vrot.lane.b32.xlu0 %v4773, 60
      %v5014 = vpop.permute.xlu0 %5013
      %5015 = vrot.lane.b32.xlu0 %v4774, 60
      %v5016 = vpop.permute.xlu0 %5015
      %5017 = vrot.lane.b32.xlu0 %v4775, 60
      %v5018 = vpop.permute.xlu0 %5017
      %5019 = vrot.lane.b32.xlu0 %v4776, 60
      %v5020 = vpop.permute.xlu0 %5019
      %5021 = vrot.lane.b32.xlu0 %v4777, 60
      %v5022 = vpop.permute.xlu0 %5021
      %5023 = vrot.lane.b32.xlu0 %v4778, 60
      %v5024 = vpop.permute.xlu0 %5023
      %v5025 = vsel %vm2478, %v5014, %v5016
      %v5026 = vsel %vm2478, %v5016, %v5018
      %v5027 = vsel %vm2478, %v5018, %v5020
      %v5028 = vsel %vm2478, %v5020, %v5022
      %v5029 = vsel %vm2478, %v5022, %v5024
      %v5031 = vsel %vm437, %v5012, 0
      %v5034 = vsel %vm441, %v5025, 0
      %v5037 = vsel %vm441, %v5026, 0
      %v5040 = vsel %vm441, %v5027, 0
      %v5043 = vsel %vm441, %v5028, 0
      %v5046 = vsel %vm441, %v5029, 0
      %5048 = vmatpush.bf16.msra.mxu0 0
      %5049 = vmatpush.bf16.msra.mxu0 0
      %5050 = vmatpush.bf16.msra.mxu0 0
      %5051 = vmatpush.bf16.msra.mxu0 0
      %5052 = vmatpush.bf16.msra.mxu0 0
      %5053 = vmatpush.bf16.msra.mxu0 0
      %5054 = vmatpush.bf16.msra.mxu0 0
      %5055 = vmatpush.bf16.msra.mxu0 %v5034
      %5056 = vmatmul.bf16.gmra.mxu0 %v5031
      %v5057 = vpop.f32.mrf.mxu0
      %v5058 = vadd.f32 0.0, %v5057
      %v5059 = vpop.f32.mrf.mxu0
      %v5060 = vadd.f32 0.0, %v5059
      %5061 = vdwg.mxu0
      %5062 = vmatpush.bf16.msra.mxu0 0
      %5063 = vmatpush.bf16.msra.mxu0 0
      %5064 = vmatpush.bf16.msra.mxu0 0
      %5065 = vmatpush.bf16.msra.mxu0 0
      %5066 = vmatpush.bf16.msra.mxu0 0
      %5067 = vmatpush.bf16.msra.mxu0 0
      %5068 = vmatpush.bf16.msra.mxu0 0
      %5069 = vmatpush.bf16.msra.mxu0 %v5037
      %5070 = vmatmul.bf16.gmra.mxu0 %v5031
      %v5071 = vpop.f32.mrf.mxu0
      %v5072 = vadd.f32 0.0, %v5071
      %v5073 = vpop.f32.mrf.mxu0
      %v5074 = vadd.f32 0.0, %v5073
      %5075 = vdwg.mxu0
      %5076 = vmatpush.bf16.msra.mxu0 0
      %5077 = vmatpush.bf16.msra.mxu0 0
      %5078 = vmatpush.bf16.msra.mxu0 0
      %5079 = vmatpush.bf16.msra.mxu0 0
      %5080 = vmatpush.bf16.msra.mxu0 0
      %5081 = vmatpush.bf16.msra.mxu0 0
      %5082 = vmatpush.bf16.msra.mxu0 0
      %5083 = vmatpush.bf16.msra.mxu0 %v5040
      %5084 = vmatmul.bf16.gmra.mxu0 %v5031
      %v5085 = vpop.f32.mrf.mxu0
      %v5086 = vadd.f32 0.0, %v5085
      %v5087 = vpop.f32.mrf.mxu0
      %v5088 = vadd.f32 0.0, %v5087
      %5089 = vdwg.mxu0
      %5090 = vmatpush.bf16.msra.mxu0 0
      %5091 = vmatpush.bf16.msra.mxu0 0
      %5092 = vmatpush.bf16.msra.mxu0 0
      %5093 = vmatpush.bf16.msra.mxu0 0
      %5094 = vmatpush.bf16.msra.mxu0 0
      %5095 = vmatpush.bf16.msra.mxu0 0
      %5096 = vmatpush.bf16.msra.mxu0 0
      %5097 = vmatpush.bf16.msra.mxu0 %v5043
      %5098 = vmatmul.bf16.gmra.mxu0 %v5031
      %v5099 = vpop.f32.mrf.mxu0
      %v5100 = vadd.f32 0.0, %v5099
      %v5101 = vpop.f32.mrf.mxu0
      %v5102 = vadd.f32 0.0, %v5101
      %5103 = vdwg.mxu0
      %5104 = vmatpush.bf16.msra.mxu0 0
      %5105 = vmatpush.bf16.msra.mxu0 0
      %5106 = vmatpush.bf16.msra.mxu0 0
      %5107 = vmatpush.bf16.msra.mxu0 0
      %5108 = vmatpush.bf16.msra.mxu0 0
      %5109 = vmatpush.bf16.msra.mxu0 0
      %5110 = vmatpush.bf16.msra.mxu0 0
      %5111 = vmatpush.bf16.msra.mxu0 %v5046
      %5112 = vmatmul.bf16.gmra.mxu0 %v5031
      %v5113 = vpop.f32.mrf.mxu0
      %v5114 = vadd.f32 0.0, %v5113
      %v5115 = vpop.f32.mrf.mxu0
      %v5116 = vadd.f32 0.0, %v5115
      %5117 = vdwg.mxu0
      %v5118 = vadd.f32 %v5001, %v5058
      %v5119 = vadd.f32 %v5002, %v5072
      %v5120 = vadd.f32 %v5003, %v5086
      %v5121 = vadd.f32 %v5004, %v5100
      %v5122 = vadd.f32 %v5005, %v5114
      %v5123 = vadd.f32 %v5006, %v5060
      %v5124 = vadd.f32 %v5007, %v5074
      %v5125 = vadd.f32 %v5008, %v5088
      %v5126 = vadd.f32 %v5009, %v5102
      %v5127 = vadd.f32 %v5010, %v5116
      %5128 = vrot.lane.b32.xlu0 %v4209, 64
      %v5129 = vpop.permute.xlu0 %5128
      %5130 = vrot.lane.b32.xlu0 %v4773, 58
      %v5131 = vpop.permute.xlu0 %5130
      %5132 = vrot.lane.b32.xlu0 %v4774, 58
      %v5133 = vpop.permute.xlu0 %5132
      %5134 = vrot.lane.b32.xlu0 %v4775, 58
      %v5135 = vpop.permute.xlu0 %5134
      %5136 = vrot.lane.b32.xlu0 %v4776, 58
      %v5137 = vpop.permute.xlu0 %5136
      %5138 = vrot.lane.b32.xlu0 %v4777, 58
      %v5139 = vpop.permute.xlu0 %5138
      %5140 = vrot.lane.b32.xlu0 %v4778, 58
      %v5141 = vpop.permute.xlu0 %5140
      %vm5142 = vcmask 474112
      %v5143 = vsel %vm5142, %v5131, %v5133
      %v5144 = vsel %vm5142, %v5133, %v5135
      %v5145 = vsel %vm5142, %v5135, %v5137
      %v5146 = vsel %vm5142, %v5137, %v5139
      %v5147 = vsel %vm5142, %v5139, %v5141
      %v5149 = vsel %vm437, %v5129, 0
      %v5152 = vsel %vm441, %v5143, 0
      %v5155 = vsel %vm441, %v5144, 0
      %v5158 = vsel %vm441, %v5145, 0
      %v5161 = vsel %vm441, %v5146, 0
      %v5164 = vsel %vm441, %v5147, 0
      %5166 = vmatpush.bf16.msra.mxu0 0
      %5167 = vmatpush.bf16.msra.mxu0 0
      %5168 = vmatpush.bf16.msra.mxu0 0
      %5169 = vmatpush.bf16.msra.mxu0 0
      %5170 = vmatpush.bf16.msra.mxu0 0
      %5171 = vmatpush.bf16.msra.mxu0 0
      %5172 = vmatpush.bf16.msra.mxu0 0
      %5173 = vmatpush.bf16.msra.mxu0 %v5152
      %5174 = vmatmul.bf16.gmra.mxu0 %v5149
      %v5175 = vpop.f32.mrf.mxu0
      %v5176 = vadd.f32 0.0, %v5175
      %v5177 = vpop.f32.mrf.mxu0
      %v5178 = vadd.f32 0.0, %v5177
      %5179 = vdwg.mxu0
      %5180 = vmatpush.bf16.msra.mxu0 0
      %5181 = vmatpush.bf16.msra.mxu0 0
      %5182 = vmatpush.bf16.msra.mxu0 0
      %5183 = vmatpush.bf16.msra.mxu0 0
      %5184 = vmatpush.bf16.msra.mxu0 0
      %5185 = vmatpush.bf16.msra.mxu0 0
      %5186 = vmatpush.bf16.msra.mxu0 0
      %5187 = vmatpush.bf16.msra.mxu0 %v5155
      %5188 = vmatmul.bf16.gmra.mxu0 %v5149
      %v5189 = vpop.f32.mrf.mxu0
      %v5190 = vadd.f32 0.0, %v5189
      %v5191 = vpop.f32.mrf.mxu0
      %v5192 = vadd.f32 0.0, %v5191
      %5193 = vdwg.mxu0
      %5194 = vmatpush.bf16.msra.mxu0 0
      %5195 = vmatpush.bf16.msra.mxu0 0
      %5196 = vmatpush.bf16.msra.mxu0 0
      %5197 = vmatpush.bf16.msra.mxu0 0
      %5198 = vmatpush.bf16.msra.mxu0 0
      %5199 = vmatpush.bf16.msra.mxu0 0
      %5200 = vmatpush.bf16.msra.mxu0 0
      %5201 = vmatpush.bf16.msra.mxu0 %v5158
      %5202 = vmatmul.bf16.gmra.mxu0 %v5149
      %v5203 = vpop.f32.mrf.mxu0
      %v5204 = vadd.f32 0.0, %v5203
      %v5205 = vpop.f32.mrf.mxu0
      %v5206 = vadd.f32 0.0, %v5205
      %5207 = vdwg.mxu0
      %5208 = vmatpush.bf16.msra.mxu0 0
      %5209 = vmatpush.bf16.msra.mxu0 0
      %5210 = vmatpush.bf16.msra.mxu0 0
      %5211 = vmatpush.bf16.msra.mxu0 0
      %5212 = vmatpush.bf16.msra.mxu0 0
      %5213 = vmatpush.bf16.msra.mxu0 0
      %5214 = vmatpush.bf16.msra.mxu0 0
      %5215 = vmatpush.bf16.msra.mxu0 %v5161
      %5216 = vmatmul.bf16.gmra.mxu0 %v5149
      %v5217 = vpop.f32.mrf.mxu0
      %v5218 = vadd.f32 0.0, %v5217
      %v5219 = vpop.f32.mrf.mxu0
      %v5220 = vadd.f32 0.0, %v5219
      %5221 = vdwg.mxu0
      %5222 = vmatpush.bf16.msra.mxu0 0
      %5223 = vmatpush.bf16.msra.mxu0 0
      %5224 = vmatpush.bf16.msra.mxu0 0
      %5225 = vmatpush.bf16.msra.mxu0 0
      %5226 = vmatpush.bf16.msra.mxu0 0
      %5227 = vmatpush.bf16.msra.mxu0 0
      %5228 = vmatpush.bf16.msra.mxu0 0
      %5229 = vmatpush.bf16.msra.mxu0 %v5164
      %5230 = vmatmul.bf16.gmra.mxu0 %v5149
      %v5231 = vpop.f32.mrf.mxu0
      %v5232 = vadd.f32 0.0, %v5231
      %v5233 = vpop.f32.mrf.mxu0
      %v5234 = vadd.f32 0.0, %v5233
      %5235 = vdwg.mxu0
      %v5236 = vadd.f32 %v5118, %v5176
      %v5237 = vadd.f32 %v5119, %v5190
      %v5238 = vadd.f32 %v5120, %v5204
      %v5239 = vadd.f32 %v5121, %v5218
      %v5240 = vadd.f32 %v5122, %v5232
      %v5241 = vadd.f32 %v5123, %v5178
      %v5242 = vadd.f32 %v5124, %v5192
      %v5243 = vadd.f32 %v5125, %v5206
      %v5244 = vadd.f32 %v5126, %v5220
      %v5245 = vadd.f32 %v5127, %v5234
      %5246 = vrot.lane.b32.xlu0 %v4209, 56
      %v5247 = vpop.permute.xlu0 %5246
      %5248 = vrot.lane.b32.xlu0 %v4773, 56
      %v5249 = vpop.permute.xlu0 %5248
      %5250 = vrot.lane.b32.xlu0 %v4774, 56
      %v5251 = vpop.permute.xlu0 %5250
      %5252 = vrot.lane.b32.xlu0 %v4775, 56
      %v5253 = vpop.permute.xlu0 %5252
      %5254 = vrot.lane.b32.xlu0 %v4776, 56
      %v5255 = vpop.permute.xlu0 %5254
      %5256 = vrot.lane.b32.xlu0 %v4777, 56
      %v5257 = vpop.permute.xlu0 %5256
      %5258 = vrot.lane.b32.xlu0 %v4778, 56
      %v5259 = vpop.permute.xlu0 %5258
      %vm5260 = vcmask 457728
      %v5261 = vsel %vm5260, %v5249, %v5251
      %v5262 = vsel %vm5260, %v5251, %v5253
      %v5263 = vsel %vm5260, %v5253, %v5255
      %v5264 = vsel %vm5260, %v5255, %v5257
      %v5265 = vsel %vm5260, %v5257, %v5259
      %v5267 = vsel %vm437, %v5247, 0
      %v5270 = vsel %vm441, %v5261, 0
      %v5273 = vsel %vm441, %v5262, 0
      %v5276 = vsel %vm441, %v5263, 0
      %v5279 = vsel %vm441, %v5264, 0
      %v5282 = vsel %vm441, %v5265, 0
      %5284 = vmatpush.bf16.msra.mxu0 0
      %5285 = vmatpush.bf16.msra.mxu0 0
      %5286 = vmatpush.bf16.msra.mxu0 0
      %5287 = vmatpush.bf16.msra.mxu0 0
      %5288 = vmatpush.bf16.msra.mxu0 0
      %5289 = vmatpush.bf16.msra.mxu0 0
      %5290 = vmatpush.bf16.msra.mxu0 0
      %5291 = vmatpush.bf16.msra.mxu0 %v5270
      %5292 = vmatmul.bf16.gmra.mxu0 %v5267
      %v5293 = vpop.f32.mrf.mxu0
      %v5294 = vadd.f32 0.0, %v5293
      %v5295 = vpop.f32.mrf.mxu0
      %v5296 = vadd.f32 0.0, %v5295
      %5297 = vdwg.mxu0
      %5298 = vmatpush.bf16.msra.mxu0 0
      %5299 = vmatpush.bf16.msra.mxu0 0
      %5300 = vmatpush.bf16.msra.mxu0 0
      %5301 = vmatpush.bf16.msra.mxu0 0
      %5302 = vmatpush.bf16.msra.mxu0 0
      %5303 = vmatpush.bf16.msra.mxu0 0
      %5304 = vmatpush.bf16.msra.mxu0 0
      %5305 = vmatpush.bf16.msra.mxu0 %v5273
      %5306 = vmatmul.bf16.gmra.mxu0 %v5267
      %v5307 = vpop.f32.mrf.mxu0
      %v5308 = vadd.f32 0.0, %v5307
      %v5309 = vpop.f32.mrf.mxu0
      %v5310 = vadd.f32 0.0, %v5309
      %5311 = vdwg.mxu0
      %5312 = vmatpush.bf16.msra.mxu0 0
      %5313 = vmatpush.bf16.msra.mxu0 0
      %5314 = vmatpush.bf16.msra.mxu0 0
      %5315 = vmatpush.bf16.msra.mxu0 0
      %5316 = vmatpush.bf16.msra.mxu0 0
      %5317 = vmatpush.bf16.msra.mxu0 0
      %5318 = vmatpush.bf16.msra.mxu0 0
      %5319 = vmatpush.bf16.msra.mxu0 %v5276
      %5320 = vmatmul.bf16.gmra.mxu0 %v5267
      %v5321 = vpop.f32.mrf.mxu0
      %v5322 = vadd.f32 0.0, %v5321
      %v5323 = vpop.f32.mrf.mxu0
      %v5324 = vadd.f32 0.0, %v5323
      %5325 = vdwg.mxu0
      %5326 = vmatpush.bf16.msra.mxu0 0
      %5327 = vmatpush.bf16.msra.mxu0 0
      %5328 = vmatpush.bf16.msra.mxu0 0
      %5329 = vmatpush.bf16.msra.mxu0 0
      %5330 = vmatpush.bf16.msra.mxu0 0
      %5331 = vmatpush.bf16.msra.mxu0 0
      %5332 = vmatpush.bf16.msra.mxu0 0
      %5333 = vmatpush.bf16.msra.mxu0 %v5279
      %5334 = vmatmul.bf16.gmra.mxu0 %v5267
      %v5335 = vpop.f32.mrf.mxu0
      %v5336 = vadd.f32 0.0, %v5335
      %v5337 = vpop.f32.mrf.mxu0
      %v5338 = vadd.f32 0.0, %v5337
      %5339 = vdwg.mxu0
      %5340 = vmatpush.bf16.msra.mxu0 0
      %5341 = vmatpush.bf16.msra.mxu0 0
      %5342 = vmatpush.bf16.msra.mxu0 0
      %5343 = vmatpush.bf16.msra.mxu0 0
      %5344 = vmatpush.bf16.msra.mxu0 0
      %5345 = vmatpush.bf16.msra.mxu0 0
      %5346 = vmatpush.bf16.msra.mxu0 0
      %5347 = vmatpush.bf16.msra.mxu0 %v5282
      %5348 = vmatmul.bf16.gmra.mxu0 %v5267
      %v5349 = vpop.f32.mrf.mxu0
      %v5350 = vadd.f32 0.0, %v5349
      %v5351 = vpop.f32.mrf.mxu0
      %v5352 = vadd.f32 0.0, %v5351
      %5353 = vdwg.mxu0
      %v5354 = vadd.f32 %v5236, %v5294
      %v5355 = vadd.f32 %v5237, %v5308
      %v5356 = vadd.f32 %v5238, %v5322
      %v5357 = vadd.f32 %v5239, %v5336
      %v5358 = vadd.f32 %v5240, %v5350
      %v5359 = vadd.f32 %v5241, %v5296
      %v5360 = vadd.f32 %v5242, %v5310
      %v5361 = vadd.f32 %v5243, %v5324
      %v5362 = vadd.f32 %v5244, %v5338
      %v5363 = vadd.f32 %v5245, %v5352
      %v5364 = vld [vmem:[#allocation3 + $0x4] sm:$0xff]
      %v5365 = vld [vmem:[#allocation3 + $0xc] sm:$0xff]
      %v5366 = vld [vmem:[#allocation3 + $0x14] sm:$0xf]
      %5367 = vrot.lane.b32.xlu0 %v4209, 48
      %v5368 = vpop.permute.xlu0 %5367
      %v5372 = vunpack.c.l.b16 %v5364
      %v5373 = vunpack.c.h.b16 %v5364
      %v5374 = vunpack.c.l.b16 %v5365
      %v5375 = vunpack.c.h.b16 %v5365
      %v5376 = vunpack.c.l.b16 %v5366
      %v5377 = vpack.c.b16 %v5372, %v5372
      %v5378 = vpack.c.b16 %v5373, %v5373
      %v5379 = vpack.c.b16 %v5374, %v5374
      %v5380 = vpack.c.b16 %v5375, %v5375
      %v5381 = vpack.c.b16 %v5376, %v5376
      %v5383 = vsel %vm437, %v5368, 0
      %v5386 = vsel %vm441, %v5377, 0
      %v5389 = vsel %vm441, %v5378, 0
      %v5392 = vsel %vm441, %v5379, 0
      %v5395 = vsel %vm441, %v5380, 0
      %v5398 = vsel %vm441, %v5381, 0
      %5400 = vmatpush.bf16.msra.mxu0 0
      %5401 = vmatpush.bf16.msra.mxu0 0
      %5402 = vmatpush.bf16.msra.mxu0 0
      %5403 = vmatpush.bf16.msra.mxu0 0
      %5404 = vmatpush.bf16.msra.mxu0 0
      %5405 = vmatpush.bf16.msra.mxu0 0
      %5406 = vmatpush.bf16.msra.mxu0 0
      %5407 = vmatpush.bf16.msra.mxu0 %v5386
      %5408 = vmatmul.bf16.gmra.mxu0 %v5383
      %v5409 = vpop.f32.mrf.mxu0
      %v5410 = vadd.f32 0.0, %v5409
      %v5411 = vpop.f32.mrf.mxu0
      %v5412 = vadd.f32 0.0, %v5411
      %5413 = vdwg.mxu0
      %5414 = vmatpush.bf16.msra.mxu0 0
      %5415 = vmatpush.bf16.msra.mxu0 0
      %5416 = vmatpush.bf16.msra.mxu0 0
      %5417 = vmatpush.bf16.msra.mxu0 0
      %5418 = vmatpush.bf16.msra.mxu0 0
      %5419 = vmatpush.bf16.msra.mxu0 0
      %5420 = vmatpush.bf16.msra.mxu0 0
      %5421 = vmatpush.bf16.msra.mxu0 %v5389
      %5422 = vmatmul.bf16.gmra.mxu0 %v5383
      %v5423 = vpop.f32.mrf.mxu0
      %v5424 = vadd.f32 0.0, %v5423
      %v5425 = vpop.f32.mrf.mxu0
      %v5426 = vadd.f32 0.0, %v5425
      %5427 = vdwg.mxu0
      %5428 = vmatpush.bf16.msra.mxu0 0
      %5429 = vmatpush.bf16.msra.mxu0 0
      %5430 = vmatpush.bf16.msra.mxu0 0
      %5431 = vmatpush.bf16.msra.mxu0 0
      %5432 = vmatpush.bf16.msra.mxu0 0
      %5433 = vmatpush.bf16.msra.mxu0 0
      %5434 = vmatpush.bf16.msra.mxu0 0
      %5435 = vmatpush.bf16.msra.mxu0 %v5392
      %5436 = vmatmul.bf16.gmra.mxu0 %v5383
      %v5437 = vpop.f32.mrf.mxu0
      %v5438 = vadd.f32 0.0, %v5437
      %v5439 = vpop.f32.mrf.mxu0
      %v5440 = vadd.f32 0.0, %v5439
      %5441 = vdwg.mxu0
      %5442 = vmatpush.bf16.msra.mxu0 0
      %5443 = vmatpush.bf16.msra.mxu0 0
      %5444 = vmatpush.bf16.msra.mxu0 0
      %5445 = vmatpush.bf16.msra.mxu0 0
      %5446 = vmatpush.bf16.msra.mxu0 0
      %5447 = vmatpush.bf16.msra.mxu0 0
      %5448 = vmatpush.bf16.msra.mxu0 0
      %5449 = vmatpush.bf16.msra.mxu0 %v5395
      %5450 = vmatmul.bf16.gmra.mxu0 %v5383
      %v5451 = vpop.f32.mrf.mxu0
      %v5452 = vadd.f32 0.0, %v5451
      %v5453 = vpop.f32.mrf.mxu0
      %v5454 = vadd.f32 0.0, %v5453
      %5455 = vdwg.mxu0
      %5456 = vmatpush.bf16.msra.mxu0 0
      %5457 = vmatpush.bf16.msra.mxu0 0
      %5458 = vmatpush.bf16.msra.mxu0 0
      %5459 = vmatpush.bf16.msra.mxu0 0
      %5460 = vmatpush.bf16.msra.mxu0 0
      %5461 = vmatpush.bf16.msra.mxu0 0
      %5462 = vmatpush.bf16.msra.mxu0 0
      %5463 = vmatpush.bf16.msra.mxu0 %v5398
      %5464 = vmatmul.bf16.gmra.mxu0 %v5383
      %v5465 = vpop.f32.mrf.mxu0
      %v5466 = vadd.f32 0.0, %v5465
      %v5467 = vpop.f32.mrf.mxu0
      %v5468 = vadd.f32 0.0, %v5467
      %5469 = vdwg.mxu0
      %v5470 = vadd.f32 %v5354, %v5410
      %v5471 = vadd.f32 %v5355, %v5424
      %v5472 = vadd.f32 %v5356, %v5438
      %v5473 = vadd.f32 %v5357, %v5452
      %v5474 = vadd.f32 %v5358, %v5466
      %v5475 = vadd.f32 %v5359, %v5412
      %v5476 = vadd.f32 %v5360, %v5426
      %v5477 = vadd.f32 %v5361, %v5440
      %v5478 = vadd.f32 %v5362, %v5454
      %v5479 = vadd.f32 %v5363, %v5468
      %5480 = vrot.lane.b32.xlu0 %v4209, 40
      %v5481 = vpop.permute.xlu0 %5480
      %5482 = vrot.lane.b32.xlu0 %v5377, 126
      %v5483 = vpop.permute.xlu0 %5482
      %5484 = vrot.lane.b32.xlu0 %v5378, 126
      %v5485 = vpop.permute.xlu0 %5484
      %5486 = vrot.lane.b32.xlu0 %v5379, 126
      %v5487 = vpop.permute.xlu0 %5486
      %5488 = vrot.lane.b32.xlu0 %v5380, 126
      %v5489 = vpop.permute.xlu0 %5488
      %5490 = vrot.lane.b32.xlu0 %v5381, 126
      %v5491 = vpop.permute.xlu0 %5490
      %v5492 = vsel %vm685, %v5483, %v5485
      %v5493 = vsel %vm685, %v5485, %v5487
      %v5494 = vsel %vm685, %v5487, %v5489
      %v5495 = vsel %vm685, %v5489, %v5491
      %v5497 = vsel %vm437, %v5481, 0
      %v5500 = vsel %vm441, %v5492, 0
      %v5503 = vsel %vm441, %v5493, 0
      %v5506 = vsel %vm441, %v5494, 0
      %v5509 = vsel %vm441, %v5495, 0
      %v5512 = vsel %vm441, %v5491, 0
      %5514 = vmatpush.bf16.msra.mxu0 0
      %5515 = vmatpush.bf16.msra.mxu0 0
      %5516 = vmatpush.bf16.msra.mxu0 0
      %5517 = vmatpush.bf16.msra.mxu0 0
      %5518 = vmatpush.bf16.msra.mxu0 0
      %5519 = vmatpush.bf16.msra.mxu0 0
      %5520 = vmatpush.bf16.msra.mxu0 0
      %5521 = vmatpush.bf16.msra.mxu0 %v5500
      %5522 = vmatmul.bf16.gmra.mxu0 %v5497
      %v5523 = vpop.f32.mrf.mxu0
      %v5524 = vadd.f32 0.0, %v5523
      %v5525 = vpop.f32.mrf.mxu0
      %v5526 = vadd.f32 0.0, %v5525
      %5527 = vdwg.mxu0
      %5528 = vmatpush.bf16.msra.mxu0 0
      %5529 = vmatpush.bf16.msra.mxu0 0
      %5530 = vmatpush.bf16.msra.mxu0 0
      %5531 = vmatpush.bf16.msra.mxu0 0
      %5532 = vmatpush.bf16.msra.mxu0 0
      %5533 = vmatpush.bf16.msra.mxu0 0
      %5534 = vmatpush.bf16.msra.mxu0 0
      %5535 = vmatpush.bf16.msra.mxu0 %v5503
      %5536 = vmatmul.bf16.gmra.mxu0 %v5497
      %v5537 = vpop.f32.mrf.mxu0
      %v5538 = vadd.f32 0.0, %v5537
      %v5539 = vpop.f32.mrf.mxu0
      %v5540 = vadd.f32 0.0, %v5539
      %5541 = vdwg.mxu0
      %5542 = vmatpush.bf16.msra.mxu0 0
      %5543 = vmatpush.bf16.msra.mxu0 0
      %5544 = vmatpush.bf16.msra.mxu0 0
      %5545 = vmatpush.bf16.msra.mxu0 0
      %5546 = vmatpush.bf16.msra.mxu0 0
      %5547 = vmatpush.bf16.msra.mxu0 0
      %5548 = vmatpush.bf16.msra.mxu0 0
      %5549 = vmatpush.bf16.msra.mxu0 %v5506
      %5550 = vmatmul.bf16.gmra.mxu0 %v5497
      %v5551 = vpop.f32.mrf.mxu0
      %v5552 = vadd.f32 0.0, %v5551
      %v5553 = vpop.f32.mrf.mxu0
      %v5554 = vadd.f32 0.0, %v5553
      %5555 = vdwg.mxu0
      %5556 = vmatpush.bf16.msra.mxu0 0
      %5557 = vmatpush.bf16.msra.mxu0 0
      %5558 = vmatpush.bf16.msra.mxu0 0
      %5559 = vmatpush.bf16.msra.mxu0 0
      %5560 = vmatpush.bf16.msra.mxu0 0
      %5561 = vmatpush.bf16.msra.mxu0 0
      %5562 = vmatpush.bf16.msra.mxu0 0
      %5563 = vmatpush.bf16.msra.mxu0 %v5509
      %5564 = vmatmul.bf16.gmra.mxu0 %v5497
      %v5565 = vpop.f32.mrf.mxu0
      %v5566 = vadd.f32 0.0, %v5565
      %v5567 = vpop.f32.mrf.mxu0
      %v5568 = vadd.f32 0.0, %v5567
      %5569 = vdwg.mxu0
      %5570 = vmatpush.bf16.msra.mxu0 0
      %5571 = vmatpush.bf16.msra.mxu0 0
      %5572 = vmatpush.bf16.msra.mxu0 0
      %5573 = vmatpush.bf16.msra.mxu0 0
      %5574 = vmatpush.bf16.msra.mxu0 0
      %5575 = vmatpush.bf16.msra.mxu0 0
      %5576 = vmatpush.bf16.msra.mxu0 0
      %5577 = vmatpush.bf16.msra.mxu0 %v5512
      %5578 = vmatmul.bf16.gmra.mxu0 %v5497
      %v5579 = vpop.f32.mrf.mxu0
      %v5580 = vadd.f32 0.0, %v5579
      %v5581 = vpop.f32.mrf.mxu0
      %v5582 = vadd.f32 0.0, %v5581
      %5583 = vdwg.mxu0
      %v5584 = vadd.f32 %v5470, %v5524
      %v5585 = vadd.f32 %v5471, %v5538
      %v5586 = vadd.f32 %v5472, %v5552
      %v5587 = vadd.f32 %v5473, %v5566
      %v5588 = vadd.f32 %v5474, %v5580
      %v5589 = vadd.f32 %v5475, %v5526
      %v5590 = vadd.f32 %v5476, %v5540
      %v5591 = vadd.f32 %v5477, %v5554
      %v5592 = vadd.f32 %v5478, %v5568
      %v5593 = vadd.f32 %v5479, %v5582
      %5594 = vrot.lane.b32.xlu0 %v4209, 32
      %v5595 = vpop.permute.xlu0 %5594
      %5596 = vrot.lane.b32.xlu0 %v5377, 124
      %v5597 = vpop.permute.xlu0 %5596
      %5598 = vrot.lane.b32.xlu0 %v5378, 124
      %v5599 = vpop.permute.xlu0 %5598
      %5600 = vrot.lane.b32.xlu0 %v5379, 124
      %v5601 = vpop.permute.xlu0 %5600
      %5602 = vrot.lane.b32.xlu0 %v5380, 124
      %v5603 = vpop.permute.xlu0 %5602
      %5604 = vrot.lane.b32.xlu0 %v5381, 124
      %v5605 = vpop.permute.xlu0 %5604
      %v5606 = vsel %vm975, %v5597, %v5599
      %v5607 = vsel %vm975, %v5599, %v5601
      %v5608 = vsel %vm975, %v5601, %v5603
      %v5609 = vsel %vm975, %v5603, %v5605
      %v5611 = vsel %vm437, %v5595, 0
      %v5614 = vsel %vm441, %v5606, 0
      %v5617 = vsel %vm441, %v5607, 0
      %v5620 = vsel %vm441, %v5608, 0
      %v5623 = vsel %vm441, %v5609, 0
      %v5626 = vsel %vm441, %v5605, 0
      %5628 = vmatpush.bf16.msra.mxu0 0
      %5629 = vmatpush.bf16.msra.mxu0 0
      %5630 = vmatpush.bf16.msra.mxu0 0
      %5631 = vmatpush.bf16.msra.mxu0 0
      %5632 = vmatpush.bf16.msra.mxu0 0
      %5633 = vmatpush.bf16.msra.mxu0 0
      %5634 = vmatpush.bf16.msra.mxu0 0
      %5635 = vmatpush.bf16.msra.mxu0 %v5614
      %5636 = vmatmul.bf16.gmra.mxu0 %v5611
      %v5637 = vpop.f32.mrf.mxu0
      %v5638 = vadd.f32 0.0, %v5637
      %v5639 = vpop.f32.mrf.mxu0
      %v5640 = vadd.f32 0.0, %v5639
      %5641 = vdwg.mxu0
      %5642 = vmatpush.bf16.msra.mxu0 0
      %5643 = vmatpush.bf16.msra.mxu0 0
      %5644 = vmatpush.bf16.msra.mxu0 0
      %5645 = vmatpush.bf16.msra.mxu0 0
      %5646 = vmatpush.bf16.msra.mxu0 0
      %5647 = vmatpush.bf16.msra.mxu0 0
      %5648 = vmatpush.bf16.msra.mxu0 0
      %5649 = vmatpush.bf16.msra.mxu0 %v5617
      %5650 = vmatmul.bf16.gmra.mxu0 %v5611
      %v5651 = vpop.f32.mrf.mxu0
      %v5652 = vadd.f32 0.0, %v5651
      %v5653 = vpop.f32.mrf.mxu0
      %v5654 = vadd.f32 0.0, %v5653
      %5655 = vdwg.mxu0
      %5656 = vmatpush.bf16.msra.mxu0 0
      %5657 = vmatpush.bf16.msra.mxu0 0
      %5658 = vmatpush.bf16.msra.mxu0 0
      %5659 = vmatpush.bf16.msra.mxu0 0
      %5660 = vmatpush.bf16.msra.mxu0 0
      %5661 = vmatpush.bf16.msra.mxu0 0
      %5662 = vmatpush.bf16.msra.mxu0 0
      %5663 = vmatpush.bf16.msra.mxu0 %v5620
      %5664 = vmatmul.bf16.gmra.mxu0 %v5611
      %v5665 = vpop.f32.mrf.mxu0
      %v5666 = vadd.f32 0.0, %v5665
      %v5667 = vpop.f32.mrf.mxu0
      %v5668 = vadd.f32 0.0, %v5667
      %5669 = vdwg.mxu0
      %5670 = vmatpush.bf16.msra.mxu0 0
      %5671 = vmatpush.bf16.msra.mxu0 0
      %5672 = vmatpush.bf16.msra.mxu0 0
      %5673 = vmatpush.bf16.msra.mxu0 0
      %5674 = vmatpush.bf16.msra.mxu0 0
      %5675 = vmatpush.bf16.msra.mxu0 0
      %5676 = vmatpush.bf16.msra.mxu0 0
      %5677 = vmatpush.bf16.msra.mxu0 %v5623
      %5678 = vmatmul.bf16.gmra.mxu0 %v5611
      %v5679 = vpop.f32.mrf.mxu0
      %v5680 = vadd.f32 0.0, %v5679
      %v5681 = vpop.f32.mrf.mxu0
      %v5682 = vadd.f32 0.0, %v5681
      %5683 = vdwg.mxu0
      %5684 = vmatpush.bf16.msra.mxu0 0
      %5685 = vmatpush.bf16.msra.mxu0 0
      %5686 = vmatpush.bf16.msra.mxu0 0
      %5687 = vmatpush.bf16.msra.mxu0 0
      %5688 = vmatpush.bf16.msra.mxu0 0
      %5689 = vmatpush.bf16.msra.mxu0 0
      %5690 = vmatpush.bf16.msra.mxu0 0
      %5691 = vmatpush.bf16.msra.mxu0 %v5626
      %5692 = vmatmul.bf16.gmra.mxu0 %v5611
      %v5693 = vpop.f32.mrf.mxu0
      %v5694 = vadd.f32 0.0, %v5693
      %v5695 = vpop.f32.mrf.mxu0
      %v5696 = vadd.f32 0.0, %v5695
      %5697 = vdwg.mxu0
      %v5698 = vadd.f32 %v5584, %v5638
      %v5699 = vadd.f32 %v5585, %v5652
      %v5700 = vadd.f32 %v5586, %v5666
      %v5701 = vadd.f32 %v5587, %v5680
      %v5702 = vadd.f32 %v5588, %v5694
      %v5703 = vadd.f32 %v5589, %v5640
      %v5704 = vadd.f32 %v5590, %v5654
      %v5705 = vadd.f32 %v5591, %v5668
      %v5706 = vadd.f32 %v5592, %v5682
      %v5707 = vadd.f32 %v5593, %v5696
      %5708 = vrot.lane.b32.xlu0 %v4209, 24
      %v5709 = vpop.permute.xlu0 %5708
      %5710 = vrot.lane.b32.xlu0 %v5377, 122
      %v5711 = vpop.permute.xlu0 %5710
      %5712 = vrot.lane.b32.xlu0 %v5378, 122
      %v5713 = vpop.permute.xlu0 %5712
      %5714 = vrot.lane.b32.xlu0 %v5379, 122
      %v5715 = vpop.permute.xlu0 %5714
      %5716 = vrot.lane.b32.xlu0 %v5380, 122
      %v5717 = vpop.permute.xlu0 %5716
      %5718 = vrot.lane.b32.xlu0 %v5381, 122
      %v5719 = vpop.permute.xlu0 %5718
      %v5720 = vsel %vm4541, %v5711, %v5713
      %v5721 = vsel %vm4541, %v5713, %v5715
      %v5722 = vsel %vm4541, %v5715, %v5717
      %v5723 = vsel %vm4541, %v5717, %v5719
      %v5725 = vsel %vm437, %v5709, 0
      %v5728 = vsel %vm441, %v5720, 0
      %v5731 = vsel %vm441, %v5721, 0
      %v5734 = vsel %vm441, %v5722, 0
      %v5737 = vsel %vm441, %v5723, 0
      %v5740 = vsel %vm441, %v5719, 0
      %5742 = vmatpush.bf16.msra.mxu0 0
      %5743 = vmatpush.bf16.msra.mxu0 0
      %5744 = vmatpush.bf16.msra.mxu0 0
      %5745 = vmatpush.bf16.msra.mxu0 0
      %5746 = vmatpush.bf16.msra.mxu0 0
      %5747 = vmatpush.bf16.msra.mxu0 0
      %5748 = vmatpush.bf16.msra.mxu0 0
      %5749 = vmatpush.bf16.msra.mxu0 %v5728
      %5750 = vmatmul.bf16.gmra.mxu0 %v5725
      %v5751 = vpop.f32.mrf.mxu0
      %v5752 = vadd.f32 0.0, %v5751
      %v5753 = vpop.f32.mrf.mxu0
      %v5754 = vadd.f32 0.0, %v5753
      %5755 = vdwg.mxu0
      %5756 = vmatpush.bf16.msra.mxu0 0
      %5757 = vmatpush.bf16.msra.mxu0 0
      %5758 = vmatpush.bf16.msra.mxu0 0
      %5759 = vmatpush.bf16.msra.mxu0 0
      %5760 = vmatpush.bf16.msra.mxu0 0
      %5761 = vmatpush.bf16.msra.mxu0 0
      %5762 = vmatpush.bf16.msra.mxu0 0
      %5763 = vmatpush.bf16.msra.mxu0 %v5731
      %5764 = vmatmul.bf16.gmra.mxu0 %v5725
      %v5765 = vpop.f32.mrf.mxu0
      %v5766 = vadd.f32 0.0, %v5765
      %v5767 = vpop.f32.mrf.mxu0
      %v5768 = vadd.f32 0.0, %v5767
      %5769 = vdwg.mxu0
      %5770 = vmatpush.bf16.msra.mxu0 0
      %5771 = vmatpush.bf16.msra.mxu0 0
      %5772 = vmatpush.bf16.msra.mxu0 0
      %5773 = vmatpush.bf16.msra.mxu0 0
      %5774 = vmatpush.bf16.msra.mxu0 0
      %5775 = vmatpush.bf16.msra.mxu0 0
      %5776 = vmatpush.bf16.msra.mxu0 0
      %5777 = vmatpush.bf16.msra.mxu0 %v5734
      %5778 = vmatmul.bf16.gmra.mxu0 %v5725
      %v5779 = vpop.f32.mrf.mxu0
      %v5780 = vadd.f32 0.0, %v5779
      %v5781 = vpop.f32.mrf.mxu0
      %v5782 = vadd.f32 0.0, %v5781
      %5783 = vdwg.mxu0
      %5784 = vmatpush.bf16.msra.mxu0 0
      %5785 = vmatpush.bf16.msra.mxu0 0
      %5786 = vmatpush.bf16.msra.mxu0 0
      %5787 = vmatpush.bf16.msra.mxu0 0
      %5788 = vmatpush.bf16.msra.mxu0 0
      %5789 = vmatpush.bf16.msra.mxu0 0
      %5790 = vmatpush.bf16.msra.mxu0 0
      %5791 = vmatpush.bf16.msra.mxu0 %v5737
      %5792 = vmatmul.bf16.gmra.mxu0 %v5725
      %v5793 = vpop.f32.mrf.mxu0
      %v5794 = vadd.f32 0.0, %v5793
      %v5795 = vpop.f32.mrf.mxu0
      %v5796 = vadd.f32 0.0, %v5795
      %5797 = vdwg.mxu0
      %5798 = vmatpush.bf16.msra.mxu0 0
      %5799 = vmatpush.bf16.msra.mxu0 0
      %5800 = vmatpush.bf16.msra.mxu0 0
      %5801 = vmatpush.bf16.msra.mxu0 0
      %5802 = vmatpush.bf16.msra.mxu0 0
      %5803 = vmatpush.bf16.msra.mxu0 0
      %5804 = vmatpush.bf16.msra.mxu0 0
      %5805 = vmatpush.bf16.msra.mxu0 %v5740
      %5806 = vmatmul.bf16.gmra.mxu0 %v5725
      %v5807 = vpop.f32.mrf.mxu0
      %v5808 = vadd.f32 0.0, %v5807
      %v5809 = vpop.f32.mrf.mxu0
      %v5810 = vadd.f32 0.0, %v5809
      %5811 = vdwg.mxu0
      %v5812 = vadd.f32 %v5698, %v5752
      %v5813 = vadd.f32 %v5699, %v5766
      %v5814 = vadd.f32 %v5700, %v5780
      %v5815 = vadd.f32 %v5701, %v5794
      %v5816 = vadd.f32 %v5702, %v5808
      %v5817 = vadd.f32 %v5703, %v5754
      %v5818 = vadd.f32 %v5704, %v5768
      %v5819 = vadd.f32 %v5705, %v5782
      %v5820 = vadd.f32 %v5706, %v5796
      %v5821 = vadd.f32 %v5707, %v5810
      %5822 = vrot.lane.b32.xlu0 %v4209, 16
      %v5823 = vpop.permute.xlu0 %5822
      %5824 = vrot.lane.b32.xlu0 %v5377, 120
      %v5825 = vpop.permute.xlu0 %5824
      %5826 = vrot.lane.b32.xlu0 %v5378, 120
      %v5827 = vpop.permute.xlu0 %5826
      %5828 = vrot.lane.b32.xlu0 %v5379, 120
      %v5829 = vpop.permute.xlu0 %5828
      %5830 = vrot.lane.b32.xlu0 %v5380, 120
      %v5831 = vpop.permute.xlu0 %5830
      %5832 = vrot.lane.b32.xlu0 %v5381, 120
      %v5833 = vpop.permute.xlu0 %5832
      %v5834 = vsel %vm4656, %v5825, %v5827
      %v5835 = vsel %vm4656, %v5827, %v5829
      %v5836 = vsel %vm4656, %v5829, %v5831
      %v5837 = vsel %vm4656, %v5831, %v5833
      %v5839 = vsel %vm437, %v5823, 0
      %v5842 = vsel %vm441, %v5834, 0
      %v5845 = vsel %vm441, %v5835, 0
      %v5848 = vsel %vm441, %v5836, 0
      %v5851 = vsel %vm441, %v5837, 0
      %v5854 = vsel %vm441, %v5833, 0
      %5856 = vmatpush.bf16.msra.mxu0 0
      %5857 = vmatpush.bf16.msra.mxu0 0
      %5858 = vmatpush.bf16.msra.mxu0 0
      %5859 = vmatpush.bf16.msra.mxu0 0
      %5860 = vmatpush.bf16.msra.mxu0 0
      %5861 = vmatpush.bf16.msra.mxu0 0
      %5862 = vmatpush.bf16.msra.mxu0 0
      %5863 = vmatpush.bf16.msra.mxu0 %v5842
      %5864 = vmatmul.bf16.gmra.mxu0 %v5839
      %v5865 = vpop.f32.mrf.mxu0
      %v5866 = vadd.f32 0.0, %v5865
      %v5867 = vpop.f32.mrf.mxu0
      %v5868 = vadd.f32 0.0, %v5867
      %5869 = vdwg.mxu0
      %5870 = vmatpush.bf16.msra.mxu0 0
      %5871 = vmatpush.bf16.msra.mxu0 0
      %5872 = vmatpush.bf16.msra.mxu0 0
      %5873 = vmatpush.bf16.msra.mxu0 0
      %5874 = vmatpush.bf16.msra.mxu0 0
      %5875 = vmatpush.bf16.msra.mxu0 0
      %5876 = vmatpush.bf16.msra.mxu0 0
      %5877 = vmatpush.bf16.msra.mxu0 %v5845
      %5878 = vmatmul.bf16.gmra.mxu0 %v5839
      %v5879 = vpop.f32.mrf.mxu0
      %v5880 = vadd.f32 0.0, %v5879
      %v5881 = vpop.f32.mrf.mxu0
      %v5882 = vadd.f32 0.0, %v5881
      %5883 = vdwg.mxu0
      %5884 = vmatpush.bf16.msra.mxu0 0
      %5885 = vmatpush.bf16.msra.mxu0 0
      %5886 = vmatpush.bf16.msra.mxu0 0
      %5887 = vmatpush.bf16.msra.mxu0 0
      %5888 = vmatpush.bf16.msra.mxu0 0
      %5889 = vmatpush.bf16.msra.mxu0 0
      %5890 = vmatpush.bf16.msra.mxu0 0
      %5891 = vmatpush.bf16.msra.mxu0 %v5848
      %5892 = vmatmul.bf16.gmra.mxu0 %v5839
      %v5893 = vpop.f32.mrf.mxu0
      %v5894 = vadd.f32 0.0, %v5893
      %v5895 = vpop.f32.mrf.mxu0
      %v5896 = vadd.f32 0.0, %v5895
      %5897 = vdwg.mxu0
      %5898 = vmatpush.bf16.msra.mxu0 0
      %5899 = vmatpush.bf16.msra.mxu0 0
      %5900 = vmatpush.bf16.msra.mxu0 0
      %5901 = vmatpush.bf16.msra.mxu0 0
      %5902 = vmatpush.bf16.msra.mxu0 0
      %5903 = vmatpush.bf16.msra.mxu0 0
      %5904 = vmatpush.bf16.msra.mxu0 0
      %5905 = vmatpush.bf16.msra.mxu0 %v5851
      %5906 = vmatmul.bf16.gmra.mxu0 %v5839
      %v5907 = vpop.f32.mrf.mxu0
      %v5908 = vadd.f32 0.0, %v5907
      %v5909 = vpop.f32.mrf.mxu0
      %v5910 = vadd.f32 0.0, %v5909
      %5911 = vdwg.mxu0
      %5912 = vmatpush.bf16.msra.mxu0 0
      %5913 = vmatpush.bf16.msra.mxu0 0
      %5914 = vmatpush.bf16.msra.mxu0 0
      %5915 = vmatpush.bf16.msra.mxu0 0
      %5916 = vmatpush.bf16.msra.mxu0 0
      %5917 = vmatpush.bf16.msra.mxu0 0
      %5918 = vmatpush.bf16.msra.mxu0 0
      %5919 = vmatpush.bf16.msra.mxu0 %v5854
      %5920 = vmatmul.bf16.gmra.mxu0 %v5839
      %v5921 = vpop.f32.mrf.mxu0
      %v5922 = vadd.f32 0.0, %v5921
      %v5923 = vpop.f32.mrf.mxu0
      %v5924 = vadd.f32 0.0, %v5923
      %5925 = vdwg.mxu0
      %v5926 = vadd.f32 %v5812, %v5866
      %v5927 = vadd.f32 %v5813, %v5880
      %v5928 = vadd.f32 %v5814, %v5894
      %v5929 = vadd.f32 %v5815, %v5908
      %v5930 = vadd.f32 %v5816, %v5922
      %v5931 = vadd.f32 %v5817, %v5868
      %v5932 = vadd.f32 %v5818, %v5882
      %v5933 = vadd.f32 %v5819, %v5896
      %v5934 = vadd.f32 %v5820, %v5910
      %v5935 = vadd.f32 %v5821, %v5924
      %v5936 = vld [vmem:[#allocation3 + $0x4] sm:$0xff]
      %v5937 = vld [vmem:[#allocation3 + $0xc] sm:$0xff]
      %v5938 = vld [vmem:[#allocation3 + $0x14] sm:$0xff]
      %5939 = vrot.lane.b32.xlu0 %v4209, 8
      %v5940 = vpop.permute.xlu0 %5939
      %v5944 = vunpack.c.l.b16 %v5936
      %v5945 = vunpack.c.h.b16 %v5936
      %v5946 = vunpack.c.l.b16 %v5937
      %v5947 = vunpack.c.h.b16 %v5937
      %v5948 = vunpack.c.l.b16 %v5938
      %v5949 = vunpack.c.h.b16 %v5938
      %v5950 = vpack.c.b16 %v5944, %v5944
      %v5951 = vpack.c.b16 %v5945, %v5945
      %v5952 = vpack.c.b16 %v5946, %v5946
      %v5953 = vpack.c.b16 %v5947, %v5947
      %v5954 = vpack.c.b16 %v5948, %v5948
      %v5955 = vpack.c.b16 %v5949, %v5949
      %5956 = vrot.lane.b32.xlu0 %v5950, 64
      %v5957 = vpop.permute.xlu0 %5956
      %5958 = vrot.lane.b32.xlu0 %v5951, 64
      %v5959 = vpop.permute.xlu0 %5958
      %5960 = vrot.lane.b32.xlu0 %v5952, 64
      %v5961 = vpop.permute.xlu0 %5960
      %5962 = vrot.lane.b32.xlu0 %v5953, 64
      %v5963 = vpop.permute.xlu0 %5962
      %5964 = vrot.lane.b32.xlu0 %v5954, 64
      %v5965 = vpop.permute.xlu0 %5964
      %5966 = vrot.lane.b32.xlu0 %v5955, 64
      %v5967 = vpop.permute.xlu0 %5966
      %v5968 = vsel %vm1886, %v5957, %v5959
      %v5969 = vsel %vm1886, %v5959, %v5961
      %v5970 = vsel %vm1886, %v5961, %v5963
      %v5971 = vsel %vm1886, %v5963, %v5965
      %v5972 = vsel %vm1886, %v5965, %v5967
      %v5974 = vsel %vm437, %v5940, 0
      %v5977 = vsel %vm441, %v5968, 0
      %v5980 = vsel %vm441, %v5969, 0
      %v5983 = vsel %vm441, %v5970, 0
      %v5986 = vsel %vm441, %v5971, 0
      %v5989 = vsel %vm441, %v5972, 0
      %5991 = vmatpush.bf16.msra.mxu0 0
      %5992 = vmatpush.bf16.msra.mxu0 0
      %5993 = vmatpush.bf16.msra.mxu0 0
      %5994 = vmatpush.bf16.msra.mxu0 0
      %5995 = vmatpush.bf16.msra.mxu0 0
      %5996 = vmatpush.bf16.msra.mxu0 0
      %5997 = vmatpush.bf16.msra.mxu0 0
      %5998 = vmatpush.bf16.msra.mxu0 %v5977
      %5999 = vmatmul.bf16.gmra.mxu0 %v5974
      %v6000 = vpop.f32.mrf.mxu0
      %v6001 = vadd.f32 0.0, %v6000
      %v6002 = vpop.f32.mrf.mxu0
      %v6003 = vadd.f32 0.0, %v6002
      %6004 = vdwg.mxu0
      %6005 = vmatpush.bf16.msra.mxu0 0
      %6006 = vmatpush.bf16.msra.mxu0 0
      %6007 = vmatpush.bf16.msra.mxu0 0
      %6008 = vmatpush.bf16.msra.mxu0 0
      %6009 = vmatpush.bf16.msra.mxu0 0
      %6010 = vmatpush.bf16.msra.mxu0 0
      %6011 = vmatpush.bf16.msra.mxu0 0
      %6012 = vmatpush.bf16.msra.mxu0 %v5980
      %6013 = vmatmul.bf16.gmra.mxu0 %v5974
      %v6014 = vpop.f32.mrf.mxu0
      %v6015 = vadd.f32 0.0, %v6014
      %v6016 = vpop.f32.mrf.mxu0
      %v6017 = vadd.f32 0.0, %v6016
      %6018 = vdwg.mxu0
      %6019 = vmatpush.bf16.msra.mxu0 0
      %6020 = vmatpush.bf16.msra.mxu0 0
      %6021 = vmatpush.bf16.msra.mxu0 0
      %6022 = vmatpush.bf16.msra.mxu0 0
      %6023 = vmatpush.bf16.msra.mxu0 0
      %6024 = vmatpush.bf16.msra.mxu0 0
      %6025 = vmatpush.bf16.msra.mxu0 0
      %6026 = vmatpush.bf16.msra.mxu0 %v5983
      %6027 = vmatmul.bf16.gmra.mxu0 %v5974
      %v6028 = vpop.f32.mrf.mxu0
      %v6029 = vadd.f32 0.0, %v6028
      %v6030 = vpop.f32.mrf.mxu0
      %v6031 = vadd.f32 0.0, %v6030
      %6032 = vdwg.mxu0
      %6033 = vmatpush.bf16.msra.mxu0 0
      %6034 = vmatpush.bf16.msra.mxu0 0
      %6035 = vmatpush.bf16.msra.mxu0 0
      %6036 = vmatpush.bf16.msra.mxu0 0
      %6037 = vmatpush.bf16.msra.mxu0 0
      %6038 = vmatpush.bf16.msra.mxu0 0
      %6039 = vmatpush.bf16.msra.mxu0 0
      %6040 = vmatpush.bf16.msra.mxu0 %v5986
      %6041 = vmatmul.bf16.gmra.mxu0 %v5974
      %v6042 = vpop.f32.mrf.mxu0
      %v6043 = vadd.f32 0.0, %v6042
      %v6044 = vpop.f32.mrf.mxu0
      %v6045 = vadd.f32 0.0, %v6044
      %6046 = vdwg.mxu0
      %6047 = vmatpush.bf16.msra.mxu0 0
      %6048 = vmatpush.bf16.msra.mxu0 0
      %6049 = vmatpush.bf16.msra.mxu0 0
      %6050 = vmatpush.bf16.msra.mxu0 0
      %6051 = vmatpush.bf16.msra.mxu0 0
      %6052 = vmatpush.bf16.msra.mxu0 0
      %6053 = vmatpush.bf16.msra.mxu0 0
      %6054 = vmatpush.bf16.msra.mxu0 %v5989
      %6055 = vmatmul.bf16.gmra.mxu0 %v5974
      %v6056 = vpop.f32.mrf.mxu0
      %v6057 = vadd.f32 0.0, %v6056
      %v6058 = vpop.f32.mrf.mxu0
      %v6059 = vadd.f32 0.0, %v6058
      %6060 = vdwg.mxu0
      %v6061 = vadd.f32 %v5926, %v6001
      %v6062 = vadd.f32 %v5927, %v6015
      %v6063 = vadd.f32 %v5928, %v6029
      %v6064 = vadd.f32 %v5929, %v6043
      %v6065 = vadd.f32 %v5930, %v6057
      %v6066 = vadd.f32 %v5931, %v6003
      %v6067 = vadd.f32 %v5932, %v6017
      %v6068 = vadd.f32 %v5933, %v6031
      %v6069 = vadd.f32 %v5934, %v6045
      %v6070 = vadd.f32 %v5935, %v6059
      %v6071 = vld [vmem:[%s3 + $0x4] sm:$0xf]
      %v6072 = vld [vmem:[%s3 + $0xc] sm:$0xf]
      %v6075 = vunpack.c.l.b16 %v6071
      %v6076 = vunpack.c.l.b16 %v6072
      %v6077 = vpack.c.b16 %v6076, %v6075
      %6078 = vrot.lane.b32.xlu0 %v5950, 62
      %v6079 = vpop.permute.xlu0 %6078
      %6080 = vrot.lane.b32.xlu0 %v5951, 62
      %v6081 = vpop.permute.xlu0 %6080
      %6082 = vrot.lane.b32.xlu0 %v5952, 62
      %v6083 = vpop.permute.xlu0 %6082
      %6084 = vrot.lane.b32.xlu0 %v5953, 62
      %v6085 = vpop.permute.xlu0 %6084
      %6086 = vrot.lane.b32.xlu0 %v5954, 62
      %v6087 = vpop.permute.xlu0 %6086
      %6088 = vrot.lane.b32.xlu0 %v5955, 62
      %v6089 = vpop.permute.xlu0 %6088
      %v6090 = vsel %vm2182, %v6079, %v6081
      %v6091 = vsel %vm2182, %v6081, %v6083
      %v6092 = vsel %vm2182, %v6083, %v6085
      %v6093 = vsel %vm2182, %v6085, %v6087
      %v6094 = vsel %vm2182, %v6087, %v6089
      %v6096 = vsel %vm437, %v6077, 0
      %v6099 = vsel %vm441, %v6090, 0
      %v6102 = vsel %vm441, %v6091, 0
      %v6105 = vsel %vm441, %v6092, 0
      %v6108 = vsel %vm441, %v6093, 0
      %v6111 = vsel %vm441, %v6094, 0
      %6113 = vmatpush.bf16.msra.mxu0 0
      %6114 = vmatpush.bf16.msra.mxu0 0
      %6115 = vmatpush.bf16.msra.mxu0 0
      %6116 = vmatpush.bf16.msra.mxu0 0
      %6117 = vmatpush.bf16.msra.mxu0 0
      %6118 = vmatpush.bf16.msra.mxu0 0
      %6119 = vmatpush.bf16.msra.mxu0 0
      %6120 = vmatpush.bf16.msra.mxu0 %v6099
      %6121 = vmatmul.bf16.gmra.mxu0 %v6096
      %v6122 = vpop.f32.mrf.mxu0
      %v6123 = vadd.f32 0.0, %v6122
      %v6124 = vpop.f32.mrf.mxu0
      %v6125 = vadd.f32 0.0, %v6124
      %6126 = vdwg.mxu0
      %6127 = vmatpush.bf16.msra.mxu0 0
      %6128 = vmatpush.bf16.msra.mxu0 0
      %6129 = vmatpush.bf16.msra.mxu0 0
      %6130 = vmatpush.bf16.msra.mxu0 0
      %6131 = vmatpush.bf16.msra.mxu0 0
      %6132 = vmatpush.bf16.msra.mxu0 0
      %6133 = vmatpush.bf16.msra.mxu0 0
      %6134 = vmatpush.bf16.msra.mxu0 %v6102
      %6135 = vmatmul.bf16.gmra.mxu0 %v6096
      %v6136 = vpop.f32.mrf.mxu0
      %v6137 = vadd.f32 0.0, %v6136
      %v6138 = vpop.f32.mrf.mxu0
      %v6139 = vadd.f32 0.0, %v6138
      %6140 = vdwg.mxu0
      %6141 = vmatpush.bf16.msra.mxu0 0
      %6142 = vmatpush.bf16.msra.mxu0 0
      %6143 = vmatpush.bf16.msra.mxu0 0
      %6144 = vmatpush.bf16.msra.mxu0 0
      %6145 = vmatpush.bf16.msra.mxu0 0
      %6146 = vmatpush.bf16.msra.mxu0 0
      %6147 = vmatpush.bf16.msra.mxu0 0
      %6148 = vmatpush.bf16.msra.mxu0 %v6105
      %6149 = vmatmul.bf16.gmra.mxu0 %v6096
      %v6150 = vpop.f32.mrf.mxu0
      %v6151 = vadd.f32 0.0, %v6150
      %v6152 = vpop.f32.mrf.mxu0
      %v6153 = vadd.f32 0.0, %v6152
      %6154 = vdwg.mxu0
      %6155 = vmatpush.bf16.msra.mxu0 0
      %6156 = vmatpush.bf16.msra.mxu0 0
      %6157 = vmatpush.bf16.msra.mxu0 0
      %6158 = vmatpush.bf16.msra.mxu0 0
      %6159 = vmatpush.bf16.msra.mxu0 0
      %6160 = vmatpush.bf16.msra.mxu0 0
      %6161 = vmatpush.bf16.msra.mxu0 0
      %6162 = vmatpush.bf16.msra.mxu0 %v6108
      %6163 = vmatmul.bf16.gmra.mxu0 %v6096
      %v6164 = vpop.f32.mrf.mxu0
      %v6165 = vadd.f32 0.0, %v6164
      %v6166 = vpop.f32.mrf.mxu0
      %v6167 = vadd.f32 0.0, %v6166
      %6168 = vdwg.mxu0
      %6169 = vmatpush.bf16.msra.mxu0 0
      %6170 = vmatpush.bf16.msra.mxu0 0
      %6171 = vmatpush.bf16.msra.mxu0 0
      %6172 = vmatpush.bf16.msra.mxu0 0
      %6173 = vmatpush.bf16.msra.mxu0 0
      %6174 = vmatpush.bf16.msra.mxu0 0
      %6175 = vmatpush.bf16.msra.mxu0 0
      %6176 = vmatpush.bf16.msra.mxu0 %v6111
      %6177 = vmatmul.bf16.gmra.mxu0 %v6096
      %v6178 = vpop.f32.mrf.mxu0
      %v6179 = vadd.f32 0.0, %v6178
      %v6180 = vpop.f32.mrf.mxu0
      %v6181 = vadd.f32 0.0, %v6180
      %6182 = vdwg.mxu0
      %v6183 = vadd.f32 %v6061, %v6123
      %v6184 = vadd.f32 %v6062, %v6137
      %v6185 = vadd.f32 %v6063, %v6151
      %v6186 = vadd.f32 %v6064, %v6165
      %v6187 = vadd.f32 %v6065, %v6179
      %v6188 = vadd.f32 %v6066, %v6125
      %v6189 = vadd.f32 %v6067, %v6139
      %v6190 = vadd.f32 %v6068, %v6153
      %v6191 = vadd.f32 %v6069, %v6167
      %v6192 = vadd.f32 %v6070, %v6181
      %6193 = vrot.lane.b32.xlu0 %v6077, 120
      %v6194 = vpop.permute.xlu0 %6193
      %6195 = vrot.lane.b32.xlu0 %v5950, 60
      %v6196 = vpop.permute.xlu0 %6195
      %6197 = vrot.lane.b32.xlu0 %v5951, 60
      %v6198 = vpop.permute.xlu0 %6197
      %6199 = vrot.lane.b32.xlu0 %v5952, 60
      %v6200 = vpop.permute.xlu0 %6199
      %6201 = vrot.lane.b32.xlu0 %v5953, 60
      %v6202 = vpop.permute.xlu0 %6201
      %6203 = vrot.lane.b32.xlu0 %v5954, 60
      %v6204 = vpop.permute.xlu0 %6203
      %6205 = vrot.lane.b32.xlu0 %v5955, 60
      %v6206 = vpop.permute.xlu0 %6205
      %v6207 = vsel %vm2478, %v6196, %v6198
      %v6208 = vsel %vm2478, %v6198, %v6200
      %v6209 = vsel %vm2478, %v6200, %v6202
      %v6210 = vsel %vm2478, %v6202, %v6204
      %v6211 = vsel %vm2478, %v6204, %v6206
      %v6213 = vsel %vm437, %v6194, 0
      %v6216 = vsel %vm441, %v6207, 0
      %v6219 = vsel %vm441, %v6208, 0
      %v6222 = vsel %vm441, %v6209, 0
      %v6225 = vsel %vm441, %v6210, 0
      %v6228 = vsel %vm441, %v6211, 0
      %6230 = vmatpush.bf16.msra.mxu0 0
      %6231 = vmatpush.bf16.msra.mxu0 0
      %6232 = vmatpush.bf16.msra.mxu0 0
      %6233 = vmatpush.bf16.msra.mxu0 0
      %6234 = vmatpush.bf16.msra.mxu0 0
      %6235 = vmatpush.bf16.msra.mxu0 0
      %6236 = vmatpush.bf16.msra.mxu0 0
      %6237 = vmatpush.bf16.msra.mxu0 %v6216
      %6238 = vmatmul.bf16.gmra.mxu0 %v6213
      %v6239 = vpop.f32.mrf.mxu0
      %v6240 = vadd.f32 0.0, %v6239
      %v6241 = vpop.f32.mrf.mxu0
      %v6242 = vadd.f32 0.0, %v6241
      %6243 = vdwg.mxu0
      %6244 = vmatpush.bf16.msra.mxu0 0
      %6245 = vmatpush.bf16.msra.mxu0 0
      %6246 = vmatpush.bf16.msra.mxu0 0
      %6247 = vmatpush.bf16.msra.mxu0 0
      %6248 = vmatpush.bf16.msra.mxu0 0
      %6249 = vmatpush.bf16.msra.mxu0 0
      %6250 = vmatpush.bf16.msra.mxu0 0
      %6251 = vmatpush.bf16.msra.mxu0 %v6219
      %6252 = vmatmul.bf16.gmra.mxu0 %v6213
      %v6253 = vpop.f32.mrf.mxu0
      %v6254 = vadd.f32 0.0, %v6253
      %v6255 = vpop.f32.mrf.mxu0
      %v6256 = vadd.f32 0.0, %v6255
      %6257 = vdwg.mxu0
      %6258 = vmatpush.bf16.msra.mxu0 0
      %6259 = vmatpush.bf16.msra.mxu0 0
      %6260 = vmatpush.bf16.msra.mxu0 0
      %6261 = vmatpush.bf16.msra.mxu0 0
      %6262 = vmatpush.bf16.msra.mxu0 0
      %6263 = vmatpush.bf16.msra.mxu0 0
      %6264 = vmatpush.bf16.msra.mxu0 0
      %6265 = vmatpush.bf16.msra.mxu0 %v6222
      %6266 = vmatmul.bf16.gmra.mxu0 %v6213
      %v6267 = vpop.f32.mrf.mxu0
      %v6268 = vadd.f32 0.0, %v6267
      %v6269 = vpop.f32.mrf.mxu0
      %v6270 = vadd.f32 0.0, %v6269
      %6271 = vdwg.mxu0
      %6272 = vmatpush.bf16.msra.mxu0 0
      %6273 = vmatpush.bf16.msra.mxu0 0
      %6274 = vmatpush.bf16.msra.mxu0 0
      %6275 = vmatpush.bf16.msra.mxu0 0
      %6276 = vmatpush.bf16.msra.mxu0 0
      %6277 = vmatpush.bf16.msra.mxu0 0
      %6278 = vmatpush.bf16.msra.mxu0 0
      %6279 = vmatpush.bf16.msra.mxu0 %v6225
      %6280 = vmatmul.bf16.gmra.mxu0 %v6213
      %v6281 = vpop.f32.mrf.mxu0
      %v6282 = vadd.f32 0.0, %v6281
      %v6283 = vpop.f32.mrf.mxu0
      %v6284 = vadd.f32 0.0, %v6283
      %6285 = vdwg.mxu0
      %6286 = vmatpush.bf16.msra.mxu0 0
      %6287 = vmatpush.bf16.msra.mxu0 0
      %6288 = vmatpush.bf16.msra.mxu0 0
      %6289 = vmatpush.bf16.msra.mxu0 0
      %6290 = vmatpush.bf16.msra.mxu0 0
      %6291 = vmatpush.bf16.msra.mxu0 0
      %6292 = vmatpush.bf16.msra.mxu0 0
      %6293 = vmatpush.bf16.msra.mxu0 %v6228
      %6294 = vmatmul.bf16.gmra.mxu0 %v6213
      %v6295 = vpop.f32.mrf.mxu0
      %v6296 = vadd.f32 0.0, %v6295
      %v6297 = vpop.f32.mrf.mxu0
      %v6298 = vadd.f32 0.0, %v6297
      %6299 = vdwg.mxu0
      %v6300 = vadd.f32 %v6183, %v6240
      %v6301 = vadd.f32 %v6184, %v6254
      %v6302 = vadd.f32 %v6185, %v6268
      %v6303 = vadd.f32 %v6186, %v6282
      %v6304 = vadd.f32 %v6187, %v6296
      %v6305 = vadd.f32 %v6188, %v6242
      %v6306 = vadd.f32 %v6189, %v6256
      %v6307 = vadd.f32 %v6190, %v6270
      %v6308 = vadd.f32 %v6191, %v6284
      %v6309 = vadd.f32 %v6192, %v6298
      %6310 = vrot.lane.b32.xlu0 %v6077, 112
      %v6311 = vpop.permute.xlu0 %6310
      %6312 = vrot.lane.b32.xlu0 %v5950, 58
      %v6313 = vpop.permute.xlu0 %6312
      %6314 = vrot.lane.b32.xlu0 %v5951, 58
      %v6315 = vpop.permute.xlu0 %6314
      %6316 = vrot.lane.b32.xlu0 %v5952, 58
      %v6317 = vpop.permute.xlu0 %6316
      %6318 = vrot.lane.b32.xlu0 %v5953, 58
      %v6319 = vpop.permute.xlu0 %6318
      %6320 = vrot.lane.b32.xlu0 %v5954, 58
      %v6321 = vpop.permute.xlu0 %6320
      %6322 = vrot.lane.b32.xlu0 %v5955, 58
      %v6323 = vpop.permute.xlu0 %6322
      %v6324 = vsel %vm5142, %v6313, %v6315
      %v6325 = vsel %vm5142, %v6315, %v6317
      %v6326 = vsel %vm5142, %v6317, %v6319
      %v6327 = vsel %vm5142, %v6319, %v6321
      %v6328 = vsel %vm5142, %v6321, %v6323
      %v6330 = vsel %vm437, %v6311, 0
      %v6333 = vsel %vm441, %v6324, 0
      %v6336 = vsel %vm441, %v6325, 0
      %v6339 = vsel %vm441, %v6326, 0
      %v6342 = vsel %vm441, %v6327, 0
      %v6345 = vsel %vm441, %v6328, 0
      %6347 = vmatpush.bf16.msra.mxu0 0
      %6348 = vmatpush.bf16.msra.mxu0 0
      %6349 = vmatpush.bf16.msra.mxu0 0
      %6350 = vmatpush.bf16.msra.mxu0 0
      %6351 = vmatpush.bf16.msra.mxu0 0
      %6352 = vmatpush.bf16.msra.mxu0 0
      %6353 = vmatpush.bf16.msra.mxu0 0
      %6354 = vmatpush.bf16.msra.mxu0 %v6333
      %6355 = vmatmul.bf16.gmra.mxu0 %v6330
      %v6356 = vpop.f32.mrf.mxu0
      %v6357 = vadd.f32 0.0, %v6356
      %v6358 = vpop.f32.mrf.mxu0
      %v6359 = vadd.f32 0.0, %v6358
      %6360 = vdwg.mxu0
      %6361 = vmatpush.bf16.msra.mxu0 0
      %6362 = vmatpush.bf16.msra.mxu0 0
      %6363 = vmatpush.bf16.msra.mxu0 0
      %6364 = vmatpush.bf16.msra.mxu0 0
      %6365 = vmatpush.bf16.msra.mxu0 0
      %6366 = vmatpush.bf16.msra.mxu0 0
      %6367 = vmatpush.bf16.msra.mxu0 0
      %6368 = vmatpush.bf16.msra.mxu0 %v6336
      %6369 = vmatmul.bf16.gmra.mxu0 %v6330
      %v6370 = vpop.f32.mrf.mxu0
      %v6371 = vadd.f32 0.0, %v6370
      %v6372 = vpop.f32.mrf.mxu0
      %v6373 = vadd.f32 0.0, %v6372
      %6374 = vdwg.mxu0
      %6375 = vmatpush.bf16.msra.mxu0 0
      %6376 = vmatpush.bf16.msra.mxu0 0
      %6377 = vmatpush.bf16.msra.mxu0 0
      %6378 = vmatpush.bf16.msra.mxu0 0
      %6379 = vmatpush.bf16.msra.mxu0 0
      %6380 = vmatpush.bf16.msra.mxu0 0
      %6381 = vmatpush.bf16.msra.mxu0 0
      %6382 = vmatpush.bf16.msra.mxu0 %v6339
      %6383 = vmatmul.bf16.gmra.mxu0 %v6330
      %v6384 = vpop.f32.mrf.mxu0
      %v6385 = vadd.f32 0.0, %v6384
      %v6386 = vpop.f32.mrf.mxu0
      %v6387 = vadd.f32 0.0, %v6386
      %6388 = vdwg.mxu0
      %6389 = vmatpush.bf16.msra.mxu0 0
      %6390 = vmatpush.bf16.msra.mxu0 0
      %6391 = vmatpush.bf16.msra.mxu0 0
      %6392 = vmatpush.bf16.msra.mxu0 0
      %6393 = vmatpush.bf16.msra.mxu0 0
      %6394 = vmatpush.bf16.msra.mxu0 0
      %6395 = vmatpush.bf16.msra.mxu0 0
      %6396 = vmatpush.bf16.msra.mxu0 %v6342
      %6397 = vmatmul.bf16.gmra.mxu0 %v6330
      %v6398 = vpop.f32.mrf.mxu0
      %v6399 = vadd.f32 0.0, %v6398
      %v6400 = vpop.f32.mrf.mxu0
      %v6401 = vadd.f32 0.0, %v6400
      %6402 = vdwg.mxu0
      %6403 = vmatpush.bf16.msra.mxu0 0
      %6404 = vmatpush.bf16.msra.mxu0 0
      %6405 = vmatpush.bf16.msra.mxu0 0
      %6406 = vmatpush.bf16.msra.mxu0 0
      %6407 = vmatpush.bf16.msra.mxu0 0
      %6408 = vmatpush.bf16.msra.mxu0 0
      %6409 = vmatpush.bf16.msra.mxu0 0
      %6410 = vmatpush.bf16.msra.mxu0 %v6345
      %6411 = vmatmul.bf16.gmra.mxu0 %v6330
      %v6412 = vpop.f32.mrf.mxu0
      %v6413 = vadd.f32 0.0, %v6412
      %v6414 = vpop.f32.mrf.mxu0
      %v6415 = vadd.f32 0.0, %v6414
      %6416 = vdwg.mxu0
      %v6417 = vadd.f32 %v6300, %v6357
      %v6418 = vadd.f32 %v6301, %v6371
      %v6419 = vadd.f32 %v6302, %v6385
      %v6420 = vadd.f32 %v6303, %v6399
      %v6421 = vadd.f32 %v6304, %v6413
      %v6422 = vadd.f32 %v6305, %v6359
      %v6423 = vadd.f32 %v6306, %v6373
      %v6424 = vadd.f32 %v6307, %v6387
      %v6425 = vadd.f32 %v6308, %v6401
      %v6426 = vadd.f32 %v6309, %v6415
      %6427 = vrot.lane.b32.xlu0 %v6077, 104
      %v6428 = vpop.permute.xlu0 %6427
      %6429 = vrot.lane.b32.xlu0 %v5950, 56
      %v6430 = vpop.permute.xlu0 %6429
      %6431 = vrot.lane.b32.xlu0 %v5951, 56
      %v6432 = vpop.permute.xlu0 %6431
      %6433 = vrot.lane.b32.xlu0 %v5952, 56
      %v6434 = vpop.permute.xlu0 %6433
      %6435 = vrot.lane.b32.xlu0 %v5953, 56
      %v6436 = vpop.permute.xlu0 %6435
      %6437 = vrot.lane.b32.xlu0 %v5954, 56
      %v6438 = vpop.permute.xlu0 %6437
      %6439 = vrot.lane.b32.xlu0 %v5955, 56
      %v6440 = vpop.permute.xlu0 %6439
      %v6441 = vsel %vm5260, %v6430, %v6432
      %v6442 = vsel %vm5260, %v6432, %v6434
      %v6443 = vsel %vm5260, %v6434, %v6436
      %v6444 = vsel %vm5260, %v6436, %v6438
      %v6445 = vsel %vm5260, %v6438, %v6440
      %v6447 = vsel %vm437, %v6428, 0
      %v6450 = vsel %vm441, %v6441, 0
      %v6453 = vsel %vm441, %v6442, 0
      %v6456 = vsel %vm441, %v6443, 0
      %v6459 = vsel %vm441, %v6444, 0
      %v6462 = vsel %vm441, %v6445, 0
      %6464 = vmatpush.bf16.msra.mxu0 0
      %6465 = vmatpush.bf16.msra.mxu0 0
      %6466 = vmatpush.bf16.msra.mxu0 0
      %6467 = vmatpush.bf16.msra.mxu0 0
      %6468 = vmatpush.bf16.msra.mxu0 0
      %6469 = vmatpush.bf16.msra.mxu0 0
      %6470 = vmatpush.bf16.msra.mxu0 0
      %6471 = vmatpush.bf16.msra.mxu0 %v6450
      %6472 = vmatmul.bf16.gmra.mxu0 %v6447
      %v6473 = vpop.f32.mrf.mxu0
      %v6474 = vadd.f32 0.0, %v6473
      %v6475 = vpop.f32.mrf.mxu0
      %v6476 = vadd.f32 0.0, %v6475
      %6477 = vdwg.mxu0
      %6478 = vmatpush.bf16.msra.mxu0 0
      %6479 = vmatpush.bf16.msra.mxu0 0
      %6480 = vmatpush.bf16.msra.mxu0 0
      %6481 = vmatpush.bf16.msra.mxu0 0
      %6482 = vmatpush.bf16.msra.mxu0 0
      %6483 = vmatpush.bf16.msra.mxu0 0
      %6484 = vmatpush.bf16.msra.mxu0 0
      %6485 = vmatpush.bf16.msra.mxu0 %v6453
      %6486 = vmatmul.bf16.gmra.mxu0 %v6447
      %v6487 = vpop.f32.mrf.mxu0
      %v6488 = vadd.f32 0.0, %v6487
      %v6489 = vpop.f32.mrf.mxu0
      %v6490 = vadd.f32 0.0, %v6489
      %6491 = vdwg.mxu0
      %6492 = vmatpush.bf16.msra.mxu0 0
      %6493 = vmatpush.bf16.msra.mxu0 0
      %6494 = vmatpush.bf16.msra.mxu0 0
      %6495 = vmatpush.bf16.msra.mxu0 0
      %6496 = vmatpush.bf16.msra.mxu0 0
      %6497 = vmatpush.bf16.msra.mxu0 0
      %6498 = vmatpush.bf16.msra.mxu0 0
      %6499 = vmatpush.bf16.msra.mxu0 %v6456
      %6500 = vmatmul.bf16.gmra.mxu0 %v6447
      %v6501 = vpop.f32.mrf.mxu0
      %v6502 = vadd.f32 0.0, %v6501
      %v6503 = vpop.f32.mrf.mxu0
      %v6504 = vadd.f32 0.0, %v6503
      %6505 = vdwg.mxu0
      %6506 = vmatpush.bf16.msra.mxu0 0
      %6507 = vmatpush.bf16.msra.mxu0 0
      %6508 = vmatpush.bf16.msra.mxu0 0
      %6509 = vmatpush.bf16.msra.mxu0 0
      %6510 = vmatpush.bf16.msra.mxu0 0
      %6511 = vmatpush.bf16.msra.mxu0 0
      %6512 = vmatpush.bf16.msra.mxu0 0
      %6513 = vmatpush.bf16.msra.mxu0 %v6459
      %6514 = vmatmul.bf16.gmra.mxu0 %v6447
      %v6515 = vpop.f32.mrf.mxu0
      %v6516 = vadd.f32 0.0, %v6515
      %v6517 = vpop.f32.mrf.mxu0
      %v6518 = vadd.f32 0.0, %v6517
      %6519 = vdwg.mxu0
      %6520 = vmatpush.bf16.msra.mxu0 0
      %6521 = vmatpush.bf16.msra.mxu0 0
      %6522 = vmatpush.bf16.msra.mxu0 0
      %6523 = vmatpush.bf16.msra.mxu0 0
      %6524 = vmatpush.bf16.msra.mxu0 0
      %6525 = vmatpush.bf16.msra.mxu0 0
      %6526 = vmatpush.bf16.msra.mxu0 0
      %6527 = vmatpush.bf16.msra.mxu0 %v6462
      %6528 = vmatmul.bf16.gmra.mxu0 %v6447
      %v6529 = vpop.f32.mrf.mxu0
      %v6530 = vadd.f32 0.0, %v6529
      %v6531 = vpop.f32.mrf.mxu0
      %v6532 = vadd.f32 0.0, %v6531
      %6533 = vdwg.mxu0
      %v6534 = vadd.f32 %v6417, %v6474
      %v6535 = vadd.f32 %v6418, %v6488
      %v6536 = vadd.f32 %v6419, %v6502
      %v6537 = vadd.f32 %v6420, %v6516
      %v6538 = vadd.f32 %v6421, %v6530
      %v6539 = vadd.f32 %v6422, %v6476
      %v6540 = vadd.f32 %v6423, %v6490
      %v6541 = vadd.f32 %v6424, %v6504
      %v6542 = vadd.f32 %v6425, %v6518
      %v6543 = vadd.f32 %v6426, %v6532
      %v6544 = vld [vmem:[#allocation3 + $0x8] sm:$0xff]
      %v6545 = vld [vmem:[#allocation3 + $0x10] sm:$0xff]
      %v6546 = vld [vmem:[#allocation3 + $0x18] sm:$0xf]
      %6547 = vrot.lane.b32.xlu0 %v6077, 96
      %v6548 = vpop.permute.xlu0 %6547
      %v6552 = vunpack.c.l.b16 %v6544
      %v6553 = vunpack.c.h.b16 %v6544
      %v6554 = vunpack.c.l.b16 %v6545
      %v6555 = vunpack.c.h.b16 %v6545
      %v6556 = vunpack.c.l.b16 %v6546
      %v6557 = vpack.c.b16 %v6552, %v6552
      %v6558 = vpack.c.b16 %v6553, %v6553
      %v6559 = vpack.c.b16 %v6554, %v6554
      %v6560 = vpack.c.b16 %v6555, %v6555
      %v6561 = vpack.c.b16 %v6556, %v6556
      %v6563 = vsel %vm437, %v6548, 0
      %v6566 = vsel %vm441, %v6557, 0
      %v6569 = vsel %vm441, %v6558, 0
      %v6572 = vsel %vm441, %v6559, 0
      %v6575 = vsel %vm441, %v6560, 0
      %v6578 = vsel %vm441, %v6561, 0
      %6580 = vmatpush.bf16.msra.mxu0 0
      %6581 = vmatpush.bf16.msra.mxu0 0
      %6582 = vmatpush.bf16.msra.mxu0 0
      %6583 = vmatpush.bf16.msra.mxu0 0
      %6584 = vmatpush.bf16.msra.mxu0 0
      %6585 = vmatpush.bf16.msra.mxu0 0
      %6586 = vmatpush.bf16.msra.mxu0 0
      %6587 = vmatpush.bf16.msra.mxu0 %v6566
      %6588 = vmatmul.bf16.gmra.mxu0 %v6563
      %v6589 = vpop.f32.mrf.mxu0
      %v6590 = vadd.f32 0.0, %v6589
      %v6591 = vpop.f32.mrf.mxu0
      %v6592 = vadd.f32 0.0, %v6591
      %6593 = vdwg.mxu0
      %6594 = vmatpush.bf16.msra.mxu0 0
      %6595 = vmatpush.bf16.msra.mxu0 0
      %6596 = vmatpush.bf16.msra.mxu0 0
      %6597 = vmatpush.bf16.msra.mxu0 0
      %6598 = vmatpush.bf16.msra.mxu0 0
      %6599 = vmatpush.bf16.msra.mxu0 0
      %6600 = vmatpush.bf16.msra.mxu0 0
      %6601 = vmatpush.bf16.msra.mxu0 %v6569
      %6602 = vmatmul.bf16.gmra.mxu0 %v6563
      %v6603 = vpop.f32.mrf.mxu0
      %v6604 = vadd.f32 0.0, %v6603
      %v6605 = vpop.f32.mrf.mxu0
      %v6606 = vadd.f32 0.0, %v6605
      %6607 = vdwg.mxu0
      %6608 = vmatpush.bf16.msra.mxu0 0
      %6609 = vmatpush.bf16.msra.mxu0 0
      %6610 = vmatpush.bf16.msra.mxu0 0
      %6611 = vmatpush.bf16.msra.mxu0 0
      %6612 = vmatpush.bf16.msra.mxu0 0
      %6613 = vmatpush.bf16.msra.mxu0 0
      %6614 = vmatpush.bf16.msra.mxu0 0
      %6615 = vmatpush.bf16.msra.mxu0 %v6572
      %6616 = vmatmul.bf16.gmra.mxu0 %v6563
      %v6617 = vpop.f32.mrf.mxu0
      %v6618 = vadd.f32 0.0, %v6617
      %v6619 = vpop.f32.mrf.mxu0
      %v6620 = vadd.f32 0.0, %v6619
      %6621 = vdwg.mxu0
      %6622 = vmatpush.bf16.msra.mxu0 0
      %6623 = vmatpush.bf16.msra.mxu0 0
      %6624 = vmatpush.bf16.msra.mxu0 0
      %6625 = vmatpush.bf16.msra.mxu0 0
      %6626 = vmatpush.bf16.msra.mxu0 0
      %6627 = vmatpush.bf16.msra.mxu0 0
      %6628 = vmatpush.bf16.msra.mxu0 0
      %6629 = vmatpush.bf16.msra.mxu0 %v6575
      %6630 = vmatmul.bf16.gmra.mxu0 %v6563
      %v6631 = vpop.f32.mrf.mxu0
      %v6632 = vadd.f32 0.0, %v6631
      %v6633 = vpop.f32.mrf.mxu0
      %v6634 = vadd.f32 0.0, %v6633
      %6635 = vdwg.mxu0
      %6636 = vmatpush.bf16.msra.mxu0 0
      %6637 = vmatpush.bf16.msra.mxu0 0
      %6638 = vmatpush.bf16.msra.mxu0 0
      %6639 = vmatpush.bf16.msra.mxu0 0
      %6640 = vmatpush.bf16.msra.mxu0 0
      %6641 = vmatpush.bf16.msra.mxu0 0
      %6642 = vmatpush.bf16.msra.mxu0 0
      %6643 = vmatpush.bf16.msra.mxu0 %v6578
      %6644 = vmatmul.bf16.gmra.mxu0 %v6563
      %v6645 = vpop.f32.mrf.mxu0
      %v6646 = vadd.f32 0.0, %v6645
      %v6647 = vpop.f32.mrf.mxu0
      %v6648 = vadd.f32 0.0, %v6647
      %6649 = vdwg.mxu0
      %v6650 = vadd.f32 %v6534, %v6590
      %v6651 = vadd.f32 %v6535, %v6604
      %v6652 = vadd.f32 %v6536, %v6618
      %v6653 = vadd.f32 %v6537, %v6632
      %v6654 = vadd.f32 %v6538, %v6646
      %v6655 = vadd.f32 %v6539, %v6592
      %v6656 = vadd.f32 %v6540, %v6606
      %v6657 = vadd.f32 %v6541, %v6620
      %v6658 = vadd.f32 %v6542, %v6634
      %v6659 = vadd.f32 %v6543, %v6648
      %6660 = vrot.lane.b32.xlu0 %v6077, 88
      %v6661 = vpop.permute.xlu0 %6660
      %6662 = vrot.lane.b32.xlu0 %v6557, 126
      %v6663 = vpop.permute.xlu0 %6662
      %6664 = vrot.lane.b32.xlu0 %v6558, 126
      %v6665 = vpop.permute.xlu0 %6664
      %6666 = vrot.lane.b32.xlu0 %v6559, 126
      %v6667 = vpop.permute.xlu0 %6666
      %6668 = vrot.lane.b32.xlu0 %v6560, 126
      %v6669 = vpop.permute.xlu0 %6668
      %6670 = vrot.lane.b32.xlu0 %v6561, 126
      %v6671 = vpop.permute.xlu0 %6670
      %v6672 = vsel %vm685, %v6663, %v6665
      %v6673 = vsel %vm685, %v6665, %v6667
      %v6674 = vsel %vm685, %v6667, %v6669
      %v6675 = vsel %vm685, %v6669, %v6671
      %v6677 = vsel %vm437, %v6661, 0
      %v6680 = vsel %vm441, %v6672, 0
      %v6683 = vsel %vm441, %v6673, 0
      %v6686 = vsel %vm441, %v6674, 0
      %v6689 = vsel %vm441, %v6675, 0
      %v6692 = vsel %vm441, %v6671, 0
      %6694 = vmatpush.bf16.msra.mxu0 0
      %6695 = vmatpush.bf16.msra.mxu0 0
      %6696 = vmatpush.bf16.msra.mxu0 0
      %6697 = vmatpush.bf16.msra.mxu0 0
      %6698 = vmatpush.bf16.msra.mxu0 0
      %6699 = vmatpush.bf16.msra.mxu0 0
      %6700 = vmatpush.bf16.msra.mxu0 0
      %6701 = vmatpush.bf16.msra.mxu0 %v6680
      %6702 = vmatmul.bf16.gmra.mxu0 %v6677
      %v6703 = vpop.f32.mrf.mxu0
      %v6704 = vadd.f32 0.0, %v6703
      %v6705 = vpop.f32.mrf.mxu0
      %v6706 = vadd.f32 0.0, %v6705
      %6707 = vdwg.mxu0
      %6708 = vmatpush.bf16.msra.mxu0 0
      %6709 = vmatpush.bf16.msra.mxu0 0
      %6710 = vmatpush.bf16.msra.mxu0 0
      %6711 = vmatpush.bf16.msra.mxu0 0
      %6712 = vmatpush.bf16.msra.mxu0 0
      %6713 = vmatpush.bf16.msra.mxu0 0
      %6714 = vmatpush.bf16.msra.mxu0 0
      %6715 = vmatpush.bf16.msra.mxu0 %v6683
      %6716 = vmatmul.bf16.gmra.mxu0 %v6677
      %v6717 = vpop.f32.mrf.mxu0
      %v6718 = vadd.f32 0.0, %v6717
      %v6719 = vpop.f32.mrf.mxu0
      %v6720 = vadd.f32 0.0, %v6719
      %6721 = vdwg.mxu0
      %6722 = vmatpush.bf16.msra.mxu0 0
      %6723 = vmatpush.bf16.msra.mxu0 0
      %6724 = vmatpush.bf16.msra.mxu0 0
      %6725 = vmatpush.bf16.msra.mxu0 0
      %6726 = vmatpush.bf16.msra.mxu0 0
      %6727 = vmatpush.bf16.msra.mxu0 0
      %6728 = vmatpush.bf16.msra.mxu0 0
      %6729 = vmatpush.bf16.msra.mxu0 %v6686
      %6730 = vmatmul.bf16.gmra.mxu0 %v6677
      %v6731 = vpop.f32.mrf.mxu0
      %v6732 = vadd.f32 0.0, %v6731
      %v6733 = vpop.f32.mrf.mxu0
      %v6734 = vadd.f32 0.0, %v6733
      %6735 = vdwg.mxu0
      %6736 = vmatpush.bf16.msra.mxu0 0
      %6737 = vmatpush.bf16.msra.mxu0 0
      %6738 = vmatpush.bf16.msra.mxu0 0
      %6739 = vmatpush.bf16.msra.mxu0 0
      %6740 = vmatpush.bf16.msra.mxu0 0
      %6741 = vmatpush.bf16.msra.mxu0 0
      %6742 = vmatpush.bf16.msra.mxu0 0
      %6743 = vmatpush.bf16.msra.mxu0 %v6689
      %6744 = vmatmul.bf16.gmra.mxu0 %v6677
      %v6745 = vpop.f32.mrf.mxu0
      %v6746 = vadd.f32 0.0, %v6745
      %v6747 = vpop.f32.mrf.mxu0
      %v6748 = vadd.f32 0.0, %v6747
      %6749 = vdwg.mxu0
      %6750 = vmatpush.bf16.msra.mxu0 0
      %6751 = vmatpush.bf16.msra.mxu0 0
      %6752 = vmatpush.bf16.msra.mxu0 0
      %6753 = vmatpush.bf16.msra.mxu0 0
      %6754 = vmatpush.bf16.msra.mxu0 0
      %6755 = vmatpush.bf16.msra.mxu0 0
      %6756 = vmatpush.bf16.msra.mxu0 0
      %6757 = vmatpush.bf16.msra.mxu0 %v6692
      %6758 = vmatmul.bf16.gmra.mxu0 %v6677
      %v6759 = vpop.f32.mrf.mxu0
      %v6760 = vadd.f32 0.0, %v6759
      %v6761 = vpop.f32.mrf.mxu0
      %v6762 = vadd.f32 0.0, %v6761
      %6763 = vdwg.mxu0
      %v6764 = vadd.f32 %v6650, %v6704
      %v6765 = vadd.f32 %v6651, %v6718
      %v6766 = vadd.f32 %v6652, %v6732
      %v6767 = vadd.f32 %v6653, %v6746
      %v6768 = vadd.f32 %v6654, %v6760
      %v6769 = vadd.f32 %v6655, %v6706
      %v6770 = vadd.f32 %v6656, %v6720
      %v6771 = vadd.f32 %v6657, %v6734
      %v6772 = vadd.f32 %v6658, %v6748
      %v6773 = vadd.f32 %v6659, %v6762
      %6774 = vrot.lane.b32.xlu0 %v6077, 80
      %v6775 = vpop.permute.xlu0 %6774
      %6776 = vrot.lane.b32.xlu0 %v6557, 124
      %v6777 = vpop.permute.xlu0 %6776
      %6778 = vrot.lane.b32.xlu0 %v6558, 124
      %v6779 = vpop.permute.xlu0 %6778
      %6780 = vrot.lane.b32.xlu0 %v6559, 124
      %v6781 = vpop.permute.xlu0 %6780
      %6782 = vrot.lane.b32.xlu0 %v6560, 124
      %v6783 = vpop.permute.xlu0 %6782
      %6784 = vrot.lane.b32.xlu0 %v6561, 124
      %v6785 = vpop.permute.xlu0 %6784
      %v6786 = vsel %vm975, %v6777, %v6779
      %v6787 = vsel %vm975, %v6779, %v6781
      %v6788 = vsel %vm975, %v6781, %v6783
      %v6789 = vsel %vm975, %v6783, %v6785
      %v6791 = vsel %vm437, %v6775, 0
      %v6794 = vsel %vm441, %v6786, 0
      %v6797 = vsel %vm441, %v6787, 0
      %v6800 = vsel %vm441, %v6788, 0
      %v6803 = vsel %vm441, %v6789, 0
      %v6806 = vsel %vm441, %v6785, 0
      %6808 = vmatpush.bf16.msra.mxu0 0
      %6809 = vmatpush.bf16.msra.mxu0 0
      %6810 = vmatpush.bf16.msra.mxu0 0
      %6811 = vmatpush.bf16.msra.mxu0 0
      %6812 = vmatpush.bf16.msra.mxu0 0
      %6813 = vmatpush.bf16.msra.mxu0 0
      %6814 = vmatpush.bf16.msra.mxu0 0
      %6815 = vmatpush.bf16.msra.mxu0 %v6794
      %6816 = vmatmul.bf16.gmra.mxu0 %v6791
      %v6817 = vpop.f32.mrf.mxu0
      %v6818 = vadd.f32 0.0, %v6817
      %v6819 = vpop.f32.mrf.mxu0
      %v6820 = vadd.f32 0.0, %v6819
      %6821 = vdwg.mxu0
      %6822 = vmatpush.bf16.msra.mxu0 0
      %6823 = vmatpush.bf16.msra.mxu0 0
      %6824 = vmatpush.bf16.msra.mxu0 0
      %6825 = vmatpush.bf16.msra.mxu0 0
      %6826 = vmatpush.bf16.msra.mxu0 0
      %6827 = vmatpush.bf16.msra.mxu0 0
      %6828 = vmatpush.bf16.msra.mxu0 0
      %6829 = vmatpush.bf16.msra.mxu0 %v6797
      %6830 = vmatmul.bf16.gmra.mxu0 %v6791
      %v6831 = vpop.f32.mrf.mxu0
      %v6832 = vadd.f32 0.0, %v6831
      %v6833 = vpop.f32.mrf.mxu0
      %v6834 = vadd.f32 0.0, %v6833
      %6835 = vdwg.mxu0
      %6836 = vmatpush.bf16.msra.mxu0 0
      %6837 = vmatpush.bf16.msra.mxu0 0
      %6838 = vmatpush.bf16.msra.mxu0 0
      %6839 = vmatpush.bf16.msra.mxu0 0
      %6840 = vmatpush.bf16.msra.mxu0 0
      %6841 = vmatpush.bf16.msra.mxu0 0
      %6842 = vmatpush.bf16.msra.mxu0 0
      %6843 = vmatpush.bf16.msra.mxu0 %v6800
      %6844 = vmatmul.bf16.gmra.mxu0 %v6791
      %v6845 = vpop.f32.mrf.mxu0
      %v6846 = vadd.f32 0.0, %v6845
      %v6847 = vpop.f32.mrf.mxu0
      %v6848 = vadd.f32 0.0, %v6847
      %6849 = vdwg.mxu0
      %6850 = vmatpush.bf16.msra.mxu0 0
      %6851 = vmatpush.bf16.msra.mxu0 0
      %6852 = vmatpush.bf16.msra.mxu0 0
      %6853 = vmatpush.bf16.msra.mxu0 0
      %6854 = vmatpush.bf16.msra.mxu0 0
      %6855 = vmatpush.bf16.msra.mxu0 0
      %6856 = vmatpush.bf16.msra.mxu0 0
      %6857 = vmatpush.bf16.msra.mxu0 %v6803
      %6858 = vmatmul.bf16.gmra.mxu0 %v6791
      %v6859 = vpop.f32.mrf.mxu0
      %v6860 = vadd.f32 0.0, %v6859
      %v6861 = vpop.f32.mrf.mxu0
      %v6862 = vadd.f32 0.0, %v6861
      %6863 = vdwg.mxu0
      %6864 = vmatpush.bf16.msra.mxu0 0
      %6865 = vmatpush.bf16.msra.mxu0 0
      %6866 = vmatpush.bf16.msra.mxu0 0
      %6867 = vmatpush.bf16.msra.mxu0 0
      %6868 = vmatpush.bf16.msra.mxu0 0
      %6869 = vmatpush.bf16.msra.mxu0 0
      %6870 = vmatpush.bf16.msra.mxu0 0
      %6871 = vmatpush.bf16.msra.mxu0 %v6806
      %6872 = vmatmul.bf16.gmra.mxu0 %v6791
      %v6873 = vpop.f32.mrf.mxu0
      %v6874 = vadd.f32 0.0, %v6873
      %v6875 = vpop.f32.mrf.mxu0
      %v6876 = vadd.f32 0.0, %v6875
      %6877 = vdwg.mxu0
      %v6878 = vadd.f32 %v6764, %v6818
      %v6879 = vadd.f32 %v6765, %v6832
      %v6880 = vadd.f32 %v6766, %v6846
      %v6881 = vadd.f32 %v6767, %v6860
      %v6882 = vadd.f32 %v6768, %v6874
      %v6883 = vadd.f32 %v6769, %v6820
      %v6884 = vadd.f32 %v6770, %v6834
      %v6885 = vadd.f32 %v6771, %v6848
      %v6886 = vadd.f32 %v6772, %v6862
      %v6887 = vadd.f32 %v6773, %v6876
      %6888 = vrot.lane.b32.xlu0 %v6077, 72
      %v6889 = vpop.permute.xlu0 %6888
      %6890 = vrot.lane.b32.xlu0 %v6557, 122
      %v6891 = vpop.permute.xlu0 %6890
      %6892 = vrot.lane.b32.xlu0 %v6558, 122
      %v6893 = vpop.permute.xlu0 %6892
      %6894 = vrot.lane.b32.xlu0 %v6559, 122
      %v6895 = vpop.permute.xlu0 %6894
      %6896 = vrot.lane.b32.xlu0 %v6560, 122
      %v6897 = vpop.permute.xlu0 %6896
      %6898 = vrot.lane.b32.xlu0 %v6561, 122
      %v6899 = vpop.permute.xlu0 %6898
      %v6900 = vsel %vm4541, %v6891, %v6893
      %v6901 = vsel %vm4541, %v6893, %v6895
      %v6902 = vsel %vm4541, %v6895, %v6897
      %v6903 = vsel %vm4541, %v6897, %v6899
      %v6905 = vsel %vm437, %v6889, 0
      %v6908 = vsel %vm441, %v6900, 0
      %v6911 = vsel %vm441, %v6901, 0
      %v6914 = vsel %vm441, %v6902, 0
      %v6917 = vsel %vm441, %v6903, 0
      %v6920 = vsel %vm441, %v6899, 0
      %6922 = vmatpush.bf16.msra.mxu0 0
      %6923 = vmatpush.bf16.msra.mxu0 0
      %6924 = vmatpush.bf16.msra.mxu0 0
      %6925 = vmatpush.bf16.msra.mxu0 0
      %6926 = vmatpush.bf16.msra.mxu0 0
      %6927 = vmatpush.bf16.msra.mxu0 0
      %6928 = vmatpush.bf16.msra.mxu0 0
      %6929 = vmatpush.bf16.msra.mxu0 %v6908
      %6930 = vmatmul.bf16.gmra.mxu0 %v6905
      %v6931 = vpop.f32.mrf.mxu0
      %v6932 = vadd.f32 0.0, %v6931
      %v6933 = vpop.f32.mrf.mxu0
      %v6934 = vadd.f32 0.0, %v6933
      %6935 = vdwg.mxu0
      %6936 = vmatpush.bf16.msra.mxu0 0
      %6937 = vmatpush.bf16.msra.mxu0 0
      %6938 = vmatpush.bf16.msra.mxu0 0
      %6939 = vmatpush.bf16.msra.mxu0 0
      %6940 = vmatpush.bf16.msra.mxu0 0
      %6941 = vmatpush.bf16.msra.mxu0 0
      %6942 = vmatpush.bf16.msra.mxu0 0
      %6943 = vmatpush.bf16.msra.mxu0 %v6911
      %6944 = vmatmul.bf16.gmra.mxu0 %v6905
      %v6945 = vpop.f32.mrf.mxu0
      %v6946 = vadd.f32 0.0, %v6945
      %v6947 = vpop.f32.mrf.mxu0
      %v6948 = vadd.f32 0.0, %v6947
      %6949 = vdwg.mxu0
      %6950 = vmatpush.bf16.msra.mxu0 0
      %6951 = vmatpush.bf16.msra.mxu0 0
      %6952 = vmatpush.bf16.msra.mxu0 0
      %6953 = vmatpush.bf16.msra.mxu0 0
      %6954 = vmatpush.bf16.msra.mxu0 0
      %6955 = vmatpush.bf16.msra.mxu0 0
      %6956 = vmatpush.bf16.msra.mxu0 0
      %6957 = vmatpush.bf16.msra.mxu0 %v6914
      %6958 = vmatmul.bf16.gmra.mxu0 %v6905
      %v6959 = vpop.f32.mrf.mxu0
      %v6960 = vadd.f32 0.0, %v6959
      %v6961 = vpop.f32.mrf.mxu0
      %v6962 = vadd.f32 0.0, %v6961
      %6963 = vdwg.mxu0
      %6964 = vmatpush.bf16.msra.mxu0 0
      %6965 = vmatpush.bf16.msra.mxu0 0
      %6966 = vmatpush.bf16.msra.mxu0 0
      %6967 = vmatpush.bf16.msra.mxu0 0
      %6968 = vmatpush.bf16.msra.mxu0 0
      %6969 = vmatpush.bf16.msra.mxu0 0
      %6970 = vmatpush.bf16.msra.mxu0 0
      %6971 = vmatpush.bf16.msra.mxu0 %v6917
      %6972 = vmatmul.bf16.gmra.mxu0 %v6905
      %v6973 = vpop.f32.mrf.mxu0
      %v6974 = vadd.f32 0.0, %v6973
      %v6975 = vpop.f32.mrf.mxu0
      %v6976 = vadd.f32 0.0, %v6975
      %6977 = vdwg.mxu0
      %6978 = vmatpush.bf16.msra.mxu0 0
      %6979 = vmatpush.bf16.msra.mxu0 0
      %6980 = vmatpush.bf16.msra.mxu0 0
      %6981 = vmatpush.bf16.msra.mxu0 0
      %6982 = vmatpush.bf16.msra.mxu0 0
      %6983 = vmatpush.bf16.msra.mxu0 0
      %6984 = vmatpush.bf16.msra.mxu0 0
      %6985 = vmatpush.bf16.msra.mxu0 %v6920
      %6986 = vmatmul.bf16.gmra.mxu0 %v6905
      %v6987 = vpop.f32.mrf.mxu0
      %v6988 = vadd.f32 0.0, %v6987
      %v6989 = vpop.f32.mrf.mxu0
      %v6990 = vadd.f32 0.0, %v6989
      %6991 = vdwg.mxu0
      %v6992 = vadd.f32 %v6878, %v6932
      %v6993 = vadd.f32 %v6879, %v6946
      %v6994 = vadd.f32 %v6880, %v6960
      %v6995 = vadd.f32 %v6881, %v6974
      %v6996 = vadd.f32 %v6882, %v6988
      %v6997 = vadd.f32 %v6883, %v6934
      %v6998 = vadd.f32 %v6884, %v6948
      %v6999 = vadd.f32 %v6885, %v6962
      %v7000 = vadd.f32 %v6886, %v6976
      %v7001 = vadd.f32 %v6887, %v6990
      %7002 = vrot.lane.b32.xlu0 %v6077, 64
      %v7003 = vpop.permute.xlu0 %7002
      %7004 = vrot.lane.b32.xlu0 %v6557, 120
      %v7005 = vpop.permute.xlu0 %7004
      %7006 = vrot.lane.b32.xlu0 %v6558, 120
      %v7007 = vpop.permute.xlu0 %7006
      %7008 = vrot.lane.b32.xlu0 %v6559, 120
      %v7009 = vpop.permute.xlu0 %7008
      %7010 = vrot.lane.b32.xlu0 %v6560, 120
      %v7011 = vpop.permute.xlu0 %7010
      %7012 = vrot.lane.b32.xlu0 %v6561, 120
      %v7013 = vpop.permute.xlu0 %7012
      %v7014 = vsel %vm4656, %v7005, %v7007
      %v7015 = vsel %vm4656, %v7007, %v7009
      %v7016 = vsel %vm4656, %v7009, %v7011
      %v7017 = vsel %vm4656, %v7011, %v7013
      %v7019 = vsel %vm437, %v7003, 0
      %v7022 = vsel %vm441, %v7014, 0
      %v7025 = vsel %vm441, %v7015, 0
      %v7028 = vsel %vm441, %v7016, 0
      %v7031 = vsel %vm441, %v7017, 0
      %v7034 = vsel %vm441, %v7013, 0
      %7036 = vmatpush.bf16.msra.mxu0 0
      %7037 = vmatpush.bf16.msra.mxu0 0
      %7038 = vmatpush.bf16.msra.mxu0 0
      %7039 = vmatpush.bf16.msra.mxu0 0
      %7040 = vmatpush.bf16.msra.mxu0 0
      %7041 = vmatpush.bf16.msra.mxu0 0
      %7042 = vmatpush.bf16.msra.mxu0 0
      %7043 = vmatpush.bf16.msra.mxu0 %v7022
      %7044 = vmatmul.bf16.gmra.mxu0 %v7019
      %v7045 = vpop.f32.mrf.mxu0
      %v7046 = vadd.f32 0.0, %v7045
      %v7047 = vpop.f32.mrf.mxu0
      %v7048 = vadd.f32 0.0, %v7047
      %7049 = vdwg.mxu0
      %7050 = vmatpush.bf16.msra.mxu0 0
      %7051 = vmatpush.bf16.msra.mxu0 0
      %7052 = vmatpush.bf16.msra.mxu0 0
      %7053 = vmatpush.bf16.msra.mxu0 0
      %7054 = vmatpush.bf16.msra.mxu0 0
      %7055 = vmatpush.bf16.msra.mxu0 0
      %7056 = vmatpush.bf16.msra.mxu0 0
      %7057 = vmatpush.bf16.msra.mxu0 %v7025
      %7058 = vmatmul.bf16.gmra.mxu0 %v7019
      %v7059 = vpop.f32.mrf.mxu0
      %v7060 = vadd.f32 0.0, %v7059
      %v7061 = vpop.f32.mrf.mxu0
      %v7062 = vadd.f32 0.0, %v7061
      %7063 = vdwg.mxu0
      %7064 = vmatpush.bf16.msra.mxu0 0
      %7065 = vmatpush.bf16.msra.mxu0 0
      %7066 = vmatpush.bf16.msra.mxu0 0
      %7067 = vmatpush.bf16.msra.mxu0 0
      %7068 = vmatpush.bf16.msra.mxu0 0
      %7069 = vmatpush.bf16.msra.mxu0 0
      %7070 = vmatpush.bf16.msra.mxu0 0
      %7071 = vmatpush.bf16.msra.mxu0 %v7028
      %7072 = vmatmul.bf16.gmra.mxu0 %v7019
      %v7073 = vpop.f32.mrf.mxu0
      %v7074 = vadd.f32 0.0, %v7073
      %v7075 = vpop.f32.mrf.mxu0
      %v7076 = vadd.f32 0.0, %v7075
      %7077 = vdwg.mxu0
      %7078 = vmatpush.bf16.msra.mxu0 0
      %7079 = vmatpush.bf16.msra.mxu0 0
      %7080 = vmatpush.bf16.msra.mxu0 0
      %7081 = vmatpush.bf16.msra.mxu0 0
      %7082 = vmatpush.bf16.msra.mxu0 0
      %7083 = vmatpush.bf16.msra.mxu0 0
      %7084 = vmatpush.bf16.msra.mxu0 0
      %7085 = vmatpush.bf16.msra.mxu0 %v7031
      %7086 = vmatmul.bf16.gmra.mxu0 %v7019
      %v7087 = vpop.f32.mrf.mxu0
      %v7088 = vadd.f32 0.0, %v7087
      %v7089 = vpop.f32.mrf.mxu0
      %v7090 = vadd.f32 0.0, %v7089
      %7091 = vdwg.mxu0
      %7092 = vmatpush.bf16.msra.mxu0 0
      %7093 = vmatpush.bf16.msra.mxu0 0
      %7094 = vmatpush.bf16.msra.mxu0 0
      %7095 = vmatpush.bf16.msra.mxu0 0
      %7096 = vmatpush.bf16.msra.mxu0 0
      %7097 = vmatpush.bf16.msra.mxu0 0
      %7098 = vmatpush.bf16.msra.mxu0 0
      %7099 = vmatpush.bf16.msra.mxu0 %v7034
      %7100 = vmatmul.bf16.gmra.mxu0 %v7019
      %v7101 = vpop.f32.mrf.mxu0
      %v7102 = vadd.f32 0.0, %v7101
      %v7103 = vpop.f32.mrf.mxu0
      %v7104 = vadd.f32 0.0, %v7103
      %7105 = vdwg.mxu0
      %v7106 = vadd.f32 %v6992, %v7046
      %v7107 = vadd.f32 %v6993, %v7060
      %v7108 = vadd.f32 %v6994, %v7074
      %v7109 = vadd.f32 %v6995, %v7088
      %v7110 = vadd.f32 %v6996, %v7102
      %v7111 = vadd.f32 %v6997, %v7048
      %v7112 = vadd.f32 %v6998, %v7062
      %v7113 = vadd.f32 %v6999, %v7076
      %v7114 = vadd.f32 %v7000, %v7090
      %v7115 = vadd.f32 %v7001, %v7104
      %v7116 = vld [vmem:[%s4] sm:$0xff]
      %v7117 = vld [vmem:[%s4 + $0x8] sm:$0xff]
      %7119 = vset.pattern.permute.xlu0 0
      %7120 = vperm.xlu0 %7119, %v7116
      %v7121 = vpop.permute.xlu0 %7120
      %7124 = vset.pattern.permute.xlu0 0
      %7125 = vperm.xlu0 %7124, %v7117
      %v7126 = vpop.permute.xlu0 %7125
      %v7128 = vadd.f32 %v7106, %v7121
      %v7129 = vadd.f32 %v7107, %v7121
      %v7130 = vadd.f32 %v7108, %v7121
      %v7131 = vadd.f32 %v7109, %v7121
      %v7132 = vadd.f32 %v7110, %v7121
      %v7133 = vadd.f32 %v7111, %v7126
      %v7134 = vadd.f32 %v7112, %v7126
      %v7135 = vadd.f32 %v7113, %v7126
      %v7136 = vadd.f32 %v7114, %v7126
      %v7137 = vadd.f32 %v7115, %v7126
      %v7138 = vmax.f32 %v7128, 0.0
      %v7139 = vmax.f32 %v7129, 0.0
      %v7140 = vmax.f32 %v7130, 0.0
      %v7141 = vmax.f32 %v7131, 0.0
      %v7142 = vmax.f32 %v7132, 0.0
      %v7143 = vmax.f32 %v7133, 0.0
      %v7144 = vmax.f32 %v7134, 0.0
      %v7145 = vmax.f32 %v7135, 0.0
      %v7146 = vmax.f32 %v7136, 0.0
      %v7147 = vmax.f32 %v7137, 0.0
      %7148 = vst [vmem:[#allocation4] sm:$0xff] %v7138
      %7149 = vst [vmem:[#allocation4 + $0x8] sm:$0xff] %v7139
      %7150 = vst [vmem:[#allocation4 + $0x10] sm:$0xff] %v7140
      %7151 = vst [vmem:[#allocation4 + $0x18] sm:$0xff] %v7141
      %vm7152 = vcmask 678912
      %7153 = vst.msk [vmem:[#allocation4 + $0x20] sm:$0xff] %vm7152, %v7142
      %7154 = vst [vmem:[#allocation4 + $0x28] sm:$0xff] %v7143
      %7155 = vst [vmem:[#allocation4 + $0x30] sm:$0xff] %v7144
      %7156 = vst [vmem:[#allocation4 + $0x38] sm:$0xff] %v7145
      %7157 = vst [vmem:[#allocation4 + $0x40] sm:$0xff] %v7146
      %7158 = vst.msk [vmem:[#allocation4 + $0x48] sm:$0xff] %vm7152, %v7147
      %v7159 = vld [vmem:[#allocation4] sm:$0xff]
      %v7160 = vld [vmem:[#allocation4 + $0x8] sm:$0xff]
      %v7161 = vld [vmem:[#allocation4 + $0x10] sm:$0xff]
      %v7162 = vld [vmem:[#allocation4 + $0x18] sm:$0xff]
      %v7163 = vld [vmem:[#allocation4 + $0x20] sm:$0xff]
      %v7164 = vld [vmem:[#allocation4 + $0x28] sm:$0xff]
      %v7165 = vld [vmem:[#allocation4 + $0x30] sm:$0xff]
      %v7166 = vld [vmem:[#allocation4 + $0x38] sm:$0xff]
      %v7167 = vld [vmem:[#allocation4 + $0x40] sm:$0xff]
      %v7168 = vld [vmem:[#allocation4 + $0x48] sm:$0xff]
      %7179 = vrot.lane.b32.xlu0 %v7159, 126
      %v7180 = vpop.permute.xlu0 %7179
      %7181 = vrot.lane.b32.xlu0 %v7160, 126
      %v7182 = vpop.permute.xlu0 %7181
      %7183 = vrot.lane.b32.xlu0 %v7161, 126
      %v7184 = vpop.permute.xlu0 %7183
      %7185 = vrot.lane.b32.xlu0 %v7162, 126
      %v7186 = vpop.permute.xlu0 %7185
      %7187 = vrot.lane.b32.xlu0 %v7163, 126
      %v7188 = vpop.permute.xlu0 %7187
      %7189 = vrot.lane.b32.xlu0 %v7164, 126
      %v7190 = vpop.permute.xlu0 %7189
      %7191 = vrot.lane.b32.xlu0 %v7165, 126
      %v7192 = vpop.permute.xlu0 %7191
      %7193 = vrot.lane.b32.xlu0 %v7166, 126
      %v7194 = vpop.permute.xlu0 %7193
      %7195 = vrot.lane.b32.xlu0 %v7167, 126
      %v7196 = vpop.permute.xlu0 %7195
      %7197 = vrot.lane.b32.xlu0 %v7168, 126
      %v7198 = vpop.permute.xlu0 %7197
      %vm7199 = vcmask 1031168
      %v7200 = vsel %vm7199, %v7180, %v7182
      %v7201 = vsel %vm7199, %v7182, %v7184
      %v7202 = vsel %vm7199, %v7184, %v7186
      %v7203 = vsel %vm7199, %v7186, %v7188
      %v7204 = vsel %vm7199, %v7190, %v7192
      %v7205 = vsel %vm7199, %v7192, %v7194
      %v7206 = vsel %vm7199, %v7194, %v7196
      %v7207 = vsel %vm7199, %v7196, %v7198
      %v7218 = vmax.f32 %v7159, %v7200
      %v7219 = vmax.f32 %v7160, %v7201
      %v7220 = vmax.f32 %v7161, %v7202
      %v7221 = vmax.f32 %v7162, %v7203
      %v7222 = vmax.f32 %v7163, %v7188
      %v7223 = vmax.f32 %v7164, %v7204
      %v7224 = vmax.f32 %v7165, %v7205
      %v7225 = vmax.f32 %v7166, %v7206
      %v7226 = vmax.f32 %v7167, %v7207
      %v7227 = vmax.f32 %v7168, %v7198
      %7238 = vrot.lane.b32.xlu0 %v7218, 64
      %v7239 = vpop.permute.xlu0 %7238
      %7240 = vrot.lane.b32.xlu0 %v7219, 64
      %v7241 = vpop.permute.xlu0 %7240
      %7242 = vrot.lane.b32.xlu0 %v7220, 64
      %v7243 = vpop.permute.xlu0 %7242
      %7244 = vrot.lane.b32.xlu0 %v7221, 64
      %v7245 = vpop.permute.xlu0 %7244
      %7246 = vrot.lane.b32.xlu0 %v7222, 64
      %v7247 = vpop.permute.xlu0 %7246
      %7248 = vrot.lane.b32.xlu0 %v7223, 64
      %v7249 = vpop.permute.xlu0 %7248
      %7250 = vrot.lane.b32.xlu0 %v7224, 64
      %v7251 = vpop.permute.xlu0 %7250
      %7252 = vrot.lane.b32.xlu0 %v7225, 64
      %v7253 = vpop.permute.xlu0 %7252
      %7254 = vrot.lane.b32.xlu0 %v7226, 64
      %v7255 = vpop.permute.xlu0 %7254
      %7256 = vrot.lane.b32.xlu0 %v7227, 64
      %v7257 = vpop.permute.xlu0 %7256
      %vm7258 = vcmask 523264
      %v7259 = vsel %vm7258, %v7239, %v7241
      %v7260 = vsel %vm7258, %v7241, %v7243
      %v7261 = vsel %vm7258, %v7243, %v7245
      %v7262 = vsel %vm7258, %v7245, %v7247
      %v7263 = vsel %vm7258, %v7249, %v7251
      %v7264 = vsel %vm7258, %v7251, %v7253
      %v7265 = vsel %vm7258, %v7253, %v7255
      %v7266 = vsel %vm7258, %v7255, %v7257
      %v7277 = vmax.f32 %v7218, %v7259
      %v7278 = vmax.f32 %v7219, %v7260
      %v7279 = vmax.f32 %v7220, %v7261
      %v7280 = vmax.f32 %v7221, %v7262
      %v7281 = vmax.f32 %v7222, %v7247
      %v7282 = vmax.f32 %v7223, %v7263
      %v7283 = vmax.f32 %v7224, %v7264
      %v7284 = vmax.f32 %v7225, %v7265
      %v7285 = vmax.f32 %v7226, %v7266
      %v7286 = vmax.f32 %v7227, %v7257
      %v7287 = vpack.c.bf16 %v7278, %v7277
      %v7288 = vpack.c.bf16 %v7280, %v7279
      %v7289 = vpack.c.bf16 %v7281, %v7281
      %v7290 = vpack.c.bf16 %v7283, %v7282
      %v7291 = vpack.c.bf16 %v7285, %v7284
      %v7292 = vpack.c.bf16 %v7286, %v7286
      %7293 = vst [vmem:[#allocation5] sm:$0xff] %v7287
      %7294 = vst [vmem:[#allocation5 + $0x8] sm:$0xff] %v7288
      %vm7295 = vcmask 134144
      %7296 = vst.msk [vmem:[#allocation5 + $0x10] sm:$0xf] %vm7295, %v7289
      %7297 = vst [vmem:[#allocation5 + $0x14] sm:$0xff] %v7290
      %7298 = vst [vmem:[#allocation5 + $0x1c] sm:$0xff] %v7291
      %7299 = vst.msk [vmem:[#allocation5 + $0x24] sm:$0xf] %vm7295, %v7292
      %v7300 = vld [vmem:[%s5] sm:$0xf]
      %v7301 = vld [vmem:[%s5 + $0x10] sm:$0xf]
      %v7302 = vld [vmem:[%s5 + $0x20] sm:$0xf]
      %v7303 = vld [vmem:[%s5 + $0x30] sm:$0xf]
      %v7304 = vld [vmem:[%s5 + $0x40] sm:$0xf]
      %v7305 = vld [vmem:[%s5 + $0x50] sm:$0xf]
      %v7306 = vld [vmem:[%s5 + $0x60] sm:$0xf]
      %v7307 = vld [vmem:[%s5 + $0x70] sm:$0xf]
      %v7308 = vld [vmem:[%s5 + $0x80] sm:$0xf]
      %v7309 = vld [vmem:[%s5 + $0x90] sm:$0xf]
      %v7310 = vld [vmem:[%s5 + $0xa0] sm:$0xf]
      %v7311 = vld [vmem:[%s5 + $0xb0] sm:$0xf]
      %v7312 = vld [vmem:[%s5 + $0xc0] sm:$0xf]
      %v7313 = vld [vmem:[%s5 + $0xd0] sm:$0xf]
      %v7314 = vld [vmem:[%s5 + $0xe0] sm:$0xf]
      %v7315 = vld [vmem:[#allocation5] sm:$0xf]
      %v7316 = vld [vmem:[#allocation5 + $0x14] sm:$0xf]
      %v7332 = vunpack.c.l.b16 %v7300
      %v7333 = vunpack.c.l.b16 %v7301
      %v7334 = vunpack.c.l.b16 %v7302
      %v7335 = vunpack.c.l.b16 %v7303
      %v7336 = vunpack.c.l.b16 %v7304
      %v7337 = vunpack.c.l.b16 %v7305
      %v7338 = vunpack.c.l.b16 %v7306
      %v7339 = vunpack.c.l.b16 %v7307
      %v7340 = vunpack.c.l.b16 %v7308
      %v7341 = vunpack.c.l.b16 %v7309
      %v7342 = vunpack.c.l.b16 %v7310
      %v7343 = vunpack.c.l.b16 %v7311
      %v7344 = vunpack.c.l.b16 %v7312
      %v7345 = vunpack.c.l.b16 %v7313
      %v7346 = vunpack.c.l.b16 %v7314
      %v7347 = vpack.c.b16 %v7333, %v7332
      %v7348 = vpack.c.b16 %v7335, %v7334
      %v7349 = vpack.c.b16 %v7337, %v7336
      %v7350 = vpack.c.b16 %v7339, %v7338
      %v7351 = vpack.c.b16 %v7341, %v7340
      %v7352 = vpack.c.b16 %v7343, %v7342
      %v7353 = vpack.c.b16 %v7345, %v7344
      %v7354 = vpack.c.b16 %v7346, %v7346
      %7355 = vrot.lane.b32.xlu0 %v7347, 112
      %v7356 = vpop.permute.xlu0 %7355
      %7357 = vrot.lane.b32.xlu0 %v7348, 112
      %v7358 = vpop.permute.xlu0 %7357
      %7359 = vrot.lane.b32.xlu0 %v7349, 112
      %v7360 = vpop.permute.xlu0 %7359
      %7361 = vrot.lane.b32.xlu0 %v7350, 112
      %v7362 = vpop.permute.xlu0 %7361
      %7363 = vrot.lane.b32.xlu0 %v7351, 112
      %v7364 = vpop.permute.xlu0 %7363
      %7365 = vrot.lane.b32.xlu0 %v7352, 112
      %v7366 = vpop.permute.xlu0 %7365
      %7367 = vrot.lane.b32.xlu0 %v7353, 112
      %v7368 = vpop.permute.xlu0 %7367
      %7369 = vrot.lane.b32.xlu0 %v7354, 112
      %v7370 = vpop.permute.xlu0 %7369
      %v7373 = vunpack.c.l.b16 %v7315
      %v7374 = vunpack.c.l.b16 %v7316
      %v7375 = vpack.c.b16 %v7374, %v7373
      %7376 = vrot.lane.b32.xlu0 %v7375, 124
      %v7377 = vpop.permute.xlu0 %7376
      %vm7379 = vcmask 130048
      %v7381 = vsel %vm7379, %v7356, 0
      %v7384 = vsel %vm7379, %v7358, 0
      %v7387 = vsel %vm7379, %v7360, 0
      %v7390 = vsel %vm7379, %v7362, 0
      %v7393 = vsel %vm7379, %v7364, 0
      %v7396 = vsel %vm7379, %v7366, 0
      %v7399 = vsel %vm7379, %v7368, 0
      %v7402 = vsel %vm7379, %v7370, 0
      %7404 = vmatpush.bf16.msra.mxu0 0
      %7405 = vmatpush.bf16.msra.mxu0 0
      %7406 = vmatpush.bf16.msra.mxu0 0
      %7407 = vmatpush.bf16.msra.mxu0 0
      %7408 = vmatpush.bf16.msra.mxu0 0
      %7409 = vmatpush.bf16.msra.mxu0 0
      %7410 = vmatpush.bf16.msra.mxu0 0
      %7411 = vmatpush.bf16.msra.mxu0 %v7377
      %7412 = vmatmul.bf16.gmra.mxu0 %v7381
      %v7413 = vpop.f32.mrf.mxu0
      %v7414 = vadd.f32 0.0, %v7413
      %v7415 = vpop.f32.mrf.mxu0
      %v7416 = vadd.f32 0.0, %v7415
      %7417 = vmatmul.bf16.gmra.mxu0 %v7384
      %v7418 = vpop.f32.mrf.mxu0
      %v7419 = vadd.f32 0.0, %v7418
      %v7420 = vpop.f32.mrf.mxu0
      %v7421 = vadd.f32 0.0, %v7420
      %7422 = vmatmul.bf16.gmra.mxu0 %v7387
      %v7423 = vpop.f32.mrf.mxu0
      %v7424 = vadd.f32 0.0, %v7423
      %v7425 = vpop.f32.mrf.mxu0
      %v7426 = vadd.f32 0.0, %v7425
      %7427 = vmatmul.bf16.gmra.mxu0 %v7390
      %v7428 = vpop.f32.mrf.mxu0
      %v7429 = vadd.f32 0.0, %v7428
      %v7430 = vpop.f32.mrf.mxu0
      %v7431 = vadd.f32 0.0, %v7430
      %7432 = vmatmul.bf16.gmra.mxu0 %v7393
      %v7433 = vpop.f32.mrf.mxu0
      %v7434 = vadd.f32 0.0, %v7433
      %v7435 = vpop.f32.mrf.mxu0
      %v7436 = vadd.f32 0.0, %v7435
      %7437 = vmatmul.bf16.gmra.mxu0 %v7396
      %v7438 = vpop.f32.mrf.mxu0
      %v7439 = vadd.f32 0.0, %v7438
      %v7440 = vpop.f32.mrf.mxu0
      %v7441 = vadd.f32 0.0, %v7440
      %7442 = vmatmul.bf16.gmra.mxu0 %v7399
      %v7443 = vpop.f32.mrf.mxu0
      %v7444 = vadd.f32 0.0, %v7443
      %v7445 = vpop.f32.mrf.mxu0
      %v7446 = vadd.f32 0.0, %v7445
      %7447 = vmatmul.bf16.gmra.mxu0 %v7402
      %v7448 = vpop.f32.mrf.mxu0
      %v7449 = vadd.f32 0.0, %v7448
      %v7450 = vpop.f32.mrf.mxu0
      %7451 = vdwg.mxu0
      %v7454 = vsel %vm7379, %v7347, 0
      %v7457 = vsel %vm7379, %v7348, 0
      %v7460 = vsel %vm7379, %v7349, 0
      %v7463 = vsel %vm7379, %v7350, 0
      %v7466 = vsel %vm7379, %v7351, 0
      %v7469 = vsel %vm7379, %v7352, 0
      %v7472 = vsel %vm7379, %v7353, 0
      %v7475 = vsel %vm7379, %v7354, 0
      %7477 = vmatpush.bf16.msra.mxu0 0
      %7478 = vmatpush.bf16.msra.mxu0 0
      %7479 = vmatpush.bf16.msra.mxu0 0
      %7480 = vmatpush.bf16.msra.mxu0 0
      %7481 = vmatpush.bf16.msra.mxu0 0
      %7482 = vmatpush.bf16.msra.mxu0 0
      %7483 = vmatpush.bf16.msra.mxu0 0
      %7484 = vmatpush.bf16.msra.mxu0 %v7375
      %7485 = vmatmul.bf16.gmra.mxu0 %v7454
      %v7486 = vpop.f32.mrf.mxu0
      %v7487 = vadd.f32 %v7414, %v7486
      %v7488 = vpop.f32.mrf.mxu0
      %v7489 = vadd.f32 %v7416, %v7488
      %7490 = vmatmul.bf16.gmra.mxu0 %v7457
      %v7491 = vpop.f32.mrf.mxu0
      %v7492 = vadd.f32 %v7419, %v7491
      %v7493 = vpop.f32.mrf.mxu0
      %v7494 = vadd.f32 %v7421, %v7493
      %7495 = vmatmul.bf16.gmra.mxu0 %v7460
      %v7496 = vpop.f32.mrf.mxu0
      %v7497 = vadd.f32 %v7424, %v7496
      %v7498 = vpop.f32.mrf.mxu0
      %v7499 = vadd.f32 %v7426, %v7498
      %7500 = vmatmul.bf16.gmra.mxu0 %v7463
      %v7501 = vpop.f32.mrf.mxu0
      %v7502 = vadd.f32 %v7429, %v7501
      %v7503 = vpop.f32.mrf.mxu0
      %v7504 = vadd.f32 %v7431, %v7503
      %7505 = vmatmul.bf16.gmra.mxu0 %v7466
      %v7506 = vpop.f32.mrf.mxu0
      %v7507 = vadd.f32 %v7434, %v7506
      %v7508 = vpop.f32.mrf.mxu0
      %v7509 = vadd.f32 %v7436, %v7508
      %7510 = vmatmul.bf16.gmra.mxu0 %v7469
      %v7511 = vpop.f32.mrf.mxu0
      %v7512 = vadd.f32 %v7439, %v7511
      %v7513 = vpop.f32.mrf.mxu0
      %v7514 = vadd.f32 %v7441, %v7513
      %7515 = vmatmul.bf16.gmra.mxu0 %v7472
      %v7516 = vpop.f32.mrf.mxu0
      %v7517 = vadd.f32 %v7444, %v7516
      %v7518 = vpop.f32.mrf.mxu0
      %v7519 = vadd.f32 %v7446, %v7518
      %7520 = vmatmul.bf16.gmra.mxu0 %v7475
      %v7521 = vpop.f32.mrf.mxu0
      %v7522 = vadd.f32 %v7449, %v7521
      %v7523 = vpop.f32.mrf.mxu0
      %7524 = vdwg.mxu0
      %7525 = vrot.lane.b32.xlu0 %v7347, 96
      %v7526 = vpop.permute.xlu0 %7525
      %7527 = vrot.lane.b32.xlu0 %v7348, 96
      %v7528 = vpop.permute.xlu0 %7527
      %7529 = vrot.lane.b32.xlu0 %v7349, 96
      %v7530 = vpop.permute.xlu0 %7529
      %7531 = vrot.lane.b32.xlu0 %v7350, 96
      %v7532 = vpop.permute.xlu0 %7531
      %7533 = vrot.lane.b32.xlu0 %v7351, 96
      %v7534 = vpop.permute.xlu0 %7533
      %7535 = vrot.lane.b32.xlu0 %v7352, 96
      %v7536 = vpop.permute.xlu0 %7535
      %7537 = vrot.lane.b32.xlu0 %v7353, 96
      %v7538 = vpop.permute.xlu0 %7537
      %7539 = vrot.lane.b32.xlu0 %v7354, 96
      %v7540 = vpop.permute.xlu0 %7539
      %7541 = vrot.lane.b32.xlu0 %v7375, 120
      %v7542 = vpop.permute.xlu0 %7541
      %v7545 = vsel %vm7379, %v7526, 0
      %v7548 = vsel %vm7379, %v7528, 0
      %v7551 = vsel %vm7379, %v7530, 0
      %v7554 = vsel %vm7379, %v7532, 0
      %v7557 = vsel %vm7379, %v7534, 0
      %v7560 = vsel %vm7379, %v7536, 0
      %v7563 = vsel %vm7379, %v7538, 0
      %v7566 = vsel %vm7379, %v7540, 0
      %7568 = vmatpush.bf16.msra.mxu0 0
      %7569 = vmatpush.bf16.msra.mxu0 0
      %7570 = vmatpush.bf16.msra.mxu0 0
      %7571 = vmatpush.bf16.msra.mxu0 0
      %7572 = vmatpush.bf16.msra.mxu0 0
      %7573 = vmatpush.bf16.msra.mxu0 0
      %7574 = vmatpush.bf16.msra.mxu0 0
      %7575 = vmatpush.bf16.msra.mxu0 %v7542
      %7576 = vmatmul.bf16.gmra.mxu0 %v7545
      %v7577 = vpop.f32.mrf.mxu0
      %v7578 = vadd.f32 0.0, %v7577
      %v7579 = vpop.f32.mrf.mxu0
      %v7580 = vadd.f32 0.0, %v7579
      %7581 = vmatmul.bf16.gmra.mxu0 %v7548
      %v7582 = vpop.f32.mrf.mxu0
      %v7583 = vadd.f32 0.0, %v7582
      %v7584 = vpop.f32.mrf.mxu0
      %v7585 = vadd.f32 0.0, %v7584
      %7586 = vmatmul.bf16.gmra.mxu0 %v7551
      %v7587 = vpop.f32.mrf.mxu0
      %v7588 = vadd.f32 0.0, %v7587
      %v7589 = vpop.f32.mrf.mxu0
      %v7590 = vadd.f32 0.0, %v7589
      %7591 = vmatmul.bf16.gmra.mxu0 %v7554
      %v7592 = vpop.f32.mrf.mxu0
      %v7593 = vadd.f32 0.0, %v7592
      %v7594 = vpop.f32.mrf.mxu0
      %v7595 = vadd.f32 0.0, %v7594
      %7596 = vmatmul.bf16.gmra.mxu0 %v7557
      %v7597 = vpop.f32.mrf.mxu0
      %v7598 = vadd.f32 0.0, %v7597
      %v7599 = vpop.f32.mrf.mxu0
      %v7600 = vadd.f32 0.0, %v7599
      %7601 = vmatmul.bf16.gmra.mxu0 %v7560
      %v7602 = vpop.f32.mrf.mxu0
      %v7603 = vadd.f32 0.0, %v7602
      %v7604 = vpop.f32.mrf.mxu0
      %v7605 = vadd.f32 0.0, %v7604
      %7606 = vmatmul.bf16.gmra.mxu0 %v7563
      %v7607 = vpop.f32.mrf.mxu0
      %v7608 = vadd.f32 0.0, %v7607
      %v7609 = vpop.f32.mrf.mxu0
      %v7610 = vadd.f32 0.0, %v7609
      %7611 = vmatmul.bf16.gmra.mxu0 %v7566
      %v7612 = vpop.f32.mrf.mxu0
      %v7613 = vadd.f32 0.0, %v7612
      %v7614 = vpop.f32.mrf.mxu0
      %7615 = vdwg.mxu0
      %v7616 = vadd.f32 %v7487, %v7578
      %v7617 = vadd.f32 %v7489, %v7580
      %v7618 = vadd.f32 %v7492, %v7583
      %v7619 = vadd.f32 %v7494, %v7585
      %v7620 = vadd.f32 %v7497, %v7588
      %v7621 = vadd.f32 %v7499, %v7590
      %v7622 = vadd.f32 %v7502, %v7593
      %v7623 = vadd.f32 %v7504, %v7595
      %v7624 = vadd.f32 %v7507, %v7598
      %v7625 = vadd.f32 %v7509, %v7600
      %v7626 = vadd.f32 %v7512, %v7603
      %v7627 = vadd.f32 %v7514, %v7605
      %v7628 = vadd.f32 %v7517, %v7608
      %v7629 = vadd.f32 %v7519, %v7610
      %v7630 = vadd.f32 %v7522, %v7613
      %7631 = vrot.lane.b32.xlu0 %v7347, 80
      %v7632 = vpop.permute.xlu0 %7631
      %7633 = vrot.lane.b32.xlu0 %v7348, 80
      %v7634 = vpop.permute.xlu0 %7633
      %7635 = vrot.lane.b32.xlu0 %v7349, 80
      %v7636 = vpop.permute.xlu0 %7635
      %7637 = vrot.lane.b32.xlu0 %v7350, 80
      %v7638 = vpop.permute.xlu0 %7637
      %7639 = vrot.lane.b32.xlu0 %v7351, 80
      %v7640 = vpop.permute.xlu0 %7639
      %7641 = vrot.lane.b32.xlu0 %v7352, 80
      %v7642 = vpop.permute.xlu0 %7641
      %7643 = vrot.lane.b32.xlu0 %v7353, 80
      %v7644 = vpop.permute.xlu0 %7643
      %7645 = vrot.lane.b32.xlu0 %v7354, 80
      %v7646 = vpop.permute.xlu0 %7645
      %7647 = vrot.lane.b32.xlu0 %v7375, 116
      %v7648 = vpop.permute.xlu0 %7647
      %v7651 = vsel %vm7379, %v7632, 0
      %v7654 = vsel %vm7379, %v7634, 0
      %v7657 = vsel %vm7379, %v7636, 0
      %v7660 = vsel %vm7379, %v7638, 0
      %v7663 = vsel %vm7379, %v7640, 0
      %v7666 = vsel %vm7379, %v7642, 0
      %v7669 = vsel %vm7379, %v7644, 0
      %v7672 = vsel %vm7379, %v7646, 0
      %7674 = vmatpush.bf16.msra.mxu0 0
      %7675 = vmatpush.bf16.msra.mxu0 0
      %7676 = vmatpush.bf16.msra.mxu0 0
      %7677 = vmatpush.bf16.msra.mxu0 0
      %7678 = vmatpush.bf16.msra.mxu0 0
      %7679 = vmatpush.bf16.msra.mxu0 0
      %7680 = vmatpush.bf16.msra.mxu0 0
      %7681 = vmatpush.bf16.msra.mxu0 %v7648
      %7682 = vmatmul.bf16.gmra.mxu0 %v7651
      %v7683 = vpop.f32.mrf.mxu0
      %v7684 = vadd.f32 0.0, %v7683
      %v7685 = vpop.f32.mrf.mxu0
      %v7686 = vadd.f32 0.0, %v7685
      %7687 = vmatmul.bf16.gmra.mxu0 %v7654
      %v7688 = vpop.f32.mrf.mxu0
      %v7689 = vadd.f32 0.0, %v7688
      %v7690 = vpop.f32.mrf.mxu0
      %v7691 = vadd.f32 0.0, %v7690
      %7692 = vmatmul.bf16.gmra.mxu0 %v7657
      %v7693 = vpop.f32.mrf.mxu0
      %v7694 = vadd.f32 0.0, %v7693
      %v7695 = vpop.f32.mrf.mxu0
      %v7696 = vadd.f32 0.0, %v7695
      %7697 = vmatmul.bf16.gmra.mxu0 %v7660
      %v7698 = vpop.f32.mrf.mxu0
      %v7699 = vadd.f32 0.0, %v7698
      %v7700 = vpop.f32.mrf.mxu0
      %v7701 = vadd.f32 0.0, %v7700
      %7702 = vmatmul.bf16.gmra.mxu0 %v7663
      %v7703 = vpop.f32.mrf.mxu0
      %v7704 = vadd.f32 0.0, %v7703
      %v7705 = vpop.f32.mrf.mxu0
      %v7706 = vadd.f32 0.0, %v7705
      %7707 = vmatmul.bf16.gmra.mxu0 %v7666
      %v7708 = vpop.f32.mrf.mxu0
      %v7709 = vadd.f32 0.0, %v7708
      %v7710 = vpop.f32.mrf.mxu0
      %v7711 = vadd.f32 0.0, %v7710
      %7712 = vmatmul.bf16.gmra.mxu0 %v7669
      %v7713 = vpop.f32.mrf.mxu0
      %v7714 = vadd.f32 0.0, %v7713
      %v7715 = vpop.f32.mrf.mxu0
      %v7716 = vadd.f32 0.0, %v7715
      %7717 = vmatmul.bf16.gmra.mxu0 %v7672
      %v7718 = vpop.f32.mrf.mxu0
      %v7719 = vadd.f32 0.0, %v7718
      %v7720 = vpop.f32.mrf.mxu0
      %7721 = vdwg.mxu0
      %v7722 = vadd.f32 %v7616, %v7684
      %v7723 = vadd.f32 %v7617, %v7686
      %v7724 = vadd.f32 %v7618, %v7689
      %v7725 = vadd.f32 %v7619, %v7691
      %v7726 = vadd.f32 %v7620, %v7694
      %v7727 = vadd.f32 %v7621, %v7696
      %v7728 = vadd.f32 %v7622, %v7699
      %v7729 = vadd.f32 %v7623, %v7701
      %v7730 = vadd.f32 %v7624, %v7704
      %v7731 = vadd.f32 %v7625, %v7706
      %v7732 = vadd.f32 %v7626, %v7709
      %v7733 = vadd.f32 %v7627, %v7711
      %v7734 = vadd.f32 %v7628, %v7714
      %v7735 = vadd.f32 %v7629, %v7716
      %v7736 = vadd.f32 %v7630, %v7719
      %7737 = vrot.lane.b32.xlu0 %v7347, 64
      %v7738 = vpop.permute.xlu0 %7737
      %7739 = vrot.lane.b32.xlu0 %v7348, 64
      %v7740 = vpop.permute.xlu0 %7739
      %7741 = vrot.lane.b32.xlu0 %v7349, 64
      %v7742 = vpop.permute.xlu0 %7741
      %7743 = vrot.lane.b32.xlu0 %v7350, 64
      %v7744 = vpop.permute.xlu0 %7743
      %7745 = vrot.lane.b32.xlu0 %v7351, 64
      %v7746 = vpop.permute.xlu0 %7745
      %7747 = vrot.lane.b32.xlu0 %v7352, 64
      %v7748 = vpop.permute.xlu0 %7747
      %7749 = vrot.lane.b32.xlu0 %v7353, 64
      %v7750 = vpop.permute.xlu0 %7749
      %7751 = vrot.lane.b32.xlu0 %v7354, 64
      %v7752 = vpop.permute.xlu0 %7751
      %7753 = vrot.lane.b32.xlu0 %v7375, 112
      %v7754 = vpop.permute.xlu0 %7753
      %v7757 = vsel %vm7379, %v7738, 0
      %v7760 = vsel %vm7379, %v7740, 0
      %v7763 = vsel %vm7379, %v7742, 0
      %v7766 = vsel %vm7379, %v7744, 0
      %v7769 = vsel %vm7379, %v7746, 0
      %v7772 = vsel %vm7379, %v7748, 0
      %v7775 = vsel %vm7379, %v7750, 0
      %v7778 = vsel %vm7379, %v7752, 0
      %7780 = vmatpush.bf16.msra.mxu0 0
      %7781 = vmatpush.bf16.msra.mxu0 0
      %7782 = vmatpush.bf16.msra.mxu0 0
      %7783 = vmatpush.bf16.msra.mxu0 0
      %7784 = vmatpush.bf16.msra.mxu0 0
      %7785 = vmatpush.bf16.msra.mxu0 0
      %7786 = vmatpush.bf16.msra.mxu0 0
      %7787 = vmatpush.bf16.msra.mxu0 %v7754
      %7788 = vmatmul.bf16.gmra.mxu0 %v7757
      %v7789 = vpop.f32.mrf.mxu0
      %v7790 = vadd.f32 0.0, %v7789
      %v7791 = vpop.f32.mrf.mxu0
      %v7792 = vadd.f32 0.0, %v7791
      %7793 = vmatmul.bf16.gmra.mxu0 %v7760
      %v7794 = vpop.f32.mrf.mxu0
      %v7795 = vadd.f32 0.0, %v7794
      %v7796 = vpop.f32.mrf.mxu0
      %v7797 = vadd.f32 0.0, %v7796
      %7798 = vmatmul.bf16.gmra.mxu0 %v7763
      %v7799 = vpop.f32.mrf.mxu0
      %v7800 = vadd.f32 0.0, %v7799
      %v7801 = vpop.f32.mrf.mxu0
      %v7802 = vadd.f32 0.0, %v7801
      %7803 = vmatmul.bf16.gmra.mxu0 %v7766
      %v7804 = vpop.f32.mrf.mxu0
      %v7805 = vadd.f32 0.0, %v7804
      %v7806 = vpop.f32.mrf.mxu0
      %v7807 = vadd.f32 0.0, %v7806
      %7808 = vmatmul.bf16.gmra.mxu0 %v7769
      %v7809 = vpop.f32.mrf.mxu0
      %v7810 = vadd.f32 0.0, %v7809
      %v7811 = vpop.f32.mrf.mxu0
      %v7812 = vadd.f32 0.0, %v7811
      %7813 = vmatmul.bf16.gmra.mxu0 %v7772
      %v7814 = vpop.f32.mrf.mxu0
      %v7815 = vadd.f32 0.0, %v7814
      %v7816 = vpop.f32.mrf.mxu0
      %v7817 = vadd.f32 0.0, %v7816
      %7818 = vmatmul.bf16.gmra.mxu0 %v7775
      %v7819 = vpop.f32.mrf.mxu0
      %v7820 = vadd.f32 0.0, %v7819
      %v7821 = vpop.f32.mrf.mxu0
      %v7822 = vadd.f32 0.0, %v7821
      %7823 = vmatmul.bf16.gmra.mxu0 %v7778
      %v7824 = vpop.f32.mrf.mxu0
      %v7825 = vadd.f32 0.0, %v7824
      %v7826 = vpop.f32.mrf.mxu0
      %7827 = vdwg.mxu0
      %v7828 = vadd.f32 %v7722, %v7790
      %v7829 = vadd.f32 %v7723, %v7792
      %v7830 = vadd.f32 %v7724, %v7795
      %v7831 = vadd.f32 %v7725, %v7797
      %v7832 = vadd.f32 %v7726, %v7800
      %v7833 = vadd.f32 %v7727, %v7802
      %v7834 = vadd.f32 %v7728, %v7805
      %v7835 = vadd.f32 %v7729, %v7807
      %v7836 = vadd.f32 %v7730, %v7810
      %v7837 = vadd.f32 %v7731, %v7812
      %v7838 = vadd.f32 %v7732, %v7815
      %v7839 = vadd.f32 %v7733, %v7817
      %v7840 = vadd.f32 %v7734, %v7820
      %v7841 = vadd.f32 %v7735, %v7822
      %v7842 = vadd.f32 %v7736, %v7825
      %v7843 = vld [vmem:[#allocation5 + $0x4] sm:$0xf]
      %v7844 = vld [vmem:[#allocation5 + $0x18] sm:$0xf]
      %7845 = vrot.lane.b32.xlu0 %v7347, 48
      %v7846 = vpop.permute.xlu0 %7845
      %7847 = vrot.lane.b32.xlu0 %v7348, 48
      %v7848 = vpop.permute.xlu0 %7847
      %7849 = vrot.lane.b32.xlu0 %v7349, 48
      %v7850 = vpop.permute.xlu0 %7849
      %7851 = vrot.lane.b32.xlu0 %v7350, 48
      %v7852 = vpop.permute.xlu0 %7851
      %7853 = vrot.lane.b32.xlu0 %v7351, 48
      %v7854 = vpop.permute.xlu0 %7853
      %7855 = vrot.lane.b32.xlu0 %v7352, 48
      %v7856 = vpop.permute.xlu0 %7855
      %7857 = vrot.lane.b32.xlu0 %v7353, 48
      %v7858 = vpop.permute.xlu0 %7857
      %7859 = vrot.lane.b32.xlu0 %v7354, 48
      %v7860 = vpop.permute.xlu0 %7859
      %v7863 = vunpack.c.l.b16 %v7843
      %v7864 = vunpack.c.l.b16 %v7844
      %v7865 = vpack.c.b16 %v7864, %v7863
      %v7868 = vsel %vm7379, %v7846, 0
      %v7871 = vsel %vm7379, %v7848, 0
      %v7874 = vsel %vm7379, %v7850, 0
      %v7877 = vsel %vm7379, %v7852, 0
      %v7880 = vsel %vm7379, %v7854, 0
      %v7883 = vsel %vm7379, %v7856, 0
      %v7886 = vsel %vm7379, %v7858, 0
      %v7889 = vsel %vm7379, %v7860, 0
      %7891 = vmatpush.bf16.msra.mxu0 0
      %7892 = vmatpush.bf16.msra.mxu0 0
      %7893 = vmatpush.bf16.msra.mxu0 0
      %7894 = vmatpush.bf16.msra.mxu0 0
      %7895 = vmatpush.bf16.msra.mxu0 0
      %7896 = vmatpush.bf16.msra.mxu0 0
      %7897 = vmatpush.bf16.msra.mxu0 0
      %7898 = vmatpush.bf16.msra.mxu0 %v7865
      %7899 = vmatmul.bf16.gmra.mxu0 %v7868
      %v7900 = vpop.f32.mrf.mxu0
      %v7901 = vadd.f32 0.0, %v7900
      %v7902 = vpop.f32.mrf.mxu0
      %v7903 = vadd.f32 0.0, %v7902
      %7904 = vmatmul.bf16.gmra.mxu0 %v7871
      %v7905 = vpop.f32.mrf.mxu0
      %v7906 = vadd.f32 0.0, %v7905
      %v7907 = vpop.f32.mrf.mxu0
      %v7908 = vadd.f32 0.0, %v7907
      %7909 = vmatmul.bf16.gmra.mxu0 %v7874
      %v7910 = vpop.f32.mrf.mxu0
      %v7911 = vadd.f32 0.0, %v7910
      %v7912 = vpop.f32.mrf.mxu0
      %v7913 = vadd.f32 0.0, %v7912
      %7914 = vmatmul.bf16.gmra.mxu0 %v7877
      %v7915 = vpop.f32.mrf.mxu0
      %v7916 = vadd.f32 0.0, %v7915
      %v7917 = vpop.f32.mrf.mxu0
      %v7918 = vadd.f32 0.0, %v7917
      %7919 = vmatmul.bf16.gmra.mxu0 %v7880
      %v7920 = vpop.f32.mrf.mxu0
      %v7921 = vadd.f32 0.0, %v7920
      %v7922 = vpop.f32.mrf.mxu0
      %v7923 = vadd.f32 0.0, %v7922
      %7924 = vmatmul.bf16.gmra.mxu0 %v7883
      %v7925 = vpop.f32.mrf.mxu0
      %v7926 = vadd.f32 0.0, %v7925
      %v7927 = vpop.f32.mrf.mxu0
      %v7928 = vadd.f32 0.0, %v7927
      %7929 = vmatmul.bf16.gmra.mxu0 %v7886
      %v7930 = vpop.f32.mrf.mxu0
      %v7931 = vadd.f32 0.0, %v7930
      %v7932 = vpop.f32.mrf.mxu0
      %v7933 = vadd.f32 0.0, %v7932
      %7934 = vmatmul.bf16.gmra.mxu0 %v7889
      %v7935 = vpop.f32.mrf.mxu0
      %v7936 = vadd.f32 0.0, %v7935
      %v7937 = vpop.f32.mrf.mxu0
      %7938 = vdwg.mxu0
      %v7939 = vadd.f32 %v7828, %v7901
      %v7940 = vadd.f32 %v7829, %v7903
      %v7941 = vadd.f32 %v7830, %v7906
      %v7942 = vadd.f32 %v7831, %v7908
      %v7943 = vadd.f32 %v7832, %v7911
      %v7944 = vadd.f32 %v7833, %v7913
      %v7945 = vadd.f32 %v7834, %v7916
      %v7946 = vadd.f32 %v7835, %v7918
      %v7947 = vadd.f32 %v7836, %v7921
      %v7948 = vadd.f32 %v7837, %v7923
      %v7949 = vadd.f32 %v7838, %v7926
      %v7950 = vadd.f32 %v7839, %v7928
      %v7951 = vadd.f32 %v7840, %v7931
      %v7952 = vadd.f32 %v7841, %v7933
      %v7953 = vadd.f32 %v7842, %v7936
      %7954 = vrot.lane.b32.xlu0 %v7347, 32
      %v7955 = vpop.permute.xlu0 %7954
      %7956 = vrot.lane.b32.xlu0 %v7348, 32
      %v7957 = vpop.permute.xlu0 %7956
      %7958 = vrot.lane.b32.xlu0 %v7349, 32
      %v7959 = vpop.permute.xlu0 %7958
      %7960 = vrot.lane.b32.xlu0 %v7350, 32
      %v7961 = vpop.permute.xlu0 %7960
      %7962 = vrot.lane.b32.xlu0 %v7351, 32
      %v7963 = vpop.permute.xlu0 %7962
      %7964 = vrot.lane.b32.xlu0 %v7352, 32
      %v7965 = vpop.permute.xlu0 %7964
      %7966 = vrot.lane.b32.xlu0 %v7353, 32
      %v7967 = vpop.permute.xlu0 %7966
      %7968 = vrot.lane.b32.xlu0 %v7354, 32
      %v7969 = vpop.permute.xlu0 %7968
      %7970 = vrot.lane.b32.xlu0 %v7865, 124
      %v7971 = vpop.permute.xlu0 %7970
      %v7974 = vsel %vm7379, %v7955, 0
      %v7977 = vsel %vm7379, %v7957, 0
      %v7980 = vsel %vm7379, %v7959, 0
      %v7983 = vsel %vm7379, %v7961, 0
      %v7986 = vsel %vm7379, %v7963, 0
      %v7989 = vsel %vm7379, %v7965, 0
      %v7992 = vsel %vm7379, %v7967, 0
      %v7995 = vsel %vm7379, %v7969, 0
      %7997 = vmatpush.bf16.msra.mxu0 0
      %7998 = vmatpush.bf16.msra.mxu0 0
      %7999 = vmatpush.bf16.msra.mxu0 0
      %8000 = vmatpush.bf16.msra.mxu0 0
      %8001 = vmatpush.bf16.msra.mxu0 0
      %8002 = vmatpush.bf16.msra.mxu0 0
      %8003 = vmatpush.bf16.msra.mxu0 0
      %8004 = vmatpush.bf16.msra.mxu0 %v7971
      %8005 = vmatmul.bf16.gmra.mxu0 %v7974
      %v8006 = vpop.f32.mrf.mxu0
      %v8007 = vadd.f32 0.0, %v8006
      %v8008 = vpop.f32.mrf.mxu0
      %v8009 = vadd.f32 0.0, %v8008
      %8010 = vmatmul.bf16.gmra.mxu0 %v7977
      %v8011 = vpop.f32.mrf.mxu0
      %v8012 = vadd.f32 0.0, %v8011
      %v8013 = vpop.f32.mrf.mxu0
      %v8014 = vadd.f32 0.0, %v8013
      %8015 = vmatmul.bf16.gmra.mxu0 %v7980
      %v8016 = vpop.f32.mrf.mxu0
      %v8017 = vadd.f32 0.0, %v8016
      %v8018 = vpop.f32.mrf.mxu0
      %v8019 = vadd.f32 0.0, %v8018
      %8020 = vmatmul.bf16.gmra.mxu0 %v7983
      %v8021 = vpop.f32.mrf.mxu0
      %v8022 = vadd.f32 0.0, %v8021
      %v8023 = vpop.f32.mrf.mxu0
      %v8024 = vadd.f32 0.0, %v8023
      %8025 = vmatmul.bf16.gmra.mxu0 %v7986
      %v8026 = vpop.f32.mrf.mxu0
      %v8027 = vadd.f32 0.0, %v8026
      %v8028 = vpop.f32.mrf.mxu0
      %v8029 = vadd.f32 0.0, %v8028
      %8030 = vmatmul.bf16.gmra.mxu0 %v7989
      %v8031 = vpop.f32.mrf.mxu0
      %v8032 = vadd.f32 0.0, %v8031
      %v8033 = vpop.f32.mrf.mxu0
      %v8034 = vadd.f32 0.0, %v8033
      %8035 = vmatmul.bf16.gmra.mxu0 %v7992
      %v8036 = vpop.f32.mrf.mxu0
      %v8037 = vadd.f32 0.0, %v8036
      %v8038 = vpop.f32.mrf.mxu0
      %v8039 = vadd.f32 0.0, %v8038
      %8040 = vmatmul.bf16.gmra.mxu0 %v7995
      %v8041 = vpop.f32.mrf.mxu0
      %v8042 = vadd.f32 0.0, %v8041
      %v8043 = vpop.f32.mrf.mxu0
      %8044 = vdwg.mxu0
      %v8045 = vadd.f32 %v7939, %v8007
      %v8046 = vadd.f32 %v7940, %v8009
      %v8047 = vadd.f32 %v7941, %v8012
      %v8048 = vadd.f32 %v7942, %v8014
      %v8049 = vadd.f32 %v7943, %v8017
      %v8050 = vadd.f32 %v7944, %v8019
      %v8051 = vadd.f32 %v7945, %v8022
      %v8052 = vadd.f32 %v7946, %v8024
      %v8053 = vadd.f32 %v7947, %v8027
      %v8054 = vadd.f32 %v7948, %v8029
      %v8055 = vadd.f32 %v7949, %v8032
      %v8056 = vadd.f32 %v7950, %v8034
      %v8057 = vadd.f32 %v7951, %v8037
      %v8058 = vadd.f32 %v7952, %v8039
      %v8059 = vadd.f32 %v7953, %v8042
      %8060 = vrot.lane.b32.xlu0 %v7347, 16
      %v8061 = vpop.permute.xlu0 %8060
      %8062 = vrot.lane.b32.xlu0 %v7348, 16
      %v8063 = vpop.permute.xlu0 %8062
      %8064 = vrot.lane.b32.xlu0 %v7349, 16
      %v8065 = vpop.permute.xlu0 %8064
      %8066 = vrot.lane.b32.xlu0 %v7350, 16
      %v8067 = vpop.permute.xlu0 %8066
      %8068 = vrot.lane.b32.xlu0 %v7351, 16
      %v8069 = vpop.permute.xlu0 %8068
      %8070 = vrot.lane.b32.xlu0 %v7352, 16
      %v8071 = vpop.permute.xlu0 %8070
      %8072 = vrot.lane.b32.xlu0 %v7353, 16
      %v8073 = vpop.permute.xlu0 %8072
      %8074 = vrot.lane.b32.xlu0 %v7354, 16
      %v8075 = vpop.permute.xlu0 %8074
      %8076 = vrot.lane.b32.xlu0 %v7865, 120
      %v8077 = vpop.permute.xlu0 %8076
      %v8080 = vsel %vm7379, %v8061, 0
      %v8083 = vsel %vm7379, %v8063, 0
      %v8086 = vsel %vm7379, %v8065, 0
      %v8089 = vsel %vm7379, %v8067, 0
      %v8092 = vsel %vm7379, %v8069, 0
      %v8095 = vsel %vm7379, %v8071, 0
      %v8098 = vsel %vm7379, %v8073, 0
      %v8101 = vsel %vm7379, %v8075, 0
      %8103 = vmatpush.bf16.msra.mxu0 0
      %8104 = vmatpush.bf16.msra.mxu0 0
      %8105 = vmatpush.bf16.msra.mxu0 0
      %8106 = vmatpush.bf16.msra.mxu0 0
      %8107 = vmatpush.bf16.msra.mxu0 0
      %8108 = vmatpush.bf16.msra.mxu0 0
      %8109 = vmatpush.bf16.msra.mxu0 0
      %8110 = vmatpush.bf16.msra.mxu0 %v8077
      %8111 = vmatmul.bf16.gmra.mxu0 %v8080
      %v8112 = vpop.f32.mrf.mxu0
      %v8113 = vadd.f32 0.0, %v8112
      %v8114 = vpop.f32.mrf.mxu0
      %v8115 = vadd.f32 0.0, %v8114
      %8116 = vmatmul.bf16.gmra.mxu0 %v8083
      %v8117 = vpop.f32.mrf.mxu0
      %v8118 = vadd.f32 0.0, %v8117
      %v8119 = vpop.f32.mrf.mxu0
      %v8120 = vadd.f32 0.0, %v8119
      %8121 = vmatmul.bf16.gmra.mxu0 %v8086
      %v8122 = vpop.f32.mrf.mxu0
      %v8123 = vadd.f32 0.0, %v8122
      %v8124 = vpop.f32.mrf.mxu0
      %v8125 = vadd.f32 0.0, %v8124
      %8126 = vmatmul.bf16.gmra.mxu0 %v8089
      %v8127 = vpop.f32.mrf.mxu0
      %v8128 = vadd.f32 0.0, %v8127
      %v8129 = vpop.f32.mrf.mxu0
      %v8130 = vadd.f32 0.0, %v8129
      %8131 = vmatmul.bf16.gmra.mxu0 %v8092
      %v8132 = vpop.f32.mrf.mxu0
      %v8133 = vadd.f32 0.0, %v8132
      %v8134 = vpop.f32.mrf.mxu0
      %v8135 = vadd.f32 0.0, %v8134
      %8136 = vmatmul.bf16.gmra.mxu0 %v8095
      %v8137 = vpop.f32.mrf.mxu0
      %v8138 = vadd.f32 0.0, %v8137
      %v8139 = vpop.f32.mrf.mxu0
      %v8140 = vadd.f32 0.0, %v8139
      %8141 = vmatmul.bf16.gmra.mxu0 %v8098
      %v8142 = vpop.f32.mrf.mxu0
      %v8143 = vadd.f32 0.0, %v8142
      %v8144 = vpop.f32.mrf.mxu0
      %v8145 = vadd.f32 0.0, %v8144
      %8146 = vmatmul.bf16.gmra.mxu0 %v8101
      %v8147 = vpop.f32.mrf.mxu0
      %v8148 = vadd.f32 0.0, %v8147
      %v8149 = vpop.f32.mrf.mxu0
      %8150 = vdwg.mxu0
      %v8151 = vadd.f32 %v8045, %v8113
      %v8152 = vadd.f32 %v8046, %v8115
      %v8153 = vadd.f32 %v8047, %v8118
      %v8154 = vadd.f32 %v8048, %v8120
      %v8155 = vadd.f32 %v8049, %v8123
      %v8156 = vadd.f32 %v8050, %v8125
      %v8157 = vadd.f32 %v8051, %v8128
      %v8158 = vadd.f32 %v8052, %v8130
      %v8159 = vadd.f32 %v8053, %v8133
      %v8160 = vadd.f32 %v8054, %v8135
      %v8161 = vadd.f32 %v8055, %v8138
      %v8162 = vadd.f32 %v8056, %v8140
      %v8163 = vadd.f32 %v8057, %v8143
      %v8164 = vadd.f32 %v8058, %v8145
      %v8165 = vadd.f32 %v8059, %v8148
      %v8166 = vld [vmem:[%s5 + $0x4] sm:$0xf]
      %v8167 = vld [vmem:[%s5 + $0x14] sm:$0xf]
      %v8168 = vld [vmem:[%s5 + $0x24] sm:$0xf]
      %v8169 = vld [vmem:[%s5 + $0x34] sm:$0xf]
      %v8170 = vld [vmem:[%s5 + $0x44] sm:$0xf]
      %v8171 = vld [vmem:[%s5 + $0x54] sm:$0xf]
      %v8172 = vld [vmem:[%s5 + $0x64] sm:$0xf]
      %v8173 = vld [vmem:[%s5 + $0x74] sm:$0xf]
      %v8174 = vld [vmem:[%s5 + $0x84] sm:$0xf]
      %v8175 = vld [vmem:[%s5 + $0x94] sm:$0xf]
      %v8176 = vld [vmem:[%s5 + $0xa4] sm:$0xf]
      %v8177 = vld [vmem:[%s5 + $0xb4] sm:$0xf]
      %v8178 = vld [vmem:[%s5 + $0xc4] sm:$0xf]
      %v8179 = vld [vmem:[%s5 + $0xd4] sm:$0xf]
      %v8180 = vld [vmem:[%s5 + $0xe4] sm:$0xf]
      %v8196 = vunpack.c.l.b16 %v8166
      %v8197 = vunpack.c.l.b16 %v8167
      %v8198 = vunpack.c.l.b16 %v8168
      %v8199 = vunpack.c.l.b16 %v8169
      %v8200 = vunpack.c.l.b16 %v8170
      %v8201 = vunpack.c.l.b16 %v8171
      %v8202 = vunpack.c.l.b16 %v8172
      %v8203 = vunpack.c.l.b16 %v8173
      %v8204 = vunpack.c.l.b16 %v8174
      %v8205 = vunpack.c.l.b16 %v8175
      %v8206 = vunpack.c.l.b16 %v8176
      %v8207 = vunpack.c.l.b16 %v8177
      %v8208 = vunpack.c.l.b16 %v8178
      %v8209 = vunpack.c.l.b16 %v8179
      %v8210 = vunpack.c.l.b16 %v8180
      %v8211 = vpack.c.b16 %v8197, %v8196
      %v8212 = vpack.c.b16 %v8199, %v8198
      %v8213 = vpack.c.b16 %v8201, %v8200
      %v8214 = vpack.c.b16 %v8203, %v8202
      %v8215 = vpack.c.b16 %v8205, %v8204
      %v8216 = vpack.c.b16 %v8207, %v8206
      %v8217 = vpack.c.b16 %v8209, %v8208
      %v8218 = vpack.c.b16 %v8210, %v8210
      %8219 = vrot.lane.b32.xlu0 %v7865, 116
      %v8220 = vpop.permute.xlu0 %8219
      %v8223 = vsel %vm7379, %v8211, 0
      %v8226 = vsel %vm7379, %v8212, 0
      %v8229 = vsel %vm7379, %v8213, 0
      %v8232 = vsel %vm7379, %v8214, 0
      %v8235 = vsel %vm7379, %v8215, 0
      %v8238 = vsel %vm7379, %v8216, 0
      %v8241 = vsel %vm7379, %v8217, 0
      %v8244 = vsel %vm7379, %v8218, 0
      %8246 = vmatpush.bf16.msra.mxu0 0
      %8247 = vmatpush.bf16.msra.mxu0 0
      %8248 = vmatpush.bf16.msra.mxu0 0
      %8249 = vmatpush.bf16.msra.mxu0 0
      %8250 = vmatpush.bf16.msra.mxu0 0
      %8251 = vmatpush.bf16.msra.mxu0 0
      %8252 = vmatpush.bf16.msra.mxu0 0
      %8253 = vmatpush.bf16.msra.mxu0 %v8220
      %8254 = vmatmul.bf16.gmra.mxu0 %v8223
      %v8255 = vpop.f32.mrf.mxu0
      %v8256 = vadd.f32 0.0, %v8255
      %v8257 = vpop.f32.mrf.mxu0
      %v8258 = vadd.f32 0.0, %v8257
      %8259 = vmatmul.bf16.gmra.mxu0 %v8226
      %v8260 = vpop.f32.mrf.mxu0
      %v8261 = vadd.f32 0.0, %v8260
      %v8262 = vpop.f32.mrf.mxu0
      %v8263 = vadd.f32 0.0, %v8262
      %8264 = vmatmul.bf16.gmra.mxu0 %v8229
      %v8265 = vpop.f32.mrf.mxu0
      %v8266 = vadd.f32 0.0, %v8265
      %v8267 = vpop.f32.mrf.mxu0
      %v8268 = vadd.f32 0.0, %v8267
      %8269 = vmatmul.bf16.gmra.mxu0 %v8232
      %v8270 = vpop.f32.mrf.mxu0
      %v8271 = vadd.f32 0.0, %v8270
      %v8272 = vpop.f32.mrf.mxu0
      %v8273 = vadd.f32 0.0, %v8272
      %8274 = vmatmul.bf16.gmra.mxu0 %v8235
      %v8275 = vpop.f32.mrf.mxu0
      %v8276 = vadd.f32 0.0, %v8275
      %v8277 = vpop.f32.mrf.mxu0
      %v8278 = vadd.f32 0.0, %v8277
      %8279 = vmatmul.bf16.gmra.mxu0 %v8238
      %v8280 = vpop.f32.mrf.mxu0
      %v8281 = vadd.f32 0.0, %v8280
      %v8282 = vpop.f32.mrf.mxu0
      %v8283 = vadd.f32 0.0, %v8282
      %8284 = vmatmul.bf16.gmra.mxu0 %v8241
      %v8285 = vpop.f32.mrf.mxu0
      %v8286 = vadd.f32 0.0, %v8285
      %v8287 = vpop.f32.mrf.mxu0
      %v8288 = vadd.f32 0.0, %v8287
      %8289 = vmatmul.bf16.gmra.mxu0 %v8244
      %v8290 = vpop.f32.mrf.mxu0
      %v8291 = vadd.f32 0.0, %v8290
      %v8292 = vpop.f32.mrf.mxu0
      %8293 = vdwg.mxu0
      %v8294 = vadd.f32 %v8151, %v8256
      %v8295 = vadd.f32 %v8152, %v8258
      %v8296 = vadd.f32 %v8153, %v8261
      %v8297 = vadd.f32 %v8154, %v8263
      %v8298 = vadd.f32 %v8155, %v8266
      %v8299 = vadd.f32 %v8156, %v8268
      %v8300 = vadd.f32 %v8157, %v8271
      %v8301 = vadd.f32 %v8158, %v8273
      %v8302 = vadd.f32 %v8159, %v8276
      %v8303 = vadd.f32 %v8160, %v8278
      %v8304 = vadd.f32 %v8161, %v8281
      %v8305 = vadd.f32 %v8162, %v8283
      %v8306 = vadd.f32 %v8163, %v8286
      %v8307 = vadd.f32 %v8164, %v8288
      %v8308 = vadd.f32 %v8165, %v8291
      %8309 = vrot.lane.b32.xlu0 %v8211, 112
      %v8310 = vpop.permute.xlu0 %8309
      %8311 = vrot.lane.b32.xlu0 %v8212, 112
      %v8312 = vpop.permute.xlu0 %8311
      %8313 = vrot.lane.b32.xlu0 %v8213, 112
      %v8314 = vpop.permute.xlu0 %8313
      %8315 = vrot.lane.b32.xlu0 %v8214, 112
      %v8316 = vpop.permute.xlu0 %8315
      %8317 = vrot.lane.b32.xlu0 %v8215, 112
      %v8318 = vpop.permute.xlu0 %8317
      %8319 = vrot.lane.b32.xlu0 %v8216, 112
      %v8320 = vpop.permute.xlu0 %8319
      %8321 = vrot.lane.b32.xlu0 %v8217, 112
      %v8322 = vpop.permute.xlu0 %8321
      %8323 = vrot.lane.b32.xlu0 %v8218, 112
      %v8324 = vpop.permute.xlu0 %8323
      %8325 = vrot.lane.b32.xlu0 %v7865, 112
      %v8326 = vpop.permute.xlu0 %8325
      %v8329 = vsel %vm7379, %v8310, 0
      %v8332 = vsel %vm7379, %v8312, 0
      %v8335 = vsel %vm7379, %v8314, 0
      %v8338 = vsel %vm7379, %v8316, 0
      %v8341 = vsel %vm7379, %v8318, 0
      %v8344 = vsel %vm7379, %v8320, 0
      %v8347 = vsel %vm7379, %v8322, 0
      %v8350 = vsel %vm7379, %v8324, 0
      %8352 = vmatpush.bf16.msra.mxu0 0
      %8353 = vmatpush.bf16.msra.mxu0 0
      %8354 = vmatpush.bf16.msra.mxu0 0
      %8355 = vmatpush.bf16.msra.mxu0 0
      %8356 = vmatpush.bf16.msra.mxu0 0
      %8357 = vmatpush.bf16.msra.mxu0 0
      %8358 = vmatpush.bf16.msra.mxu0 0
      %8359 = vmatpush.bf16.msra.mxu0 %v8326
      %8360 = vmatmul.bf16.gmra.mxu0 %v8329
      %v8361 = vpop.f32.mrf.mxu0
      %v8362 = vadd.f32 0.0, %v8361
      %v8363 = vpop.f32.mrf.mxu0
      %v8364 = vadd.f32 0.0, %v8363
      %8365 = vmatmul.bf16.gmra.mxu0 %v8332
      %v8366 = vpop.f32.mrf.mxu0
      %v8367 = vadd.f32 0.0, %v8366
      %v8368 = vpop.f32.mrf.mxu0
      %v8369 = vadd.f32 0.0, %v8368
      %8370 = vmatmul.bf16.gmra.mxu0 %v8335
      %v8371 = vpop.f32.mrf.mxu0
      %v8372 = vadd.f32 0.0, %v8371
      %v8373 = vpop.f32.mrf.mxu0
      %v8374 = vadd.f32 0.0, %v8373
      %8375 = vmatmul.bf16.gmra.mxu0 %v8338
      %v8376 = vpop.f32.mrf.mxu0
      %v8377 = vadd.f32 0.0, %v8376
      %v8378 = vpop.f32.mrf.mxu0
      %v8379 = vadd.f32 0.0, %v8378
      %8380 = vmatmul.bf16.gmra.mxu0 %v8341
      %v8381 = vpop.f32.mrf.mxu0
      %v8382 = vadd.f32 0.0, %v8381
      %v8383 = vpop.f32.mrf.mxu0
      %v8384 = vadd.f32 0.0, %v8383
      %8385 = vmatmul.bf16.gmra.mxu0 %v8344
      %v8386 = vpop.f32.mrf.mxu0
      %v8387 = vadd.f32 0.0, %v8386
      %v8388 = vpop.f32.mrf.mxu0
      %v8389 = vadd.f32 0.0, %v8388
      %8390 = vmatmul.bf16.gmra.mxu0 %v8347
      %v8391 = vpop.f32.mrf.mxu0
      %v8392 = vadd.f32 0.0, %v8391
      %v8393 = vpop.f32.mrf.mxu0
      %v8394 = vadd.f32 0.0, %v8393
      %8395 = vmatmul.bf16.gmra.mxu0 %v8350
      %v8396 = vpop.f32.mrf.mxu0
      %v8397 = vadd.f32 0.0, %v8396
      %v8398 = vpop.f32.mrf.mxu0
      %8399 = vdwg.mxu0
      %v8400 = vadd.f32 %v8294, %v8362
      %v8401 = vadd.f32 %v8295, %v8364
      %v8402 = vadd.f32 %v8296, %v8367
      %v8403 = vadd.f32 %v8297, %v8369
      %v8404 = vadd.f32 %v8298, %v8372
      %v8405 = vadd.f32 %v8299, %v8374
      %v8406 = vadd.f32 %v8300, %v8377
      %v8407 = vadd.f32 %v8301, %v8379
      %v8408 = vadd.f32 %v8302, %v8382
      %v8409 = vadd.f32 %v8303, %v8384
      %v8410 = vadd.f32 %v8304, %v8387
      %v8411 = vadd.f32 %v8305, %v8389
      %v8412 = vadd.f32 %v8306, %v8392
      %v8413 = vadd.f32 %v8307, %v8394
      %v8414 = vadd.f32 %v8308, %v8397
      %v8415 = vld [vmem:[#allocation5 + $0x8] sm:$0xf]
      %v8416 = vld [vmem:[#allocation5 + $0x1c] sm:$0xf]
      %8417 = vrot.lane.b32.xlu0 %v8211, 96
      %v8418 = vpop.permute.xlu0 %8417
      %8419 = vrot.lane.b32.xlu0 %v8212, 96
      %v8420 = vpop.permute.xlu0 %8419
      %8421 = vrot.lane.b32.xlu0 %v8213, 96
      %v8422 = vpop.permute.xlu0 %8421
      %8423 = vrot.lane.b32.xlu0 %v8214, 96
      %v8424 = vpop.permute.xlu0 %8423
      %8425 = vrot.lane.b32.xlu0 %v8215, 96
      %v8426 = vpop.permute.xlu0 %8425
      %8427 = vrot.lane.b32.xlu0 %v8216, 96
      %v8428 = vpop.permute.xlu0 %8427
      %8429 = vrot.lane.b32.xlu0 %v8217, 96
      %v8430 = vpop.permute.xlu0 %8429
      %8431 = vrot.lane.b32.xlu0 %v8218, 96
      %v8432 = vpop.permute.xlu0 %8431
      %v8435 = vunpack.c.l.b16 %v8415
      %v8436 = vunpack.c.l.b16 %v8416
      %v8437 = vpack.c.b16 %v8436, %v8435
      %v8440 = vsel %vm7379, %v8418, 0
      %v8443 = vsel %vm7379, %v8420, 0
      %v8446 = vsel %vm7379, %v8422, 0
      %v8449 = vsel %vm7379, %v8424, 0
      %v8452 = vsel %vm7379, %v8426, 0
      %v8455 = vsel %vm7379, %v8428, 0
      %v8458 = vsel %vm7379, %v8430, 0
      %v8461 = vsel %vm7379, %v8432, 0
      %8463 = vmatpush.bf16.msra.mxu0 0
      %8464 = vmatpush.bf16.msra.mxu0 0
      %8465 = vmatpush.bf16.msra.mxu0 0
      %8466 = vmatpush.bf16.msra.mxu0 0
      %8467 = vmatpush.bf16.msra.mxu0 0
      %8468 = vmatpush.bf16.msra.mxu0 0
      %8469 = vmatpush.bf16.msra.mxu0 0
      %8470 = vmatpush.bf16.msra.mxu0 %v8437
      %8471 = vmatmul.bf16.gmra.mxu0 %v8440
      %v8472 = vpop.f32.mrf.mxu0
      %v8473 = vadd.f32 0.0, %v8472
      %v8474 = vpop.f32.mrf.mxu0
      %v8475 = vadd.f32 0.0, %v8474
      %8476 = vmatmul.bf16.gmra.mxu0 %v8443
      %v8477 = vpop.f32.mrf.mxu0
      %v8478 = vadd.f32 0.0, %v8477
      %v8479 = vpop.f32.mrf.mxu0
      %v8480 = vadd.f32 0.0, %v8479
      %8481 = vmatmul.bf16.gmra.mxu0 %v8446
      %v8482 = vpop.f32.mrf.mxu0
      %v8483 = vadd.f32 0.0, %v8482
      %v8484 = vpop.f32.mrf.mxu0
      %v8485 = vadd.f32 0.0, %v8484
      %8486 = vmatmul.bf16.gmra.mxu0 %v8449
      %v8487 = vpop.f32.mrf.mxu0
      %v8488 = vadd.f32 0.0, %v8487
      %v8489 = vpop.f32.mrf.mxu0
      %v8490 = vadd.f32 0.0, %v8489
      %8491 = vmatmul.bf16.gmra.mxu0 %v8452
      %v8492 = vpop.f32.mrf.mxu0
      %v8493 = vadd.f32 0.0, %v8492
      %v8494 = vpop.f32.mrf.mxu0
      %v8495 = vadd.f32 0.0, %v8494
      %8496 = vmatmul.bf16.gmra.mxu0 %v8455
      %v8497 = vpop.f32.mrf.mxu0
      %v8498 = vadd.f32 0.0, %v8497
      %v8499 = vpop.f32.mrf.mxu0
      %v8500 = vadd.f32 0.0, %v8499
      %8501 = vmatmul.bf16.gmra.mxu0 %v8458
      %v8502 = vpop.f32.mrf.mxu0
      %v8503 = vadd.f32 0.0, %v8502
      %v8504 = vpop.f32.mrf.mxu0
      %v8505 = vadd.f32 0.0, %v8504
      %8506 = vmatmul.bf16.gmra.mxu0 %v8461
      %v8507 = vpop.f32.mrf.mxu0
      %v8508 = vadd.f32 0.0, %v8507
      %v8509 = vpop.f32.mrf.mxu0
      %8510 = vdwg.mxu0
      %v8511 = vadd.f32 %v8400, %v8473
      %v8512 = vadd.f32 %v8401, %v8475
      %v8513 = vadd.f32 %v8402, %v8478
      %v8514 = vadd.f32 %v8403, %v8480
      %v8515 = vadd.f32 %v8404, %v8483
      %v8516 = vadd.f32 %v8405, %v8485
      %v8517 = vadd.f32 %v8406, %v8488
      %v8518 = vadd.f32 %v8407, %v8490
      %v8519 = vadd.f32 %v8408, %v8493
      %v8520 = vadd.f32 %v8409, %v8495
      %v8521 = vadd.f32 %v8410, %v8498
      %v8522 = vadd.f32 %v8411, %v8500
      %v8523 = vadd.f32 %v8412, %v8503
      %v8524 = vadd.f32 %v8413, %v8505
      %v8525 = vadd.f32 %v8414, %v8508
      %8526 = vrot.lane.b32.xlu0 %v8211, 80
      %v8527 = vpop.permute.xlu0 %8526
      %8528 = vrot.lane.b32.xlu0 %v8212, 80
      %v8529 = vpop.permute.xlu0 %8528
      %8530 = vrot.lane.b32.xlu0 %v8213, 80
      %v8531 = vpop.permute.xlu0 %8530
      %8532 = vrot.lane.b32.xlu0 %v8214, 80
      %v8533 = vpop.permute.xlu0 %8532
      %8534 = vrot.lane.b32.xlu0 %v8215, 80
      %v8535 = vpop.permute.xlu0 %8534
      %8536 = vrot.lane.b32.xlu0 %v8216, 80
      %v8537 = vpop.permute.xlu0 %8536
      %8538 = vrot.lane.b32.xlu0 %v8217, 80
      %v8539 = vpop.permute.xlu0 %8538
      %8540 = vrot.lane.b32.xlu0 %v8218, 80
      %v8541 = vpop.permute.xlu0 %8540
      %8542 = vrot.lane.b32.xlu0 %v8437, 124
      %v8543 = vpop.permute.xlu0 %8542
      %v8546 = vsel %vm7379, %v8527, 0
      %v8549 = vsel %vm7379, %v8529, 0
      %v8552 = vsel %vm7379, %v8531, 0
      %v8555 = vsel %vm7379, %v8533, 0
      %v8558 = vsel %vm7379, %v8535, 0
      %v8561 = vsel %vm7379, %v8537, 0
      %v8564 = vsel %vm7379, %v8539, 0
      %v8567 = vsel %vm7379, %v8541, 0
      %8569 = vmatpush.bf16.msra.mxu0 0
      %8570 = vmatpush.bf16.msra.mxu0 0
      %8571 = vmatpush.bf16.msra.mxu0 0
      %8572 = vmatpush.bf16.msra.mxu0 0
      %8573 = vmatpush.bf16.msra.mxu0 0
      %8574 = vmatpush.bf16.msra.mxu0 0
      %8575 = vmatpush.bf16.msra.mxu0 0
      %8576 = vmatpush.bf16.msra.mxu0 %v8543
      %8577 = vmatmul.bf16.gmra.mxu0 %v8546
      %v8578 = vpop.f32.mrf.mxu0
      %v8579 = vadd.f32 0.0, %v8578
      %v8580 = vpop.f32.mrf.mxu0
      %v8581 = vadd.f32 0.0, %v8580
      %8582 = vmatmul.bf16.gmra.mxu0 %v8549
      %v8583 = vpop.f32.mrf.mxu0
      %v8584 = vadd.f32 0.0, %v8583
      %v8585 = vpop.f32.mrf.mxu0
      %v8586 = vadd.f32 0.0, %v8585
      %8587 = vmatmul.bf16.gmra.mxu0 %v8552
      %v8588 = vpop.f32.mrf.mxu0
      %v8589 = vadd.f32 0.0, %v8588
      %v8590 = vpop.f32.mrf.mxu0
      %v8591 = vadd.f32 0.0, %v8590
      %8592 = vmatmul.bf16.gmra.mxu0 %v8555
      %v8593 = vpop.f32.mrf.mxu0
      %v8594 = vadd.f32 0.0, %v8593
      %v8595 = vpop.f32.mrf.mxu0
      %v8596 = vadd.f32 0.0, %v8595
      %8597 = vmatmul.bf16.gmra.mxu0 %v8558
      %v8598 = vpop.f32.mrf.mxu0
      %v8599 = vadd.f32 0.0, %v8598
      %v8600 = vpop.f32.mrf.mxu0
      %v8601 = vadd.f32 0.0, %v8600
      %8602 = vmatmul.bf16.gmra.mxu0 %v8561
      %v8603 = vpop.f32.mrf.mxu0
      %v8604 = vadd.f32 0.0, %v8603
      %v8605 = vpop.f32.mrf.mxu0
      %v8606 = vadd.f32 0.0, %v8605
      %8607 = vmatmul.bf16.gmra.mxu0 %v8564
      %v8608 = vpop.f32.mrf.mxu0
      %v8609 = vadd.f32 0.0, %v8608
      %v8610 = vpop.f32.mrf.mxu0
      %v8611 = vadd.f32 0.0, %v8610
      %8612 = vmatmul.bf16.gmra.mxu0 %v8567
      %v8613 = vpop.f32.mrf.mxu0
      %v8614 = vadd.f32 0.0, %v8613
      %v8615 = vpop.f32.mrf.mxu0
      %8616 = vdwg.mxu0
      %v8617 = vadd.f32 %v8511, %v8579
      %v8618 = vadd.f32 %v8512, %v8581
      %v8619 = vadd.f32 %v8513, %v8584
      %v8620 = vadd.f32 %v8514, %v8586
      %v8621 = vadd.f32 %v8515, %v8589
      %v8622 = vadd.f32 %v8516, %v8591
      %v8623 = vadd.f32 %v8517, %v8594
      %v8624 = vadd.f32 %v8518, %v8596
      %v8625 = vadd.f32 %v8519, %v8599
      %v8626 = vadd.f32 %v8520, %v8601
      %v8627 = vadd.f32 %v8521, %v8604
      %v8628 = vadd.f32 %v8522, %v8606
      %v8629 = vadd.f32 %v8523, %v8609
      %v8630 = vadd.f32 %v8524, %v8611
      %v8631 = vadd.f32 %v8525, %v8614
      %8632 = vrot.lane.b32.xlu0 %v8211, 64
      %v8633 = vpop.permute.xlu0 %8632
      %8634 = vrot.lane.b32.xlu0 %v8212, 64
      %v8635 = vpop.permute.xlu0 %8634
      %8636 = vrot.lane.b32.xlu0 %v8213, 64
      %v8637 = vpop.permute.xlu0 %8636
      %8638 = vrot.lane.b32.xlu0 %v8214, 64
      %v8639 = vpop.permute.xlu0 %8638
      %8640 = vrot.lane.b32.xlu0 %v8215, 64
      %v8641 = vpop.permute.xlu0 %8640
      %8642 = vrot.lane.b32.xlu0 %v8216, 64
      %v8643 = vpop.permute.xlu0 %8642
      %8644 = vrot.lane.b32.xlu0 %v8217, 64
      %v8645 = vpop.permute.xlu0 %8644
      %8646 = vrot.lane.b32.xlu0 %v8218, 64
      %v8647 = vpop.permute.xlu0 %8646
      %8648 = vrot.lane.b32.xlu0 %v8437, 120
      %v8649 = vpop.permute.xlu0 %8648
      %v8652 = vsel %vm7379, %v8633, 0
      %v8655 = vsel %vm7379, %v8635, 0
      %v8658 = vsel %vm7379, %v8637, 0
      %v8661 = vsel %vm7379, %v8639, 0
      %v8664 = vsel %vm7379, %v8641, 0
      %v8667 = vsel %vm7379, %v8643, 0
      %v8670 = vsel %vm7379, %v8645, 0
      %v8673 = vsel %vm7379, %v8647, 0
      %8675 = vmatpush.bf16.msra.mxu0 0
      %8676 = vmatpush.bf16.msra.mxu0 0
      %8677 = vmatpush.bf16.msra.mxu0 0
      %8678 = vmatpush.bf16.msra.mxu0 0
      %8679 = vmatpush.bf16.msra.mxu0 0
      %8680 = vmatpush.bf16.msra.mxu0 0
      %8681 = vmatpush.bf16.msra.mxu0 0
      %8682 = vmatpush.bf16.msra.mxu0 %v8649
      %8683 = vmatmul.bf16.gmra.mxu0 %v8652
      %v8684 = vpop.f32.mrf.mxu0
      %v8685 = vadd.f32 0.0, %v8684
      %v8686 = vpop.f32.mrf.mxu0
      %v8687 = vadd.f32 0.0, %v8686
      %8688 = vmatmul.bf16.gmra.mxu0 %v8655
      %v8689 = vpop.f32.mrf.mxu0
      %v8690 = vadd.f32 0.0, %v8689
      %v8691 = vpop.f32.mrf.mxu0
      %v8692 = vadd.f32 0.0, %v8691
      %8693 = vmatmul.bf16.gmra.mxu0 %v8658
      %v8694 = vpop.f32.mrf.mxu0
      %v8695 = vadd.f32 0.0, %v8694
      %v8696 = vpop.f32.mrf.mxu0
      %v8697 = vadd.f32 0.0, %v8696
      %8698 = vmatmul.bf16.gmra.mxu0 %v8661
      %v8699 = vpop.f32.mrf.mxu0
      %v8700 = vadd.f32 0.0, %v8699
      %v8701 = vpop.f32.mrf.mxu0
      %v8702 = vadd.f32 0.0, %v8701
      %8703 = vmatmul.bf16.gmra.mxu0 %v8664
      %v8704 = vpop.f32.mrf.mxu0
      %v8705 = vadd.f32 0.0, %v8704
      %v8706 = vpop.f32.mrf.mxu0
      %v8707 = vadd.f32 0.0, %v8706
      %8708 = vmatmul.bf16.gmra.mxu0 %v8667
      %v8709 = vpop.f32.mrf.mxu0
      %v8710 = vadd.f32 0.0, %v8709
      %v8711 = vpop.f32.mrf.mxu0
      %v8712 = vadd.f32 0.0, %v8711
      %8713 = vmatmul.bf16.gmra.mxu0 %v8670
      %v8714 = vpop.f32.mrf.mxu0
      %v8715 = vadd.f32 0.0, %v8714
      %v8716 = vpop.f32.mrf.mxu0
      %v8717 = vadd.f32 0.0, %v8716
      %8718 = vmatmul.bf16.gmra.mxu0 %v8673
      %v8719 = vpop.f32.mrf.mxu0
      %v8720 = vadd.f32 0.0, %v8719
      %v8721 = vpop.f32.mrf.mxu0
      %8722 = vdwg.mxu0
      %v8723 = vadd.f32 %v8617, %v8685
      %v8724 = vadd.f32 %v8618, %v8687
      %v8725 = vadd.f32 %v8619, %v8690
      %v8726 = vadd.f32 %v8620, %v8692
      %v8727 = vadd.f32 %v8621, %v8695
      %v8728 = vadd.f32 %v8622, %v8697
      %v8729 = vadd.f32 %v8623, %v8700
      %v8730 = vadd.f32 %v8624, %v8702
      %v8731 = vadd.f32 %v8625, %v8705
      %v8732 = vadd.f32 %v8626, %v8707
      %v8733 = vadd.f32 %v8627, %v8710
      %v8734 = vadd.f32 %v8628, %v8712
      %v8735 = vadd.f32 %v8629, %v8715
      %v8736 = vadd.f32 %v8630, %v8717
      %v8737 = vadd.f32 %v8631, %v8720
      %8738 = vrot.lane.b32.xlu0 %v8211, 48
      %v8739 = vpop.permute.xlu0 %8738
      %8740 = vrot.lane.b32.xlu0 %v8212, 48
      %v8741 = vpop.permute.xlu0 %8740
      %8742 = vrot.lane.b32.xlu0 %v8213, 48
      %v8743 = vpop.permute.xlu0 %8742
      %8744 = vrot.lane.b32.xlu0 %v8214, 48
      %v8745 = vpop.permute.xlu0 %8744
      %8746 = vrot.lane.b32.xlu0 %v8215, 48
      %v8747 = vpop.permute.xlu0 %8746
      %8748 = vrot.lane.b32.xlu0 %v8216, 48
      %v8749 = vpop.permute.xlu0 %8748
      %8750 = vrot.lane.b32.xlu0 %v8217, 48
      %v8751 = vpop.permute.xlu0 %8750
      %8752 = vrot.lane.b32.xlu0 %v8218, 48
      %v8753 = vpop.permute.xlu0 %8752
      %8754 = vrot.lane.b32.xlu0 %v8437, 116
      %v8755 = vpop.permute.xlu0 %8754
      %v8758 = vsel %vm7379, %v8739, 0
      %v8761 = vsel %vm7379, %v8741, 0
      %v8764 = vsel %vm7379, %v8743, 0
      %v8767 = vsel %vm7379, %v8745, 0
      %v8770 = vsel %vm7379, %v8747, 0
      %v8773 = vsel %vm7379, %v8749, 0
      %v8776 = vsel %vm7379, %v8751, 0
      %v8779 = vsel %vm7379, %v8753, 0
      %8781 = vmatpush.bf16.msra.mxu0 0
      %8782 = vmatpush.bf16.msra.mxu0 0
      %8783 = vmatpush.bf16.msra.mxu0 0
      %8784 = vmatpush.bf16.msra.mxu0 0
      %8785 = vmatpush.bf16.msra.mxu0 0
      %8786 = vmatpush.bf16.msra.mxu0 0
      %8787 = vmatpush.bf16.msra.mxu0 0
      %8788 = vmatpush.bf16.msra.mxu0 %v8755
      %8789 = vmatmul.bf16.gmra.mxu0 %v8758
      %v8790 = vpop.f32.mrf.mxu0
      %v8791 = vadd.f32 0.0, %v8790
      %v8792 = vpop.f32.mrf.mxu0
      %v8793 = vadd.f32 0.0, %v8792
      %8794 = vmatmul.bf16.gmra.mxu0 %v8761
      %v8795 = vpop.f32.mrf.mxu0
      %v8796 = vadd.f32 0.0, %v8795
      %v8797 = vpop.f32.mrf.mxu0
      %v8798 = vadd.f32 0.0, %v8797
      %8799 = vmatmul.bf16.gmra.mxu0 %v8764
      %v8800 = vpop.f32.mrf.mxu0
      %v8801 = vadd.f32 0.0, %v8800
      %v8802 = vpop.f32.mrf.mxu0
      %v8803 = vadd.f32 0.0, %v8802
      %8804 = vmatmul.bf16.gmra.mxu0 %v8767
      %v8805 = vpop.f32.mrf.mxu0
      %v8806 = vadd.f32 0.0, %v8805
      %v8807 = vpop.f32.mrf.mxu0
      %v8808 = vadd.f32 0.0, %v8807
      %8809 = vmatmul.bf16.gmra.mxu0 %v8770
      %v8810 = vpop.f32.mrf.mxu0
      %v8811 = vadd.f32 0.0, %v8810
      %v8812 = vpop.f32.mrf.mxu0
      %v8813 = vadd.f32 0.0, %v8812
      %8814 = vmatmul.bf16.gmra.mxu0 %v8773
      %v8815 = vpop.f32.mrf.mxu0
      %v8816 = vadd.f32 0.0, %v8815
      %v8817 = vpop.f32.mrf.mxu0
      %v8818 = vadd.f32 0.0, %v8817
      %8819 = vmatmul.bf16.gmra.mxu0 %v8776
      %v8820 = vpop.f32.mrf.mxu0
      %v8821 = vadd.f32 0.0, %v8820
      %v8822 = vpop.f32.mrf.mxu0
      %v8823 = vadd.f32 0.0, %v8822
      %8824 = vmatmul.bf16.gmra.mxu0 %v8779
      %v8825 = vpop.f32.mrf.mxu0
      %v8826 = vadd.f32 0.0, %v8825
      %v8827 = vpop.f32.mrf.mxu0
      %8828 = vdwg.mxu0
      %v8829 = vadd.f32 %v8723, %v8791
      %v8830 = vadd.f32 %v8724, %v8793
      %v8831 = vadd.f32 %v8725, %v8796
      %v8832 = vadd.f32 %v8726, %v8798
      %v8833 = vadd.f32 %v8727, %v8801
      %v8834 = vadd.f32 %v8728, %v8803
      %v8835 = vadd.f32 %v8729, %v8806
      %v8836 = vadd.f32 %v8730, %v8808
      %v8837 = vadd.f32 %v8731, %v8811
      %v8838 = vadd.f32 %v8732, %v8813
      %v8839 = vadd.f32 %v8733, %v8816
      %v8840 = vadd.f32 %v8734, %v8818
      %v8841 = vadd.f32 %v8735, %v8821
      %v8842 = vadd.f32 %v8736, %v8823
      %v8843 = vadd.f32 %v8737, %v8826
      %8844 = vrot.lane.b32.xlu0 %v8211, 32
      %v8845 = vpop.permute.xlu0 %8844
      %8846 = vrot.lane.b32.xlu0 %v8212, 32
      %v8847 = vpop.permute.xlu0 %8846
      %8848 = vrot.lane.b32.xlu0 %v8213, 32
      %v8849 = vpop.permute.xlu0 %8848
      %8850 = vrot.lane.b32.xlu0 %v8214, 32
      %v8851 = vpop.permute.xlu0 %8850
      %8852 = vrot.lane.b32.xlu0 %v8215, 32
      %v8853 = vpop.permute.xlu0 %8852
      %8854 = vrot.lane.b32.xlu0 %v8216, 32
      %v8855 = vpop.permute.xlu0 %8854
      %8856 = vrot.lane.b32.xlu0 %v8217, 32
      %v8857 = vpop.permute.xlu0 %8856
      %8858 = vrot.lane.b32.xlu0 %v8218, 32
      %v8859 = vpop.permute.xlu0 %8858
      %8860 = vrot.lane.b32.xlu0 %v8437, 112
      %v8861 = vpop.permute.xlu0 %8860
      %v8864 = vsel %vm7379, %v8845, 0
      %v8867 = vsel %vm7379, %v8847, 0
      %v8870 = vsel %vm7379, %v8849, 0
      %v8873 = vsel %vm7379, %v8851, 0
      %v8876 = vsel %vm7379, %v8853, 0
      %v8879 = vsel %vm7379, %v8855, 0
      %v8882 = vsel %vm7379, %v8857, 0
      %v8885 = vsel %vm7379, %v8859, 0
      %8887 = vmatpush.bf16.msra.mxu0 0
      %8888 = vmatpush.bf16.msra.mxu0 0
      %8889 = vmatpush.bf16.msra.mxu0 0
      %8890 = vmatpush.bf16.msra.mxu0 0
      %8891 = vmatpush.bf16.msra.mxu0 0
      %8892 = vmatpush.bf16.msra.mxu0 0
      %8893 = vmatpush.bf16.msra.mxu0 0
      %8894 = vmatpush.bf16.msra.mxu0 %v8861
      %8895 = vmatmul.bf16.gmra.mxu0 %v8864
      %v8896 = vpop.f32.mrf.mxu0
      %v8897 = vadd.f32 0.0, %v8896
      %v8898 = vpop.f32.mrf.mxu0
      %v8899 = vadd.f32 0.0, %v8898
      %8900 = vmatmul.bf16.gmra.mxu0 %v8867
      %v8901 = vpop.f32.mrf.mxu0
      %v8902 = vadd.f32 0.0, %v8901
      %v8903 = vpop.f32.mrf.mxu0
      %v8904 = vadd.f32 0.0, %v8903
      %8905 = vmatmul.bf16.gmra.mxu0 %v8870
      %v8906 = vpop.f32.mrf.mxu0
      %v8907 = vadd.f32 0.0, %v8906
      %v8908 = vpop.f32.mrf.mxu0
      %v8909 = vadd.f32 0.0, %v8908
      %8910 = vmatmul.bf16.gmra.mxu0 %v8873
      %v8911 = vpop.f32.mrf.mxu0
      %v8912 = vadd.f32 0.0, %v8911
      %v8913 = vpop.f32.mrf.mxu0
      %v8914 = vadd.f32 0.0, %v8913
      %8915 = vmatmul.bf16.gmra.mxu0 %v8876
      %v8916 = vpop.f32.mrf.mxu0
      %v8917 = vadd.f32 0.0, %v8916
      %v8918 = vpop.f32.mrf.mxu0
      %v8919 = vadd.f32 0.0, %v8918
      %8920 = vmatmul.bf16.gmra.mxu0 %v8879
      %v8921 = vpop.f32.mrf.mxu0
      %v8922 = vadd.f32 0.0, %v8921
      %v8923 = vpop.f32.mrf.mxu0
      %v8924 = vadd.f32 0.0, %v8923
      %8925 = vmatmul.bf16.gmra.mxu0 %v8882
      %v8926 = vpop.f32.mrf.mxu0
      %v8927 = vadd.f32 0.0, %v8926
      %v8928 = vpop.f32.mrf.mxu0
      %v8929 = vadd.f32 0.0, %v8928
      %8930 = vmatmul.bf16.gmra.mxu0 %v8885
      %v8931 = vpop.f32.mrf.mxu0
      %v8932 = vadd.f32 0.0, %v8931
      %v8933 = vpop.f32.mrf.mxu0
      %8934 = vdwg.mxu0
      %v8935 = vadd.f32 %v8829, %v8897
      %v8936 = vadd.f32 %v8830, %v8899
      %v8937 = vadd.f32 %v8831, %v8902
      %v8938 = vadd.f32 %v8832, %v8904
      %v8939 = vadd.f32 %v8833, %v8907
      %v8940 = vadd.f32 %v8834, %v8909
      %v8941 = vadd.f32 %v8835, %v8912
      %v8942 = vadd.f32 %v8836, %v8914
      %v8943 = vadd.f32 %v8837, %v8917
      %v8944 = vadd.f32 %v8838, %v8919
      %v8945 = vadd.f32 %v8839, %v8922
      %v8946 = vadd.f32 %v8840, %v8924
      %v8947 = vadd.f32 %v8841, %v8927
      %v8948 = vadd.f32 %v8842, %v8929
      %v8949 = vadd.f32 %v8843, %v8932
      %v8950 = vld [vmem:[#allocation5 + $0xc] sm:$0xf]
      %v8951 = vld [vmem:[#allocation5 + $0x20] sm:$0xf]
      %8952 = vrot.lane.b32.xlu0 %v8211, 16
      %v8953 = vpop.permute.xlu0 %8952
      %8954 = vrot.lane.b32.xlu0 %v8212, 16
      %v8955 = vpop.permute.xlu0 %8954
      %8956 = vrot.lane.b32.xlu0 %v8213, 16
      %v8957 = vpop.permute.xlu0 %8956
      %8958 = vrot.lane.b32.xlu0 %v8214, 16
      %v8959 = vpop.permute.xlu0 %8958
      %8960 = vrot.lane.b32.xlu0 %v8215, 16
      %v8961 = vpop.permute.xlu0 %8960
      %8962 = vrot.lane.b32.xlu0 %v8216, 16
      %v8963 = vpop.permute.xlu0 %8962
      %8964 = vrot.lane.b32.xlu0 %v8217, 16
      %v8965 = vpop.permute.xlu0 %8964
      %8966 = vrot.lane.b32.xlu0 %v8218, 16
      %v8967 = vpop.permute.xlu0 %8966
      %v8970 = vunpack.c.l.b16 %v8950
      %v8971 = vunpack.c.l.b16 %v8951
      %v8972 = vpack.c.b16 %v8971, %v8970
      %v8975 = vsel %vm7379, %v8953, 0
      %v8978 = vsel %vm7379, %v8955, 0
      %v8981 = vsel %vm7379, %v8957, 0
      %v8984 = vsel %vm7379, %v8959, 0
      %v8987 = vsel %vm7379, %v8961, 0
      %v8990 = vsel %vm7379, %v8963, 0
      %v8993 = vsel %vm7379, %v8965, 0
      %v8996 = vsel %vm7379, %v8967, 0
      %8998 = vmatpush.bf16.msra.mxu0 0
      %8999 = vmatpush.bf16.msra.mxu0 0
      %9000 = vmatpush.bf16.msra.mxu0 0
      %9001 = vmatpush.bf16.msra.mxu0 0
      %9002 = vmatpush.bf16.msra.mxu0 0
      %9003 = vmatpush.bf16.msra.mxu0 0
      %9004 = vmatpush.bf16.msra.mxu0 0
      %9005 = vmatpush.bf16.msra.mxu0 %v8972
      %9006 = vmatmul.bf16.gmra.mxu0 %v8975
      %v9007 = vpop.f32.mrf.mxu0
      %v9008 = vadd.f32 0.0, %v9007
      %v9009 = vpop.f32.mrf.mxu0
      %v9010 = vadd.f32 0.0, %v9009
      %9011 = vmatmul.bf16.gmra.mxu0 %v8978
      %v9012 = vpop.f32.mrf.mxu0
      %v9013 = vadd.f32 0.0, %v9012
      %v9014 = vpop.f32.mrf.mxu0
      %v9015 = vadd.f32 0.0, %v9014
      %9016 = vmatmul.bf16.gmra.mxu0 %v8981
      %v9017 = vpop.f32.mrf.mxu0
      %v9018 = vadd.f32 0.0, %v9017
      %v9019 = vpop.f32.mrf.mxu0
      %v9020 = vadd.f32 0.0, %v9019
      %9021 = vmatmul.bf16.gmra.mxu0 %v8984
      %v9022 = vpop.f32.mrf.mxu0
      %v9023 = vadd.f32 0.0, %v9022
      %v9024 = vpop.f32.mrf.mxu0
      %v9025 = vadd.f32 0.0, %v9024
      %9026 = vmatmul.bf16.gmra.mxu0 %v8987
      %v9027 = vpop.f32.mrf.mxu0
      %v9028 = vadd.f32 0.0, %v9027
      %v9029 = vpop.f32.mrf.mxu0
      %v9030 = vadd.f32 0.0, %v9029
      %9031 = vmatmul.bf16.gmra.mxu0 %v8990
      %v9032 = vpop.f32.mrf.mxu0
      %v9033 = vadd.f32 0.0, %v9032
      %v9034 = vpop.f32.mrf.mxu0
      %v9035 = vadd.f32 0.0, %v9034
      %9036 = vmatmul.bf16.gmra.mxu0 %v8993
      %v9037 = vpop.f32.mrf.mxu0
      %v9038 = vadd.f32 0.0, %v9037
      %v9039 = vpop.f32.mrf.mxu0
      %v9040 = vadd.f32 0.0, %v9039
      %9041 = vmatmul.bf16.gmra.mxu0 %v8996
      %v9042 = vpop.f32.mrf.mxu0
      %v9043 = vadd.f32 0.0, %v9042
      %v9044 = vpop.f32.mrf.mxu0
      %9045 = vdwg.mxu0
      %v9046 = vadd.f32 %v8935, %v9008
      %v9047 = vadd.f32 %v8936, %v9010
      %v9048 = vadd.f32 %v8937, %v9013
      %v9049 = vadd.f32 %v8938, %v9015
      %v9050 = vadd.f32 %v8939, %v9018
      %v9051 = vadd.f32 %v8940, %v9020
      %v9052 = vadd.f32 %v8941, %v9023
      %v9053 = vadd.f32 %v8942, %v9025
      %v9054 = vadd.f32 %v8943, %v9028
      %v9055 = vadd.f32 %v8944, %v9030
      %v9056 = vadd.f32 %v8945, %v9033
      %v9057 = vadd.f32 %v8946, %v9035
      %v9058 = vadd.f32 %v8947, %v9038
      %v9059 = vadd.f32 %v8948, %v9040
      %v9060 = vadd.f32 %v8949, %v9043
      %v9061 = vld [vmem:[%s5 + $0x8] sm:$0xf]
      %v9062 = vld [vmem:[%s5 + $0x18] sm:$0xf]
      %v9063 = vld [vmem:[%s5 + $0x28] sm:$0xf]
      %v9064 = vld [vmem:[%s5 + $0x38] sm:$0xf]
      %v9065 = vld [vmem:[%s5 + $0x48] sm:$0xf]
      %v9066 = vld [vmem:[%s5 + $0x58] sm:$0xf]
      %v9067 = vld [vmem:[%s5 + $0x68] sm:$0xf]
      %v9068 = vld [vmem:[%s5 + $0x78] sm:$0xf]
      %v9069 = vld [vmem:[%s5 + $0x88] sm:$0xf]
      %v9070 = vld [vmem:[%s5 + $0x98] sm:$0xf]
      %v9071 = vld [vmem:[%s5 + $0xa8] sm:$0xf]
      %v9072 = vld [vmem:[%s5 + $0xb8] sm:$0xf]
      %v9073 = vld [vmem:[%s5 + $0xc8] sm:$0xf]
      %v9074 = vld [vmem:[%s5 + $0xd8] sm:$0xf]
      %v9075 = vld [vmem:[%s5 + $0xe8] sm:$0xf]
      %v9091 = vunpack.c.l.b16 %v9061
      %v9092 = vunpack.c.l.b16 %v9062
      %v9093 = vunpack.c.l.b16 %v9063
      %v9094 = vunpack.c.l.b16 %v9064
      %v9095 = vunpack.c.l.b16 %v9065
      %v9096 = vunpack.c.l.b16 %v9066
      %v9097 = vunpack.c.l.b16 %v9067
      %v9098 = vunpack.c.l.b16 %v9068
      %v9099 = vunpack.c.l.b16 %v9069
      %v9100 = vunpack.c.l.b16 %v9070
      %v9101 = vunpack.c.l.b16 %v9071
      %v9102 = vunpack.c.l.b16 %v9072
      %v9103 = vunpack.c.l.b16 %v9073
      %v9104 = vunpack.c.l.b16 %v9074
      %v9105 = vunpack.c.l.b16 %v9075
      %v9106 = vpack.c.b16 %v9092, %v9091
      %v9107 = vpack.c.b16 %v9094, %v9093
      %v9108 = vpack.c.b16 %v9096, %v9095
      %v9109 = vpack.c.b16 %v9098, %v9097
      %v9110 = vpack.c.b16 %v9100, %v9099
      %v9111 = vpack.c.b16 %v9102, %v9101
      %v9112 = vpack.c.b16 %v9104, %v9103
      %v9113 = vpack.c.b16 %v9105, %v9105
      %9114 = vrot.lane.b32.xlu0 %v8972, 124
      %v9115 = vpop.permute.xlu0 %9114
      %v9118 = vsel %vm7379, %v9106, 0
      %v9121 = vsel %vm7379, %v9107, 0
      %v9124 = vsel %vm7379, %v9108, 0
      %v9127 = vsel %vm7379, %v9109, 0
      %v9130 = vsel %vm7379, %v9110, 0
      %v9133 = vsel %vm7379, %v9111, 0
      %v9136 = vsel %vm7379, %v9112, 0
      %v9139 = vsel %vm7379, %v9113, 0
      %9141 = vmatpush.bf16.msra.mxu0 0
      %9142 = vmatpush.bf16.msra.mxu0 0
      %9143 = vmatpush.bf16.msra.mxu0 0
      %9144 = vmatpush.bf16.msra.mxu0 0
      %9145 = vmatpush.bf16.msra.mxu0 0
      %9146 = vmatpush.bf16.msra.mxu0 0
      %9147 = vmatpush.bf16.msra.mxu0 0
      %9148 = vmatpush.bf16.msra.mxu0 %v9115
      %9149 = vmatmul.bf16.gmra.mxu0 %v9118
      %v9150 = vpop.f32.mrf.mxu0
      %v9151 = vadd.f32 0.0, %v9150
      %v9152 = vpop.f32.mrf.mxu0
      %v9153 = vadd.f32 0.0, %v9152
      %9154 = vmatmul.bf16.gmra.mxu0 %v9121
      %v9155 = vpop.f32.mrf.mxu0
      %v9156 = vadd.f32 0.0, %v9155
      %v9157 = vpop.f32.mrf.mxu0
      %v9158 = vadd.f32 0.0, %v9157
      %9159 = vmatmul.bf16.gmra.mxu0 %v9124
      %v9160 = vpop.f32.mrf.mxu0
      %v9161 = vadd.f32 0.0, %v9160
      %v9162 = vpop.f32.mrf.mxu0
      %v9163 = vadd.f32 0.0, %v9162
      %9164 = vmatmul.bf16.gmra.mxu0 %v9127
      %v9165 = vpop.f32.mrf.mxu0
      %v9166 = vadd.f32 0.0, %v9165
      %v9167 = vpop.f32.mrf.mxu0
      %v9168 = vadd.f32 0.0, %v9167
      %9169 = vmatmul.bf16.gmra.mxu0 %v9130
      %v9170 = vpop.f32.mrf.mxu0
      %v9171 = vadd.f32 0.0, %v9170
      %v9172 = vpop.f32.mrf.mxu0
      %v9173 = vadd.f32 0.0, %v9172
      %9174 = vmatmul.bf16.gmra.mxu0 %v9133
      %v9175 = vpop.f32.mrf.mxu0
      %v9176 = vadd.f32 0.0, %v9175
      %v9177 = vpop.f32.mrf.mxu0
      %v9178 = vadd.f32 0.0, %v9177
      %9179 = vmatmul.bf16.gmra.mxu0 %v9136
      %v9180 = vpop.f32.mrf.mxu0
      %v9181 = vadd.f32 0.0, %v9180
      %v9182 = vpop.f32.mrf.mxu0
      %v9183 = vadd.f32 0.0, %v9182
      %9184 = vmatmul.bf16.gmra.mxu0 %v9139
      %v9185 = vpop.f32.mrf.mxu0
      %v9186 = vadd.f32 0.0, %v9185
      %v9187 = vpop.f32.mrf.mxu0
      %9188 = vdwg.mxu0
      %v9189 = vadd.f32 %v9046, %v9151
      %v9190 = vadd.f32 %v9047, %v9153
      %v9191 = vadd.f32 %v9048, %v9156
      %v9192 = vadd.f32 %v9049, %v9158
      %v9193 = vadd.f32 %v9050, %v9161
      %v9194 = vadd.f32 %v9051, %v9163
      %v9195 = vadd.f32 %v9052, %v9166
      %v9196 = vadd.f32 %v9053, %v9168
      %v9197 = vadd.f32 %v9054, %v9171
      %v9198 = vadd.f32 %v9055, %v9173
      %v9199 = vadd.f32 %v9056, %v9176
      %v9200 = vadd.f32 %v9057, %v9178
      %v9201 = vadd.f32 %v9058, %v9181
      %v9202 = vadd.f32 %v9059, %v9183
      %v9203 = vadd.f32 %v9060, %v9186
      %9204 = vrot.lane.b32.xlu0 %v9106, 112
      %v9205 = vpop.permute.xlu0 %9204
      %9206 = vrot.lane.b32.xlu0 %v9107, 112
      %v9207 = vpop.permute.xlu0 %9206
      %9208 = vrot.lane.b32.xlu0 %v9108, 112
      %v9209 = vpop.permute.xlu0 %9208
      %9210 = vrot.lane.b32.xlu0 %v9109, 112
      %v9211 = vpop.permute.xlu0 %9210
      %9212 = vrot.lane.b32.xlu0 %v9110, 112
      %v9213 = vpop.permute.xlu0 %9212
      %9214 = vrot.lane.b32.xlu0 %v9111, 112
      %v9215 = vpop.permute.xlu0 %9214
      %9216 = vrot.lane.b32.xlu0 %v9112, 112
      %v9217 = vpop.permute.xlu0 %9216
      %9218 = vrot.lane.b32.xlu0 %v9113, 112
      %v9219 = vpop.permute.xlu0 %9218
      %9220 = vrot.lane.b32.xlu0 %v8972, 120
      %v9221 = vpop.permute.xlu0 %9220
      %v9224 = vsel %vm7379, %v9205, 0
      %v9227 = vsel %vm7379, %v9207, 0
      %v9230 = vsel %vm7379, %v9209, 0
      %v9233 = vsel %vm7379, %v9211, 0
      %v9236 = vsel %vm7379, %v9213, 0
      %v9239 = vsel %vm7379, %v9215, 0
      %v9242 = vsel %vm7379, %v9217, 0
      %v9245 = vsel %vm7379, %v9219, 0
      %9247 = vmatpush.bf16.msra.mxu0 0
      %9248 = vmatpush.bf16.msra.mxu0 0
      %9249 = vmatpush.bf16.msra.mxu0 0
      %9250 = vmatpush.bf16.msra.mxu0 0
      %9251 = vmatpush.bf16.msra.mxu0 0
      %9252 = vmatpush.bf16.msra.mxu0 0
      %9253 = vmatpush.bf16.msra.mxu0 0
      %9254 = vmatpush.bf16.msra.mxu0 %v9221
      %9255 = vmatmul.bf16.gmra.mxu0 %v9224
      %v9256 = vpop.f32.mrf.mxu0
      %v9257 = vadd.f32 0.0, %v9256
      %v9258 = vpop.f32.mrf.mxu0
      %v9259 = vadd.f32 0.0, %v9258
      %9260 = vmatmul.bf16.gmra.mxu0 %v9227
      %v9261 = vpop.f32.mrf.mxu0
      %v9262 = vadd.f32 0.0, %v9261
      %v9263 = vpop.f32.mrf.mxu0
      %v9264 = vadd.f32 0.0, %v9263
      %9265 = vmatmul.bf16.gmra.mxu0 %v9230
      %v9266 = vpop.f32.mrf.mxu0
      %v9267 = vadd.f32 0.0, %v9266
      %v9268 = vpop.f32.mrf.mxu0
      %v9269 = vadd.f32 0.0, %v9268
      %9270 = vmatmul.bf16.gmra.mxu0 %v9233
      %v9271 = vpop.f32.mrf.mxu0
      %v9272 = vadd.f32 0.0, %v9271
      %v9273 = vpop.f32.mrf.mxu0
      %v9274 = vadd.f32 0.0, %v9273
      %9275 = vmatmul.bf16.gmra.mxu0 %v9236
      %v9276 = vpop.f32.mrf.mxu0
      %v9277 = vadd.f32 0.0, %v9276
      %v9278 = vpop.f32.mrf.mxu0
      %v9279 = vadd.f32 0.0, %v9278
      %9280 = vmatmul.bf16.gmra.mxu0 %v9239
      %v9281 = vpop.f32.mrf.mxu0
      %v9282 = vadd.f32 0.0, %v9281
      %v9283 = vpop.f32.mrf.mxu0
      %v9284 = vadd.f32 0.0, %v9283
      %9285 = vmatmul.bf16.gmra.mxu0 %v9242
      %v9286 = vpop.f32.mrf.mxu0
      %v9287 = vadd.f32 0.0, %v9286
      %v9288 = vpop.f32.mrf.mxu0
      %v9289 = vadd.f32 0.0, %v9288
      %9290 = vmatmul.bf16.gmra.mxu0 %v9245
      %v9291 = vpop.f32.mrf.mxu0
      %v9292 = vadd.f32 0.0, %v9291
      %v9293 = vpop.f32.mrf.mxu0
      %9294 = vdwg.mxu0
      %v9295 = vadd.f32 %v9189, %v9257
      %v9296 = vadd.f32 %v9190, %v9259
      %v9297 = vadd.f32 %v9191, %v9262
      %v9298 = vadd.f32 %v9192, %v9264
      %v9299 = vadd.f32 %v9193, %v9267
      %v9300 = vadd.f32 %v9194, %v9269
      %v9301 = vadd.f32 %v9195, %v9272
      %v9302 = vadd.f32 %v9196, %v9274
      %v9303 = vadd.f32 %v9197, %v9277
      %v9304 = vadd.f32 %v9198, %v9279
      %v9305 = vadd.f32 %v9199, %v9282
      %v9306 = vadd.f32 %v9200, %v9284
      %v9307 = vadd.f32 %v9201, %v9287
      %v9308 = vadd.f32 %v9202, %v9289
      %v9309 = vadd.f32 %v9203, %v9292
      %9310 = vrot.lane.b32.xlu0 %v9106, 96
      %v9311 = vpop.permute.xlu0 %9310
      %9312 = vrot.lane.b32.xlu0 %v9107, 96
      %v9313 = vpop.permute.xlu0 %9312
      %9314 = vrot.lane.b32.xlu0 %v9108, 96
      %v9315 = vpop.permute.xlu0 %9314
      %9316 = vrot.lane.b32.xlu0 %v9109, 96
      %v9317 = vpop.permute.xlu0 %9316
      %9318 = vrot.lane.b32.xlu0 %v9110, 96
      %v9319 = vpop.permute.xlu0 %9318
      %9320 = vrot.lane.b32.xlu0 %v9111, 96
      %v9321 = vpop.permute.xlu0 %9320
      %9322 = vrot.lane.b32.xlu0 %v9112, 96
      %v9323 = vpop.permute.xlu0 %9322
      %9324 = vrot.lane.b32.xlu0 %v9113, 96
      %v9325 = vpop.permute.xlu0 %9324
      %9326 = vrot.lane.b32.xlu0 %v8972, 116
      %v9327 = vpop.permute.xlu0 %9326
      %v9330 = vsel %vm7379, %v9311, 0
      %v9333 = vsel %vm7379, %v9313, 0
      %v9336 = vsel %vm7379, %v9315, 0
      %v9339 = vsel %vm7379, %v9317, 0
      %v9342 = vsel %vm7379, %v9319, 0
      %v9345 = vsel %vm7379, %v9321, 0
      %v9348 = vsel %vm7379, %v9323, 0
      %v9351 = vsel %vm7379, %v9325, 0
      %9353 = vmatpush.bf16.msra.mxu0 0
      %9354 = vmatpush.bf16.msra.mxu0 0
      %9355 = vmatpush.bf16.msra.mxu0 0
      %9356 = vmatpush.bf16.msra.mxu0 0
      %9357 = vmatpush.bf16.msra.mxu0 0
      %9358 = vmatpush.bf16.msra.mxu0 0
      %9359 = vmatpush.bf16.msra.mxu0 0
      %9360 = vmatpush.bf16.msra.mxu0 %v9327
      %9361 = vmatmul.bf16.gmra.mxu0 %v9330
      %v9362 = vpop.f32.mrf.mxu0
      %v9363 = vadd.f32 0.0, %v9362
      %v9364 = vpop.f32.mrf.mxu0
      %v9365 = vadd.f32 0.0, %v9364
      %9366 = vmatmul.bf16.gmra.mxu0 %v9333
      %v9367 = vpop.f32.mrf.mxu0
      %v9368 = vadd.f32 0.0, %v9367
      %v9369 = vpop.f32.mrf.mxu0
      %v9370 = vadd.f32 0.0, %v9369
      %9371 = vmatmul.bf16.gmra.mxu0 %v9336
      %v9372 = vpop.f32.mrf.mxu0
      %v9373 = vadd.f32 0.0, %v9372
      %v9374 = vpop.f32.mrf.mxu0
      %v9375 = vadd.f32 0.0, %v9374
      %9376 = vmatmul.bf16.gmra.mxu0 %v9339
      %v9377 = vpop.f32.mrf.mxu0
      %v9378 = vadd.f32 0.0, %v9377
      %v9379 = vpop.f32.mrf.mxu0
      %v9380 = vadd.f32 0.0, %v9379
      %9381 = vmatmul.bf16.gmra.mxu0 %v9342
      %v9382 = vpop.f32.mrf.mxu0
      %v9383 = vadd.f32 0.0, %v9382
      %v9384 = vpop.f32.mrf.mxu0
      %v9385 = vadd.f32 0.0, %v9384
      %9386 = vmatmul.bf16.gmra.mxu0 %v9345
      %v9387 = vpop.f32.mrf.mxu0
      %v9388 = vadd.f32 0.0, %v9387
      %v9389 = vpop.f32.mrf.mxu0
      %v9390 = vadd.f32 0.0, %v9389
      %9391 = vmatmul.bf16.gmra.mxu0 %v9348
      %v9392 = vpop.f32.mrf.mxu0
      %v9393 = vadd.f32 0.0, %v9392
      %v9394 = vpop.f32.mrf.mxu0
      %v9395 = vadd.f32 0.0, %v9394
      %9396 = vmatmul.bf16.gmra.mxu0 %v9351
      %v9397 = vpop.f32.mrf.mxu0
      %v9398 = vadd.f32 0.0, %v9397
      %v9399 = vpop.f32.mrf.mxu0
      %9400 = vdwg.mxu0
      %v9401 = vadd.f32 %v9295, %v9363
      %v9402 = vadd.f32 %v9296, %v9365
      %v9403 = vadd.f32 %v9297, %v9368
      %v9404 = vadd.f32 %v9298, %v9370
      %v9405 = vadd.f32 %v9299, %v9373
      %v9406 = vadd.f32 %v9300, %v9375
      %v9407 = vadd.f32 %v9301, %v9378
      %v9408 = vadd.f32 %v9302, %v9380
      %v9409 = vadd.f32 %v9303, %v9383
      %v9410 = vadd.f32 %v9304, %v9385
      %v9411 = vadd.f32 %v9305, %v9388
      %v9412 = vadd.f32 %v9306, %v9390
      %v9413 = vadd.f32 %v9307, %v9393
      %v9414 = vadd.f32 %v9308, %v9395
      %v9415 = vadd.f32 %v9309, %v9398
      %9416 = vrot.lane.b32.xlu0 %v9106, 80
      %v9417 = vpop.permute.xlu0 %9416
      %9418 = vrot.lane.b32.xlu0 %v9107, 80
      %v9419 = vpop.permute.xlu0 %9418
      %9420 = vrot.lane.b32.xlu0 %v9108, 80
      %v9421 = vpop.permute.xlu0 %9420
      %9422 = vrot.lane.b32.xlu0 %v9109, 80
      %v9423 = vpop.permute.xlu0 %9422
      %9424 = vrot.lane.b32.xlu0 %v9110, 80
      %v9425 = vpop.permute.xlu0 %9424
      %9426 = vrot.lane.b32.xlu0 %v9111, 80
      %v9427 = vpop.permute.xlu0 %9426
      %9428 = vrot.lane.b32.xlu0 %v9112, 80
      %v9429 = vpop.permute.xlu0 %9428
      %9430 = vrot.lane.b32.xlu0 %v9113, 80
      %v9431 = vpop.permute.xlu0 %9430
      %9432 = vrot.lane.b32.xlu0 %v8972, 112
      %v9433 = vpop.permute.xlu0 %9432
      %v9436 = vsel %vm7379, %v9417, 0
      %v9439 = vsel %vm7379, %v9419, 0
      %v9442 = vsel %vm7379, %v9421, 0
      %v9445 = vsel %vm7379, %v9423, 0
      %v9448 = vsel %vm7379, %v9425, 0
      %v9451 = vsel %vm7379, %v9427, 0
      %v9454 = vsel %vm7379, %v9429, 0
      %v9457 = vsel %vm7379, %v9431, 0
      %9459 = vmatpush.bf16.msra.mxu0 0
      %9460 = vmatpush.bf16.msra.mxu0 0
      %9461 = vmatpush.bf16.msra.mxu0 0
      %9462 = vmatpush.bf16.msra.mxu0 0
      %9463 = vmatpush.bf16.msra.mxu0 0
      %9464 = vmatpush.bf16.msra.mxu0 0
      %9465 = vmatpush.bf16.msra.mxu0 0
      %9466 = vmatpush.bf16.msra.mxu0 %v9433
      %9467 = vmatmul.bf16.gmra.mxu0 %v9436
      %v9468 = vpop.f32.mrf.mxu0
      %v9469 = vadd.f32 0.0, %v9468
      %v9470 = vpop.f32.mrf.mxu0
      %v9471 = vadd.f32 0.0, %v9470
      %9472 = vmatmul.bf16.gmra.mxu0 %v9439
      %v9473 = vpop.f32.mrf.mxu0
      %v9474 = vadd.f32 0.0, %v9473
      %v9475 = vpop.f32.mrf.mxu0
      %v9476 = vadd.f32 0.0, %v9475
      %9477 = vmatmul.bf16.gmra.mxu0 %v9442
      %v9478 = vpop.f32.mrf.mxu0
      %v9479 = vadd.f32 0.0, %v9478
      %v9480 = vpop.f32.mrf.mxu0
      %v9481 = vadd.f32 0.0, %v9480
      %9482 = vmatmul.bf16.gmra.mxu0 %v9445
      %v9483 = vpop.f32.mrf.mxu0
      %v9484 = vadd.f32 0.0, %v9483
      %v9485 = vpop.f32.mrf.mxu0
      %v9486 = vadd.f32 0.0, %v9485
      %9487 = vmatmul.bf16.gmra.mxu0 %v9448
      %v9488 = vpop.f32.mrf.mxu0
      %v9489 = vadd.f32 0.0, %v9488
      %v9490 = vpop.f32.mrf.mxu0
      %v9491 = vadd.f32 0.0, %v9490
      %9492 = vmatmul.bf16.gmra.mxu0 %v9451
      %v9493 = vpop.f32.mrf.mxu0
      %v9494 = vadd.f32 0.0, %v9493
      %v9495 = vpop.f32.mrf.mxu0
      %v9496 = vadd.f32 0.0, %v9495
      %9497 = vmatmul.bf16.gmra.mxu0 %v9454
      %v9498 = vpop.f32.mrf.mxu0
      %v9499 = vadd.f32 0.0, %v9498
      %v9500 = vpop.f32.mrf.mxu0
      %v9501 = vadd.f32 0.0, %v9500
      %9502 = vmatmul.bf16.gmra.mxu0 %v9457
      %v9503 = vpop.f32.mrf.mxu0
      %v9504 = vadd.f32 0.0, %v9503
      %v9505 = vpop.f32.mrf.mxu0
      %9506 = vdwg.mxu0
      %v9507 = vadd.f32 %v9401, %v9469
      %v9508 = vadd.f32 %v9402, %v9471
      %v9509 = vadd.f32 %v9403, %v9474
      %v9510 = vadd.f32 %v9404, %v9476
      %v9511 = vadd.f32 %v9405, %v9479
      %v9512 = vadd.f32 %v9406, %v9481
      %v9513 = vadd.f32 %v9407, %v9484
      %v9514 = vadd.f32 %v9408, %v9486
      %v9515 = vadd.f32 %v9409, %v9489
      %v9516 = vadd.f32 %v9410, %v9491
      %v9517 = vadd.f32 %v9411, %v9494
      %v9518 = vadd.f32 %v9412, %v9496
      %v9519 = vadd.f32 %v9413, %v9499
      %v9520 = vadd.f32 %v9414, %v9501
      %v9521 = vadd.f32 %v9415, %v9504
      %v9522 = vld [vmem:[#allocation5 + $0x10] sm:$0xf]
      %v9523 = vld [vmem:[#allocation5 + $0x24] sm:$0xf]
      %9524 = vrot.lane.b32.xlu0 %v9106, 64
      %v9525 = vpop.permute.xlu0 %9524
      %9526 = vrot.lane.b32.xlu0 %v9107, 64
      %v9527 = vpop.permute.xlu0 %9526
      %9528 = vrot.lane.b32.xlu0 %v9108, 64
      %v9529 = vpop.permute.xlu0 %9528
      %9530 = vrot.lane.b32.xlu0 %v9109, 64
      %v9531 = vpop.permute.xlu0 %9530
      %9532 = vrot.lane.b32.xlu0 %v9110, 64
      %v9533 = vpop.permute.xlu0 %9532
      %9534 = vrot.lane.b32.xlu0 %v9111, 64
      %v9535 = vpop.permute.xlu0 %9534
      %9536 = vrot.lane.b32.xlu0 %v9112, 64
      %v9537 = vpop.permute.xlu0 %9536
      %9538 = vrot.lane.b32.xlu0 %v9113, 64
      %v9539 = vpop.permute.xlu0 %9538
      %v9542 = vunpack.c.l.b16 %v9522
      %v9543 = vunpack.c.l.b16 %v9523
      %v9544 = vpack.c.b16 %v9543, %v9542
      %v9547 = vsel %vm7379, %v9525, 0
      %v9550 = vsel %vm7379, %v9527, 0
      %v9553 = vsel %vm7379, %v9529, 0
      %v9556 = vsel %vm7379, %v9531, 0
      %v9559 = vsel %vm7379, %v9533, 0
      %v9562 = vsel %vm7379, %v9535, 0
      %v9565 = vsel %vm7379, %v9537, 0
      %v9568 = vsel %vm7379, %v9539, 0
      %9570 = vmatpush.bf16.msra.mxu0 0
      %9571 = vmatpush.bf16.msra.mxu0 0
      %9572 = vmatpush.bf16.msra.mxu0 0
      %9573 = vmatpush.bf16.msra.mxu0 0
      %9574 = vmatpush.bf16.msra.mxu0 0
      %9575 = vmatpush.bf16.msra.mxu0 0
      %9576 = vmatpush.bf16.msra.mxu0 0
      %9577 = vmatpush.bf16.msra.mxu0 %v9544
      %9578 = vmatmul.bf16.gmra.mxu0 %v9547
      %v9579 = vpop.f32.mrf.mxu0
      %v9580 = vadd.f32 0.0, %v9579
      %v9581 = vpop.f32.mrf.mxu0
      %v9582 = vadd.f32 0.0, %v9581
      %9583 = vmatmul.bf16.gmra.mxu0 %v9550
      %v9584 = vpop.f32.mrf.mxu0
      %v9585 = vadd.f32 0.0, %v9584
      %v9586 = vpop.f32.mrf.mxu0
      %v9587 = vadd.f32 0.0, %v9586
      %9588 = vmatmul.bf16.gmra.mxu0 %v9553
      %v9589 = vpop.f32.mrf.mxu0
      %v9590 = vadd.f32 0.0, %v9589
      %v9591 = vpop.f32.mrf.mxu0
      %v9592 = vadd.f32 0.0, %v9591
      %9593 = vmatmul.bf16.gmra.mxu0 %v9556
      %v9594 = vpop.f32.mrf.mxu0
      %v9595 = vadd.f32 0.0, %v9594
      %v9596 = vpop.f32.mrf.mxu0
      %v9597 = vadd.f32 0.0, %v9596
      %9598 = vmatmul.bf16.gmra.mxu0 %v9559
      %v9599 = vpop.f32.mrf.mxu0
      %v9600 = vadd.f32 0.0, %v9599
      %v9601 = vpop.f32.mrf.mxu0
      %v9602 = vadd.f32 0.0, %v9601
      %9603 = vmatmul.bf16.gmra.mxu0 %v9562
      %v9604 = vpop.f32.mrf.mxu0
      %v9605 = vadd.f32 0.0, %v9604
      %v9606 = vpop.f32.mrf.mxu0
      %v9607 = vadd.f32 0.0, %v9606
      %9608 = vmatmul.bf16.gmra.mxu0 %v9565
      %v9609 = vpop.f32.mrf.mxu0
      %v9610 = vadd.f32 0.0, %v9609
      %v9611 = vpop.f32.mrf.mxu0
      %v9612 = vadd.f32 0.0, %v9611
      %9613 = vmatmul.bf16.gmra.mxu0 %v9568
      %v9614 = vpop.f32.mrf.mxu0
      %v9615 = vadd.f32 0.0, %v9614
      %v9616 = vpop.f32.mrf.mxu0
      %9617 = vdwg.mxu0
      %v9618 = vadd.f32 %v9507, %v9580
      %v9619 = vadd.f32 %v9508, %v9582
      %v9620 = vadd.f32 %v9509, %v9585
      %v9621 = vadd.f32 %v9510, %v9587
      %v9622 = vadd.f32 %v9511, %v9590
      %v9623 = vadd.f32 %v9512, %v9592
      %v9624 = vadd.f32 %v9513, %v9595
      %v9625 = vadd.f32 %v9514, %v9597
      %v9626 = vadd.f32 %v9515, %v9600
      %v9627 = vadd.f32 %v9516, %v9602
      %v9628 = vadd.f32 %v9517, %v9605
      %v9629 = vadd.f32 %v9518, %v9607
      %v9630 = vadd.f32 %v9519, %v9610
      %v9631 = vadd.f32 %v9520, %v9612
      %v9632 = vadd.f32 %v9521, %v9615
      %9633 = vrot.lane.b32.xlu0 %v9106, 48
      %v9634 = vpop.permute.xlu0 %9633
      %9635 = vrot.lane.b32.xlu0 %v9107, 48
      %v9636 = vpop.permute.xlu0 %9635
      %9637 = vrot.lane.b32.xlu0 %v9108, 48
      %v9638 = vpop.permute.xlu0 %9637
      %9639 = vrot.lane.b32.xlu0 %v9109, 48
      %v9640 = vpop.permute.xlu0 %9639
      %9641 = vrot.lane.b32.xlu0 %v9110, 48
      %v9642 = vpop.permute.xlu0 %9641
      %9643 = vrot.lane.b32.xlu0 %v9111, 48
      %v9644 = vpop.permute.xlu0 %9643
      %9645 = vrot.lane.b32.xlu0 %v9112, 48
      %v9646 = vpop.permute.xlu0 %9645
      %9647 = vrot.lane.b32.xlu0 %v9113, 48
      %v9648 = vpop.permute.xlu0 %9647
      %9649 = vrot.lane.b32.xlu0 %v9544, 124
      %v9650 = vpop.permute.xlu0 %9649
      %v9653 = vsel %vm7379, %v9634, 0
      %v9656 = vsel %vm7379, %v9636, 0
      %v9659 = vsel %vm7379, %v9638, 0
      %v9662 = vsel %vm7379, %v9640, 0
      %v9665 = vsel %vm7379, %v9642, 0
      %v9668 = vsel %vm7379, %v9644, 0
      %v9671 = vsel %vm7379, %v9646, 0
      %v9674 = vsel %vm7379, %v9648, 0
      %9676 = vmatpush.bf16.msra.mxu0 0
      %9677 = vmatpush.bf16.msra.mxu0 0
      %9678 = vmatpush.bf16.msra.mxu0 0
      %9679 = vmatpush.bf16.msra.mxu0 0
      %9680 = vmatpush.bf16.msra.mxu0 0
      %9681 = vmatpush.bf16.msra.mxu0 0
      %9682 = vmatpush.bf16.msra.mxu0 0
      %9683 = vmatpush.bf16.msra.mxu0 %v9650
      %9684 = vmatmul.bf16.gmra.mxu0 %v9653
      %v9685 = vpop.f32.mrf.mxu0
      %v9686 = vadd.f32 0.0, %v9685
      %v9687 = vpop.f32.mrf.mxu0
      %v9688 = vadd.f32 0.0, %v9687
      %9689 = vmatmul.bf16.gmra.mxu0 %v9656
      %v9690 = vpop.f32.mrf.mxu0
      %v9691 = vadd.f32 0.0, %v9690
      %v9692 = vpop.f32.mrf.mxu0
      %v9693 = vadd.f32 0.0, %v9692
      %9694 = vmatmul.bf16.gmra.mxu0 %v9659
      %v9695 = vpop.f32.mrf.mxu0
      %v9696 = vadd.f32 0.0, %v9695
      %v9697 = vpop.f32.mrf.mxu0
      %v9698 = vadd.f32 0.0, %v9697
      %9699 = vmatmul.bf16.gmra.mxu0 %v9662
      %v9700 = vpop.f32.mrf.mxu0
      %v9701 = vadd.f32 0.0, %v9700
      %v9702 = vpop.f32.mrf.mxu0
      %v9703 = vadd.f32 0.0, %v9702
      %9704 = vmatmul.bf16.gmra.mxu0 %v9665
      %v9705 = vpop.f32.mrf.mxu0
      %v9706 = vadd.f32 0.0, %v9705
      %v9707 = vpop.f32.mrf.mxu0
      %v9708 = vadd.f32 0.0, %v9707
      %9709 = vmatmul.bf16.gmra.mxu0 %v9668
      %v9710 = vpop.f32.mrf.mxu0
      %v9711 = vadd.f32 0.0, %v9710
      %v9712 = vpop.f32.mrf.mxu0
      %v9713 = vadd.f32 0.0, %v9712
      %9714 = vmatmul.bf16.gmra.mxu0 %v9671
      %v9715 = vpop.f32.mrf.mxu0
      %v9716 = vadd.f32 0.0, %v9715
      %v9717 = vpop.f32.mrf.mxu0
      %v9718 = vadd.f32 0.0, %v9717
      %9719 = vmatmul.bf16.gmra.mxu0 %v9674
      %v9720 = vpop.f32.mrf.mxu0
      %v9721 = vadd.f32 0.0, %v9720
      %v9722 = vpop.f32.mrf.mxu0
      %9723 = vdwg.mxu0
      %v9724 = vadd.f32 %v9618, %v9686
      %v9725 = vadd.f32 %v9619, %v9688
      %v9726 = vadd.f32 %v9620, %v9691
      %v9727 = vadd.f32 %v9621, %v9693
      %v9728 = vadd.f32 %v9622, %v9696
      %v9729 = vadd.f32 %v9623, %v9698
      %v9730 = vadd.f32 %v9624, %v9701
      %v9731 = vadd.f32 %v9625, %v9703
      %v9732 = vadd.f32 %v9626, %v9706
      %v9733 = vadd.f32 %v9627, %v9708
      %v9734 = vadd.f32 %v9628, %v9711
      %v9735 = vadd.f32 %v9629, %v9713
      %v9736 = vadd.f32 %v9630, %v9716
      %v9737 = vadd.f32 %v9631, %v9718
      %v9738 = vadd.f32 %v9632, %v9721
      %9739 = vrot.lane.b32.xlu0 %v9106, 32
      %v9740 = vpop.permute.xlu0 %9739
      %9741 = vrot.lane.b32.xlu0 %v9107, 32
      %v9742 = vpop.permute.xlu0 %9741
      %9743 = vrot.lane.b32.xlu0 %v9108, 32
      %v9744 = vpop.permute.xlu0 %9743
      %9745 = vrot.lane.b32.xlu0 %v9109, 32
      %v9746 = vpop.permute.xlu0 %9745
      %9747 = vrot.lane.b32.xlu0 %v9110, 32
      %v9748 = vpop.permute.xlu0 %9747
      %9749 = vrot.lane.b32.xlu0 %v9111, 32
      %v9750 = vpop.permute.xlu0 %9749
      %9751 = vrot.lane.b32.xlu0 %v9112, 32
      %v9752 = vpop.permute.xlu0 %9751
      %9753 = vrot.lane.b32.xlu0 %v9113, 32
      %v9754 = vpop.permute.xlu0 %9753
      %9755 = vrot.lane.b32.xlu0 %v9544, 120
      %v9756 = vpop.permute.xlu0 %9755
      %v9759 = vsel %vm7379, %v9740, 0
      %v9762 = vsel %vm7379, %v9742, 0
      %v9765 = vsel %vm7379, %v9744, 0
      %v9768 = vsel %vm7379, %v9746, 0
      %v9771 = vsel %vm7379, %v9748, 0
      %v9774 = vsel %vm7379, %v9750, 0
      %v9777 = vsel %vm7379, %v9752, 0
      %v9780 = vsel %vm7379, %v9754, 0
      %9782 = vmatpush.bf16.msra.mxu0 0
      %9783 = vmatpush.bf16.msra.mxu0 0
      %9784 = vmatpush.bf16.msra.mxu0 0
      %9785 = vmatpush.bf16.msra.mxu0 0
      %9786 = vmatpush.bf16.msra.mxu0 0
      %9787 = vmatpush.bf16.msra.mxu0 0
      %9788 = vmatpush.bf16.msra.mxu0 0
      %9789 = vmatpush.bf16.msra.mxu0 %v9756
      %9790 = vmatmul.bf16.gmra.mxu0 %v9759
      %v9791 = vpop.f32.mrf.mxu0
      %v9792 = vadd.f32 0.0, %v9791
      %v9793 = vpop.f32.mrf.mxu0
      %v9794 = vadd.f32 0.0, %v9793
      %9795 = vmatmul.bf16.gmra.mxu0 %v9762
      %v9796 = vpop.f32.mrf.mxu0
      %v9797 = vadd.f32 0.0, %v9796
      %v9798 = vpop.f32.mrf.mxu0
      %v9799 = vadd.f32 0.0, %v9798
      %9800 = vmatmul.bf16.gmra.mxu0 %v9765
      %v9801 = vpop.f32.mrf.mxu0
      %v9802 = vadd.f32 0.0, %v9801
      %v9803 = vpop.f32.mrf.mxu0
      %v9804 = vadd.f32 0.0, %v9803
      %9805 = vmatmul.bf16.gmra.mxu0 %v9768
      %v9806 = vpop.f32.mrf.mxu0
      %v9807 = vadd.f32 0.0, %v9806
      %v9808 = vpop.f32.mrf.mxu0
      %v9809 = vadd.f32 0.0, %v9808
      %9810 = vmatmul.bf16.gmra.mxu0 %v9771
      %v9811 = vpop.f32.mrf.mxu0
      %v9812 = vadd.f32 0.0, %v9811
      %v9813 = vpop.f32.mrf.mxu0
      %v9814 = vadd.f32 0.0, %v9813
      %9815 = vmatmul.bf16.gmra.mxu0 %v9774
      %v9816 = vpop.f32.mrf.mxu0
      %v9817 = vadd.f32 0.0, %v9816
      %v9818 = vpop.f32.mrf.mxu0
      %v9819 = vadd.f32 0.0, %v9818
      %9820 = vmatmul.bf16.gmra.mxu0 %v9777
      %v9821 = vpop.f32.mrf.mxu0
      %v9822 = vadd.f32 0.0, %v9821
      %v9823 = vpop.f32.mrf.mxu0
      %v9824 = vadd.f32 0.0, %v9823
      %9825 = vmatmul.bf16.gmra.mxu0 %v9780
      %v9826 = vpop.f32.mrf.mxu0
      %v9827 = vadd.f32 0.0, %v9826
      %v9828 = vpop.f32.mrf.mxu0
      %9829 = vdwg.mxu0
      %v9830 = vadd.f32 %v9724, %v9792
      %v9831 = vadd.f32 %v9725, %v9794
      %v9832 = vadd.f32 %v9726, %v9797
      %v9833 = vadd.f32 %v9727, %v9799
      %v9834 = vadd.f32 %v9728, %v9802
      %v9835 = vadd.f32 %v9729, %v9804
      %v9836 = vadd.f32 %v9730, %v9807
      %v9837 = vadd.f32 %v9731, %v9809
      %v9838 = vadd.f32 %v9732, %v9812
      %v9839 = vadd.f32 %v9733, %v9814
      %v9840 = vadd.f32 %v9734, %v9817
      %v9841 = vadd.f32 %v9735, %v9819
      %v9842 = vadd.f32 %v9736, %v9822
      %v9843 = vadd.f32 %v9737, %v9824
      %v9844 = vadd.f32 %v9738, %v9827
      %9845 = vrot.lane.b32.xlu0 %v9106, 16
      %v9846 = vpop.permute.xlu0 %9845
      %9847 = vrot.lane.b32.xlu0 %v9107, 16
      %v9848 = vpop.permute.xlu0 %9847
      %9849 = vrot.lane.b32.xlu0 %v9108, 16
      %v9850 = vpop.permute.xlu0 %9849
      %9851 = vrot.lane.b32.xlu0 %v9109, 16
      %v9852 = vpop.permute.xlu0 %9851
      %9853 = vrot.lane.b32.xlu0 %v9110, 16
      %v9854 = vpop.permute.xlu0 %9853
      %9855 = vrot.lane.b32.xlu0 %v9111, 16
      %v9856 = vpop.permute.xlu0 %9855
      %9857 = vrot.lane.b32.xlu0 %v9112, 16
      %v9858 = vpop.permute.xlu0 %9857
      %9859 = vrot.lane.b32.xlu0 %v9113, 16
      %v9860 = vpop.permute.xlu0 %9859
      %9861 = vrot.lane.b32.xlu0 %v9544, 116
      %v9862 = vpop.permute.xlu0 %9861
      %v9865 = vsel %vm7379, %v9846, 0
      %v9868 = vsel %vm7379, %v9848, 0
      %v9871 = vsel %vm7379, %v9850, 0
      %v9874 = vsel %vm7379, %v9852, 0
      %v9877 = vsel %vm7379, %v9854, 0
      %v9880 = vsel %vm7379, %v9856, 0
      %v9883 = vsel %vm7379, %v9858, 0
      %v9886 = vsel %vm7379, %v9860, 0
      %9888 = vmatpush.bf16.msra.mxu0 0
      %9889 = vmatpush.bf16.msra.mxu0 0
      %9890 = vmatpush.bf16.msra.mxu0 0
      %9891 = vmatpush.bf16.msra.mxu0 0
      %9892 = vmatpush.bf16.msra.mxu0 0
      %9893 = vmatpush.bf16.msra.mxu0 0
      %9894 = vmatpush.bf16.msra.mxu0 0
      %9895 = vmatpush.bf16.msra.mxu0 %v9862
      %9896 = vmatmul.bf16.gmra.mxu0 %v9865
      %v9897 = vpop.f32.mrf.mxu0
      %v9898 = vadd.f32 0.0, %v9897
      %v9899 = vpop.f32.mrf.mxu0
      %v9900 = vadd.f32 0.0, %v9899
      %9901 = vmatmul.bf16.gmra.mxu0 %v9868
      %v9902 = vpop.f32.mrf.mxu0
      %v9903 = vadd.f32 0.0, %v9902
      %v9904 = vpop.f32.mrf.mxu0
      %v9905 = vadd.f32 0.0, %v9904
      %9906 = vmatmul.bf16.gmra.mxu0 %v9871
      %v9907 = vpop.f32.mrf.mxu0
      %v9908 = vadd.f32 0.0, %v9907
      %v9909 = vpop.f32.mrf.mxu0
      %v9910 = vadd.f32 0.0, %v9909
      %9911 = vmatmul.bf16.gmra.mxu0 %v9874
      %v9912 = vpop.f32.mrf.mxu0
      %v9913 = vadd.f32 0.0, %v9912
      %v9914 = vpop.f32.mrf.mxu0
      %v9915 = vadd.f32 0.0, %v9914
      %9916 = vmatmul.bf16.gmra.mxu0 %v9877
      %v9917 = vpop.f32.mrf.mxu0
      %v9918 = vadd.f32 0.0, %v9917
      %v9919 = vpop.f32.mrf.mxu0
      %v9920 = vadd.f32 0.0, %v9919
      %9921 = vmatmul.bf16.gmra.mxu0 %v9880
      %v9922 = vpop.f32.mrf.mxu0
      %v9923 = vadd.f32 0.0, %v9922
      %v9924 = vpop.f32.mrf.mxu0
      %v9925 = vadd.f32 0.0, %v9924
      %9926 = vmatmul.bf16.gmra.mxu0 %v9883
      %v9927 = vpop.f32.mrf.mxu0
      %v9928 = vadd.f32 0.0, %v9927
      %v9929 = vpop.f32.mrf.mxu0
      %v9930 = vadd.f32 0.0, %v9929
      %9931 = vmatmul.bf16.gmra.mxu0 %v9886
      %v9932 = vpop.f32.mrf.mxu0
      %v9933 = vadd.f32 0.0, %v9932
      %v9934 = vpop.f32.mrf.mxu0
      %9935 = vdwg.mxu0
      %v9936 = vadd.f32 %v9830, %v9898
      %v9937 = vadd.f32 %v9831, %v9900
      %v9938 = vadd.f32 %v9832, %v9903
      %v9939 = vadd.f32 %v9833, %v9905
      %v9940 = vadd.f32 %v9834, %v9908
      %v9941 = vadd.f32 %v9835, %v9910
      %v9942 = vadd.f32 %v9836, %v9913
      %v9943 = vadd.f32 %v9837, %v9915
      %v9944 = vadd.f32 %v9838, %v9918
      %v9945 = vadd.f32 %v9839, %v9920
      %v9946 = vadd.f32 %v9840, %v9923
      %v9947 = vadd.f32 %v9841, %v9925
      %v9948 = vadd.f32 %v9842, %v9928
      %v9949 = vadd.f32 %v9843, %v9930
      %v9950 = vadd.f32 %v9844, %v9933
      %v9951 = vld [vmem:[%s5 + $0xc] sm:$0xf]
      %v9952 = vld [vmem:[%s5 + $0x1c] sm:$0xf]
      %v9953 = vld [vmem:[%s5 + $0x2c] sm:$0xf]
      %v9954 = vld [vmem:[%s5 + $0x3c] sm:$0xf]
      %v9955 = vld [vmem:[%s5 + $0x4c] sm:$0xf]
      %v9956 = vld [vmem:[%s5 + $0x5c] sm:$0xf]
      %v9957 = vld [vmem:[%s5 + $0x6c] sm:$0xf]
      %v9958 = vld [vmem:[%s5 + $0x7c] sm:$0xf]
      %v9959 = vld [vmem:[%s5 + $0x8c] sm:$0xf]
      %v9960 = vld [vmem:[%s5 + $0x9c] sm:$0xf]
      %v9961 = vld [vmem:[%s5 + $0xac] sm:$0xf]
      %v9962 = vld [vmem:[%s5 + $0xbc] sm:$0xf]
      %v9963 = vld [vmem:[%s5 + $0xcc] sm:$0xf]
      %v9964 = vld [vmem:[%s5 + $0xdc] sm:$0xf]
      %v9965 = vld [vmem:[%s5 + $0xec] sm:$0xf]
      %v9981 = vunpack.c.l.b16 %v9951
      %v9982 = vunpack.c.l.b16 %v9952
      %v9983 = vunpack.c.l.b16 %v9953
      %v9984 = vunpack.c.l.b16 %v9954
      %v9985 = vunpack.c.l.b16 %v9955
      %v9986 = vunpack.c.l.b16 %v9956
      %v9987 = vunpack.c.l.b16 %v9957
      %v9988 = vunpack.c.l.b16 %v9958
      %v9989 = vunpack.c.l.b16 %v9959
      %v9990 = vunpack.c.l.b16 %v9960
      %v9991 = vunpack.c.l.b16 %v9961
      %v9992 = vunpack.c.l.b16 %v9962
      %v9993 = vunpack.c.l.b16 %v9963
      %v9994 = vunpack.c.l.b16 %v9964
      %v9995 = vunpack.c.l.b16 %v9965
      %v9996 = vpack.c.b16 %v9982, %v9981
      %v9997 = vpack.c.b16 %v9984, %v9983
      %v9998 = vpack.c.b16 %v9986, %v9985
      %v9999 = vpack.c.b16 %v9988, %v9987
      %v10000 = vpack.c.b16 %v9990, %v9989
      %v10001 = vpack.c.b16 %v9992, %v9991
      %v10002 = vpack.c.b16 %v9994, %v9993
      %v10003 = vpack.c.b16 %v9995, %v9995
      %10004 = vrot.lane.b32.xlu0 %v9544, 112
      %v10005 = vpop.permute.xlu0 %10004
      %v10008 = vsel %vm7379, %v9996, 0
      %v10011 = vsel %vm7379, %v9997, 0
      %v10014 = vsel %vm7379, %v9998, 0
      %v10017 = vsel %vm7379, %v9999, 0
      %v10020 = vsel %vm7379, %v10000, 0
      %v10023 = vsel %vm7379, %v10001, 0
      %v10026 = vsel %vm7379, %v10002, 0
      %v10029 = vsel %vm7379, %v10003, 0
      %10031 = vmatpush.bf16.msra.mxu0 0
      %10032 = vmatpush.bf16.msra.mxu0 0
      %10033 = vmatpush.bf16.msra.mxu0 0
      %10034 = vmatpush.bf16.msra.mxu0 0
      %10035 = vmatpush.bf16.msra.mxu0 0
      %10036 = vmatpush.bf16.msra.mxu0 0
      %10037 = vmatpush.bf16.msra.mxu0 0
      %10038 = vmatpush.bf16.msra.mxu0 %v10005
      %10039 = vmatmul.bf16.gmra.mxu0 %v10008
      %v10040 = vpop.f32.mrf.mxu0
      %v10041 = vadd.f32 0.0, %v10040
      %v10042 = vpop.f32.mrf.mxu0
      %v10043 = vadd.f32 0.0, %v10042
      %10044 = vmatmul.bf16.gmra.mxu0 %v10011
      %v10045 = vpop.f32.mrf.mxu0
      %v10046 = vadd.f32 0.0, %v10045
      %v10047 = vpop.f32.mrf.mxu0
      %v10048 = vadd.f32 0.0, %v10047
      %10049 = vmatmul.bf16.gmra.mxu0 %v10014
      %v10050 = vpop.f32.mrf.mxu0
      %v10051 = vadd.f32 0.0, %v10050
      %v10052 = vpop.f32.mrf.mxu0
      %v10053 = vadd.f32 0.0, %v10052
      %10054 = vmatmul.bf16.gmra.mxu0 %v10017
      %v10055 = vpop.f32.mrf.mxu0
      %v10056 = vadd.f32 0.0, %v10055
      %v10057 = vpop.f32.mrf.mxu0
      %v10058 = vadd.f32 0.0, %v10057
      %10059 = vmatmul.bf16.gmra.mxu0 %v10020
      %v10060 = vpop.f32.mrf.mxu0
      %v10061 = vadd.f32 0.0, %v10060
      %v10062 = vpop.f32.mrf.mxu0
      %v10063 = vadd.f32 0.0, %v10062
      %10064 = vmatmul.bf16.gmra.mxu0 %v10023
      %v10065 = vpop.f32.mrf.mxu0
      %v10066 = vadd.f32 0.0, %v10065
      %v10067 = vpop.f32.mrf.mxu0
      %v10068 = vadd.f32 0.0, %v10067
      %10069 = vmatmul.bf16.gmra.mxu0 %v10026
      %v10070 = vpop.f32.mrf.mxu0
      %v10071 = vadd.f32 0.0, %v10070
      %v10072 = vpop.f32.mrf.mxu0
      %v10073 = vadd.f32 0.0, %v10072
      %10074 = vmatmul.bf16.gmra.mxu0 %v10029
      %v10075 = vpop.f32.mrf.mxu0
      %v10076 = vadd.f32 0.0, %v10075
      %v10077 = vpop.f32.mrf.mxu0
      %10078 = vdwg.mxu0
      %v10079 = vadd.f32 %v9936, %v10041
      %v10080 = vadd.f32 %v9937, %v10043
      %v10081 = vadd.f32 %v9938, %v10046
      %v10082 = vadd.f32 %v9939, %v10048
      %v10083 = vadd.f32 %v9940, %v10051
      %v10084 = vadd.f32 %v9941, %v10053
      %v10085 = vadd.f32 %v9942, %v10056
      %v10086 = vadd.f32 %v9943, %v10058
      %v10087 = vadd.f32 %v9944, %v10061
      %v10088 = vadd.f32 %v9945, %v10063
      %v10089 = vadd.f32 %v9946, %v10066
      %v10090 = vadd.f32 %v9947, %v10068
      %v10091 = vadd.f32 %v9948, %v10071
      %v10092 = vadd.f32 %v9949, %v10073
      %v10093 = vadd.f32 %v9950, %v10076
      %v10094 = vld [vmem:[%s6] sm:$0xff]
      %v10095 = vld [vmem:[%s6 + $0x8] sm:$0xff]
      %v10096 = vld [vmem:[%s6 + $0x10] sm:$0xff]
      %v10097 = vld [vmem:[%s6 + $0x18] sm:$0xff]
      %v10098 = vld [vmem:[%s6 + $0x20] sm:$0xff]
      %v10099 = vld [vmem:[%s6 + $0x28] sm:$0xff]
      %v10100 = vld [vmem:[%s6 + $0x30] sm:$0xff]
      %v10101 = vld [vmem:[%s6 + $0x38] sm:$0xff]
      %v10102 = vld [vmem:[%s6 + $0x40] sm:$0xff]
      %v10103 = vld [vmem:[%s6 + $0x48] sm:$0xff]
      %v10104 = vld [vmem:[%s6 + $0x50] sm:$0xff]
      %v10105 = vld [vmem:[%s6 + $0x58] sm:$0xff]
      %v10106 = vld [vmem:[%s6 + $0x60] sm:$0xff]
      %v10107 = vld [vmem:[%s6 + $0x68] sm:$0xff]
      %v10108 = vld [vmem:[%s6 + $0x70] sm:$0xff]
      %v10109 = vadd.f32 %v10079, %v10094
      %v10110 = vadd.f32 %v10080, %v10095
      %v10111 = vadd.f32 %v10081, %v10096
      %v10112 = vadd.f32 %v10082, %v10097
      %v10113 = vadd.f32 %v10083, %v10098
      %v10114 = vadd.f32 %v10084, %v10099
      %v10115 = vadd.f32 %v10085, %v10100
      %v10116 = vadd.f32 %v10086, %v10101
      %v10117 = vadd.f32 %v10087, %v10102
      %v10118 = vadd.f32 %v10088, %v10103
      %v10119 = vadd.f32 %v10089, %v10104
      %v10120 = vadd.f32 %v10090, %v10105
      %v10121 = vadd.f32 %v10091, %v10106
      %v10122 = vadd.f32 %v10092, %v10107
      %v10123 = vadd.f32 %v10093, %v10108
      %v10124 = vmax.f32 %v10109, 0.0
      %v10125 = vmax.f32 %v10110, 0.0
      %v10126 = vmax.f32 %v10111, 0.0
      %v10127 = vmax.f32 %v10112, 0.0
      %v10128 = vmax.f32 %v10113, 0.0
      %v10129 = vmax.f32 %v10114, 0.0
      %v10130 = vmax.f32 %v10115, 0.0
      %v10131 = vmax.f32 %v10116, 0.0
      %v10132 = vmax.f32 %v10117, 0.0
      %v10133 = vmax.f32 %v10118, 0.0
      %v10134 = vmax.f32 %v10119, 0.0
      %v10135 = vmax.f32 %v10120, 0.0
      %v10136 = vmax.f32 %v10121, 0.0
      %v10137 = vmax.f32 %v10122, 0.0
      %v10138 = vmax.f32 %v10123, 0.0
      %v10139 = vld [vmem:[%s7] sm:$0xf]
      %v10140 = vld [vmem:[%s7 + $0x4] sm:$0xf]
      %v10141 = vld [vmem:[%s7 + $0x8] sm:$0xf]
      %v10142 = vld [vmem:[%s7 + $0xc] sm:$0xf]
      %v10143 = vld [vmem:[%s7 + $0x10] sm:$0xf]
      %v10144 = vld [vmem:[%s7 + $0x14] sm:$0xf]
      %v10145 = vld [vmem:[%s7 + $0x18] sm:$0xf]
      %v10146 = vld [vmem:[%s7 + $0x1c] sm:$0xf]
      %v10147 = vld [vmem:[%s7 + $0x20] sm:$0xf]
      %v10148 = vld [vmem:[%s7 + $0x24] sm:$0xf]
      %v10149 = vld [vmem:[%s7 + $0x28] sm:$0x3]
      %v10150 = vpack.c.bf16 %v10125, %v10124
      %v10151 = vpack.c.bf16 %v10127, %v10126
      %v10152 = vpack.c.bf16 %v10129, %v10128
      %v10153 = vpack.c.bf16 %v10131, %v10130
      %v10154 = vpack.c.bf16 %v10133, %v10132
      %v10155 = vpack.c.bf16 %v10135, %v10134
      %v10156 = vpack.c.bf16 %v10137, %v10136
      %v10157 = vpack.c.bf16 %v10138, %v10138
      %v10158 = vld [vmem:[%s8] sm:$0xff]
      %v10159 = vld [vmem:[%s8 + $0x8] sm:$0xff]
      %v10160 = vld [vmem:[%s8 + $0x10] sm:$0xff]
      %v10161 = vld [vmem:[%s8 + $0x18] sm:$0xff]
      %v10162 = vld [vmem:[%s8 + $0x20] sm:$0xff]
      %v10163 = vld [vmem:[%s8 + $0x28] sm:$0xff]
      %v10164 = vld [vmem:[%s8 + $0x30] sm:$0xff]
      %v10165 = vld [vmem:[%s8 + $0x38] sm:$0xff]
      %v10166 = vld [vmem:[%s8 + $0x40] sm:$0xff]
      %v10167 = vld [vmem:[%s8 + $0x48] sm:$0xff]
      %v10168 = vld [vmem:[%s8 + $0x50] sm:$0xf]
      %v10180 = vunpack.c.l.b16 %v10139
      %v10181 = vunpack.c.l.b16 %v10140
      %v10182 = vunpack.c.l.b16 %v10141
      %v10183 = vunpack.c.l.b16 %v10142
      %v10184 = vunpack.c.l.b16 %v10143
      %v10185 = vunpack.c.l.b16 %v10144
      %v10186 = vunpack.c.l.b16 %v10145
      %v10187 = vunpack.c.l.b16 %v10146
      %v10188 = vunpack.c.l.b16 %v10147
      %v10189 = vunpack.c.l.b16 %v10148
      %v10190 = vunpack.c.l.b16 %v10149
      %v10191 = vpack.c.b16 %v10181, %v10180
      %v10192 = vpack.c.b16 %v10183, %v10182
      %v10193 = vpack.c.b16 %v10185, %v10184
      %v10194 = vpack.c.b16 %v10187, %v10186
      %v10195 = vpack.c.b16 %v10189, %v10188
      %v10196 = vpack.c.b16 %v10190, %v10190
      %vm10197 = vcmask 982016
      %v10199 = vsel %vm10197, %v10191, 0
      %v10202 = vsel %vm10197, %v10192, 0
      %v10205 = vsel %vm10197, %v10193, 0
      %v10208 = vsel %vm10197, %v10194, 0
      %v10211 = vsel %vm10197, %v10195, 0
      %v10214 = vsel %vm10197, %v10196, 0
      %v10217 = vsel %vm441, %v10157, 0
      %10219 = vmatpush.bf16.msra.mxu0 %v10217
      %10220 = vmatpush.bf16.msra.mxu0 %v10156
      %10221 = vmatpush.bf16.msra.mxu0 %v10155
      %10222 = vmatpush.bf16.msra.mxu0 %v10154
      %10223 = vmatpush.bf16.msra.mxu0 %v10153
      %10224 = vmatpush.bf16.msra.mxu0 %v10152
      %10225 = vmatpush.bf16.msra.mxu0 %v10151
      %10226 = vmatpush.bf16.msra.mxu0 %v10150
      %10227 = vmatmul.bf16.gmra.mxu0 %v10199
      %v10228 = vpop.f32.mrf.mxu0
      %v10229 = vadd.f32 %v10158, %v10228
      %v10230 = vpop.f32.mrf.mxu0
      %v10231 = vadd.f32 %v10159, %v10230
      %10232 = vmatmul.bf16.gmra.mxu0 %v10202
      %v10233 = vpop.f32.mrf.mxu0
      %v10234 = vadd.f32 %v10160, %v10233
      %v10235 = vpop.f32.mrf.mxu0
      %v10236 = vadd.f32 %v10161, %v10235
      %10237 = vmatmul.bf16.gmra.mxu0 %v10205
      %v10238 = vpop.f32.mrf.mxu0
      %v10239 = vadd.f32 %v10162, %v10238
      %v10240 = vpop.f32.mrf.mxu0
      %v10241 = vadd.f32 %v10163, %v10240
      %10242 = vmatmul.bf16.gmra.mxu0 %v10208
      %v10243 = vpop.f32.mrf.mxu0
      %v10244 = vadd.f32 %v10164, %v10243
      %v10245 = vpop.f32.mrf.mxu0
      %v10246 = vadd.f32 %v10165, %v10245
      %10247 = vmatmul.bf16.gmra.mxu0 %v10211
      %v10248 = vpop.f32.mrf.mxu0
      %v10249 = vadd.f32 %v10166, %v10248
      %v10250 = vpop.f32.mrf.mxu0
      %v10251 = vadd.f32 %v10167, %v10250
      %10252 = vmatmul.bf16.gmra.mxu0 %v10214
      %v10253 = vpop.f32.mrf.mxu0
      %v10254 = vadd.f32 %v10168, %v10253
      %v10255 = vpop.f32.mrf.mxu0
      %10256 = vdwg.mxu0
      %v10257 = vmax.f32 %v10229, 0.0
      %v10258 = vmax.f32 %v10231, 0.0
      %v10259 = vmax.f32 %v10234, 0.0
      %v10260 = vmax.f32 %v10236, 0.0
      %v10261 = vmax.f32 %v10239, 0.0
      %v10262 = vmax.f32 %v10241, 0.0
      %v10263 = vmax.f32 %v10244, 0.0
      %v10264 = vmax.f32 %v10246, 0.0
      %v10265 = vmax.f32 %v10249, 0.0
      %v10266 = vmax.f32 %v10251, 0.0
      %v10267 = vmax.f32 %v10254, 0.0
      %v10268 = vld [vmem:[%s9] sm:$0xf]
      %v10269 = vld [vmem:[%s9 + $0x4] sm:$0x1]
      %v10270 = vpack.c.bf16 %v10258, %v10257
      %v10271 = vpack.c.bf16 %v10260, %v10259
      %v10272 = vpack.c.bf16 %v10262, %v10261
      %v10273 = vpack.c.bf16 %v10264, %v10263
      %v10274 = vpack.c.bf16 %v10266, %v10265
      %v10275 = vpack.c.bf16 %v10267, %v10267
      %v10276 = vld [vmem:[%s10] sm:$0xff]
      %v10277 = vld [vmem:[%s10 + $0x8] sm:$0x3]
      %v10280 = vunpack.c.l.b16 %v10268
      %v10281 = vunpack.c.l.b16 %v10269
      %v10282 = vpack.c.b16 %v10281, %v10280
      %vm10283 = vcmask 687104
      %v10285 = vsel %vm10283, %v10282, 0
      %vm10287 = vcmask 1041408
      %v10289 = vsel %vm10287, %v10275, 0
      %10291 = vmatpush.bf16.msra.mxu0 0
      %10292 = vmatpush.bf16.msra.mxu0 0
      %10293 = vmatpush.bf16.msra.mxu0 %v10289
      %10294 = vmatpush.bf16.msra.mxu0 %v10274
      %10295 = vmatpush.bf16.msra.mxu0 %v10273
      %10296 = vmatpush.bf16.msra.mxu0 %v10272
      %10297 = vmatpush.bf16.msra.mxu0 %v10271
      %10298 = vmatpush.bf16.msra.mxu0 %v10270
      %10299 = vmatmul.bf16.gmra.mxu0 %v10285
      %v10300 = vpop.f32.mrf.mxu0
      %v10301 = vadd.f32 %v10276, %v10300
      %v10302 = vpop.f32.mrf.mxu0
      %v10303 = vadd.f32 %v10277, %v10302
      %10304 = vdwg.mxu0
      %vm10305 = vcmask 7168
      %10306 = vst.msk [vmem:[%s386] sm:$0xff] %vm10305, %v10301
      %vm10307 = vcmask 1024
      %10308 = vst.msk [vmem:[%s386 + $0x8] sm:$0x3] %vm10307, %v10303
      %p10309 = scmp.lt.s32.totalorder %s22, 1
      %s10310 = scalar_select %p10309, %s22, 1
      %s10311 = smul.addr %s10310, 2
      %s10312 = smul.addr %s10311, 8
      %s10313 = scalar_lea.vmem %s11, %s10312
      // Predicated region
      $region65: #{alexnet_forward.1} parent=63 // pred_check
        %p10314 = pneg %p276
      $region66: #{alexnet_forward.1} parent=63 // pred_check_branch
        %10316 = sbr.rel (%p10314) target = $region68
      $region67: #{alexnet_forward.1} parent=63 // pred_region
        _
      $region68: #{alexnet_forward.1} parent=63 // pred_fallthru
        _
    $region64: #{alexnet_forward.1} parent=5 // pred_fallthru
      _
    %p10317 = scmp.le.s32.totalorder 2, %s17
    // Predicated region
    $region69: #{alexnet_forward.1} parent=5 // pred_check
      %p10318 = pneg %p10317
    $region70: #{alexnet_forward.1} parent=5 // pred_check_branch
      %10320 = sbr.rel (%p10318) target = $region72
    $region71: #{alexnet_forward.1} parent=5 // pred_region
      %s10321 = ssub.s32 %s17, 2
      // Predicated region
      $region73: #{alexnet_forward.1} parent=71 // pred_check
        %p10322 = pneg %p282
      $region74: #{alexnet_forward.1} parent=71 // pred_check_branch
        %10324 = sbr.rel (%p10322) target = $region76
      $region75: #{alexnet_forward.1} parent=71 // pred_region
        %p10325 = scmp.lt.s32.totalorder %s23, 1
        %s10326 = scalar_select %p10325, %s23, 1
        %s10327 = smul.addr %s10326, 2
        %s10328 = smul.addr %s10327, 8
        %s10329 = scalar_lea.vmem %s11, %s10328
      $region76: #{alexnet_forward.1} parent=71 // pred_fallthru
        _
    $region72: #{alexnet_forward.1} parent=5 // pred_fallthru
      _
  $region6: #{alexnet_forward.1} parent=0 // loop_footer
    %s21 = sadd.s32 1, %s17
  $region7: #{alexnet_forward.1} parent=0 // loop_footer_branch
    %16 = sbr.rel target = $region3
  $region8: #{alexnet_forward.1} parent=0 // loop_exit
    _

</llo_original>
